<compile_context>
chip_gen: v7x
topology: tpu7x:2x2x1
jax: 0.10.0
libtpu: 0.0.40
codegen_flags: <defaults>
</compile_context>

<pallas_src>
import math
import jax
import jax.numpy as jnp
from jax.experimental import pallas as pl
from jax.experimental.pallas import tpu as pltpu

# ---- small, BERT-style config (geneformer-6L scaled down) -------------------
VOCAB = 100
MAX_POS = 16
HIDDEN = 32
N_HEADS = 4
HEAD_DIM = HIDDEN // N_HEADS
INTER = 64
N_LAYERS = 6
LN_EPS = 1e-12


# ----------------------------- in-kernel helpers -----------------------------
def _layernorm(x, g, b):
    mu = jnp.mean(x, axis=-1, keepdims=True)
    var = jnp.mean((x - mu) ** 2, axis=-1, keepdims=True)
    return (x - mu) * jax.lax.rsqrt(var + LN_EPS) * g + b


def _gelu(x):
    # TODO(synk): HF BERT uses exact (erf) GELU; tanh approximation used for safe TPU lowering.
    c = math.sqrt(2.0 / math.pi)
    return 0.5 * x * (1.0 + jnp.tanh(c * (x + 0.044715 * x * x * x)))


# ----------------------------- fused forward kernel ---------------------------
def _geneformer_kernel(emb_ref, embln_ref, wqkv_ref, bqkv_ref, wo_ref,
                       vecs_ref, wi_ref, bi_ref, wo2_ref, out_ref):
    H = emb_ref.shape[2]
    n_layers = wqkv_ref.shape[0]
    scale = 1.0 / math.sqrt(HEAD_DIM)

    # --- embedding LayerNorm on this program's (S, H) slab ---
    embln = embln_ref[...]                                   # (2, H) f32
    x = _layernorm(emb_ref[0], embln[0:1, :], embln[1:2, :])  # (S, H) f32

    # --- 6 encoder layers, weights resident in VMEM, unrolled ---
    for l in range(n_layers):
        w_qkv = wqkv_ref[l]                                  # (H, 3H)  bf16
        b_qkv = bqkv_ref[l]                                  # (1, 3H)  f32
        w_o = wo_ref[l]                                      # (H, H)   bf16
        vecs = vecs_ref[l]                                   # (6, H)   f32
        bo, g1, b1 = vecs[0:1], vecs[1:2], vecs[2:3]
        bo2, g2, b2 = vecs[3:4], vecs[4:5], vecs[5:6]
        w_i = wi_ref[l]                                      # (H, INTER) bf16
        b_i = bi_ref[l]                                      # (1, INTER) f32
        w_o2 = wo2_ref[l]                                    # (INTER, H) bf16

        # ---------- multi-head self-attention ----------
        # One lane-dense QKV matmul for the whole slab.
        qkv = jnp.dot(x.astype(jnp.bfloat16), w_qkv,
                      preferred_element_type=jnp.float32) + b_qkv   # (S, 3H) f32
        q = qkv[:, 0:H]
        k = qkv[:, H:2 * H]
        v = qkv[:, 2 * H:3 * H]
        kt = k.T                                              # (H, S), one transpose / layer

        # TODO(synk): reference geneformer can take an attention_mask; the spec forward
        #             passes none (all-ones), so no masking is applied here.
        ctx_heads = []
        for h in range(N_HEADS):                              # static, NH=4
            lo, hi = h * HEAD_DIM, (h + 1) * HEAD_DIM
            qh = q[:, lo:hi].astype(jnp.bfloat16)             # (S, HD)
            kth = kt[lo:hi, :].astype(jnp.bfloat16)           # (HD, S)
            vh = v[:, lo:hi].astype(jnp.bfloat16)             # (S, HD)
            s = jnp.dot(qh, kth, preferred_element_type=jnp.float32) * scale  # (S, S)
            s = s - jnp.max(s, axis=-1, keepdims=True)
            p = jnp.exp(s)
            p = p * pl.reciprocal(jnp.sum(p, axis=-1, keepdims=True), approx=True)
            ctx_heads.append(jnp.dot(p.astype(jnp.bfloat16), vh,
                                     preferred_element_type=jnp.float32))     # (S, HD)
        # Reassemble heads on the lane axis (NH*HD = H = 32, within one vreg),
        # then a single lane-dense output projection.
        ctx = jnp.concatenate(ctx_heads, axis=-1)             # (S, H)
        attn = jnp.dot(ctx.astype(jnp.bfloat16), w_o,
                       preferred_element_type=jnp.float32) + bo

        h1 = _layernorm(x + attn, g1, b1)

        # ---------------------------- feed-forward ----------------------------
        inter = _gelu(jnp.dot(h1.astype(jnp.bfloat16), w_i,
                              preferred_element_type=jnp.float32) + b_i)
        ffn = jnp.dot(inter.astype(jnp.bfloat16), w_o2,
                      preferred_element_type=jnp.float32) + bo2
        x = _layernorm(h1 + ffn, g2, b2)

    # --- mean over the sequence dim (torch.mean(hidden_states, dim=1)) ---
    out_ref[0] = jnp.mean(x, axis=0, keepdims=True)           # (1, H)


# ----------------------------- parameters (synthetic, deterministic) ----------
def init_params(key):
    def normal(k, shape):
        return 0.02 * jax.random.normal(k, shape, jnp.float32)

    keys = jax.random.split(key, 3 + N_LAYERS)
    params = {
        "word_emb": normal(keys[0], (VOCAB, HIDDEN)),
        "pos_emb": normal(keys[1], (MAX_POS, HIDDEN)),
        "type_emb": normal(keys[2], (2, HIDDEN)),
        "emb_ln_g": jnp.ones((1, HIDDEN), jnp.float32),
        "emb_ln_b": jnp.zeros((1, HIDDEN), jnp.float32),
        "layers": [],
    }
    for l in range(N_LAYERS):
        lk = jax.random.split(keys[3 + l], 6)
        params["layers"].append({
            "wq": normal(lk[0], (HIDDEN, HIDDEN)), "bq": jnp.zeros((1, HIDDEN), jnp.float32),
            "wk": normal(lk[1], (HIDDEN, HIDDEN)), "bk": jnp.zeros((1, HIDDEN), jnp.float32),
            "wv": normal(lk[2], (HIDDEN, HIDDEN)), "bv": jnp.zeros((1, HIDDEN), jnp.float32),
            "wo": normal(lk[3], (HIDDEN, HIDDEN)), "bo": jnp.zeros((1, HIDDEN), jnp.float32),
            "ln1_g": jnp.ones((1, HIDDEN), jnp.float32), "ln1_b": jnp.zeros((1, HIDDEN), jnp.float32),
            "wi": normal(lk[4], (HIDDEN, INTER)), "bi": jnp.zeros((1, INTER), jnp.float32),
            "wo2": normal(lk[5], (INTER, HIDDEN)), "bo2": jnp.zeros((1, HIDDEN), jnp.float32),
            "ln2_g": jnp.ones((1, HIDDEN), jnp.float32), "ln2_b": jnp.zeros((1, HIDDEN), jnp.float32),
        })
    return params


def pack_params(params):
    """Stack / pack per-layer weights into a handful of [N_LAYERS, ...] arrays.

    Matmul weights are stored in bf16 (MXU-native); biases / LayerNorm params stay f32.
    Nothing is pre-broadcast over S, so the packed params work for any sequence length.
    """
    bf16 = jnp.bfloat16
    w_qkv, b_qkv, w_o, vecs, w_i, b_i, w_o2 = [], [], [], [], [], [], []
    for lp in params["layers"]:
        w_qkv.append(jnp.concatenate([lp["wq"], lp["wk"], lp["wv"]], axis=1).astype(bf16))  # (H, 3H)
        b_qkv.append(jnp.concatenate([lp["bq"], lp["bk"], lp["bv"]], axis=1))               # (1, 3H)
        w_o.append(lp["wo"].astype(bf16))                                                    # (H, H)
        vecs.append(jnp.concatenate([lp["bo"], lp["ln1_g"], lp["ln1_b"],
                                     lp["bo2"], lp["ln2_g"], lp["ln2_b"]], axis=0))          # (6, H)
        w_i.append(lp["wi"].astype(bf16))
        b_i.append(lp["bi"])
        w_o2.append(lp["wo2"].astype(bf16))
    return {
        "emb_ln": jnp.concatenate([params["emb_ln_g"], params["emb_ln_b"]], axis=0),  # (2, H)
        "w_qkv": jnp.stack(w_qkv),   # (L, H, 3H)   bf16
        "b_qkv": jnp.stack(b_qkv),   # (L, 1, 3H)   f32
        "w_o": jnp.stack(w_o),       # (L, H, H)    bf16
        "vecs": jnp.stack(vecs),     # (L, 6, H)    f32
        "w_i": jnp.stack(w_i),       # (L, H, INTER) bf16
        "b_i": jnp.stack(b_i),       # (L, 1, INTER) f32
        "w_o2": jnp.stack(w_o2),     # (L, INTER, H) bf16
    }


# ----------------------------- full forward -----------------------------------
def geneformer_forward(params, packed, seq_ids):
    """seq -> BERT(6 layers) -> hidden_states[6] -> mean over sequence dim -> [B, H]."""
    B, S = seq_ids.shape
    # embedding lookups (glue, plain JAX): word + position + token_type(=0)
    emb = (jnp.take(params["word_emb"], seq_ids, axis=0)
           + params["pos_emb"][None, :S, :]
           + params["type_emb"][0][None, None, :])            # (B, S, H) f32

    vmem = pltpu.MemorySpace.VMEM
    wspec = pl.BlockSpec(memory_space=vmem)                   # whole array, DMA'd once
    out = pl.pallas_call(
        _geneformer_kernel,
        out_shape=jax.ShapeDtypeStruct((B, 1, HIDDEN), jnp.float32),
        grid=(B,),
        in_specs=[pl.BlockSpec((1, S, HIDDEN), lambda b: (b, 0, 0)),
                  wspec, wspec, wspec, wspec, wspec, wspec, wspec, wspec],
        out_specs=pl.BlockSpec((1, 1, HIDDEN), lambda b: (b, 0, 0)),
        compiler_params=pltpu.CompilerParams(dimension_semantics=("parallel",)),
    )(emb, packed["emb_ln"], packed["w_qkv"], packed["b_qkv"], packed["w_o"],
      packed["vecs"], packed["w_i"], packed["b_i"], packed["w_o2"])
    return out[:, 0, :]                                       # (B, H)


if __name__ == "__main__":
    key = jax.random.PRNGKey(0)
    pkey, dkey = jax.random.split(key)
    params = init_params(pkey)
    packed = pack_params(params)

    B, S = 2, 8
    seq = jax.random.randint(dkey, (B, S), 0, VOCAB, dtype=jnp.int32)

    out = jax.jit(geneformer_forward)(params, packed, seq)
    out = jax.block_until_ready(out)
    assert out.shape == (B, HIDDEN) and out.dtype == jnp.float32
    print("KERNEL_OK")
</pallas_src>

<mosaic_0001>
module attributes {stable_mosaic.version = 11 : i64} {
  func.func @_geneformer_kernel(%arg0: i32, %arg1: memref<1x8x32xf32, #tpu.memory_space<vmem>>, %arg2: memref<2x32xf32, #tpu.memory_space<vmem>>, %arg3: memref<6x32x96xbf16, #tpu.memory_space<vmem>>, %arg4: memref<6x1x96xf32, #tpu.memory_space<vmem>>, %arg5: memref<6x32x32xbf16, #tpu.memory_space<vmem>>, %arg6: memref<6x6x32xf32, #tpu.memory_space<vmem>>, %arg7: memref<6x32x64xbf16, #tpu.memory_space<vmem>>, %arg8: memref<6x1x64xf32, #tpu.memory_space<vmem>>, %arg9: memref<6x64x32xbf16, #tpu.memory_space<vmem>>, %arg10: memref<1x1x32xf32, #tpu.memory_space<vmem>>) attributes {dimension_semantics = [#tpu.dimension_semantics<parallel>], iteration_bounds = array<i64: 2>, scalar_prefetch = 0 : i64, scratch_operands = 0 : i64, tpu.core_type = #tpu.core_type<tc>, window_params = [{transform_indices = @transform_0, window_bounds = array<i64: 1, 8, 32>}, {pipeline_mode = #tpu.pipeline_mode<synchronous>, transform_indices = @transform_1, window_bounds = array<i64: 2, 32>}, {pipeline_mode = #tpu.pipeline_mode<synchronous>, transform_indices = @transform_2, window_bounds = array<i64: 6, 32, 96>}, {pipeline_mode = #tpu.pipeline_mode<synchronous>, transform_indices = @transform_3, window_bounds = array<i64: 6, 1, 96>}, {pipeline_mode = #tpu.pipeline_mode<synchronous>, transform_indices = @transform_4, window_bounds = array<i64: 6, 32, 32>}, {pipeline_mode = #tpu.pipeline_mode<synchronous>, transform_indices = @transform_5, window_bounds = array<i64: 6, 6, 32>}, {pipeline_mode = #tpu.pipeline_mode<synchronous>, transform_indices = @transform_6, window_bounds = array<i64: 6, 32, 64>}, {pipeline_mode = #tpu.pipeline_mode<synchronous>, transform_indices = @transform_7, window_bounds = array<i64: 6, 1, 64>}, {pipeline_mode = #tpu.pipeline_mode<synchronous>, transform_indices = @transform_8, window_bounds = array<i64: 6, 64, 32>}, {transform_indices = @transform_9, window_bounds = array<i64: 1, 1, 32>}]} {
    %c0 = arith.constant 0 : index
    %c0_0 = arith.constant 0 : index
    %0 = vector.load %arg2[%c0, %c0_0] : memref<2x32xf32, #tpu.memory_space<vmem>>, vector<2x32xf32>
    %c0_1 = arith.constant 0 : index
    %c0_2 = arith.constant 0 : index
    %c0_3 = arith.constant 0 : index
    %1 = vector.load %arg1[%c0_1, %c0_2, %c0_3] : memref<1x8x32xf32, #tpu.memory_space<vmem>>, vector<1x8x32xf32>
    %2 = vector.shape_cast %1 : vector<1x8x32xf32> to vector<8x32xf32>
    %3 = vector.extract_strided_slice %0 {offsets = [0, 0], sizes = [1, 32], strides = [1, 1]} : vector<2x32xf32> to vector<1x32xf32>
    %4 = vector.extract_strided_slice %0 {offsets = [1, 0], sizes = [1, 32], strides = [1, 1]} : vector<2x32xf32> to vector<1x32xf32>
    %cst = arith.constant dense<0.000000e+00> : vector<8xf32>
    %5 = vector.multi_reduction <add>, %2, %cst [1] : vector<8x32xf32> to vector<8xf32>
    %6 = vector.shape_cast %5 : vector<8xf32> to vector<8x1xf32>
    %cst_4 = arith.constant 3.200000e+01 : f32
    %7 = vector.broadcast %cst_4 : f32 to vector<8x1xf32>
    %8 = arith.divf %6, %7 : vector<8x1xf32>
    %9 = vector.broadcast %8 : vector<8x1xf32> to vector<8x32xf32>
    %10 = arith.subf %2, %9 : vector<8x32xf32>
    %11 = arith.mulf %10, %10 : vector<8x32xf32>
    %cst_5 = arith.constant dense<0.000000e+00> : vector<8xf32>
    %12 = vector.multi_reduction <add>, %11, %cst_5 [1] : vector<8x32xf32> to vector<8xf32>
    %13 = vector.shape_cast %12 : vector<8xf32> to vector<8x1xf32>
    %cst_6 = arith.constant 3.200000e+01 : f32
    %14 = vector.broadcast %cst_6 : f32 to vector<8x1xf32>
    %15 = arith.divf %13, %14 : vector<8x1xf32>
    %16 = vector.broadcast %8 : vector<8x1xf32> to vector<8x32xf32>
    %17 = arith.subf %2, %16 : vector<8x32xf32>
    %cst_7 = arith.constant 9.99999996E-13 : f32
    %18 = vector.broadcast %cst_7 : f32 to vector<8x1xf32>
    %19 = arith.addf %15, %18 : vector<8x1xf32>
    %20 = math.rsqrt %19 : vector<8x1xf32>
    %21 = vector.broadcast %20 : vector<8x1xf32> to vector<8x32xf32>
    %22 = arith.mulf %17, %21 : vector<8x32xf32>
    %23 = vector.broadcast %3 : vector<1x32xf32> to vector<8x32xf32>
    %24 = arith.mulf %22, %23 : vector<8x32xf32>
    %25 = vector.broadcast %4 : vector<1x32xf32> to vector<8x32xf32>
    %26 = arith.addf %24, %25 : vector<8x32xf32>
    %c0_8 = arith.constant 0 : index
    %c0_9 = arith.constant 0 : index
    %c0_10 = arith.constant 0 : index
    %27 = vector.load %arg3[%c0_8, %c0_9, %c0_10] : memref<6x32x96xbf16, #tpu.memory_space<vmem>>, vector<1x32x96xbf16>
    %28 = vector.shape_cast %27 : vector<1x32x96xbf16> to vector<32x96xbf16>
    %c0_11 = arith.constant 0 : index
    %c0_12 = arith.constant 0 : index
    %c0_13 = arith.constant 0 : index
    %29 = vector.load %arg4[%c0_11, %c0_12, %c0_13] : memref<6x1x96xf32, #tpu.memory_space<vmem>>, vector<1x1x96xf32>
    %30 = vector.shape_cast %29 : vector<1x1x96xf32> to vector<1x96xf32>
    %c0_14 = arith.constant 0 : index
    %c0_15 = arith.constant 0 : index
    %c0_16 = arith.constant 0 : index
    %31 = vector.load %arg5[%c0_14, %c0_15, %c0_16] : memref<6x32x32xbf16, #tpu.memory_space<vmem>>, vector<1x32x32xbf16>
    %32 = vector.shape_cast %31 : vector<1x32x32xbf16> to vector<32x32xbf16>
    %c0_17 = arith.constant 0 : index
    %c0_18 = arith.constant 0 : index
    %c0_19 = arith.constant 0 : index
    %33 = vector.load %arg6[%c0_17, %c0_18, %c0_19] : memref<6x6x32xf32, #tpu.memory_space<vmem>>, vector<1x6x32xf32>
    %34 = vector.shape_cast %33 : vector<1x6x32xf32> to vector<6x32xf32>
    %35 = vector.extract_strided_slice %34 {offsets = [0, 0], sizes = [1, 32], strides = [1, 1]} : vector<6x32xf32> to vector<1x32xf32>
    %36 = vector.extract_strided_slice %34 {offsets = [1, 0], sizes = [1, 32], strides = [1, 1]} : vector<6x32xf32> to vector<1x32xf32>
    %37 = vector.extract_strided_slice %34 {offsets = [2, 0], sizes = [1, 32], strides = [1, 1]} : vector<6x32xf32> to vector<1x32xf32>
    %38 = vector.extract_strided_slice %34 {offsets = [3, 0], sizes = [1, 32], strides = [1, 1]} : vector<6x32xf32> to vector<1x32xf32>
    %39 = vector.extract_strided_slice %34 {offsets = [4, 0], sizes = [1, 32], strides = [1, 1]} : vector<6x32xf32> to vector<1x32xf32>
    %40 = vector.extract_strided_slice %34 {offsets = [5, 0], sizes = [1, 32], strides = [1, 1]} : vector<6x32xf32> to vector<1x32xf32>
    %c0_20 = arith.constant 0 : index
    %c0_21 = arith.constant 0 : index
    %c0_22 = arith.constant 0 : index
    %41 = vector.load %arg7[%c0_20, %c0_21, %c0_22] : memref<6x32x64xbf16, #tpu.memory_space<vmem>>, vector<1x32x64xbf16>
    %42 = vector.shape_cast %41 : vector<1x32x64xbf16> to vector<32x64xbf16>
    %c0_23 = arith.constant 0 : index
    %c0_24 = arith.constant 0 : index
    %c0_25 = arith.constant 0 : index
    %43 = vector.load %arg8[%c0_23, %c0_24, %c0_25] : memref<6x1x64xf32, #tpu.memory_space<vmem>>, vector<1x1x64xf32>
    %44 = vector.shape_cast %43 : vector<1x1x64xf32> to vector<1x64xf32>
    %c0_26 = arith.constant 0 : index
    %c0_27 = arith.constant 0 : index
    %c0_28 = arith.constant 0 : index
    %45 = vector.load %arg9[%c0_26, %c0_27, %c0_28] : memref<6x64x32xbf16, #tpu.memory_space<vmem>>, vector<1x64x32xbf16>
    %46 = vector.shape_cast %45 : vector<1x64x32xbf16> to vector<64x32xbf16>
    %47 = arith.truncf %26 : vector<8x32xf32> to vector<8x32xbf16>
    %cst_29 = arith.constant dense<0.000000e+00> : vector<8x96xf32>
    %48 = tpu.matmul %47, %28, %cst_29 {dimension_numbers = #tpu.dot_dimension_numbers<[1], [0], [0], [1], [0, 0, 1, 1], [], []>} : vector<8x32xbf16>, vector<32x96xbf16>, vector<8x96xf32> -> vector<8x96xf32>
    %49 = vector.broadcast %30 : vector<1x96xf32> to vector<8x96xf32>
    %50 = arith.addf %48, %49 : vector<8x96xf32>
    %51 = vector.extract_strided_slice %50 {offsets = [0, 0], sizes = [8, 32], strides = [1, 1]} : vector<8x96xf32> to vector<8x32xf32>
    %52 = vector.extract_strided_slice %50 {offsets = [0, 32], sizes = [8, 32], strides = [1, 1]} : vector<8x96xf32> to vector<8x32xf32>
    %53 = vector.extract_strided_slice %50 {offsets = [0, 64], sizes = [8, 32], strides = [1, 1]} : vector<8x96xf32> to vector<8x32xf32>
    %54 = tpu.transpose %52, [1, 0] : vector<8x32xf32> -> vector<32x8xf32>
    %55 = vector.extract_strided_slice %51 {offsets = [0, 0], sizes = [8, 8], strides = [1, 1]} : vector<8x32xf32> to vector<8x8xf32>
    %56 = arith.truncf %55 : vector<8x8xf32> to vector<8x8xbf16>
    %57 = vector.extract_strided_slice %54 {offsets = [0, 0], sizes = [8, 8], strides = [1, 1]} : vector<32x8xf32> to vector<8x8xf32>
    %58 = arith.truncf %57 : vector<8x8xf32> to vector<8x8xbf16>
    %59 = vector.extract_strided_slice %53 {offsets = [0, 0], sizes = [8, 8], strides = [1, 1]} : vector<8x32xf32> to vector<8x8xf32>
    %60 = arith.truncf %59 : vector<8x8xf32> to vector<8x8xbf16>
    %cst_30 = arith.constant dense<0.000000e+00> : vector<8x8xf32>
    %61 = tpu.matmul %56, %58, %cst_30 {dimension_numbers = #tpu.dot_dimension_numbers<[1], [0], [0], [1], [0, 0, 1, 1], [], []>} : vector<8x8xbf16>, vector<8x8xbf16>, vector<8x8xf32> -> vector<8x8xf32>
    %cst_31 = arith.constant 0.353553385 : f32
    %62 = vector.broadcast %cst_31 : f32 to vector<8x8xf32>
    %63 = arith.mulf %61, %62 : vector<8x8xf32>
    %cst_32 = arith.constant dense<0xFF800000> : vector<8xf32>
    %64 = vector.multi_reduction <maximumf>, %63, %cst_32 [1] : vector<8x8xf32> to vector<8xf32>
    %65 = vector.shape_cast %64 : vector<8xf32> to vector<8x1xf32>
    %66 = vector.broadcast %65 : vector<8x1xf32> to vector<8x8xf32>
    %67 = arith.subf %63, %66 : vector<8x8xf32>
    %68 = math.exp %67 : vector<8x8xf32>
    %cst_33 = arith.constant dense<0.000000e+00> : vector<8xf32>
    %69 = vector.multi_reduction <add>, %68, %cst_33 [1] : vector<8x8xf32> to vector<8xf32>
    %70 = vector.shape_cast %69 : vector<8xf32> to vector<8x1xf32>
    %71 = tpu.reciprocal %70 {approx = true} : vector<8x1xf32> -> vector<8x1xf32>
    %72 = vector.broadcast %71 : vector<8x1xf32> to vector<8x8xf32>
    %73 = arith.mulf %68, %72 : vector<8x8xf32>
    %74 = arith.truncf %73 : vector<8x8xf32> to vector<8x8xbf16>
    %cst_34 = arith.constant dense<0.000000e+00> : vector<8x8xf32>
    %75 = tpu.matmul %74, %60, %cst_34 {dimension_numbers = #tpu.dot_dimension_numbers<[1], [0], [0], [1], [0, 0, 1, 1], [], []>} : vector<8x8xbf16>, vector<8x8xbf16>, vector<8x8xf32> -> vector<8x8xf32>
    %76 = vector.extract_strided_slice %51 {offsets = [0, 8], sizes = [8, 8], strides = [1, 1]} : vector<8x32xf32> to vector<8x8xf32>
    %77 = arith.truncf %76 : vector<8x8xf32> to vector<8x8xbf16>
    %78 = vector.extract_strided_slice %54 {offsets = [8, 0], sizes = [8, 8], strides = [1, 1]} : vector<32x8xf32> to vector<8x8xf32>
    %79 = arith.truncf %78 : vector<8x8xf32> to vector<8x8xbf16>
    %80 = vector.extract_strided_slice %53 {offsets = [0, 8], sizes = [8, 8], strides = [1, 1]} : vector<8x32xf32> to vector<8x8xf32>
    %81 = arith.truncf %80 : vector<8x8xf32> to vector<8x8xbf16>
    %cst_35 = arith.constant dense<0.000000e+00> : vector<8x8xf32>
    %82 = tpu.matmul %77, %79, %cst_35 {dimension_numbers = #tpu.dot_dimension_numbers<[1], [0], [0], [1], [0, 0, 1, 1], [], []>} : vector<8x8xbf16>, vector<8x8xbf16>, vector<8x8xf32> -> vector<8x8xf32>
    %cst_36 = arith.constant 0.353553385 : f32
    %83 = vector.broadcast %cst_36 : f32 to vector<8x8xf32>
    %84 = arith.mulf %82, %83 : vector<8x8xf32>
    %cst_37 = arith.constant dense<0xFF800000> : vector<8xf32>
    %85 = vector.multi_reduction <maximumf>, %84, %cst_37 [1] : vector<8x8xf32> to vector<8xf32>
    %86 = vector.shape_cast %85 : vector<8xf32> to vector<8x1xf32>
    %87 = vector.broadcast %86 : vector<8x1xf32> to vector<8x8xf32>
    %88 = arith.subf %84, %87 : vector<8x8xf32>
    %89 = math.exp %88 : vector<8x8xf32>
    %cst_38 = arith.constant dense<0.000000e+00> : vector<8xf32>
    %90 = vector.multi_reduction <add>, %89, %cst_38 [1] : vector<8x8xf32> to vector<8xf32>
    %91 = vector.shape_cast %90 : vector<8xf32> to vector<8x1xf32>
    %92 = tpu.reciprocal %91 {approx = true} : vector<8x1xf32> -> vector<8x1xf32>
    %93 = vector.broadcast %92 : vector<8x1xf32> to vector<8x8xf32>
    %94 = arith.mulf %89, %93 : vector<8x8xf32>
    %95 = arith.truncf %94 : vector<8x8xf32> to vector<8x8xbf16>
    %cst_39 = arith.constant dense<0.000000e+00> : vector<8x8xf32>
    %96 = tpu.matmul %95, %81, %cst_39 {dimension_numbers = #tpu.dot_dimension_numbers<[1], [0], [0], [1], [0, 0, 1, 1], [], []>} : vector<8x8xbf16>, vector<8x8xbf16>, vector<8x8xf32> -> vector<8x8xf32>
    %97 = vector.extract_strided_slice %51 {offsets = [0, 16], sizes = [8, 8], strides = [1, 1]} : vector<8x32xf32> to vector<8x8xf32>
    %98 = arith.truncf %97 : vector<8x8xf32> to vector<8x8xbf16>
    %99 = vector.extract_strided_slice %54 {offsets = [16, 0], sizes = [8, 8], strides = [1, 1]} : vector<32x8xf32> to vector<8x8xf32>
    %100 = arith.truncf %99 : vector<8x8xf32> to vector<8x8xbf16>
    %101 = vector.extract_strided_slice %53 {offsets = [0, 16], sizes = [8, 8], strides = [1, 1]} : vector<8x32xf32> to vector<8x8xf32>
    %102 = arith.truncf %101 : vector<8x8xf32> to vector<8x8xbf16>
    %cst_40 = arith.constant dense<0.000000e+00> : vector<8x8xf32>
    %103 = tpu.matmul %98, %100, %cst_40 {dimension_numbers = #tpu.dot_dimension_numbers<[1], [0], [0], [1], [0, 0, 1, 1], [], []>} : vector<8x8xbf16>, vector<8x8xbf16>, vector<8x8xf32> -> vector<8x8xf32>
    %cst_41 = arith.constant 0.353553385 : f32
    %104 = vector.broadcast %cst_41 : f32 to vector<8x8xf32>
    %105 = arith.mulf %103, %104 : vector<8x8xf32>
    %cst_42 = arith.constant dense<0xFF800000> : vector<8xf32>
    %106 = vector.multi_reduction <maximumf>, %105, %cst_42 [1] : vector<8x8xf32> to vector<8xf32>
    %107 = vector.shape_cast %106 : vector<8xf32> to vector<8x1xf32>
    %108 = vector.broadcast %107 : vector<8x1xf32> to vector<8x8xf32>
    %109 = arith.subf %105, %108 : vector<8x8xf32>
    %110 = math.exp %109 : vector<8x8xf32>
    %cst_43 = arith.constant dense<0.000000e+00> : vector<8xf32>
    %111 = vector.multi_reduction <add>, %110, %cst_43 [1] : vector<8x8xf32> to vector<8xf32>
    %112 = vector.shape_cast %111 : vector<8xf32> to vector<8x1xf32>
    %113 = tpu.reciprocal %112 {approx = true} : vector<8x1xf32> -> vector<8x1xf32>
    %114 = vector.broadcast %113 : vector<8x1xf32> to vector<8x8xf32>
    %115 = arith.mulf %110, %114 : vector<8x8xf32>
    %116 = arith.truncf %115 : vector<8x8xf32> to vector<8x8xbf16>
    %cst_44 = arith.constant dense<0.000000e+00> : vector<8x8xf32>
    %117 = tpu.matmul %116, %102, %cst_44 {dimension_numbers = #tpu.dot_dimension_numbers<[1], [0], [0], [1], [0, 0, 1, 1], [], []>} : vector<8x8xbf16>, vector<8x8xbf16>, vector<8x8xf32> -> vector<8x8xf32>
    %118 = vector.extract_strided_slice %51 {offsets = [0, 24], sizes = [8, 8], strides = [1, 1]} : vector<8x32xf32> to vector<8x8xf32>
    %119 = arith.truncf %118 : vector<8x8xf32> to vector<8x8xbf16>
    %120 = vector.extract_strided_slice %54 {offsets = [24, 0], sizes = [8, 8], strides = [1, 1]} : vector<32x8xf32> to vector<8x8xf32>
    %121 = arith.truncf %120 : vector<8x8xf32> to vector<8x8xbf16>
    %122 = vector.extract_strided_slice %53 {offsets = [0, 24], sizes = [8, 8], strides = [1, 1]} : vector<8x32xf32> to vector<8x8xf32>
    %123 = arith.truncf %122 : vector<8x8xf32> to vector<8x8xbf16>
    %cst_45 = arith.constant dense<0.000000e+00> : vector<8x8xf32>
    %124 = tpu.matmul %119, %121, %cst_45 {dimension_numbers = #tpu.dot_dimension_numbers<[1], [0], [0], [1], [0, 0, 1, 1], [], []>} : vector<8x8xbf16>, vector<8x8xbf16>, vector<8x8xf32> -> vector<8x8xf32>
    %cst_46 = arith.constant 0.353553385 : f32
    %125 = vector.broadcast %cst_46 : f32 to vector<8x8xf32>
    %126 = arith.mulf %124, %125 : vector<8x8xf32>
    %cst_47 = arith.constant dense<0xFF800000> : vector<8xf32>
    %127 = vector.multi_reduction <maximumf>, %126, %cst_47 [1] : vector<8x8xf32> to vector<8xf32>
    %128 = vector.shape_cast %127 : vector<8xf32> to vector<8x1xf32>
    %129 = vector.broadcast %128 : vector<8x1xf32> to vector<8x8xf32>
    %130 = arith.subf %126, %129 : vector<8x8xf32>
    %131 = math.exp %130 : vector<8x8xf32>
    %cst_48 = arith.constant dense<0.000000e+00> : vector<8xf32>
    %132 = vector.multi_reduction <add>, %131, %cst_48 [1] : vector<8x8xf32> to vector<8xf32>
    %133 = vector.shape_cast %132 : vector<8xf32> to vector<8x1xf32>
    %134 = tpu.reciprocal %133 {approx = true} : vector<8x1xf32> -> vector<8x1xf32>
    %135 = vector.broadcast %134 : vector<8x1xf32> to vector<8x8xf32>
    %136 = arith.mulf %131, %135 : vector<8x8xf32>
    %137 = arith.truncf %136 : vector<8x8xf32> to vector<8x8xbf16>
    %cst_49 = arith.constant dense<0.000000e+00> : vector<8x8xf32>
    %138 = tpu.matmul %137, %123, %cst_49 {dimension_numbers = #tpu.dot_dimension_numbers<[1], [0], [0], [1], [0, 0, 1, 1], [], []>} : vector<8x8xbf16>, vector<8x8xbf16>, vector<8x8xf32> -> vector<8x8xf32>
    %139 = tpu.concatenate %75, %96, %117, %138 in 1 : vector<8x8xf32>, vector<8x8xf32>, vector<8x8xf32>, vector<8x8xf32> -> vector<8x32xf32>
    %140 = arith.truncf %139 : vector<8x32xf32> to vector<8x32xbf16>
    %cst_50 = arith.constant dense<0.000000e+00> : vector<8x32xf32>
    %141 = tpu.matmul %140, %32, %cst_50 {dimension_numbers = #tpu.dot_dimension_numbers<[1], [0], [0], [1], [0, 0, 1, 1], [], []>} : vector<8x32xbf16>, vector<32x32xbf16>, vector<8x32xf32> -> vector<8x32xf32>
    %142 = vector.broadcast %35 : vector<1x32xf32> to vector<8x32xf32>
    %143 = arith.addf %141, %142 : vector<8x32xf32>
    %144 = arith.addf %26, %143 : vector<8x32xf32>
    %cst_51 = arith.constant dense<0.000000e+00> : vector<8xf32>
    %145 = vector.multi_reduction <add>, %144, %cst_51 [1] : vector<8x32xf32> to vector<8xf32>
    %146 = vector.shape_cast %145 : vector<8xf32> to vector<8x1xf32>
    %cst_52 = arith.constant 3.200000e+01 : f32
    %147 = vector.broadcast %cst_52 : f32 to vector<8x1xf32>
    %148 = arith.divf %146, %147 : vector<8x1xf32>
    %149 = vector.broadcast %148 : vector<8x1xf32> to vector<8x32xf32>
    %150 = arith.subf %144, %149 : vector<8x32xf32>
    %151 = arith.mulf %150, %150 : vector<8x32xf32>
    %cst_53 = arith.constant dense<0.000000e+00> : vector<8xf32>
    %152 = vector.multi_reduction <add>, %151, %cst_53 [1] : vector<8x32xf32> to vector<8xf32>
    %153 = vector.shape_cast %152 : vector<8xf32> to vector<8x1xf32>
    %cst_54 = arith.constant 3.200000e+01 : f32
    %154 = vector.broadcast %cst_54 : f32 to vector<8x1xf32>
    %155 = arith.divf %153, %154 : vector<8x1xf32>
    %156 = vector.broadcast %148 : vector<8x1xf32> to vector<8x32xf32>
    %157 = arith.subf %144, %156 : vector<8x32xf32>
    %cst_55 = arith.constant 9.99999996E-13 : f32
    %158 = vector.broadcast %cst_55 : f32 to vector<8x1xf32>
    %159 = arith.addf %155, %158 : vector<8x1xf32>
    %160 = math.rsqrt %159 : vector<8x1xf32>
    %161 = vector.broadcast %160 : vector<8x1xf32> to vector<8x32xf32>
    %162 = arith.mulf %157, %161 : vector<8x32xf32>
    %163 = vector.broadcast %36 : vector<1x32xf32> to vector<8x32xf32>
    %164 = arith.mulf %162, %163 : vector<8x32xf32>
    %165 = vector.broadcast %37 : vector<1x32xf32> to vector<8x32xf32>
    %166 = arith.addf %164, %165 : vector<8x32xf32>
    %167 = arith.truncf %166 : vector<8x32xf32> to vector<8x32xbf16>
    %cst_56 = arith.constant dense<0.000000e+00> : vector<8x64xf32>
    %168 = tpu.matmul %167, %42, %cst_56 {dimension_numbers = #tpu.dot_dimension_numbers<[1], [0], [0], [1], [0, 0, 1, 1], [], []>} : vector<8x32xbf16>, vector<32x64xbf16>, vector<8x64xf32> -> vector<8x64xf32>
    %169 = vector.broadcast %44 : vector<1x64xf32> to vector<8x64xf32>
    %170 = arith.addf %168, %169 : vector<8x64xf32>
    %cst_57 = arith.constant 5.000000e-01 : f32
    %171 = vector.broadcast %cst_57 : f32 to vector<8x64xf32>
    %172 = arith.mulf %171, %170 : vector<8x64xf32>
    %cst_58 = arith.constant 4.471500e-02 : f32
    %173 = vector.broadcast %cst_58 : f32 to vector<8x64xf32>
    %174 = arith.mulf %173, %170 : vector<8x64xf32>
    %175 = arith.mulf %174, %170 : vector<8x64xf32>
    %176 = arith.mulf %175, %170 : vector<8x64xf32>
    %177 = arith.addf %170, %176 : vector<8x64xf32>
    %cst_59 = arith.constant 0.797884583 : f32
    %178 = vector.broadcast %cst_59 : f32 to vector<8x64xf32>
    %179 = arith.mulf %178, %177 : vector<8x64xf32>
    %180 = math.tanh %179 : vector<8x64xf32>
    %cst_60 = arith.constant 1.000000e+00 : f32
    %181 = vector.broadcast %cst_60 : f32 to vector<8x64xf32>
    %182 = arith.addf %181, %180 : vector<8x64xf32>
    %183 = arith.mulf %172, %182 : vector<8x64xf32>
    %184 = arith.truncf %183 : vector<8x64xf32> to vector<8x64xbf16>
    %cst_61 = arith.constant dense<0.000000e+00> : vector<8x32xf32>
    %185 = tpu.matmul %184, %46, %cst_61 {dimension_numbers = #tpu.dot_dimension_numbers<[1], [0], [0], [1], [0, 0, 1, 1], [], []>} : vector<8x64xbf16>, vector<64x32xbf16>, vector<8x32xf32> -> vector<8x32xf32>
    %186 = vector.broadcast %38 : vector<1x32xf32> to vector<8x32xf32>
    %187 = arith.addf %185, %186 : vector<8x32xf32>
    %188 = arith.addf %166, %187 : vector<8x32xf32>
    %cst_62 = arith.constant dense<0.000000e+00> : vector<8xf32>
    %189 = vector.multi_reduction <add>, %188, %cst_62 [1] : vector<8x32xf32> to vector<8xf32>
    %190 = vector.shape_cast %189 : vector<8xf32> to vector<8x1xf32>
    %cst_63 = arith.constant 3.200000e+01 : f32
    %191 = vector.broadcast %cst_63 : f32 to vector<8x1xf32>
    %192 = arith.divf %190, %191 : vector<8x1xf32>
    %193 = vector.broadcast %192 : vector<8x1xf32> to vector<8x32xf32>
    %194 = arith.subf %188, %193 : vector<8x32xf32>
    %195 = arith.mulf %194, %194 : vector<8x32xf32>
    %cst_64 = arith.constant dense<0.000000e+00> : vector<8xf32>
    %196 = vector.multi_reduction <add>, %195, %cst_64 [1] : vector<8x32xf32> to vector<8xf32>
    %197 = vector.shape_cast %196 : vector<8xf32> to vector<8x1xf32>
    %cst_65 = arith.constant 3.200000e+01 : f32
    %198 = vector.broadcast %cst_65 : f32 to vector<8x1xf32>
    %199 = arith.divf %197, %198 : vector<8x1xf32>
    %200 = vector.broadcast %192 : vector<8x1xf32> to vector<8x32xf32>
    %201 = arith.subf %188, %200 : vector<8x32xf32>
    %cst_66 = arith.constant 9.99999996E-13 : f32
    %202 = vector.broadcast %cst_66 : f32 to vector<8x1xf32>
    %203 = arith.addf %199, %202 : vector<8x1xf32>
    %204 = math.rsqrt %203 : vector<8x1xf32>
    %205 = vector.broadcast %204 : vector<8x1xf32> to vector<8x32xf32>
    %206 = arith.mulf %201, %205 : vector<8x32xf32>
    %207 = vector.broadcast %39 : vector<1x32xf32> to vector<8x32xf32>
    %208 = arith.mulf %206, %207 : vector<8x32xf32>
    %209 = vector.broadcast %40 : vector<1x32xf32> to vector<8x32xf32>
    %210 = arith.addf %208, %209 : vector<8x32xf32>
    %c1 = arith.constant 1 : index
    %c0_67 = arith.constant 0 : index
    %c0_68 = arith.constant 0 : index
    %211 = vector.load %arg3[%c1, %c0_67, %c0_68] : memref<6x32x96xbf16, #tpu.memory_space<vmem>>, vector<1x32x96xbf16>
    %212 = vector.shape_cast %211 : vector<1x32x96xbf16> to vector<32x96xbf16>
    %c1_69 = arith.constant 1 : index
    %c0_70 = arith.constant 0 : index
    %c0_71 = arith.constant 0 : index
    %213 = vector.load %arg4[%c1_69, %c0_70, %c0_71] : memref<6x1x96xf32, #tpu.memory_space<vmem>>, vector<1x1x96xf32>
    %214 = vector.shape_cast %213 : vector<1x1x96xf32> to vector<1x96xf32>
    %c1_72 = arith.constant 1 : index
    %c0_73 = arith.constant 0 : index
    %c0_74 = arith.constant 0 : index
    %215 = vector.load %arg5[%c1_72, %c0_73, %c0_74] : memref<6x32x32xbf16, #tpu.memory_space<vmem>>, vector<1x32x32xbf16>
    %216 = vector.shape_cast %215 : vector<1x32x32xbf16> to vector<32x32xbf16>
    %c1_75 = arith.constant 1 : index
    %c0_76 = arith.constant 0 : index
    %c0_77 = arith.constant 0 : index
    %217 = vector.load %arg6[%c1_75, %c0_76, %c0_77] : memref<6x6x32xf32, #tpu.memory_space<vmem>>, vector<1x6x32xf32>
    %218 = vector.shape_cast %217 : vector<1x6x32xf32> to vector<6x32xf32>
    %219 = vector.extract_strided_slice %218 {offsets = [0, 0], sizes = [1, 32], strides = [1, 1]} : vector<6x32xf32> to vector<1x32xf32>
    %220 = vector.extract_strided_slice %218 {offsets = [1, 0], sizes = [1, 32], strides = [1, 1]} : vector<6x32xf32> to vector<1x32xf32>
    %221 = vector.extract_strided_slice %218 {offsets = [2, 0], sizes = [1, 32], strides = [1, 1]} : vector<6x32xf32> to vector<1x32xf32>
    %222 = vector.extract_strided_slice %218 {offsets = [3, 0], sizes = [1, 32], strides = [1, 1]} : vector<6x32xf32> to vector<1x32xf32>
    %223 = vector.extract_strided_slice %218 {offsets = [4, 0], sizes = [1, 32], strides = [1, 1]} : vector<6x32xf32> to vector<1x32xf32>
    %224 = vector.extract_strided_slice %218 {offsets = [5, 0], sizes = [1, 32], strides = [1, 1]} : vector<6x32xf32> to vector<1x32xf32>
    %c1_78 = arith.constant 1 : index
    %c0_79 = arith.constant 0 : index
    %c0_80 = arith.constant 0 : index
    %225 = vector.load %arg7[%c1_78, %c0_79, %c0_80] : memref<6x32x64xbf16, #tpu.memory_space<vmem>>, vector<1x32x64xbf16>
    %226 = vector.shape_cast %225 : vector<1x32x64xbf16> to vector<32x64xbf16>
    %c1_81 = arith.constant 1 : index
    %c0_82 = arith.constant 0 : index
    %c0_83 = arith.constant 0 : index
    %227 = vector.load %arg8[%c1_81, %c0_82, %c0_83] : memref<6x1x64xf32, #tpu.memory_space<vmem>>, vector<1x1x64xf32>
    %228 = vector.shape_cast %227 : vector<1x1x64xf32> to vector<1x64xf32>
    %c1_84 = arith.constant 1 : index
    %c0_85 = arith.constant 0 : index
    %c0_86 = arith.constant 0 : index
    %229 = vector.load %arg9[%c1_84, %c0_85, %c0_86] : memref<6x64x32xbf16, #tpu.memory_space<vmem>>, vector<1x64x32xbf16>
    %230 = vector.shape_cast %229 : vector<1x64x32xbf16> to vector<64x32xbf16>
    %231 = arith.truncf %210 : vector<8x32xf32> to vector<8x32xbf16>
    %cst_87 = arith.constant dense<0.000000e+00> : vector<8x96xf32>
    %232 = tpu.matmul %231, %212, %cst_87 {dimension_numbers = #tpu.dot_dimension_numbers<[1], [0], [0], [1], [0, 0, 1, 1], [], []>} : vector<8x32xbf16>, vector<32x96xbf16>, vector<8x96xf32> -> vector<8x96xf32>
    %233 = vector.broadcast %214 : vector<1x96xf32> to vector<8x96xf32>
    %234 = arith.addf %232, %233 : vector<8x96xf32>
    %235 = vector.extract_strided_slice %234 {offsets = [0, 0], sizes = [8, 32], strides = [1, 1]} : vector<8x96xf32> to vector<8x32xf32>
    %236 = vector.extract_strided_slice %234 {offsets = [0, 32], sizes = [8, 32], strides = [1, 1]} : vector<8x96xf32> to vector<8x32xf32>
    %237 = vector.extract_strided_slice %234 {offsets = [0, 64], sizes = [8, 32], strides = [1, 1]} : vector<8x96xf32> to vector<8x32xf32>
    %238 = tpu.transpose %236, [1, 0] : vector<8x32xf32> -> vector<32x8xf32>
    %239 = vector.extract_strided_slice %235 {offsets = [0, 0], sizes = [8, 8], strides = [1, 1]} : vector<8x32xf32> to vector<8x8xf32>
    %240 = arith.truncf %239 : vector<8x8xf32> to vector<8x8xbf16>
    %241 = vector.extract_strided_slice %238 {offsets = [0, 0], sizes = [8, 8], strides = [1, 1]} : vector<32x8xf32> to vector<8x8xf32>
    %242 = arith.truncf %241 : vector<8x8xf32> to vector<8x8xbf16>
    %243 = vector.extract_strided_slice %237 {offsets = [0, 0], sizes = [8, 8], strides = [1, 1]} : vector<8x32xf32> to vector<8x8xf32>
    %244 = arith.truncf %243 : vector<8x8xf32> to vector<8x8xbf16>
    %cst_88 = arith.constant dense<0.000000e+00> : vector<8x8xf32>
    %245 = tpu.matmul %240, %242, %cst_88 {dimension_numbers = #tpu.dot_dimension_numbers<[1], [0], [0], [1], [0, 0, 1, 1], [], []>} : vector<8x8xbf16>, vector<8x8xbf16>, vector<8x8xf32> -> vector<8x8xf32>
    %cst_89 = arith.constant 0.353553385 : f32
    %246 = vector.broadcast %cst_89 : f32 to vector<8x8xf32>
    %247 = arith.mulf %245, %246 : vector<8x8xf32>
    %cst_90 = arith.constant dense<0xFF800000> : vector<8xf32>
    %248 = vector.multi_reduction <maximumf>, %247, %cst_90 [1] : vector<8x8xf32> to vector<8xf32>
    %249 = vector.shape_cast %248 : vector<8xf32> to vector<8x1xf32>
    %250 = vector.broadcast %249 : vector<8x1xf32> to vector<8x8xf32>
    %251 = arith.subf %247, %250 : vector<8x8xf32>
    %252 = math.exp %251 : vector<8x8xf32>
    %cst_91 = arith.constant dense<0.000000e+00> : vector<8xf32>
    %253 = vector.multi_reduction <add>, %252, %cst_91 [1] : vector<8x8xf32> to vector<8xf32>
    %254 = vector.shape_cast %253 : vector<8xf32> to vector<8x1xf32>
    %255 = tpu.reciprocal %254 {approx = true} : vector<8x1xf32> -> vector<8x1xf32>
    %256 = vector.broadcast %255 : vector<8x1xf32> to vector<8x8xf32>
    %257 = arith.mulf %252, %256 : vector<8x8xf32>
    %258 = arith.truncf %257 : vector<8x8xf32> to vector<8x8xbf16>
    %cst_92 = arith.constant dense<0.000000e+00> : vector<8x8xf32>
    %259 = tpu.matmul %258, %244, %cst_92 {dimension_numbers = #tpu.dot_dimension_numbers<[1], [0], [0], [1], [0, 0, 1, 1], [], []>} : vector<8x8xbf16>, vector<8x8xbf16>, vector<8x8xf32> -> vector<8x8xf32>
    %260 = vector.extract_strided_slice %235 {offsets = [0, 8], sizes = [8, 8], strides = [1, 1]} : vector<8x32xf32> to vector<8x8xf32>
    %261 = arith.truncf %260 : vector<8x8xf32> to vector<8x8xbf16>
    %262 = vector.extract_strided_slice %238 {offsets = [8, 0], sizes = [8, 8], strides = [1, 1]} : vector<32x8xf32> to vector<8x8xf32>
    %263 = arith.truncf %262 : vector<8x8xf32> to vector<8x8xbf16>
    %264 = vector.extract_strided_slice %237 {offsets = [0, 8], sizes = [8, 8], strides = [1, 1]} : vector<8x32xf32> to vector<8x8xf32>
    %265 = arith.truncf %264 : vector<8x8xf32> to vector<8x8xbf16>
    %cst_93 = arith.constant dense<0.000000e+00> : vector<8x8xf32>
    %266 = tpu.matmul %261, %263, %cst_93 {dimension_numbers = #tpu.dot_dimension_numbers<[1], [0], [0], [1], [0, 0, 1, 1], [], []>} : vector<8x8xbf16>, vector<8x8xbf16>, vector<8x8xf32> -> vector<8x8xf32>
    %cst_94 = arith.constant 0.353553385 : f32
    %267 = vector.broadcast %cst_94 : f32 to vector<8x8xf32>
    %268 = arith.mulf %266, %267 : vector<8x8xf32>
    %cst_95 = arith.constant dense<0xFF800000> : vector<8xf32>
    %269 = vector.multi_reduction <maximumf>, %268, %cst_95 [1] : vector<8x8xf32> to vector<8xf32>
    %270 = vector.shape_cast %269 : vector<8xf32> to vector<8x1xf32>
    %271 = vector.broadcast %270 : vector<8x1xf32> to vector<8x8xf32>
    %272 = arith.subf %268, %271 : vector<8x8xf32>
    %273 = math.exp %272 : vector<8x8xf32>
    %cst_96 = arith.constant dense<0.000000e+00> : vector<8xf32>
    %274 = vector.multi_reduction <add>, %273, %cst_96 [1] : vector<8x8xf32> to vector<8xf32>
    %275 = vector.shape_cast %274 : vector<8xf32> to vector<8x1xf32>
    %276 = tpu.reciprocal %275 {approx = true} : vector<8x1xf32> -> vector<8x1xf32>
    %277 = vector.broadcast %276 : vector<8x1xf32> to vector<8x8xf32>
    %278 = arith.mulf %273, %277 : vector<8x8xf32>
    %279 = arith.truncf %278 : vector<8x8xf32> to vector<8x8xbf16>
    %cst_97 = arith.constant dense<0.000000e+00> : vector<8x8xf32>
    %280 = tpu.matmul %279, %265, %cst_97 {dimension_numbers = #tpu.dot_dimension_numbers<[1], [0], [0], [1], [0, 0, 1, 1], [], []>} : vector<8x8xbf16>, vector<8x8xbf16>, vector<8x8xf32> -> vector<8x8xf32>
    %281 = vector.extract_strided_slice %235 {offsets = [0, 16], sizes = [8, 8], strides = [1, 1]} : vector<8x32xf32> to vector<8x8xf32>
    %282 = arith.truncf %281 : vector<8x8xf32> to vector<8x8xbf16>
    %283 = vector.extract_strided_slice %238 {offsets = [16, 0], sizes = [8, 8], strides = [1, 1]} : vector<32x8xf32> to vector<8x8xf32>
    %284 = arith.truncf %283 : vector<8x8xf32> to vector<8x8xbf16>
    %285 = vector.extract_strided_slice %237 {offsets = [0, 16], sizes = [8, 8], strides = [1, 1]} : vector<8x32xf32> to vector<8x8xf32>
    %286 = arith.truncf %285 : vector<8x8xf32> to vector<8x8xbf16>
    %cst_98 = arith.constant dense<0.000000e+00> : vector<8x8xf32>
    %287 = tpu.matmul %282, %284, %cst_98 {dimension_numbers = #tpu.dot_dimension_numbers<[1], [0], [0], [1], [0, 0, 1, 1], [], []>} : vector<8x8xbf16>, vector<8x8xbf16>, vector<8x8xf32> -> vector<8x8xf32>
    %cst_99 = arith.constant 0.353553385 : f32
    %288 = vector.broadcast %cst_99 : f32 to vector<8x8xf32>
    %289 = arith.mulf %287, %288 : vector<8x8xf32>
    %cst_100 = arith.constant dense<0xFF800000> : vector<8xf32>
    %290 = vector.multi_reduction <maximumf>, %289, %cst_100 [1] : vector<8x8xf32> to vector<8xf32>
    %291 = vector.shape_cast %290 : vector<8xf32> to vector<8x1xf32>
    %292 = vector.broadcast %291 : vector<8x1xf32> to vector<8x8xf32>
    %293 = arith.subf %289, %292 : vector<8x8xf32>
    %294 = math.exp %293 : vector<8x8xf32>
    %cst_101 = arith.constant dense<0.000000e+00> : vector<8xf32>
    %295 = vector.multi_reduction <add>, %294, %cst_101 [1] : vector<8x8xf32> to vector<8xf32>
    %296 = vector.shape_cast %295 : vector<8xf32> to vector<8x1xf32>
    %297 = tpu.reciprocal %296 {approx = true} : vector<8x1xf32> -> vector<8x1xf32>
    %298 = vector.broadcast %297 : vector<8x1xf32> to vector<8x8xf32>
    %299 = arith.mulf %294, %298 : vector<8x8xf32>
    %300 = arith.truncf %299 : vector<8x8xf32> to vector<8x8xbf16>
    %cst_102 = arith.constant dense<0.000000e+00> : vector<8x8xf32>
    %301 = tpu.matmul %300, %286, %cst_102 {dimension_numbers = #tpu.dot_dimension_numbers<[1], [0], [0], [1], [0, 0, 1, 1], [], []>} : vector<8x8xbf16>, vector<8x8xbf16>, vector<8x8xf32> -> vector<8x8xf32>
    %302 = vector.extract_strided_slice %235 {offsets = [0, 24], sizes = [8, 8], strides = [1, 1]} : vector<8x32xf32> to vector<8x8xf32>
    %303 = arith.truncf %302 : vector<8x8xf32> to vector<8x8xbf16>
    %304 = vector.extract_strided_slice %238 {offsets = [24, 0], sizes = [8, 8], strides = [1, 1]} : vector<32x8xf32> to vector<8x8xf32>
    %305 = arith.truncf %304 : vector<8x8xf32> to vector<8x8xbf16>
    %306 = vector.extract_strided_slice %237 {offsets = [0, 24], sizes = [8, 8], strides = [1, 1]} : vector<8x32xf32> to vector<8x8xf32>
    %307 = arith.truncf %306 : vector<8x8xf32> to vector<8x8xbf16>
    %cst_103 = arith.constant dense<0.000000e+00> : vector<8x8xf32>
    %308 = tpu.matmul %303, %305, %cst_103 {dimension_numbers = #tpu.dot_dimension_numbers<[1], [0], [0], [1], [0, 0, 1, 1], [], []>} : vector<8x8xbf16>, vector<8x8xbf16>, vector<8x8xf32> -> vector<8x8xf32>
    %cst_104 = arith.constant 0.353553385 : f32
    %309 = vector.broadcast %cst_104 : f32 to vector<8x8xf32>
    %310 = arith.mulf %308, %309 : vector<8x8xf32>
    %cst_105 = arith.constant dense<0xFF800000> : vector<8xf32>
    %311 = vector.multi_reduction <maximumf>, %310, %cst_105 [1] : vector<8x8xf32> to vector<8xf32>
    %312 = vector.shape_cast %311 : vector<8xf32> to vector<8x1xf32>
    %313 = vector.broadcast %312 : vector<8x1xf32> to vector<8x8xf32>
    %314 = arith.subf %310, %313 : vector<8x8xf32>
    %315 = math.exp %314 : vector<8x8xf32>
    %cst_106 = arith.constant dense<0.000000e+00> : vector<8xf32>
    %316 = vector.multi_reduction <add>, %315, %cst_106 [1] : vector<8x8xf32> to vector<8xf32>
    %317 = vector.shape_cast %316 : vector<8xf32> to vector<8x1xf32>
    %318 = tpu.reciprocal %317 {approx = true} : vector<8x1xf32> -> vector<8x1xf32>
    %319 = vector.broadcast %318 : vector<8x1xf32> to vector<8x8xf32>
    %320 = arith.mulf %315, %319 : vector<8x8xf32>
    %321 = arith.truncf %320 : vector<8x8xf32> to vector<8x8xbf16>
    %cst_107 = arith.constant dense<0.000000e+00> : vector<8x8xf32>
    %322 = tpu.matmul %321, %307, %cst_107 {dimension_numbers = #tpu.dot_dimension_numbers<[1], [0], [0], [1], [0, 0, 1, 1], [], []>} : vector<8x8xbf16>, vector<8x8xbf16>, vector<8x8xf32> -> vector<8x8xf32>
    %323 = tpu.concatenate %259, %280, %301, %322 in 1 : vector<8x8xf32>, vector<8x8xf32>, vector<8x8xf32>, vector<8x8xf32> -> vector<8x32xf32>
    %324 = arith.truncf %323 : vector<8x32xf32> to vector<8x32xbf16>
    %cst_108 = arith.constant dense<0.000000e+00> : vector<8x32xf32>
    %325 = tpu.matmul %324, %216, %cst_108 {dimension_numbers = #tpu.dot_dimension_numbers<[1], [0], [0], [1], [0, 0, 1, 1], [], []>} : vector<8x32xbf16>, vector<32x32xbf16>, vector<8x32xf32> -> vector<8x32xf32>
    %326 = vector.broadcast %219 : vector<1x32xf32> to vector<8x32xf32>
    %327 = arith.addf %325, %326 : vector<8x32xf32>
    %328 = arith.addf %210, %327 : vector<8x32xf32>
    %cst_109 = arith.constant dense<0.000000e+00> : vector<8xf32>
    %329 = vector.multi_reduction <add>, %328, %cst_109 [1] : vector<8x32xf32> to vector<8xf32>
    %330 = vector.shape_cast %329 : vector<8xf32> to vector<8x1xf32>
    %cst_110 = arith.constant 3.200000e+01 : f32
    %331 = vector.broadcast %cst_110 : f32 to vector<8x1xf32>
    %332 = arith.divf %330, %331 : vector<8x1xf32>
    %333 = vector.broadcast %332 : vector<8x1xf32> to vector<8x32xf32>
    %334 = arith.subf %328, %333 : vector<8x32xf32>
    %335 = arith.mulf %334, %334 : vector<8x32xf32>
    %cst_111 = arith.constant dense<0.000000e+00> : vector<8xf32>
    %336 = vector.multi_reduction <add>, %335, %cst_111 [1] : vector<8x32xf32> to vector<8xf32>
    %337 = vector.shape_cast %336 : vector<8xf32> to vector<8x1xf32>
    %cst_112 = arith.constant 3.200000e+01 : f32
    %338 = vector.broadcast %cst_112 : f32 to vector<8x1xf32>
    %339 = arith.divf %337, %338 : vector<8x1xf32>
    %340 = vector.broadcast %332 : vector<8x1xf32> to vector<8x32xf32>
    %341 = arith.subf %328, %340 : vector<8x32xf32>
    %cst_113 = arith.constant 9.99999996E-13 : f32
    %342 = vector.broadcast %cst_113 : f32 to vector<8x1xf32>
    %343 = arith.addf %339, %342 : vector<8x1xf32>
    %344 = math.rsqrt %343 : vector<8x1xf32>
    %345 = vector.broadcast %344 : vector<8x1xf32> to vector<8x32xf32>
    %346 = arith.mulf %341, %345 : vector<8x32xf32>
    %347 = vector.broadcast %220 : vector<1x32xf32> to vector<8x32xf32>
    %348 = arith.mulf %346, %347 : vector<8x32xf32>
    %349 = vector.broadcast %221 : vector<1x32xf32> to vector<8x32xf32>
    %350 = arith.addf %348, %349 : vector<8x32xf32>
    %351 = arith.truncf %350 : vector<8x32xf32> to vector<8x32xbf16>
    %cst_114 = arith.constant dense<0.000000e+00> : vector<8x64xf32>
    %352 = tpu.matmul %351, %226, %cst_114 {dimension_numbers = #tpu.dot_dimension_numbers<[1], [0], [0], [1], [0, 0, 1, 1], [], []>} : vector<8x32xbf16>, vector<32x64xbf16>, vector<8x64xf32> -> vector<8x64xf32>
    %353 = vector.broadcast %228 : vector<1x64xf32> to vector<8x64xf32>
    %354 = arith.addf %352, %353 : vector<8x64xf32>
    %cst_115 = arith.constant 5.000000e-01 : f32
    %355 = vector.broadcast %cst_115 : f32 to vector<8x64xf32>
    %356 = arith.mulf %355, %354 : vector<8x64xf32>
    %cst_116 = arith.constant 4.471500e-02 : f32
    %357 = vector.broadcast %cst_116 : f32 to vector<8x64xf32>
    %358 = arith.mulf %357, %354 : vector<8x64xf32>
    %359 = arith.mulf %358, %354 : vector<8x64xf32>
    %360 = arith.mulf %359, %354 : vector<8x64xf32>
    %361 = arith.addf %354, %360 : vector<8x64xf32>
    %cst_117 = arith.constant 0.797884583 : f32
    %362 = vector.broadcast %cst_117 : f32 to vector<8x64xf32>
    %363 = arith.mulf %362, %361 : vector<8x64xf32>
    %364 = math.tanh %363 : vector<8x64xf32>
    %cst_118 = arith.constant 1.000000e+00 : f32
    %365 = vector.broadcast %cst_118 : f32 to vector<8x64xf32>
    %366 = arith.addf %365, %364 : vector<8x64xf32>
    %367 = arith.mulf %356, %366 : vector<8x64xf32>
    %368 = arith.truncf %367 : vector<8x64xf32> to vector<8x64xbf16>
    %cst_119 = arith.constant dense<0.000000e+00> : vector<8x32xf32>
    %369 = tpu.matmul %368, %230, %cst_119 {dimension_numbers = #tpu.dot_dimension_numbers<[1], [0], [0], [1], [0, 0, 1, 1], [], []>} : vector<8x64xbf16>, vector<64x32xbf16>, vector<8x32xf32> -> vector<8x32xf32>
    %370 = vector.broadcast %222 : vector<1x32xf32> to vector<8x32xf32>
    %371 = arith.addf %369, %370 : vector<8x32xf32>
    %372 = arith.addf %350, %371 : vector<8x32xf32>
    %cst_120 = arith.constant dense<0.000000e+00> : vector<8xf32>
    %373 = vector.multi_reduction <add>, %372, %cst_120 [1] : vector<8x32xf32> to vector<8xf32>
    %374 = vector.shape_cast %373 : vector<8xf32> to vector<8x1xf32>
    %cst_121 = arith.constant 3.200000e+01 : f32
    %375 = vector.broadcast %cst_121 : f32 to vector<8x1xf32>
    %376 = arith.divf %374, %375 : vector<8x1xf32>
    %377 = vector.broadcast %376 : vector<8x1xf32> to vector<8x32xf32>
    %378 = arith.subf %372, %377 : vector<8x32xf32>
    %379 = arith.mulf %378, %378 : vector<8x32xf32>
    %cst_122 = arith.constant dense<0.000000e+00> : vector<8xf32>
    %380 = vector.multi_reduction <add>, %379, %cst_122 [1] : vector<8x32xf32> to vector<8xf32>
    %381 = vector.shape_cast %380 : vector<8xf32> to vector<8x1xf32>
    %cst_123 = arith.constant 3.200000e+01 : f32
    %382 = vector.broadcast %cst_123 : f32 to vector<8x1xf32>
    %383 = arith.divf %381, %382 : vector<8x1xf32>
    %384 = vector.broadcast %376 : vector<8x1xf32> to vector<8x32xf32>
    %385 = arith.subf %372, %384 : vector<8x32xf32>
    %cst_124 = arith.constant 9.99999996E-13 : f32
    %386 = vector.broadcast %cst_124 : f32 to vector<8x1xf32>
    %387 = arith.addf %383, %386 : vector<8x1xf32>
    %388 = math.rsqrt %387 : vector<8x1xf32>
    %389 = vector.broadcast %388 : vector<8x1xf32> to vector<8x32xf32>
    %390 = arith.mulf %385, %389 : vector<8x32xf32>
    %391 = vector.broadcast %223 : vector<1x32xf32> to vector<8x32xf32>
    %392 = arith.mulf %390, %391 : vector<8x32xf32>
    %393 = vector.broadcast %224 : vector<1x32xf32> to vector<8x32xf32>
    %394 = arith.addf %392, %393 : vector<8x32xf32>
    %c2 = arith.constant 2 : index
    %c0_125 = arith.constant 0 : index
    %c0_126 = arith.constant 0 : index
    %395 = vector.load %arg3[%c2, %c0_125, %c0_126] : memref<6x32x96xbf16, #tpu.memory_space<vmem>>, vector<1x32x96xbf16>
    %396 = vector.shape_cast %395 : vector<1x32x96xbf16> to vector<32x96xbf16>
    %c2_127 = arith.constant 2 : index
    %c0_128 = arith.constant 0 : index
    %c0_129 = arith.constant 0 : index
    %397 = vector.load %arg4[%c2_127, %c0_128, %c0_129] : memref<6x1x96xf32, #tpu.memory_space<vmem>>, vector<1x1x96xf32>
    %398 = vector.shape_cast %397 : vector<1x1x96xf32> to vector<1x96xf32>
    %c2_130 = arith.constant 2 : index
    %c0_131 = arith.constant 0 : index
    %c0_132 = arith.constant 0 : index
    %399 = vector.load %arg5[%c2_130, %c0_131, %c0_132] : memref<6x32x32xbf16, #tpu.memory_space<vmem>>, vector<1x32x32xbf16>
    %400 = vector.shape_cast %399 : vector<1x32x32xbf16> to vector<32x32xbf16>
    %c2_133 = arith.constant 2 : index
    %c0_134 = arith.constant 0 : index
    %c0_135 = arith.constant 0 : index
    %401 = vector.load %arg6[%c2_133, %c0_134, %c0_135] : memref<6x6x32xf32, #tpu.memory_space<vmem>>, vector<1x6x32xf32>
    %402 = vector.shape_cast %401 : vector<1x6x32xf32> to vector<6x32xf32>
    %403 = vector.extract_strided_slice %402 {offsets = [0, 0], sizes = [1, 32], strides = [1, 1]} : vector<6x32xf32> to vector<1x32xf32>
    %404 = vector.extract_strided_slice %402 {offsets = [1, 0], sizes = [1, 32], strides = [1, 1]} : vector<6x32xf32> to vector<1x32xf32>
    %405 = vector.extract_strided_slice %402 {offsets = [2, 0], sizes = [1, 32], strides = [1, 1]} : vector<6x32xf32> to vector<1x32xf32>
    %406 = vector.extract_strided_slice %402 {offsets = [3, 0], sizes = [1, 32], strides = [1, 1]} : vector<6x32xf32> to vector<1x32xf32>
    %407 = vector.extract_strided_slice %402 {offsets = [4, 0], sizes = [1, 32], strides = [1, 1]} : vector<6x32xf32> to vector<1x32xf32>
    %408 = vector.extract_strided_slice %402 {offsets = [5, 0], sizes = [1, 32], strides = [1, 1]} : vector<6x32xf32> to vector<1x32xf32>
    %c2_136 = arith.constant 2 : index
    %c0_137 = arith.constant 0 : index
    %c0_138 = arith.constant 0 : index
    %409 = vector.load %arg7[%c2_136, %c0_137, %c0_138] : memref<6x32x64xbf16, #tpu.memory_space<vmem>>, vector<1x32x64xbf16>
    %410 = vector.shape_cast %409 : vector<1x32x64xbf16> to vector<32x64xbf16>
    %c2_139 = arith.constant 2 : index
    %c0_140 = arith.constant 0 : index
    %c0_141 = arith.constant 0 : index
    %411 = vector.load %arg8[%c2_139, %c0_140, %c0_141] : memref<6x1x64xf32, #tpu.memory_space<vmem>>, vector<1x1x64xf32>
    %412 = vector.shape_cast %411 : vector<1x1x64xf32> to vector<1x64xf32>
    %c2_142 = arith.constant 2 : index
    %c0_143 = arith.constant 0 : index
    %c0_144 = arith.constant 0 : index
    %413 = vector.load %arg9[%c2_142, %c0_143, %c0_144] : memref<6x64x32xbf16, #tpu.memory_space<vmem>>, vector<1x64x32xbf16>
    %414 = vector.shape_cast %413 : vector<1x64x32xbf16> to vector<64x32xbf16>
    %415 = arith.truncf %394 : vector<8x32xf32> to vector<8x32xbf16>
    %cst_145 = arith.constant dense<0.000000e+00> : vector<8x96xf32>
    %416 = tpu.matmul %415, %396, %cst_145 {dimension_numbers = #tpu.dot_dimension_numbers<[1], [0], [0], [1], [0, 0, 1, 1], [], []>} : vector<8x32xbf16>, vector<32x96xbf16>, vector<8x96xf32> -> vector<8x96xf32>
    %417 = vector.broadcast %398 : vector<1x96xf32> to vector<8x96xf32>
    %418 = arith.addf %416, %417 : vector<8x96xf32>
    %419 = vector.extract_strided_slice %418 {offsets = [0, 0], sizes = [8, 32], strides = [1, 1]} : vector<8x96xf32> to vector<8x32xf32>
    %420 = vector.extract_strided_slice %418 {offsets = [0, 32], sizes = [8, 32], strides = [1, 1]} : vector<8x96xf32> to vector<8x32xf32>
    %421 = vector.extract_strided_slice %418 {offsets = [0, 64], sizes = [8, 32], strides = [1, 1]} : vector<8x96xf32> to vector<8x32xf32>
    %422 = tpu.transpose %420, [1, 0] : vector<8x32xf32> -> vector<32x8xf32>
    %423 = vector.extract_strided_slice %419 {offsets = [0, 0], sizes = [8, 8], strides = [1, 1]} : vector<8x32xf32> to vector<8x8xf32>
    %424 = arith.truncf %423 : vector<8x8xf32> to vector<8x8xbf16>
    %425 = vector.extract_strided_slice %422 {offsets = [0, 0], sizes = [8, 8], strides = [1, 1]} : vector<32x8xf32> to vector<8x8xf32>
    %426 = arith.truncf %425 : vector<8x8xf32> to vector<8x8xbf16>
    %427 = vector.extract_strided_slice %421 {offsets = [0, 0], sizes = [8, 8], strides = [1, 1]} : vector<8x32xf32> to vector<8x8xf32>
    %428 = arith.truncf %427 : vector<8x8xf32> to vector<8x8xbf16>
    %cst_146 = arith.constant dense<0.000000e+00> : vector<8x8xf32>
    %429 = tpu.matmul %424, %426, %cst_146 {dimension_numbers = #tpu.dot_dimension_numbers<[1], [0], [0], [1], [0, 0, 1, 1], [], []>} : vector<8x8xbf16>, vector<8x8xbf16>, vector<8x8xf32> -> vector<8x8xf32>
    %cst_147 = arith.constant 0.353553385 : f32
    %430 = vector.broadcast %cst_147 : f32 to vector<8x8xf32>
    %431 = arith.mulf %429, %430 : vector<8x8xf32>
    %cst_148 = arith.constant dense<0xFF800000> : vector<8xf32>
    %432 = vector.multi_reduction <maximumf>, %431, %cst_148 [1] : vector<8x8xf32> to vector<8xf32>
    %433 = vector.shape_cast %432 : vector<8xf32> to vector<8x1xf32>
    %434 = vector.broadcast %433 : vector<8x1xf32> to vector<8x8xf32>
    %435 = arith.subf %431, %434 : vector<8x8xf32>
    %436 = math.exp %435 : vector<8x8xf32>
    %cst_149 = arith.constant dense<0.000000e+00> : vector<8xf32>
    %437 = vector.multi_reduction <add>, %436, %cst_149 [1] : vector<8x8xf32> to vector<8xf32>
    %438 = vector.shape_cast %437 : vector<8xf32> to vector<8x1xf32>
    %439 = tpu.reciprocal %438 {approx = true} : vector<8x1xf32> -> vector<8x1xf32>
    %440 = vector.broadcast %439 : vector<8x1xf32> to vector<8x8xf32>
    %441 = arith.mulf %436, %440 : vector<8x8xf32>
    %442 = arith.truncf %441 : vector<8x8xf32> to vector<8x8xbf16>
    %cst_150 = arith.constant dense<0.000000e+00> : vector<8x8xf32>
    %443 = tpu.matmul %442, %428, %cst_150 {dimension_numbers = #tpu.dot_dimension_numbers<[1], [0], [0], [1], [0, 0, 1, 1], [], []>} : vector<8x8xbf16>, vector<8x8xbf16>, vector<8x8xf32> -> vector<8x8xf32>
    %444 = vector.extract_strided_slice %419 {offsets = [0, 8], sizes = [8, 8], strides = [1, 1]} : vector<8x32xf32> to vector<8x8xf32>
    %445 = arith.truncf %444 : vector<8x8xf32> to vector<8x8xbf16>
    %446 = vector.extract_strided_slice %422 {offsets = [8, 0], sizes = [8, 8], strides = [1, 1]} : vector<32x8xf32> to vector<8x8xf32>
    %447 = arith.truncf %446 : vector<8x8xf32> to vector<8x8xbf16>
    %448 = vector.extract_strided_slice %421 {offsets = [0, 8], sizes = [8, 8], strides = [1, 1]} : vector<8x32xf32> to vector<8x8xf32>
    %449 = arith.truncf %448 : vector<8x8xf32> to vector<8x8xbf16>
    %cst_151 = arith.constant dense<0.000000e+00> : vector<8x8xf32>
    %450 = tpu.matmul %445, %447, %cst_151 {dimension_numbers = #tpu.dot_dimension_numbers<[1], [0], [0], [1], [0, 0, 1, 1], [], []>} : vector<8x8xbf16>, vector<8x8xbf16>, vector<8x8xf32> -> vector<8x8xf32>
    %cst_152 = arith.constant 0.353553385 : f32
    %451 = vector.broadcast %cst_152 : f32 to vector<8x8xf32>
    %452 = arith.mulf %450, %451 : vector<8x8xf32>
    %cst_153 = arith.constant dense<0xFF800000> : vector<8xf32>
    %453 = vector.multi_reduction <maximumf>, %452, %cst_153 [1] : vector<8x8xf32> to vector<8xf32>
    %454 = vector.shape_cast %453 : vector<8xf32> to vector<8x1xf32>
    %455 = vector.broadcast %454 : vector<8x1xf32> to vector<8x8xf32>
    %456 = arith.subf %452, %455 : vector<8x8xf32>
    %457 = math.exp %456 : vector<8x8xf32>
    %cst_154 = arith.constant dense<0.000000e+00> : vector<8xf32>
    %458 = vector.multi_reduction <add>, %457, %cst_154 [1] : vector<8x8xf32> to vector<8xf32>
    %459 = vector.shape_cast %458 : vector<8xf32> to vector<8x1xf32>
    %460 = tpu.reciprocal %459 {approx = true} : vector<8x1xf32> -> vector<8x1xf32>
    %461 = vector.broadcast %460 : vector<8x1xf32> to vector<8x8xf32>
    %462 = arith.mulf %457, %461 : vector<8x8xf32>
    %463 = arith.truncf %462 : vector<8x8xf32> to vector<8x8xbf16>
    %cst_155 = arith.constant dense<0.000000e+00> : vector<8x8xf32>
    %464 = tpu.matmul %463, %449, %cst_155 {dimension_numbers = #tpu.dot_dimension_numbers<[1], [0], [0], [1], [0, 0, 1, 1], [], []>} : vector<8x8xbf16>, vector<8x8xbf16>, vector<8x8xf32> -> vector<8x8xf32>
    %465 = vector.extract_strided_slice %419 {offsets = [0, 16], sizes = [8, 8], strides = [1, 1]} : vector<8x32xf32> to vector<8x8xf32>
    %466 = arith.truncf %465 : vector<8x8xf32> to vector<8x8xbf16>
    %467 = vector.extract_strided_slice %422 {offsets = [16, 0], sizes = [8, 8], strides = [1, 1]} : vector<32x8xf32> to vector<8x8xf32>
    %468 = arith.truncf %467 : vector<8x8xf32> to vector<8x8xbf16>
    %469 = vector.extract_strided_slice %421 {offsets = [0, 16], sizes = [8, 8], strides = [1, 1]} : vector<8x32xf32> to vector<8x8xf32>
    %470 = arith.truncf %469 : vector<8x8xf32> to vector<8x8xbf16>
    %cst_156 = arith.constant dense<0.000000e+00> : vector<8x8xf32>
    %471 = tpu.matmul %466, %468, %cst_156 {dimension_numbers = #tpu.dot_dimension_numbers<[1], [0], [0], [1], [0, 0, 1, 1], [], []>} : vector<8x8xbf16>, vector<8x8xbf16>, vector<8x8xf32> -> vector<8x8xf32>
    %cst_157 = arith.constant 0.353553385 : f32
    %472 = vector.broadcast %cst_157 : f32 to vector<8x8xf32>
    %473 = arith.mulf %471, %472 : vector<8x8xf32>
    %cst_158 = arith.constant dense<0xFF800000> : vector<8xf32>
    %474 = vector.multi_reduction <maximumf>, %473, %cst_158 [1] : vector<8x8xf32> to vector<8xf32>
    %475 = vector.shape_cast %474 : vector<8xf32> to vector<8x1xf32>
    %476 = vector.broadcast %475 : vector<8x1xf32> to vector<8x8xf32>
    %477 = arith.subf %473, %476 : vector<8x8xf32>
    %478 = math.exp %477 : vector<8x8xf32>
    %cst_159 = arith.constant dense<0.000000e+00> : vector<8xf32>
    %479 = vector.multi_reduction <add>, %478, %cst_159 [1] : vector<8x8xf32> to vector<8xf32>
    %480 = vector.shape_cast %479 : vector<8xf32> to vector<8x1xf32>
    %481 = tpu.reciprocal %480 {approx = true} : vector<8x1xf32> -> vector<8x1xf32>
    %482 = vector.broadcast %481 : vector<8x1xf32> to vector<8x8xf32>
    %483 = arith.mulf %478, %482 : vector<8x8xf32>
    %484 = arith.truncf %483 : vector<8x8xf32> to vector<8x8xbf16>
    %cst_160 = arith.constant dense<0.000000e+00> : vector<8x8xf32>
    %485 = tpu.matmul %484, %470, %cst_160 {dimension_numbers = #tpu.dot_dimension_numbers<[1], [0], [0], [1], [0, 0, 1, 1], [], []>} : vector<8x8xbf16>, vector<8x8xbf16>, vector<8x8xf32> -> vector<8x8xf32>
    %486 = vector.extract_strided_slice %419 {offsets = [0, 24], sizes = [8, 8], strides = [1, 1]} : vector<8x32xf32> to vector<8x8xf32>
    %487 = arith.truncf %486 : vector<8x8xf32> to vector<8x8xbf16>
    %488 = vector.extract_strided_slice %422 {offsets = [24, 0], sizes = [8, 8], strides = [1, 1]} : vector<32x8xf32> to vector<8x8xf32>
    %489 = arith.truncf %488 : vector<8x8xf32> to vector<8x8xbf16>
    %490 = vector.extract_strided_slice %421 {offsets = [0, 24], sizes = [8, 8], strides = [1, 1]} : vector<8x32xf32> to vector<8x8xf32>
    %491 = arith.truncf %490 : vector<8x8xf32> to vector<8x8xbf16>
    %cst_161 = arith.constant dense<0.000000e+00> : vector<8x8xf32>
    %492 = tpu.matmul %487, %489, %cst_161 {dimension_numbers = #tpu.dot_dimension_numbers<[1], [0], [0], [1], [0, 0, 1, 1], [], []>} : vector<8x8xbf16>, vector<8x8xbf16>, vector<8x8xf32> -> vector<8x8xf32>
    %cst_162 = arith.constant 0.353553385 : f32
    %493 = vector.broadcast %cst_162 : f32 to vector<8x8xf32>
    %494 = arith.mulf %492, %493 : vector<8x8xf32>
    %cst_163 = arith.constant dense<0xFF800000> : vector<8xf32>
    %495 = vector.multi_reduction <maximumf>, %494, %cst_163 [1] : vector<8x8xf32> to vector<8xf32>
    %496 = vector.shape_cast %495 : vector<8xf32> to vector<8x1xf32>
    %497 = vector.broadcast %496 : vector<8x1xf32> to vector<8x8xf32>
    %498 = arith.subf %494, %497 : vector<8x8xf32>
    %499 = math.exp %498 : vector<8x8xf32>
    %cst_164 = arith.constant dense<0.000000e+00> : vector<8xf32>
    %500 = vector.multi_reduction <add>, %499, %cst_164 [1] : vector<8x8xf32> to vector<8xf32>
    %501 = vector.shape_cast %500 : vector<8xf32> to vector<8x1xf32>
    %502 = tpu.reciprocal %501 {approx = true} : vector<8x1xf32> -> vector<8x1xf32>
    %503 = vector.broadcast %502 : vector<8x1xf32> to vector<8x8xf32>
    %504 = arith.mulf %499, %503 : vector<8x8xf32>
    %505 = arith.truncf %504 : vector<8x8xf32> to vector<8x8xbf16>
    %cst_165 = arith.constant dense<0.000000e+00> : vector<8x8xf32>
    %506 = tpu.matmul %505, %491, %cst_165 {dimension_numbers = #tpu.dot_dimension_numbers<[1], [0], [0], [1], [0, 0, 1, 1], [], []>} : vector<8x8xbf16>, vector<8x8xbf16>, vector<8x8xf32> -> vector<8x8xf32>
    %507 = tpu.concatenate %443, %464, %485, %506 in 1 : vector<8x8xf32>, vector<8x8xf32>, vector<8x8xf32>, vector<8x8xf32> -> vector<8x32xf32>
    %508 = arith.truncf %507 : vector<8x32xf32> to vector<8x32xbf16>
    %cst_166 = arith.constant dense<0.000000e+00> : vector<8x32xf32>
    %509 = tpu.matmul %508, %400, %cst_166 {dimension_numbers = #tpu.dot_dimension_numbers<[1], [0], [0], [1], [0, 0, 1, 1], [], []>} : vector<8x32xbf16>, vector<32x32xbf16>, vector<8x32xf32> -> vector<8x32xf32>
    %510 = vector.broadcast %403 : vector<1x32xf32> to vector<8x32xf32>
    %511 = arith.addf %509, %510 : vector<8x32xf32>
    %512 = arith.addf %394, %511 : vector<8x32xf32>
    %cst_167 = arith.constant dense<0.000000e+00> : vector<8xf32>
    %513 = vector.multi_reduction <add>, %512, %cst_167 [1] : vector<8x32xf32> to vector<8xf32>
    %514 = vector.shape_cast %513 : vector<8xf32> to vector<8x1xf32>
    %cst_168 = arith.constant 3.200000e+01 : f32
    %515 = vector.broadcast %cst_168 : f32 to vector<8x1xf32>
    %516 = arith.divf %514, %515 : vector<8x1xf32>
    %517 = vector.broadcast %516 : vector<8x1xf32> to vector<8x32xf32>
    %518 = arith.subf %512, %517 : vector<8x32xf32>
    %519 = arith.mulf %518, %518 : vector<8x32xf32>
    %cst_169 = arith.constant dense<0.000000e+00> : vector<8xf32>
    %520 = vector.multi_reduction <add>, %519, %cst_169 [1] : vector<8x32xf32> to vector<8xf32>
    %521 = vector.shape_cast %520 : vector<8xf32> to vector<8x1xf32>
    %cst_170 = arith.constant 3.200000e+01 : f32
    %522 = vector.broadcast %cst_170 : f32 to vector<8x1xf32>
    %523 = arith.divf %521, %522 : vector<8x1xf32>
    %524 = vector.broadcast %516 : vector<8x1xf32> to vector<8x32xf32>
    %525 = arith.subf %512, %524 : vector<8x32xf32>
    %cst_171 = arith.constant 9.99999996E-13 : f32
    %526 = vector.broadcast %cst_171 : f32 to vector<8x1xf32>
    %527 = arith.addf %523, %526 : vector<8x1xf32>
    %528 = math.rsqrt %527 : vector<8x1xf32>
    %529 = vector.broadcast %528 : vector<8x1xf32> to vector<8x32xf32>
    %530 = arith.mulf %525, %529 : vector<8x32xf32>
    %531 = vector.broadcast %404 : vector<1x32xf32> to vector<8x32xf32>
    %532 = arith.mulf %530, %531 : vector<8x32xf32>
    %533 = vector.broadcast %405 : vector<1x32xf32> to vector<8x32xf32>
    %534 = arith.addf %532, %533 : vector<8x32xf32>
    %535 = arith.truncf %534 : vector<8x32xf32> to vector<8x32xbf16>
    %cst_172 = arith.constant dense<0.000000e+00> : vector<8x64xf32>
    %536 = tpu.matmul %535, %410, %cst_172 {dimension_numbers = #tpu.dot_dimension_numbers<[1], [0], [0], [1], [0, 0, 1, 1], [], []>} : vector<8x32xbf16>, vector<32x64xbf16>, vector<8x64xf32> -> vector<8x64xf32>
    %537 = vector.broadcast %412 : vector<1x64xf32> to vector<8x64xf32>
    %538 = arith.addf %536, %537 : vector<8x64xf32>
    %cst_173 = arith.constant 5.000000e-01 : f32
    %539 = vector.broadcast %cst_173 : f32 to vector<8x64xf32>
    %540 = arith.mulf %539, %538 : vector<8x64xf32>
    %cst_174 = arith.constant 4.471500e-02 : f32
    %541 = vector.broadcast %cst_174 : f32 to vector<8x64xf32>
    %542 = arith.mulf %541, %538 : vector<8x64xf32>
    %543 = arith.mulf %542, %538 : vector<8x64xf32>
    %544 = arith.mulf %543, %538 : vector<8x64xf32>
    %545 = arith.addf %538, %544 : vector<8x64xf32>
    %cst_175 = arith.constant 0.797884583 : f32
    %546 = vector.broadcast %cst_175 : f32 to vector<8x64xf32>
    %547 = arith.mulf %546, %545 : vector<8x64xf32>
    %548 = math.tanh %547 : vector<8x64xf32>
    %cst_176 = arith.constant 1.000000e+00 : f32
    %549 = vector.broadcast %cst_176 : f32 to vector<8x64xf32>
    %550 = arith.addf %549, %548 : vector<8x64xf32>
    %551 = arith.mulf %540, %550 : vector<8x64xf32>
    %552 = arith.truncf %551 : vector<8x64xf32> to vector<8x64xbf16>
    %cst_177 = arith.constant dense<0.000000e+00> : vector<8x32xf32>
    %553 = tpu.matmul %552, %414, %cst_177 {dimension_numbers = #tpu.dot_dimension_numbers<[1], [0], [0], [1], [0, 0, 1, 1], [], []>} : vector<8x64xbf16>, vector<64x32xbf16>, vector<8x32xf32> -> vector<8x32xf32>
    %554 = vector.broadcast %406 : vector<1x32xf32> to vector<8x32xf32>
    %555 = arith.addf %553, %554 : vector<8x32xf32>
    %556 = arith.addf %534, %555 : vector<8x32xf32>
    %cst_178 = arith.constant dense<0.000000e+00> : vector<8xf32>
    %557 = vector.multi_reduction <add>, %556, %cst_178 [1] : vector<8x32xf32> to vector<8xf32>
    %558 = vector.shape_cast %557 : vector<8xf32> to vector<8x1xf32>
    %cst_179 = arith.constant 3.200000e+01 : f32
    %559 = vector.broadcast %cst_179 : f32 to vector<8x1xf32>
    %560 = arith.divf %558, %559 : vector<8x1xf32>
    %561 = vector.broadcast %560 : vector<8x1xf32> to vector<8x32xf32>
    %562 = arith.subf %556, %561 : vector<8x32xf32>
    %563 = arith.mulf %562, %562 : vector<8x32xf32>
    %cst_180 = arith.constant dense<0.000000e+00> : vector<8xf32>
    %564 = vector.multi_reduction <add>, %563, %cst_180 [1] : vector<8x32xf32> to vector<8xf32>
    %565 = vector.shape_cast %564 : vector<8xf32> to vector<8x1xf32>
    %cst_181 = arith.constant 3.200000e+01 : f32
    %566 = vector.broadcast %cst_181 : f32 to vector<8x1xf32>
    %567 = arith.divf %565, %566 : vector<8x1xf32>
    %568 = vector.broadcast %560 : vector<8x1xf32> to vector<8x32xf32>
    %569 = arith.subf %556, %568 : vector<8x32xf32>
    %cst_182 = arith.constant 9.99999996E-13 : f32
    %570 = vector.broadcast %cst_182 : f32 to vector<8x1xf32>
    %571 = arith.addf %567, %570 : vector<8x1xf32>
    %572 = math.rsqrt %571 : vector<8x1xf32>
    %573 = vector.broadcast %572 : vector<8x1xf32> to vector<8x32xf32>
    %574 = arith.mulf %569, %573 : vector<8x32xf32>
    %575 = vector.broadcast %407 : vector<1x32xf32> to vector<8x32xf32>
    %576 = arith.mulf %574, %575 : vector<8x32xf32>
    %577 = vector.broadcast %408 : vector<1x32xf32> to vector<8x32xf32>
    %578 = arith.addf %576, %577 : vector<8x32xf32>
    %c3 = arith.constant 3 : index
    %c0_183 = arith.constant 0 : index
    %c0_184 = arith.constant 0 : index
    %579 = vector.load %arg3[%c3, %c0_183, %c0_184] : memref<6x32x96xbf16, #tpu.memory_space<vmem>>, vector<1x32x96xbf16>
    %580 = vector.shape_cast %579 : vector<1x32x96xbf16> to vector<32x96xbf16>
    %c3_185 = arith.constant 3 : index
    %c0_186 = arith.constant 0 : index
    %c0_187 = arith.constant 0 : index
    %581 = vector.load %arg4[%c3_185, %c0_186, %c0_187] : memref<6x1x96xf32, #tpu.memory_space<vmem>>, vector<1x1x96xf32>
    %582 = vector.shape_cast %581 : vector<1x1x96xf32> to vector<1x96xf32>
    %c3_188 = arith.constant 3 : index
    %c0_189 = arith.constant 0 : index
    %c0_190 = arith.constant 0 : index
    %583 = vector.load %arg5[%c3_188, %c0_189, %c0_190] : memref<6x32x32xbf16, #tpu.memory_space<vmem>>, vector<1x32x32xbf16>
    %584 = vector.shape_cast %583 : vector<1x32x32xbf16> to vector<32x32xbf16>
    %c3_191 = arith.constant 3 : index
    %c0_192 = arith.constant 0 : index
    %c0_193 = arith.constant 0 : index
    %585 = vector.load %arg6[%c3_191, %c0_192, %c0_193] : memref<6x6x32xf32, #tpu.memory_space<vmem>>, vector<1x6x32xf32>
    %586 = vector.shape_cast %585 : vector<1x6x32xf32> to vector<6x32xf32>
    %587 = vector.extract_strided_slice %586 {offsets = [0, 0], sizes = [1, 32], strides = [1, 1]} : vector<6x32xf32> to vector<1x32xf32>
    %588 = vector.extract_strided_slice %586 {offsets = [1, 0], sizes = [1, 32], strides = [1, 1]} : vector<6x32xf32> to vector<1x32xf32>
    %589 = vector.extract_strided_slice %586 {offsets = [2, 0], sizes = [1, 32], strides = [1, 1]} : vector<6x32xf32> to vector<1x32xf32>
    %590 = vector.extract_strided_slice %586 {offsets = [3, 0], sizes = [1, 32], strides = [1, 1]} : vector<6x32xf32> to vector<1x32xf32>
    %591 = vector.extract_strided_slice %586 {offsets = [4, 0], sizes = [1, 32], strides = [1, 1]} : vector<6x32xf32> to vector<1x32xf32>
    %592 = vector.extract_strided_slice %586 {offsets = [5, 0], sizes = [1, 32], strides = [1, 1]} : vector<6x32xf32> to vector<1x32xf32>
    %c3_194 = arith.constant 3 : index
    %c0_195 = arith.constant 0 : index
    %c0_196 = arith.constant 0 : index
    %593 = vector.load %arg7[%c3_194, %c0_195, %c0_196] : memref<6x32x64xbf16, #tpu.memory_space<vmem>>, vector<1x32x64xbf16>
    %594 = vector.shape_cast %593 : vector<1x32x64xbf16> to vector<32x64xbf16>
    %c3_197 = arith.constant 3 : index
    %c0_198 = arith.constant 0 : index
    %c0_199 = arith.constant 0 : index
    %595 = vector.load %arg8[%c3_197, %c0_198, %c0_199] : memref<6x1x64xf32, #tpu.memory_space<vmem>>, vector<1x1x64xf32>
    %596 = vector.shape_cast %595 : vector<1x1x64xf32> to vector<1x64xf32>
    %c3_200 = arith.constant 3 : index
    %c0_201 = arith.constant 0 : index
    %c0_202 = arith.constant 0 : index
    %597 = vector.load %arg9[%c3_200, %c0_201, %c0_202] : memref<6x64x32xbf16, #tpu.memory_space<vmem>>, vector<1x64x32xbf16>
    %598 = vector.shape_cast %597 : vector<1x64x32xbf16> to vector<64x32xbf16>
    %599 = arith.truncf %578 : vector<8x32xf32> to vector<8x32xbf16>
    %cst_203 = arith.constant dense<0.000000e+00> : vector<8x96xf32>
    %600 = tpu.matmul %599, %580, %cst_203 {dimension_numbers = #tpu.dot_dimension_numbers<[1], [0], [0], [1], [0, 0, 1, 1], [], []>} : vector<8x32xbf16>, vector<32x96xbf16>, vector<8x96xf32> -> vector<8x96xf32>
    %601 = vector.broadcast %582 : vector<1x96xf32> to vector<8x96xf32>
    %602 = arith.addf %600, %601 : vector<8x96xf32>
    %603 = vector.extract_strided_slice %602 {offsets = [0, 0], sizes = [8, 32], strides = [1, 1]} : vector<8x96xf32> to vector<8x32xf32>
    %604 = vector.extract_strided_slice %602 {offsets = [0, 32], sizes = [8, 32], strides = [1, 1]} : vector<8x96xf32> to vector<8x32xf32>
    %605 = vector.extract_strided_slice %602 {offsets = [0, 64], sizes = [8, 32], strides = [1, 1]} : vector<8x96xf32> to vector<8x32xf32>
    %606 = tpu.transpose %604, [1, 0] : vector<8x32xf32> -> vector<32x8xf32>
    %607 = vector.extract_strided_slice %603 {offsets = [0, 0], sizes = [8, 8], strides = [1, 1]} : vector<8x32xf32> to vector<8x8xf32>
    %608 = arith.truncf %607 : vector<8x8xf32> to vector<8x8xbf16>
    %609 = vector.extract_strided_slice %606 {offsets = [0, 0], sizes = [8, 8], strides = [1, 1]} : vector<32x8xf32> to vector<8x8xf32>
    %610 = arith.truncf %609 : vector<8x8xf32> to vector<8x8xbf16>
    %611 = vector.extract_strided_slice %605 {offsets = [0, 0], sizes = [8, 8], strides = [1, 1]} : vector<8x32xf32> to vector<8x8xf32>
    %612 = arith.truncf %611 : vector<8x8xf32> to vector<8x8xbf16>
    %cst_204 = arith.constant dense<0.000000e+00> : vector<8x8xf32>
    %613 = tpu.matmul %608, %610, %cst_204 {dimension_numbers = #tpu.dot_dimension_numbers<[1], [0], [0], [1], [0, 0, 1, 1], [], []>} : vector<8x8xbf16>, vector<8x8xbf16>, vector<8x8xf32> -> vector<8x8xf32>
    %cst_205 = arith.constant 0.353553385 : f32
    %614 = vector.broadcast %cst_205 : f32 to vector<8x8xf32>
    %615 = arith.mulf %613, %614 : vector<8x8xf32>
    %cst_206 = arith.constant dense<0xFF800000> : vector<8xf32>
    %616 = vector.multi_reduction <maximumf>, %615, %cst_206 [1] : vector<8x8xf32> to vector<8xf32>
    %617 = vector.shape_cast %616 : vector<8xf32> to vector<8x1xf32>
    %618 = vector.broadcast %617 : vector<8x1xf32> to vector<8x8xf32>
    %619 = arith.subf %615, %618 : vector<8x8xf32>
    %620 = math.exp %619 : vector<8x8xf32>
    %cst_207 = arith.constant dense<0.000000e+00> : vector<8xf32>
    %621 = vector.multi_reduction <add>, %620, %cst_207 [1] : vector<8x8xf32> to vector<8xf32>
    %622 = vector.shape_cast %621 : vector<8xf32> to vector<8x1xf32>
    %623 = tpu.reciprocal %622 {approx = true} : vector<8x1xf32> -> vector<8x1xf32>
    %624 = vector.broadcast %623 : vector<8x1xf32> to vector<8x8xf32>
    %625 = arith.mulf %620, %624 : vector<8x8xf32>
    %626 = arith.truncf %625 : vector<8x8xf32> to vector<8x8xbf16>
    %cst_208 = arith.constant dense<0.000000e+00> : vector<8x8xf32>
    %627 = tpu.matmul %626, %612, %cst_208 {dimension_numbers = #tpu.dot_dimension_numbers<[1], [0], [0], [1], [0, 0, 1, 1], [], []>} : vector<8x8xbf16>, vector<8x8xbf16>, vector<8x8xf32> -> vector<8x8xf32>
    %628 = vector.extract_strided_slice %603 {offsets = [0, 8], sizes = [8, 8], strides = [1, 1]} : vector<8x32xf32> to vector<8x8xf32>
    %629 = arith.truncf %628 : vector<8x8xf32> to vector<8x8xbf16>
    %630 = vector.extract_strided_slice %606 {offsets = [8, 0], sizes = [8, 8], strides = [1, 1]} : vector<32x8xf32> to vector<8x8xf32>
    %631 = arith.truncf %630 : vector<8x8xf32> to vector<8x8xbf16>
    %632 = vector.extract_strided_slice %605 {offsets = [0, 8], sizes = [8, 8], strides = [1, 1]} : vector<8x32xf32> to vector<8x8xf32>
    %633 = arith.truncf %632 : vector<8x8xf32> to vector<8x8xbf16>
    %cst_209 = arith.constant dense<0.000000e+00> : vector<8x8xf32>
    %634 = tpu.matmul %629, %631, %cst_209 {dimension_numbers = #tpu.dot_dimension_numbers<[1], [0], [0], [1], [0, 0, 1, 1], [], []>} : vector<8x8xbf16>, vector<8x8xbf16>, vector<8x8xf32> -> vector<8x8xf32>
    %cst_210 = arith.constant 0.353553385 : f32
    %635 = vector.broadcast %cst_210 : f32 to vector<8x8xf32>
    %636 = arith.mulf %634, %635 : vector<8x8xf32>
    %cst_211 = arith.constant dense<0xFF800000> : vector<8xf32>
    %637 = vector.multi_reduction <maximumf>, %636, %cst_211 [1] : vector<8x8xf32> to vector<8xf32>
    %638 = vector.shape_cast %637 : vector<8xf32> to vector<8x1xf32>
    %639 = vector.broadcast %638 : vector<8x1xf32> to vector<8x8xf32>
    %640 = arith.subf %636, %639 : vector<8x8xf32>
    %641 = math.exp %640 : vector<8x8xf32>
    %cst_212 = arith.constant dense<0.000000e+00> : vector<8xf32>
    %642 = vector.multi_reduction <add>, %641, %cst_212 [1] : vector<8x8xf32> to vector<8xf32>
    %643 = vector.shape_cast %642 : vector<8xf32> to vector<8x1xf32>
    %644 = tpu.reciprocal %643 {approx = true} : vector<8x1xf32> -> vector<8x1xf32>
    %645 = vector.broadcast %644 : vector<8x1xf32> to vector<8x8xf32>
    %646 = arith.mulf %641, %645 : vector<8x8xf32>
    %647 = arith.truncf %646 : vector<8x8xf32> to vector<8x8xbf16>
    %cst_213 = arith.constant dense<0.000000e+00> : vector<8x8xf32>
    %648 = tpu.matmul %647, %633, %cst_213 {dimension_numbers = #tpu.dot_dimension_numbers<[1], [0], [0], [1], [0, 0, 1, 1], [], []>} : vector<8x8xbf16>, vector<8x8xbf16>, vector<8x8xf32> -> vector<8x8xf32>
    %649 = vector.extract_strided_slice %603 {offsets = [0, 16], sizes = [8, 8], strides = [1, 1]} : vector<8x32xf32> to vector<8x8xf32>
    %650 = arith.truncf %649 : vector<8x8xf32> to vector<8x8xbf16>
    %651 = vector.extract_strided_slice %606 {offsets = [16, 0], sizes = [8, 8], strides = [1, 1]} : vector<32x8xf32> to vector<8x8xf32>
    %652 = arith.truncf %651 : vector<8x8xf32> to vector<8x8xbf16>
    %653 = vector.extract_strided_slice %605 {offsets = [0, 16], sizes = [8, 8], strides = [1, 1]} : vector<8x32xf32> to vector<8x8xf32>
    %654 = arith.truncf %653 : vector<8x8xf32> to vector<8x8xbf16>
    %cst_214 = arith.constant dense<0.000000e+00> : vector<8x8xf32>
    %655 = tpu.matmul %650, %652, %cst_214 {dimension_numbers = #tpu.dot_dimension_numbers<[1], [0], [0], [1], [0, 0, 1, 1], [], []>} : vector<8x8xbf16>, vector<8x8xbf16>, vector<8x8xf32> -> vector<8x8xf32>
    %cst_215 = arith.constant 0.353553385 : f32
    %656 = vector.broadcast %cst_215 : f32 to vector<8x8xf32>
    %657 = arith.mulf %655, %656 : vector<8x8xf32>
    %cst_216 = arith.constant dense<0xFF800000> : vector<8xf32>
    %658 = vector.multi_reduction <maximumf>, %657, %cst_216 [1] : vector<8x8xf32> to vector<8xf32>
    %659 = vector.shape_cast %658 : vector<8xf32> to vector<8x1xf32>
    %660 = vector.broadcast %659 : vector<8x1xf32> to vector<8x8xf32>
    %661 = arith.subf %657, %660 : vector<8x8xf32>
    %662 = math.exp %661 : vector<8x8xf32>
    %cst_217 = arith.constant dense<0.000000e+00> : vector<8xf32>
    %663 = vector.multi_reduction <add>, %662, %cst_217 [1] : vector<8x8xf32> to vector<8xf32>
    %664 = vector.shape_cast %663 : vector<8xf32> to vector<8x1xf32>
    %665 = tpu.reciprocal %664 {approx = true} : vector<8x1xf32> -> vector<8x1xf32>
    %666 = vector.broadcast %665 : vector<8x1xf32> to vector<8x8xf32>
    %667 = arith.mulf %662, %666 : vector<8x8xf32>
    %668 = arith.truncf %667 : vector<8x8xf32> to vector<8x8xbf16>
    %cst_218 = arith.constant dense<0.000000e+00> : vector<8x8xf32>
    %669 = tpu.matmul %668, %654, %cst_218 {dimension_numbers = #tpu.dot_dimension_numbers<[1], [0], [0], [1], [0, 0, 1, 1], [], []>} : vector<8x8xbf16>, vector<8x8xbf16>, vector<8x8xf32> -> vector<8x8xf32>
    %670 = vector.extract_strided_slice %603 {offsets = [0, 24], sizes = [8, 8], strides = [1, 1]} : vector<8x32xf32> to vector<8x8xf32>
    %671 = arith.truncf %670 : vector<8x8xf32> to vector<8x8xbf16>
    %672 = vector.extract_strided_slice %606 {offsets = [24, 0], sizes = [8, 8], strides = [1, 1]} : vector<32x8xf32> to vector<8x8xf32>
    %673 = arith.truncf %672 : vector<8x8xf32> to vector<8x8xbf16>
    %674 = vector.extract_strided_slice %605 {offsets = [0, 24], sizes = [8, 8], strides = [1, 1]} : vector<8x32xf32> to vector<8x8xf32>
    %675 = arith.truncf %674 : vector<8x8xf32> to vector<8x8xbf16>
    %cst_219 = arith.constant dense<0.000000e+00> : vector<8x8xf32>
    %676 = tpu.matmul %671, %673, %cst_219 {dimension_numbers = #tpu.dot_dimension_numbers<[1], [0], [0], [1], [0, 0, 1, 1], [], []>} : vector<8x8xbf16>, vector<8x8xbf16>, vector<8x8xf32> -> vector<8x8xf32>
    %cst_220 = arith.constant 0.353553385 : f32
    %677 = vector.broadcast %cst_220 : f32 to vector<8x8xf32>
    %678 = arith.mulf %676, %677 : vector<8x8xf32>
    %cst_221 = arith.constant dense<0xFF800000> : vector<8xf32>
    %679 = vector.multi_reduction <maximumf>, %678, %cst_221 [1] : vector<8x8xf32> to vector<8xf32>
    %680 = vector.shape_cast %679 : vector<8xf32> to vector<8x1xf32>
    %681 = vector.broadcast %680 : vector<8x1xf32> to vector<8x8xf32>
    %682 = arith.subf %678, %681 : vector<8x8xf32>
    %683 = math.exp %682 : vector<8x8xf32>
    %cst_222 = arith.constant dense<0.000000e+00> : vector<8xf32>
    %684 = vector.multi_reduction <add>, %683, %cst_222 [1] : vector<8x8xf32> to vector<8xf32>
    %685 = vector.shape_cast %684 : vector<8xf32> to vector<8x1xf32>
    %686 = tpu.reciprocal %685 {approx = true} : vector<8x1xf32> -> vector<8x1xf32>
    %687 = vector.broadcast %686 : vector<8x1xf32> to vector<8x8xf32>
    %688 = arith.mulf %683, %687 : vector<8x8xf32>
    %689 = arith.truncf %688 : vector<8x8xf32> to vector<8x8xbf16>
    %cst_223 = arith.constant dense<0.000000e+00> : vector<8x8xf32>
    %690 = tpu.matmul %689, %675, %cst_223 {dimension_numbers = #tpu.dot_dimension_numbers<[1], [0], [0], [1], [0, 0, 1, 1], [], []>} : vector<8x8xbf16>, vector<8x8xbf16>, vector<8x8xf32> -> vector<8x8xf32>
    %691 = tpu.concatenate %627, %648, %669, %690 in 1 : vector<8x8xf32>, vector<8x8xf32>, vector<8x8xf32>, vector<8x8xf32> -> vector<8x32xf32>
    %692 = arith.truncf %691 : vector<8x32xf32> to vector<8x32xbf16>
    %cst_224 = arith.constant dense<0.000000e+00> : vector<8x32xf32>
    %693 = tpu.matmul %692, %584, %cst_224 {dimension_numbers = #tpu.dot_dimension_numbers<[1], [0], [0], [1], [0, 0, 1, 1], [], []>} : vector<8x32xbf16>, vector<32x32xbf16>, vector<8x32xf32> -> vector<8x32xf32>
    %694 = vector.broadcast %587 : vector<1x32xf32> to vector<8x32xf32>
    %695 = arith.addf %693, %694 : vector<8x32xf32>
    %696 = arith.addf %578, %695 : vector<8x32xf32>
    %cst_225 = arith.constant dense<0.000000e+00> : vector<8xf32>
    %697 = vector.multi_reduction <add>, %696, %cst_225 [1] : vector<8x32xf32> to vector<8xf32>
    %698 = vector.shape_cast %697 : vector<8xf32> to vector<8x1xf32>
    %cst_226 = arith.constant 3.200000e+01 : f32
    %699 = vector.broadcast %cst_226 : f32 to vector<8x1xf32>
    %700 = arith.divf %698, %699 : vector<8x1xf32>
    %701 = vector.broadcast %700 : vector<8x1xf32> to vector<8x32xf32>
    %702 = arith.subf %696, %701 : vector<8x32xf32>
    %703 = arith.mulf %702, %702 : vector<8x32xf32>
    %cst_227 = arith.constant dense<0.000000e+00> : vector<8xf32>
    %704 = vector.multi_reduction <add>, %703, %cst_227 [1] : vector<8x32xf32> to vector<8xf32>
    %705 = vector.shape_cast %704 : vector<8xf32> to vector<8x1xf32>
    %cst_228 = arith.constant 3.200000e+01 : f32
    %706 = vector.broadcast %cst_228 : f32 to vector<8x1xf32>
    %707 = arith.divf %705, %706 : vector<8x1xf32>
    %708 = vector.broadcast %700 : vector<8x1xf32> to vector<8x32xf32>
    %709 = arith.subf %696, %708 : vector<8x32xf32>
    %cst_229 = arith.constant 9.99999996E-13 : f32
    %710 = vector.broadcast %cst_229 : f32 to vector<8x1xf32>
    %711 = arith.addf %707, %710 : vector<8x1xf32>
    %712 = math.rsqrt %711 : vector<8x1xf32>
    %713 = vector.broadcast %712 : vector<8x1xf32> to vector<8x32xf32>
    %714 = arith.mulf %709, %713 : vector<8x32xf32>
    %715 = vector.broadcast %588 : vector<1x32xf32> to vector<8x32xf32>
    %716 = arith.mulf %714, %715 : vector<8x32xf32>
    %717 = vector.broadcast %589 : vector<1x32xf32> to vector<8x32xf32>
    %718 = arith.addf %716, %717 : vector<8x32xf32>
    %719 = arith.truncf %718 : vector<8x32xf32> to vector<8x32xbf16>
    %cst_230 = arith.constant dense<0.000000e+00> : vector<8x64xf32>
    %720 = tpu.matmul %719, %594, %cst_230 {dimension_numbers = #tpu.dot_dimension_numbers<[1], [0], [0], [1], [0, 0, 1, 1], [], []>} : vector<8x32xbf16>, vector<32x64xbf16>, vector<8x64xf32> -> vector<8x64xf32>
    %721 = vector.broadcast %596 : vector<1x64xf32> to vector<8x64xf32>
    %722 = arith.addf %720, %721 : vector<8x64xf32>
    %cst_231 = arith.constant 5.000000e-01 : f32
    %723 = vector.broadcast %cst_231 : f32 to vector<8x64xf32>
    %724 = arith.mulf %723, %722 : vector<8x64xf32>
    %cst_232 = arith.constant 4.471500e-02 : f32
    %725 = vector.broadcast %cst_232 : f32 to vector<8x64xf32>
    %726 = arith.mulf %725, %722 : vector<8x64xf32>
    %727 = arith.mulf %726, %722 : vector<8x64xf32>
    %728 = arith.mulf %727, %722 : vector<8x64xf32>
    %729 = arith.addf %722, %728 : vector<8x64xf32>
    %cst_233 = arith.constant 0.797884583 : f32
    %730 = vector.broadcast %cst_233 : f32 to vector<8x64xf32>
    %731 = arith.mulf %730, %729 : vector<8x64xf32>
    %732 = math.tanh %731 : vector<8x64xf32>
    %cst_234 = arith.constant 1.000000e+00 : f32
    %733 = vector.broadcast %cst_234 : f32 to vector<8x64xf32>
    %734 = arith.addf %733, %732 : vector<8x64xf32>
    %735 = arith.mulf %724, %734 : vector<8x64xf32>
    %736 = arith.truncf %735 : vector<8x64xf32> to vector<8x64xbf16>
    %cst_235 = arith.constant dense<0.000000e+00> : vector<8x32xf32>
    %737 = tpu.matmul %736, %598, %cst_235 {dimension_numbers = #tpu.dot_dimension_numbers<[1], [0], [0], [1], [0, 0, 1, 1], [], []>} : vector<8x64xbf16>, vector<64x32xbf16>, vector<8x32xf32> -> vector<8x32xf32>
    %738 = vector.broadcast %590 : vector<1x32xf32> to vector<8x32xf32>
    %739 = arith.addf %737, %738 : vector<8x32xf32>
    %740 = arith.addf %718, %739 : vector<8x32xf32>
    %cst_236 = arith.constant dense<0.000000e+00> : vector<8xf32>
    %741 = vector.multi_reduction <add>, %740, %cst_236 [1] : vector<8x32xf32> to vector<8xf32>
    %742 = vector.shape_cast %741 : vector<8xf32> to vector<8x1xf32>
    %cst_237 = arith.constant 3.200000e+01 : f32
    %743 = vector.broadcast %cst_237 : f32 to vector<8x1xf32>
    %744 = arith.divf %742, %743 : vector<8x1xf32>
    %745 = vector.broadcast %744 : vector<8x1xf32> to vector<8x32xf32>
    %746 = arith.subf %740, %745 : vector<8x32xf32>
    %747 = arith.mulf %746, %746 : vector<8x32xf32>
    %cst_238 = arith.constant dense<0.000000e+00> : vector<8xf32>
    %748 = vector.multi_reduction <add>, %747, %cst_238 [1] : vector<8x32xf32> to vector<8xf32>
    %749 = vector.shape_cast %748 : vector<8xf32> to vector<8x1xf32>
    %cst_239 = arith.constant 3.200000e+01 : f32
    %750 = vector.broadcast %cst_239 : f32 to vector<8x1xf32>
    %751 = arith.divf %749, %750 : vector<8x1xf32>
    %752 = vector.broadcast %744 : vector<8x1xf32> to vector<8x32xf32>
    %753 = arith.subf %740, %752 : vector<8x32xf32>
    %cst_240 = arith.constant 9.99999996E-13 : f32
    %754 = vector.broadcast %cst_240 : f32 to vector<8x1xf32>
    %755 = arith.addf %751, %754 : vector<8x1xf32>
    %756 = math.rsqrt %755 : vector<8x1xf32>
    %757 = vector.broadcast %756 : vector<8x1xf32> to vector<8x32xf32>
    %758 = arith.mulf %753, %757 : vector<8x32xf32>
    %759 = vector.broadcast %591 : vector<1x32xf32> to vector<8x32xf32>
    %760 = arith.mulf %758, %759 : vector<8x32xf32>
    %761 = vector.broadcast %592 : vector<1x32xf32> to vector<8x32xf32>
    %762 = arith.addf %760, %761 : vector<8x32xf32>
    %c4 = arith.constant 4 : index
    %c0_241 = arith.constant 0 : index
    %c0_242 = arith.constant 0 : index
    %763 = vector.load %arg3[%c4, %c0_241, %c0_242] : memref<6x32x96xbf16, #tpu.memory_space<vmem>>, vector<1x32x96xbf16>
    %764 = vector.shape_cast %763 : vector<1x32x96xbf16> to vector<32x96xbf16>
    %c4_243 = arith.constant 4 : index
    %c0_244 = arith.constant 0 : index
    %c0_245 = arith.constant 0 : index
    %765 = vector.load %arg4[%c4_243, %c0_244, %c0_245] : memref<6x1x96xf32, #tpu.memory_space<vmem>>, vector<1x1x96xf32>
    %766 = vector.shape_cast %765 : vector<1x1x96xf32> to vector<1x96xf32>
    %c4_246 = arith.constant 4 : index
    %c0_247 = arith.constant 0 : index
    %c0_248 = arith.constant 0 : index
    %767 = vector.load %arg5[%c4_246, %c0_247, %c0_248] : memref<6x32x32xbf16, #tpu.memory_space<vmem>>, vector<1x32x32xbf16>
    %768 = vector.shape_cast %767 : vector<1x32x32xbf16> to vector<32x32xbf16>
    %c4_249 = arith.constant 4 : index
    %c0_250 = arith.constant 0 : index
    %c0_251 = arith.constant 0 : index
    %769 = vector.load %arg6[%c4_249, %c0_250, %c0_251] : memref<6x6x32xf32, #tpu.memory_space<vmem>>, vector<1x6x32xf32>
    %770 = vector.shape_cast %769 : vector<1x6x32xf32> to vector<6x32xf32>
    %771 = vector.extract_strided_slice %770 {offsets = [0, 0], sizes = [1, 32], strides = [1, 1]} : vector<6x32xf32> to vector<1x32xf32>
    %772 = vector.extract_strided_slice %770 {offsets = [1, 0], sizes = [1, 32], strides = [1, 1]} : vector<6x32xf32> to vector<1x32xf32>
    %773 = vector.extract_strided_slice %770 {offsets = [2, 0], sizes = [1, 32], strides = [1, 1]} : vector<6x32xf32> to vector<1x32xf32>
    %774 = vector.extract_strided_slice %770 {offsets = [3, 0], sizes = [1, 32], strides = [1, 1]} : vector<6x32xf32> to vector<1x32xf32>
    %775 = vector.extract_strided_slice %770 {offsets = [4, 0], sizes = [1, 32], strides = [1, 1]} : vector<6x32xf32> to vector<1x32xf32>
    %776 = vector.extract_strided_slice %770 {offsets = [5, 0], sizes = [1, 32], strides = [1, 1]} : vector<6x32xf32> to vector<1x32xf32>
    %c4_252 = arith.constant 4 : index
    %c0_253 = arith.constant 0 : index
    %c0_254 = arith.constant 0 : index
    %777 = vector.load %arg7[%c4_252, %c0_253, %c0_254] : memref<6x32x64xbf16, #tpu.memory_space<vmem>>, vector<1x32x64xbf16>
    %778 = vector.shape_cast %777 : vector<1x32x64xbf16> to vector<32x64xbf16>
    %c4_255 = arith.constant 4 : index
    %c0_256 = arith.constant 0 : index
    %c0_257 = arith.constant 0 : index
    %779 = vector.load %arg8[%c4_255, %c0_256, %c0_257] : memref<6x1x64xf32, #tpu.memory_space<vmem>>, vector<1x1x64xf32>
    %780 = vector.shape_cast %779 : vector<1x1x64xf32> to vector<1x64xf32>
    %c4_258 = arith.constant 4 : index
    %c0_259 = arith.constant 0 : index
    %c0_260 = arith.constant 0 : index
    %781 = vector.load %arg9[%c4_258, %c0_259, %c0_260] : memref<6x64x32xbf16, #tpu.memory_space<vmem>>, vector<1x64x32xbf16>
    %782 = vector.shape_cast %781 : vector<1x64x32xbf16> to vector<64x32xbf16>
    %783 = arith.truncf %762 : vector<8x32xf32> to vector<8x32xbf16>
    %cst_261 = arith.constant dense<0.000000e+00> : vector<8x96xf32>
    %784 = tpu.matmul %783, %764, %cst_261 {dimension_numbers = #tpu.dot_dimension_numbers<[1], [0], [0], [1], [0, 0, 1, 1], [], []>} : vector<8x32xbf16>, vector<32x96xbf16>, vector<8x96xf32> -> vector<8x96xf32>
    %785 = vector.broadcast %766 : vector<1x96xf32> to vector<8x96xf32>
    %786 = arith.addf %784, %785 : vector<8x96xf32>
    %787 = vector.extract_strided_slice %786 {offsets = [0, 0], sizes = [8, 32], strides = [1, 1]} : vector<8x96xf32> to vector<8x32xf32>
    %788 = vector.extract_strided_slice %786 {offsets = [0, 32], sizes = [8, 32], strides = [1, 1]} : vector<8x96xf32> to vector<8x32xf32>
    %789 = vector.extract_strided_slice %786 {offsets = [0, 64], sizes = [8, 32], strides = [1, 1]} : vector<8x96xf32> to vector<8x32xf32>
    %790 = tpu.transpose %788, [1, 0] : vector<8x32xf32> -> vector<32x8xf32>
    %791 = vector.extract_strided_slice %787 {offsets = [0, 0], sizes = [8, 8], strides = [1, 1]} : vector<8x32xf32> to vector<8x8xf32>
    %792 = arith.truncf %791 : vector<8x8xf32> to vector<8x8xbf16>
    %793 = vector.extract_strided_slice %790 {offsets = [0, 0], sizes = [8, 8], strides = [1, 1]} : vector<32x8xf32> to vector<8x8xf32>
    %794 = arith.truncf %793 : vector<8x8xf32> to vector<8x8xbf16>
    %795 = vector.extract_strided_slice %789 {offsets = [0, 0], sizes = [8, 8], strides = [1, 1]} : vector<8x32xf32> to vector<8x8xf32>
    %796 = arith.truncf %795 : vector<8x8xf32> to vector<8x8xbf16>
    %cst_262 = arith.constant dense<0.000000e+00> : vector<8x8xf32>
    %797 = tpu.matmul %792, %794, %cst_262 {dimension_numbers = #tpu.dot_dimension_numbers<[1], [0], [0], [1], [0, 0, 1, 1], [], []>} : vector<8x8xbf16>, vector<8x8xbf16>, vector<8x8xf32> -> vector<8x8xf32>
    %cst_263 = arith.constant 0.353553385 : f32
    %798 = vector.broadcast %cst_263 : f32 to vector<8x8xf32>
    %799 = arith.mulf %797, %798 : vector<8x8xf32>
    %cst_264 = arith.constant dense<0xFF800000> : vector<8xf32>
    %800 = vector.multi_reduction <maximumf>, %799, %cst_264 [1] : vector<8x8xf32> to vector<8xf32>
    %801 = vector.shape_cast %800 : vector<8xf32> to vector<8x1xf32>
    %802 = vector.broadcast %801 : vector<8x1xf32> to vector<8x8xf32>
    %803 = arith.subf %799, %802 : vector<8x8xf32>
    %804 = math.exp %803 : vector<8x8xf32>
    %cst_265 = arith.constant dense<0.000000e+00> : vector<8xf32>
    %805 = vector.multi_reduction <add>, %804, %cst_265 [1] : vector<8x8xf32> to vector<8xf32>
    %806 = vector.shape_cast %805 : vector<8xf32> to vector<8x1xf32>
    %807 = tpu.reciprocal %806 {approx = true} : vector<8x1xf32> -> vector<8x1xf32>
    %808 = vector.broadcast %807 : vector<8x1xf32> to vector<8x8xf32>
    %809 = arith.mulf %804, %808 : vector<8x8xf32>
    %810 = arith.truncf %809 : vector<8x8xf32> to vector<8x8xbf16>
    %cst_266 = arith.constant dense<0.000000e+00> : vector<8x8xf32>
    %811 = tpu.matmul %810, %796, %cst_266 {dimension_numbers = #tpu.dot_dimension_numbers<[1], [0], [0], [1], [0, 0, 1, 1], [], []>} : vector<8x8xbf16>, vector<8x8xbf16>, vector<8x8xf32> -> vector<8x8xf32>
    %812 = vector.extract_strided_slice %787 {offsets = [0, 8], sizes = [8, 8], strides = [1, 1]} : vector<8x32xf32> to vector<8x8xf32>
    %813 = arith.truncf %812 : vector<8x8xf32> to vector<8x8xbf16>
    %814 = vector.extract_strided_slice %790 {offsets = [8, 0], sizes = [8, 8], strides = [1, 1]} : vector<32x8xf32> to vector<8x8xf32>
    %815 = arith.truncf %814 : vector<8x8xf32> to vector<8x8xbf16>
    %816 = vector.extract_strided_slice %789 {offsets = [0, 8], sizes = [8, 8], strides = [1, 1]} : vector<8x32xf32> to vector<8x8xf32>
    %817 = arith.truncf %816 : vector<8x8xf32> to vector<8x8xbf16>
    %cst_267 = arith.constant dense<0.000000e+00> : vector<8x8xf32>
    %818 = tpu.matmul %813, %815, %cst_267 {dimension_numbers = #tpu.dot_dimension_numbers<[1], [0], [0], [1], [0, 0, 1, 1], [], []>} : vector<8x8xbf16>, vector<8x8xbf16>, vector<8x8xf32> -> vector<8x8xf32>
    %cst_268 = arith.constant 0.353553385 : f32
    %819 = vector.broadcast %cst_268 : f32 to vector<8x8xf32>
    %820 = arith.mulf %818, %819 : vector<8x8xf32>
    %cst_269 = arith.constant dense<0xFF800000> : vector<8xf32>
    %821 = vector.multi_reduction <maximumf>, %820, %cst_269 [1] : vector<8x8xf32> to vector<8xf32>
    %822 = vector.shape_cast %821 : vector<8xf32> to vector<8x1xf32>
    %823 = vector.broadcast %822 : vector<8x1xf32> to vector<8x8xf32>
    %824 = arith.subf %820, %823 : vector<8x8xf32>
    %825 = math.exp %824 : vector<8x8xf32>
    %cst_270 = arith.constant dense<0.000000e+00> : vector<8xf32>
    %826 = vector.multi_reduction <add>, %825, %cst_270 [1] : vector<8x8xf32> to vector<8xf32>
    %827 = vector.shape_cast %826 : vector<8xf32> to vector<8x1xf32>
    %828 = tpu.reciprocal %827 {approx = true} : vector<8x1xf32> -> vector<8x1xf32>
    %829 = vector.broadcast %828 : vector<8x1xf32> to vector<8x8xf32>
    %830 = arith.mulf %825, %829 : vector<8x8xf32>
    %831 = arith.truncf %830 : vector<8x8xf32> to vector<8x8xbf16>
    %cst_271 = arith.constant dense<0.000000e+00> : vector<8x8xf32>
    %832 = tpu.matmul %831, %817, %cst_271 {dimension_numbers = #tpu.dot_dimension_numbers<[1], [0], [0], [1], [0, 0, 1, 1], [], []>} : vector<8x8xbf16>, vector<8x8xbf16>, vector<8x8xf32> -> vector<8x8xf32>
    %833 = vector.extract_strided_slice %787 {offsets = [0, 16], sizes = [8, 8], strides = [1, 1]} : vector<8x32xf32> to vector<8x8xf32>
    %834 = arith.truncf %833 : vector<8x8xf32> to vector<8x8xbf16>
    %835 = vector.extract_strided_slice %790 {offsets = [16, 0], sizes = [8, 8], strides = [1, 1]} : vector<32x8xf32> to vector<8x8xf32>
    %836 = arith.truncf %835 : vector<8x8xf32> to vector<8x8xbf16>
    %837 = vector.extract_strided_slice %789 {offsets = [0, 16], sizes = [8, 8], strides = [1, 1]} : vector<8x32xf32> to vector<8x8xf32>
    %838 = arith.truncf %837 : vector<8x8xf32> to vector<8x8xbf16>
    %cst_272 = arith.constant dense<0.000000e+00> : vector<8x8xf32>
    %839 = tpu.matmul %834, %836, %cst_272 {dimension_numbers = #tpu.dot_dimension_numbers<[1], [0], [0], [1], [0, 0, 1, 1], [], []>} : vector<8x8xbf16>, vector<8x8xbf16>, vector<8x8xf32> -> vector<8x8xf32>
    %cst_273 = arith.constant 0.353553385 : f32
    %840 = vector.broadcast %cst_273 : f32 to vector<8x8xf32>
    %841 = arith.mulf %839, %840 : vector<8x8xf32>
    %cst_274 = arith.constant dense<0xFF800000> : vector<8xf32>
    %842 = vector.multi_reduction <maximumf>, %841, %cst_274 [1] : vector<8x8xf32> to vector<8xf32>
    %843 = vector.shape_cast %842 : vector<8xf32> to vector<8x1xf32>
    %844 = vector.broadcast %843 : vector<8x1xf32> to vector<8x8xf32>
    %845 = arith.subf %841, %844 : vector<8x8xf32>
    %846 = math.exp %845 : vector<8x8xf32>
    %cst_275 = arith.constant dense<0.000000e+00> : vector<8xf32>
    %847 = vector.multi_reduction <add>, %846, %cst_275 [1] : vector<8x8xf32> to vector<8xf32>
    %848 = vector.shape_cast %847 : vector<8xf32> to vector<8x1xf32>
    %849 = tpu.reciprocal %848 {approx = true} : vector<8x1xf32> -> vector<8x1xf32>
    %850 = vector.broadcast %849 : vector<8x1xf32> to vector<8x8xf32>
    %851 = arith.mulf %846, %850 : vector<8x8xf32>
    %852 = arith.truncf %851 : vector<8x8xf32> to vector<8x8xbf16>
    %cst_276 = arith.constant dense<0.000000e+00> : vector<8x8xf32>
    %853 = tpu.matmul %852, %838, %cst_276 {dimension_numbers = #tpu.dot_dimension_numbers<[1], [0], [0], [1], [0, 0, 1, 1], [], []>} : vector<8x8xbf16>, vector<8x8xbf16>, vector<8x8xf32> -> vector<8x8xf32>
    %854 = vector.extract_strided_slice %787 {offsets = [0, 24], sizes = [8, 8], strides = [1, 1]} : vector<8x32xf32> to vector<8x8xf32>
    %855 = arith.truncf %854 : vector<8x8xf32> to vector<8x8xbf16>
    %856 = vector.extract_strided_slice %790 {offsets = [24, 0], sizes = [8, 8], strides = [1, 1]} : vector<32x8xf32> to vector<8x8xf32>
    %857 = arith.truncf %856 : vector<8x8xf32> to vector<8x8xbf16>
    %858 = vector.extract_strided_slice %789 {offsets = [0, 24], sizes = [8, 8], strides = [1, 1]} : vector<8x32xf32> to vector<8x8xf32>
    %859 = arith.truncf %858 : vector<8x8xf32> to vector<8x8xbf16>
    %cst_277 = arith.constant dense<0.000000e+00> : vector<8x8xf32>
    %860 = tpu.matmul %855, %857, %cst_277 {dimension_numbers = #tpu.dot_dimension_numbers<[1], [0], [0], [1], [0, 0, 1, 1], [], []>} : vector<8x8xbf16>, vector<8x8xbf16>, vector<8x8xf32> -> vector<8x8xf32>
    %cst_278 = arith.constant 0.353553385 : f32
    %861 = vector.broadcast %cst_278 : f32 to vector<8x8xf32>
    %862 = arith.mulf %860, %861 : vector<8x8xf32>
    %cst_279 = arith.constant dense<0xFF800000> : vector<8xf32>
    %863 = vector.multi_reduction <maximumf>, %862, %cst_279 [1] : vector<8x8xf32> to vector<8xf32>
    %864 = vector.shape_cast %863 : vector<8xf32> to vector<8x1xf32>
    %865 = vector.broadcast %864 : vector<8x1xf32> to vector<8x8xf32>
    %866 = arith.subf %862, %865 : vector<8x8xf32>
    %867 = math.exp %866 : vector<8x8xf32>
    %cst_280 = arith.constant dense<0.000000e+00> : vector<8xf32>
    %868 = vector.multi_reduction <add>, %867, %cst_280 [1] : vector<8x8xf32> to vector<8xf32>
    %869 = vector.shape_cast %868 : vector<8xf32> to vector<8x1xf32>
    %870 = tpu.reciprocal %869 {approx = true} : vector<8x1xf32> -> vector<8x1xf32>
    %871 = vector.broadcast %870 : vector<8x1xf32> to vector<8x8xf32>
    %872 = arith.mulf %867, %871 : vector<8x8xf32>
    %873 = arith.truncf %872 : vector<8x8xf32> to vector<8x8xbf16>
    %cst_281 = arith.constant dense<0.000000e+00> : vector<8x8xf32>
    %874 = tpu.matmul %873, %859, %cst_281 {dimension_numbers = #tpu.dot_dimension_numbers<[1], [0], [0], [1], [0, 0, 1, 1], [], []>} : vector<8x8xbf16>, vector<8x8xbf16>, vector<8x8xf32> -> vector<8x8xf32>
    %875 = tpu.concatenate %811, %832, %853, %874 in 1 : vector<8x8xf32>, vector<8x8xf32>, vector<8x8xf32>, vector<8x8xf32> -> vector<8x32xf32>
    %876 = arith.truncf %875 : vector<8x32xf32> to vector<8x32xbf16>
    %cst_282 = arith.constant dense<0.000000e+00> : vector<8x32xf32>
    %877 = tpu.matmul %876, %768, %cst_282 {dimension_numbers = #tpu.dot_dimension_numbers<[1], [0], [0], [1], [0, 0, 1, 1], [], []>} : vector<8x32xbf16>, vector<32x32xbf16>, vector<8x32xf32> -> vector<8x32xf32>
    %878 = vector.broadcast %771 : vector<1x32xf32> to vector<8x32xf32>
    %879 = arith.addf %877, %878 : vector<8x32xf32>
    %880 = arith.addf %762, %879 : vector<8x32xf32>
    %cst_283 = arith.constant dense<0.000000e+00> : vector<8xf32>
    %881 = vector.multi_reduction <add>, %880, %cst_283 [1] : vector<8x32xf32> to vector<8xf32>
    %882 = vector.shape_cast %881 : vector<8xf32> to vector<8x1xf32>
    %cst_284 = arith.constant 3.200000e+01 : f32
    %883 = vector.broadcast %cst_284 : f32 to vector<8x1xf32>
    %884 = arith.divf %882, %883 : vector<8x1xf32>
    %885 = vector.broadcast %884 : vector<8x1xf32> to vector<8x32xf32>
    %886 = arith.subf %880, %885 : vector<8x32xf32>
    %887 = arith.mulf %886, %886 : vector<8x32xf32>
    %cst_285 = arith.constant dense<0.000000e+00> : vector<8xf32>
    %888 = vector.multi_reduction <add>, %887, %cst_285 [1] : vector<8x32xf32> to vector<8xf32>
    %889 = vector.shape_cast %888 : vector<8xf32> to vector<8x1xf32>
    %cst_286 = arith.constant 3.200000e+01 : f32
    %890 = vector.broadcast %cst_286 : f32 to vector<8x1xf32>
    %891 = arith.divf %889, %890 : vector<8x1xf32>
    %892 = vector.broadcast %884 : vector<8x1xf32> to vector<8x32xf32>
    %893 = arith.subf %880, %892 : vector<8x32xf32>
    %cst_287 = arith.constant 9.99999996E-13 : f32
    %894 = vector.broadcast %cst_287 : f32 to vector<8x1xf32>
    %895 = arith.addf %891, %894 : vector<8x1xf32>
    %896 = math.rsqrt %895 : vector<8x1xf32>
    %897 = vector.broadcast %896 : vector<8x1xf32> to vector<8x32xf32>
    %898 = arith.mulf %893, %897 : vector<8x32xf32>
    %899 = vector.broadcast %772 : vector<1x32xf32> to vector<8x32xf32>
    %900 = arith.mulf %898, %899 : vector<8x32xf32>
    %901 = vector.broadcast %773 : vector<1x32xf32> to vector<8x32xf32>
    %902 = arith.addf %900, %901 : vector<8x32xf32>
    %903 = arith.truncf %902 : vector<8x32xf32> to vector<8x32xbf16>
    %cst_288 = arith.constant dense<0.000000e+00> : vector<8x64xf32>
    %904 = tpu.matmul %903, %778, %cst_288 {dimension_numbers = #tpu.dot_dimension_numbers<[1], [0], [0], [1], [0, 0, 1, 1], [], []>} : vector<8x32xbf16>, vector<32x64xbf16>, vector<8x64xf32> -> vector<8x64xf32>
    %905 = vector.broadcast %780 : vector<1x64xf32> to vector<8x64xf32>
    %906 = arith.addf %904, %905 : vector<8x64xf32>
    %cst_289 = arith.constant 5.000000e-01 : f32
    %907 = vector.broadcast %cst_289 : f32 to vector<8x64xf32>
    %908 = arith.mulf %907, %906 : vector<8x64xf32>
    %cst_290 = arith.constant 4.471500e-02 : f32
    %909 = vector.broadcast %cst_290 : f32 to vector<8x64xf32>
    %910 = arith.mulf %909, %906 : vector<8x64xf32>
    %911 = arith.mulf %910, %906 : vector<8x64xf32>
    %912 = arith.mulf %911, %906 : vector<8x64xf32>
    %913 = arith.addf %906, %912 : vector<8x64xf32>
    %cst_291 = arith.constant 0.797884583 : f32
    %914 = vector.broadcast %cst_291 : f32 to vector<8x64xf32>
    %915 = arith.mulf %914, %913 : vector<8x64xf32>
    %916 = math.tanh %915 : vector<8x64xf32>
    %cst_292 = arith.constant 1.000000e+00 : f32
    %917 = vector.broadcast %cst_292 : f32 to vector<8x64xf32>
    %918 = arith.addf %917, %916 : vector<8x64xf32>
    %919 = arith.mulf %908, %918 : vector<8x64xf32>
    %920 = arith.truncf %919 : vector<8x64xf32> to vector<8x64xbf16>
    %cst_293 = arith.constant dense<0.000000e+00> : vector<8x32xf32>
    %921 = tpu.matmul %920, %782, %cst_293 {dimension_numbers = #tpu.dot_dimension_numbers<[1], [0], [0], [1], [0, 0, 1, 1], [], []>} : vector<8x64xbf16>, vector<64x32xbf16>, vector<8x32xf32> -> vector<8x32xf32>
    %922 = vector.broadcast %774 : vector<1x32xf32> to vector<8x32xf32>
    %923 = arith.addf %921, %922 : vector<8x32xf32>
    %924 = arith.addf %902, %923 : vector<8x32xf32>
    %cst_294 = arith.constant dense<0.000000e+00> : vector<8xf32>
    %925 = vector.multi_reduction <add>, %924, %cst_294 [1] : vector<8x32xf32> to vector<8xf32>
    %926 = vector.shape_cast %925 : vector<8xf32> to vector<8x1xf32>
    %cst_295 = arith.constant 3.200000e+01 : f32
    %927 = vector.broadcast %cst_295 : f32 to vector<8x1xf32>
    %928 = arith.divf %926, %927 : vector<8x1xf32>
    %929 = vector.broadcast %928 : vector<8x1xf32> to vector<8x32xf32>
    %930 = arith.subf %924, %929 : vector<8x32xf32>
    %931 = arith.mulf %930, %930 : vector<8x32xf32>
    %cst_296 = arith.constant dense<0.000000e+00> : vector<8xf32>
    %932 = vector.multi_reduction <add>, %931, %cst_296 [1] : vector<8x32xf32> to vector<8xf32>
    %933 = vector.shape_cast %932 : vector<8xf32> to vector<8x1xf32>
    %cst_297 = arith.constant 3.200000e+01 : f32
    %934 = vector.broadcast %cst_297 : f32 to vector<8x1xf32>
    %935 = arith.divf %933, %934 : vector<8x1xf32>
    %936 = vector.broadcast %928 : vector<8x1xf32> to vector<8x32xf32>
    %937 = arith.subf %924, %936 : vector<8x32xf32>
    %cst_298 = arith.constant 9.99999996E-13 : f32
    %938 = vector.broadcast %cst_298 : f32 to vector<8x1xf32>
    %939 = arith.addf %935, %938 : vector<8x1xf32>
    %940 = math.rsqrt %939 : vector<8x1xf32>
    %941 = vector.broadcast %940 : vector<8x1xf32> to vector<8x32xf32>
    %942 = arith.mulf %937, %941 : vector<8x32xf32>
    %943 = vector.broadcast %775 : vector<1x32xf32> to vector<8x32xf32>
    %944 = arith.mulf %942, %943 : vector<8x32xf32>
    %945 = vector.broadcast %776 : vector<1x32xf32> to vector<8x32xf32>
    %946 = arith.addf %944, %945 : vector<8x32xf32>
    %c5 = arith.constant 5 : index
    %c0_299 = arith.constant 0 : index
    %c0_300 = arith.constant 0 : index
    %947 = vector.load %arg3[%c5, %c0_299, %c0_300] : memref<6x32x96xbf16, #tpu.memory_space<vmem>>, vector<1x32x96xbf16>
    %948 = vector.shape_cast %947 : vector<1x32x96xbf16> to vector<32x96xbf16>
    %c5_301 = arith.constant 5 : index
    %c0_302 = arith.constant 0 : index
    %c0_303 = arith.constant 0 : index
    %949 = vector.load %arg4[%c5_301, %c0_302, %c0_303] : memref<6x1x96xf32, #tpu.memory_space<vmem>>, vector<1x1x96xf32>
    %950 = vector.shape_cast %949 : vector<1x1x96xf32> to vector<1x96xf32>
    %c5_304 = arith.constant 5 : index
    %c0_305 = arith.constant 0 : index
    %c0_306 = arith.constant 0 : index
    %951 = vector.load %arg5[%c5_304, %c0_305, %c0_306] : memref<6x32x32xbf16, #tpu.memory_space<vmem>>, vector<1x32x32xbf16>
    %952 = vector.shape_cast %951 : vector<1x32x32xbf16> to vector<32x32xbf16>
    %c5_307 = arith.constant 5 : index
    %c0_308 = arith.constant 0 : index
    %c0_309 = arith.constant 0 : index
    %953 = vector.load %arg6[%c5_307, %c0_308, %c0_309] : memref<6x6x32xf32, #tpu.memory_space<vmem>>, vector<1x6x32xf32>
    %954 = vector.shape_cast %953 : vector<1x6x32xf32> to vector<6x32xf32>
    %955 = vector.extract_strided_slice %954 {offsets = [0, 0], sizes = [1, 32], strides = [1, 1]} : vector<6x32xf32> to vector<1x32xf32>
    %956 = vector.extract_strided_slice %954 {offsets = [1, 0], sizes = [1, 32], strides = [1, 1]} : vector<6x32xf32> to vector<1x32xf32>
    %957 = vector.extract_strided_slice %954 {offsets = [2, 0], sizes = [1, 32], strides = [1, 1]} : vector<6x32xf32> to vector<1x32xf32>
    %958 = vector.extract_strided_slice %954 {offsets = [3, 0], sizes = [1, 32], strides = [1, 1]} : vector<6x32xf32> to vector<1x32xf32>
    %959 = vector.extract_strided_slice %954 {offsets = [4, 0], sizes = [1, 32], strides = [1, 1]} : vector<6x32xf32> to vector<1x32xf32>
    %960 = vector.extract_strided_slice %954 {offsets = [5, 0], sizes = [1, 32], strides = [1, 1]} : vector<6x32xf32> to vector<1x32xf32>
    %c5_310 = arith.constant 5 : index
    %c0_311 = arith.constant 0 : index
    %c0_312 = arith.constant 0 : index
    %961 = vector.load %arg7[%c5_310, %c0_311, %c0_312] : memref<6x32x64xbf16, #tpu.memory_space<vmem>>, vector<1x32x64xbf16>
    %962 = vector.shape_cast %961 : vector<1x32x64xbf16> to vector<32x64xbf16>
    %c5_313 = arith.constant 5 : index
    %c0_314 = arith.constant 0 : index
    %c0_315 = arith.constant 0 : index
    %963 = vector.load %arg8[%c5_313, %c0_314, %c0_315] : memref<6x1x64xf32, #tpu.memory_space<vmem>>, vector<1x1x64xf32>
    %964 = vector.shape_cast %963 : vector<1x1x64xf32> to vector<1x64xf32>
    %c5_316 = arith.constant 5 : index
    %c0_317 = arith.constant 0 : index
    %c0_318 = arith.constant 0 : index
    %965 = vector.load %arg9[%c5_316, %c0_317, %c0_318] : memref<6x64x32xbf16, #tpu.memory_space<vmem>>, vector<1x64x32xbf16>
    %966 = vector.shape_cast %965 : vector<1x64x32xbf16> to vector<64x32xbf16>
    %967 = arith.truncf %946 : vector<8x32xf32> to vector<8x32xbf16>
    %cst_319 = arith.constant dense<0.000000e+00> : vector<8x96xf32>
    %968 = tpu.matmul %967, %948, %cst_319 {dimension_numbers = #tpu.dot_dimension_numbers<[1], [0], [0], [1], [0, 0, 1, 1], [], []>} : vector<8x32xbf16>, vector<32x96xbf16>, vector<8x96xf32> -> vector<8x96xf32>
    %969 = vector.broadcast %950 : vector<1x96xf32> to vector<8x96xf32>
    %970 = arith.addf %968, %969 : vector<8x96xf32>
    %971 = vector.extract_strided_slice %970 {offsets = [0, 0], sizes = [8, 32], strides = [1, 1]} : vector<8x96xf32> to vector<8x32xf32>
    %972 = vector.extract_strided_slice %970 {offsets = [0, 32], sizes = [8, 32], strides = [1, 1]} : vector<8x96xf32> to vector<8x32xf32>
    %973 = vector.extract_strided_slice %970 {offsets = [0, 64], sizes = [8, 32], strides = [1, 1]} : vector<8x96xf32> to vector<8x32xf32>
    %974 = tpu.transpose %972, [1, 0] : vector<8x32xf32> -> vector<32x8xf32>
    %975 = vector.extract_strided_slice %971 {offsets = [0, 0], sizes = [8, 8], strides = [1, 1]} : vector<8x32xf32> to vector<8x8xf32>
    %976 = arith.truncf %975 : vector<8x8xf32> to vector<8x8xbf16>
    %977 = vector.extract_strided_slice %974 {offsets = [0, 0], sizes = [8, 8], strides = [1, 1]} : vector<32x8xf32> to vector<8x8xf32>
    %978 = arith.truncf %977 : vector<8x8xf32> to vector<8x8xbf16>
    %979 = vector.extract_strided_slice %973 {offsets = [0, 0], sizes = [8, 8], strides = [1, 1]} : vector<8x32xf32> to vector<8x8xf32>
    %980 = arith.truncf %979 : vector<8x8xf32> to vector<8x8xbf16>
    %cst_320 = arith.constant dense<0.000000e+00> : vector<8x8xf32>
    %981 = tpu.matmul %976, %978, %cst_320 {dimension_numbers = #tpu.dot_dimension_numbers<[1], [0], [0], [1], [0, 0, 1, 1], [], []>} : vector<8x8xbf16>, vector<8x8xbf16>, vector<8x8xf32> -> vector<8x8xf32>
    %cst_321 = arith.constant 0.353553385 : f32
    %982 = vector.broadcast %cst_321 : f32 to vector<8x8xf32>
    %983 = arith.mulf %981, %982 : vector<8x8xf32>
    %cst_322 = arith.constant dense<0xFF800000> : vector<8xf32>
    %984 = vector.multi_reduction <maximumf>, %983, %cst_322 [1] : vector<8x8xf32> to vector<8xf32>
    %985 = vector.shape_cast %984 : vector<8xf32> to vector<8x1xf32>
    %986 = vector.broadcast %985 : vector<8x1xf32> to vector<8x8xf32>
    %987 = arith.subf %983, %986 : vector<8x8xf32>
    %988 = math.exp %987 : vector<8x8xf32>
    %cst_323 = arith.constant dense<0.000000e+00> : vector<8xf32>
    %989 = vector.multi_reduction <add>, %988, %cst_323 [1] : vector<8x8xf32> to vector<8xf32>
    %990 = vector.shape_cast %989 : vector<8xf32> to vector<8x1xf32>
    %991 = tpu.reciprocal %990 {approx = true} : vector<8x1xf32> -> vector<8x1xf32>
    %992 = vector.broadcast %991 : vector<8x1xf32> to vector<8x8xf32>
    %993 = arith.mulf %988, %992 : vector<8x8xf32>
    %994 = arith.truncf %993 : vector<8x8xf32> to vector<8x8xbf16>
    %cst_324 = arith.constant dense<0.000000e+00> : vector<8x8xf32>
    %995 = tpu.matmul %994, %980, %cst_324 {dimension_numbers = #tpu.dot_dimension_numbers<[1], [0], [0], [1], [0, 0, 1, 1], [], []>} : vector<8x8xbf16>, vector<8x8xbf16>, vector<8x8xf32> -> vector<8x8xf32>
    %996 = vector.extract_strided_slice %971 {offsets = [0, 8], sizes = [8, 8], strides = [1, 1]} : vector<8x32xf32> to vector<8x8xf32>
    %997 = arith.truncf %996 : vector<8x8xf32> to vector<8x8xbf16>
    %998 = vector.extract_strided_slice %974 {offsets = [8, 0], sizes = [8, 8], strides = [1, 1]} : vector<32x8xf32> to vector<8x8xf32>
    %999 = arith.truncf %998 : vector<8x8xf32> to vector<8x8xbf16>
    %1000 = vector.extract_strided_slice %973 {offsets = [0, 8], sizes = [8, 8], strides = [1, 1]} : vector<8x32xf32> to vector<8x8xf32>
    %1001 = arith.truncf %1000 : vector<8x8xf32> to vector<8x8xbf16>
    %cst_325 = arith.constant dense<0.000000e+00> : vector<8x8xf32>
    %1002 = tpu.matmul %997, %999, %cst_325 {dimension_numbers = #tpu.dot_dimension_numbers<[1], [0], [0], [1], [0, 0, 1, 1], [], []>} : vector<8x8xbf16>, vector<8x8xbf16>, vector<8x8xf32> -> vector<8x8xf32>
    %cst_326 = arith.constant 0.353553385 : f32
    %1003 = vector.broadcast %cst_326 : f32 to vector<8x8xf32>
    %1004 = arith.mulf %1002, %1003 : vector<8x8xf32>
    %cst_327 = arith.constant dense<0xFF800000> : vector<8xf32>
    %1005 = vector.multi_reduction <maximumf>, %1004, %cst_327 [1] : vector<8x8xf32> to vector<8xf32>
    %1006 = vector.shape_cast %1005 : vector<8xf32> to vector<8x1xf32>
    %1007 = vector.broadcast %1006 : vector<8x1xf32> to vector<8x8xf32>
    %1008 = arith.subf %1004, %1007 : vector<8x8xf32>
    %1009 = math.exp %1008 : vector<8x8xf32>
    %cst_328 = arith.constant dense<0.000000e+00> : vector<8xf32>
    %1010 = vector.multi_reduction <add>, %1009, %cst_328 [1] : vector<8x8xf32> to vector<8xf32>
    %1011 = vector.shape_cast %1010 : vector<8xf32> to vector<8x1xf32>
    %1012 = tpu.reciprocal %1011 {approx = true} : vector<8x1xf32> -> vector<8x1xf32>
    %1013 = vector.broadcast %1012 : vector<8x1xf32> to vector<8x8xf32>
    %1014 = arith.mulf %1009, %1013 : vector<8x8xf32>
    %1015 = arith.truncf %1014 : vector<8x8xf32> to vector<8x8xbf16>
    %cst_329 = arith.constant dense<0.000000e+00> : vector<8x8xf32>
    %1016 = tpu.matmul %1015, %1001, %cst_329 {dimension_numbers = #tpu.dot_dimension_numbers<[1], [0], [0], [1], [0, 0, 1, 1], [], []>} : vector<8x8xbf16>, vector<8x8xbf16>, vector<8x8xf32> -> vector<8x8xf32>
    %1017 = vector.extract_strided_slice %971 {offsets = [0, 16], sizes = [8, 8], strides = [1, 1]} : vector<8x32xf32> to vector<8x8xf32>
    %1018 = arith.truncf %1017 : vector<8x8xf32> to vector<8x8xbf16>
    %1019 = vector.extract_strided_slice %974 {offsets = [16, 0], sizes = [8, 8], strides = [1, 1]} : vector<32x8xf32> to vector<8x8xf32>
    %1020 = arith.truncf %1019 : vector<8x8xf32> to vector<8x8xbf16>
    %1021 = vector.extract_strided_slice %973 {offsets = [0, 16], sizes = [8, 8], strides = [1, 1]} : vector<8x32xf32> to vector<8x8xf32>
    %1022 = arith.truncf %1021 : vector<8x8xf32> to vector<8x8xbf16>
    %cst_330 = arith.constant dense<0.000000e+00> : vector<8x8xf32>
    %1023 = tpu.matmul %1018, %1020, %cst_330 {dimension_numbers = #tpu.dot_dimension_numbers<[1], [0], [0], [1], [0, 0, 1, 1], [], []>} : vector<8x8xbf16>, vector<8x8xbf16>, vector<8x8xf32> -> vector<8x8xf32>
    %cst_331 = arith.constant 0.353553385 : f32
    %1024 = vector.broadcast %cst_331 : f32 to vector<8x8xf32>
    %1025 = arith.mulf %1023, %1024 : vector<8x8xf32>
    %cst_332 = arith.constant dense<0xFF800000> : vector<8xf32>
    %1026 = vector.multi_reduction <maximumf>, %1025, %cst_332 [1] : vector<8x8xf32> to vector<8xf32>
    %1027 = vector.shape_cast %1026 : vector<8xf32> to vector<8x1xf32>
    %1028 = vector.broadcast %1027 : vector<8x1xf32> to vector<8x8xf32>
    %1029 = arith.subf %1025, %1028 : vector<8x8xf32>
    %1030 = math.exp %1029 : vector<8x8xf32>
    %cst_333 = arith.constant dense<0.000000e+00> : vector<8xf32>
    %1031 = vector.multi_reduction <add>, %1030, %cst_333 [1] : vector<8x8xf32> to vector<8xf32>
    %1032 = vector.shape_cast %1031 : vector<8xf32> to vector<8x1xf32>
    %1033 = tpu.reciprocal %1032 {approx = true} : vector<8x1xf32> -> vector<8x1xf32>
    %1034 = vector.broadcast %1033 : vector<8x1xf32> to vector<8x8xf32>
    %1035 = arith.mulf %1030, %1034 : vector<8x8xf32>
    %1036 = arith.truncf %1035 : vector<8x8xf32> to vector<8x8xbf16>
    %cst_334 = arith.constant dense<0.000000e+00> : vector<8x8xf32>
    %1037 = tpu.matmul %1036, %1022, %cst_334 {dimension_numbers = #tpu.dot_dimension_numbers<[1], [0], [0], [1], [0, 0, 1, 1], [], []>} : vector<8x8xbf16>, vector<8x8xbf16>, vector<8x8xf32> -> vector<8x8xf32>
    %1038 = vector.extract_strided_slice %971 {offsets = [0, 24], sizes = [8, 8], strides = [1, 1]} : vector<8x32xf32> to vector<8x8xf32>
    %1039 = arith.truncf %1038 : vector<8x8xf32> to vector<8x8xbf16>
    %1040 = vector.extract_strided_slice %974 {offsets = [24, 0], sizes = [8, 8], strides = [1, 1]} : vector<32x8xf32> to vector<8x8xf32>
    %1041 = arith.truncf %1040 : vector<8x8xf32> to vector<8x8xbf16>
    %1042 = vector.extract_strided_slice %973 {offsets = [0, 24], sizes = [8, 8], strides = [1, 1]} : vector<8x32xf32> to vector<8x8xf32>
    %1043 = arith.truncf %1042 : vector<8x8xf32> to vector<8x8xbf16>
    %cst_335 = arith.constant dense<0.000000e+00> : vector<8x8xf32>
    %1044 = tpu.matmul %1039, %1041, %cst_335 {dimension_numbers = #tpu.dot_dimension_numbers<[1], [0], [0], [1], [0, 0, 1, 1], [], []>} : vector<8x8xbf16>, vector<8x8xbf16>, vector<8x8xf32> -> vector<8x8xf32>
    %cst_336 = arith.constant 0.353553385 : f32
    %1045 = vector.broadcast %cst_336 : f32 to vector<8x8xf32>
    %1046 = arith.mulf %1044, %1045 : vector<8x8xf32>
    %cst_337 = arith.constant dense<0xFF800000> : vector<8xf32>
    %1047 = vector.multi_reduction <maximumf>, %1046, %cst_337 [1] : vector<8x8xf32> to vector<8xf32>
    %1048 = vector.shape_cast %1047 : vector<8xf32> to vector<8x1xf32>
    %1049 = vector.broadcast %1048 : vector<8x1xf32> to vector<8x8xf32>
    %1050 = arith.subf %1046, %1049 : vector<8x8xf32>
    %1051 = math.exp %1050 : vector<8x8xf32>
    %cst_338 = arith.constant dense<0.000000e+00> : vector<8xf32>
    %1052 = vector.multi_reduction <add>, %1051, %cst_338 [1] : vector<8x8xf32> to vector<8xf32>
    %1053 = vector.shape_cast %1052 : vector<8xf32> to vector<8x1xf32>
    %1054 = tpu.reciprocal %1053 {approx = true} : vector<8x1xf32> -> vector<8x1xf32>
    %1055 = vector.broadcast %1054 : vector<8x1xf32> to vector<8x8xf32>
    %1056 = arith.mulf %1051, %1055 : vector<8x8xf32>
    %1057 = arith.truncf %1056 : vector<8x8xf32> to vector<8x8xbf16>
    %cst_339 = arith.constant dense<0.000000e+00> : vector<8x8xf32>
    %1058 = tpu.matmul %1057, %1043, %cst_339 {dimension_numbers = #tpu.dot_dimension_numbers<[1], [0], [0], [1], [0, 0, 1, 1], [], []>} : vector<8x8xbf16>, vector<8x8xbf16>, vector<8x8xf32> -> vector<8x8xf32>
    %1059 = tpu.concatenate %995, %1016, %1037, %1058 in 1 : vector<8x8xf32>, vector<8x8xf32>, vector<8x8xf32>, vector<8x8xf32> -> vector<8x32xf32>
    %1060 = arith.truncf %1059 : vector<8x32xf32> to vector<8x32xbf16>
    %cst_340 = arith.constant dense<0.000000e+00> : vector<8x32xf32>
    %1061 = tpu.matmul %1060, %952, %cst_340 {dimension_numbers = #tpu.dot_dimension_numbers<[1], [0], [0], [1], [0, 0, 1, 1], [], []>} : vector<8x32xbf16>, vector<32x32xbf16>, vector<8x32xf32> -> vector<8x32xf32>
    %1062 = vector.broadcast %955 : vector<1x32xf32> to vector<8x32xf32>
    %1063 = arith.addf %1061, %1062 : vector<8x32xf32>
    %1064 = arith.addf %946, %1063 : vector<8x32xf32>
    %cst_341 = arith.constant dense<0.000000e+00> : vector<8xf32>
    %1065 = vector.multi_reduction <add>, %1064, %cst_341 [1] : vector<8x32xf32> to vector<8xf32>
    %1066 = vector.shape_cast %1065 : vector<8xf32> to vector<8x1xf32>
    %cst_342 = arith.constant 3.200000e+01 : f32
    %1067 = vector.broadcast %cst_342 : f32 to vector<8x1xf32>
    %1068 = arith.divf %1066, %1067 : vector<8x1xf32>
    %1069 = vector.broadcast %1068 : vector<8x1xf32> to vector<8x32xf32>
    %1070 = arith.subf %1064, %1069 : vector<8x32xf32>
    %1071 = arith.mulf %1070, %1070 : vector<8x32xf32>
    %cst_343 = arith.constant dense<0.000000e+00> : vector<8xf32>
    %1072 = vector.multi_reduction <add>, %1071, %cst_343 [1] : vector<8x32xf32> to vector<8xf32>
    %1073 = vector.shape_cast %1072 : vector<8xf32> to vector<8x1xf32>
    %cst_344 = arith.constant 3.200000e+01 : f32
    %1074 = vector.broadcast %cst_344 : f32 to vector<8x1xf32>
    %1075 = arith.divf %1073, %1074 : vector<8x1xf32>
    %1076 = vector.broadcast %1068 : vector<8x1xf32> to vector<8x32xf32>
    %1077 = arith.subf %1064, %1076 : vector<8x32xf32>
    %cst_345 = arith.constant 9.99999996E-13 : f32
    %1078 = vector.broadcast %cst_345 : f32 to vector<8x1xf32>
    %1079 = arith.addf %1075, %1078 : vector<8x1xf32>
    %1080 = math.rsqrt %1079 : vector<8x1xf32>
    %1081 = vector.broadcast %1080 : vector<8x1xf32> to vector<8x32xf32>
    %1082 = arith.mulf %1077, %1081 : vector<8x32xf32>
    %1083 = vector.broadcast %956 : vector<1x32xf32> to vector<8x32xf32>
    %1084 = arith.mulf %1082, %1083 : vector<8x32xf32>
    %1085 = vector.broadcast %957 : vector<1x32xf32> to vector<8x32xf32>
    %1086 = arith.addf %1084, %1085 : vector<8x32xf32>
    %1087 = arith.truncf %1086 : vector<8x32xf32> to vector<8x32xbf16>
    %cst_346 = arith.constant dense<0.000000e+00> : vector<8x64xf32>
    %1088 = tpu.matmul %1087, %962, %cst_346 {dimension_numbers = #tpu.dot_dimension_numbers<[1], [0], [0], [1], [0, 0, 1, 1], [], []>} : vector<8x32xbf16>, vector<32x64xbf16>, vector<8x64xf32> -> vector<8x64xf32>
    %1089 = vector.broadcast %964 : vector<1x64xf32> to vector<8x64xf32>
    %1090 = arith.addf %1088, %1089 : vector<8x64xf32>
    %cst_347 = arith.constant 5.000000e-01 : f32
    %1091 = vector.broadcast %cst_347 : f32 to vector<8x64xf32>
    %1092 = arith.mulf %1091, %1090 : vector<8x64xf32>
    %cst_348 = arith.constant 4.471500e-02 : f32
    %1093 = vector.broadcast %cst_348 : f32 to vector<8x64xf32>
    %1094 = arith.mulf %1093, %1090 : vector<8x64xf32>
    %1095 = arith.mulf %1094, %1090 : vector<8x64xf32>
    %1096 = arith.mulf %1095, %1090 : vector<8x64xf32>
    %1097 = arith.addf %1090, %1096 : vector<8x64xf32>
    %cst_349 = arith.constant 0.797884583 : f32
    %1098 = vector.broadcast %cst_349 : f32 to vector<8x64xf32>
    %1099 = arith.mulf %1098, %1097 : vector<8x64xf32>
    %1100 = math.tanh %1099 : vector<8x64xf32>
    %cst_350 = arith.constant 1.000000e+00 : f32
    %1101 = vector.broadcast %cst_350 : f32 to vector<8x64xf32>
    %1102 = arith.addf %1101, %1100 : vector<8x64xf32>
    %1103 = arith.mulf %1092, %1102 : vector<8x64xf32>
    %1104 = arith.truncf %1103 : vector<8x64xf32> to vector<8x64xbf16>
    %cst_351 = arith.constant dense<0.000000e+00> : vector<8x32xf32>
    %1105 = tpu.matmul %1104, %966, %cst_351 {dimension_numbers = #tpu.dot_dimension_numbers<[1], [0], [0], [1], [0, 0, 1, 1], [], []>} : vector<8x64xbf16>, vector<64x32xbf16>, vector<8x32xf32> -> vector<8x32xf32>
    %1106 = vector.broadcast %958 : vector<1x32xf32> to vector<8x32xf32>
    %1107 = arith.addf %1105, %1106 : vector<8x32xf32>
    %1108 = arith.addf %1086, %1107 : vector<8x32xf32>
    %cst_352 = arith.constant dense<0.000000e+00> : vector<8xf32>
    %1109 = vector.multi_reduction <add>, %1108, %cst_352 [1] : vector<8x32xf32> to vector<8xf32>
    %1110 = vector.shape_cast %1109 : vector<8xf32> to vector<8x1xf32>
    %cst_353 = arith.constant 3.200000e+01 : f32
    %1111 = vector.broadcast %cst_353 : f32 to vector<8x1xf32>
    %1112 = arith.divf %1110, %1111 : vector<8x1xf32>
    %1113 = vector.broadcast %1112 : vector<8x1xf32> to vector<8x32xf32>
    %1114 = arith.subf %1108, %1113 : vector<8x32xf32>
    %1115 = arith.mulf %1114, %1114 : vector<8x32xf32>
    %cst_354 = arith.constant dense<0.000000e+00> : vector<8xf32>
    %1116 = vector.multi_reduction <add>, %1115, %cst_354 [1] : vector<8x32xf32> to vector<8xf32>
    %1117 = vector.shape_cast %1116 : vector<8xf32> to vector<8x1xf32>
    %cst_355 = arith.constant 3.200000e+01 : f32
    %1118 = vector.broadcast %cst_355 : f32 to vector<8x1xf32>
    %1119 = arith.divf %1117, %1118 : vector<8x1xf32>
    %1120 = vector.broadcast %1112 : vector<8x1xf32> to vector<8x32xf32>
    %1121 = arith.subf %1108, %1120 : vector<8x32xf32>
    %cst_356 = arith.constant 9.99999996E-13 : f32
    %1122 = vector.broadcast %cst_356 : f32 to vector<8x1xf32>
    %1123 = arith.addf %1119, %1122 : vector<8x1xf32>
    %1124 = math.rsqrt %1123 : vector<8x1xf32>
    %1125 = vector.broadcast %1124 : vector<8x1xf32> to vector<8x32xf32>
    %1126 = arith.mulf %1121, %1125 : vector<8x32xf32>
    %1127 = vector.broadcast %959 : vector<1x32xf32> to vector<8x32xf32>
    %1128 = arith.mulf %1126, %1127 : vector<8x32xf32>
    %1129 = vector.broadcast %960 : vector<1x32xf32> to vector<8x32xf32>
    %1130 = arith.addf %1128, %1129 : vector<8x32xf32>
    %cst_357 = arith.constant dense<0.000000e+00> : vector<32xf32>
    %1131 = vector.multi_reduction <add>, %1130, %cst_357 [0] : vector<8x32xf32> to vector<32xf32>
    %1132 = vector.shape_cast %1131 : vector<32xf32> to vector<1x32xf32>
    %cst_358 = arith.constant 8.000000e+00 : f32
    %1133 = vector.broadcast %cst_358 : f32 to vector<1x32xf32>
    %1134 = arith.divf %1132, %1133 : vector<1x32xf32>
    %c0_359 = arith.constant 0 : index
    %c0_360 = arith.constant 0 : index
    %c0_361 = arith.constant 0 : index
    %1135 = vector.load %arg10[%c0_359, %c0_360, %c0_361] : memref<1x1x32xf32, #tpu.memory_space<vmem>>, vector<1x1x32xf32>
    %1136 = vector.shape_cast %1135 : vector<1x1x32xf32> to vector<1x32xf32>
    %1137 = vector.shape_cast %1134 : vector<1x32xf32> to vector<1x1x32xf32>
    tpu.vector_store %arg10[%c0_359, %c0_360, %c0_361], %1137 {strides = array<i32>} : memref<1x1x32xf32, #tpu.memory_space<vmem>>, vector<1x1x32xf32>,
    return
  }
  func.func @transform_0(%arg0: i32) -> (i32, i32, i32) {
    %c0_i32 = arith.constant 0 : i32
    %c0_i32_0 = arith.constant 0 : i32
    %c0_i32_1 = arith.constant 0 : i32
    return %arg0, %c0_i32, %c0_i32_0 : i32, i32, i32
  }
  func.func @transform_1(%arg0: i32) -> (i32, i32) {
    %c0_i32 = arith.constant 0 : i32
    %c0_i32_0 = arith.constant 0 : i32
    %c0_i32_1 = arith.constant 0 : i32
    return %c0_i32, %c0_i32_0 : i32, i32
  }
  func.func @transform_2(%arg0: i32) -> (i32, i32, i32) {
    %c0_i32 = arith.constant 0 : i32
    %c0_i32_0 = arith.constant 0 : i32
    %c0_i32_1 = arith.constant 0 : i32
    %c0_i32_2 = arith.constant 0 : i32
    return %c0_i32, %c0_i32_0, %c0_i32_1 : i32, i32, i32
  }
  func.func @transform_3(%arg0: i32) -> (i32, i32, i32) {
    %c0_i32 = arith.constant 0 : i32
    %c0_i32_0 = arith.constant 0 : i32
    %c0_i32_1 = arith.constant 0 : i32
    %c0_i32_2 = arith.constant 0 : i32
    return %c0_i32, %c0_i32_0, %c0_i32_1 : i32, i32, i32
  }
  func.func @transform_4(%arg0: i32) -> (i32, i32, i32) {
    %c0_i32 = arith.constant 0 : i32
    %c0_i32_0 = arith.constant 0 : i32
    %c0_i32_1 = arith.constant 0 : i32
    %c0_i32_2 = arith.constant 0 : i32
    return %c0_i32, %c0_i32_0, %c0_i32_1 : i32, i32, i32
  }
  func.func @transform_5(%arg0: i32) -> (i32, i32, i32) {
    %c0_i32 = arith.constant 0 : i32
    %c0_i32_0 = arith.constant 0 : i32
    %c0_i32_1 = arith.constant 0 : i32
    %c0_i32_2 = arith.constant 0 : i32
    return %c0_i32, %c0_i32_0, %c0_i32_1 : i32, i32, i32
  }
  func.func @transform_6(%arg0: i32) -> (i32, i32, i32) {
    %c0_i32 = arith.constant 0 : i32
    %c0_i32_0 = arith.constant 0 : i32
    %c0_i32_1 = arith.constant 0 : i32
    %c0_i32_2 = arith.constant 0 : i32
    return %c0_i32, %c0_i32_0, %c0_i32_1 : i32, i32, i32
  }
  func.func @transform_7(%arg0: i32) -> (i32, i32, i32) {
    %c0_i32 = arith.constant 0 : i32
    %c0_i32_0 = arith.constant 0 : i32
    %c0_i32_1 = arith.constant 0 : i32
    %c0_i32_2 = arith.constant 0 : i32
    return %c0_i32, %c0_i32_0, %c0_i32_1 : i32, i32, i32
  }
  func.func @transform_8(%arg0: i32) -> (i32, i32, i32) {
    %c0_i32 = arith.constant 0 : i32
    %c0_i32_0 = arith.constant 0 : i32
    %c0_i32_1 = arith.constant 0 : i32
    %c0_i32_2 = arith.constant 0 : i32
    return %c0_i32, %c0_i32_0, %c0_i32_1 : i32, i32, i32
  }
  func.func @transform_9(%arg0: i32) -> (i32, i32, i32) {
    %c0_i32 = arith.constant 0 : i32
    %c0_i32_0 = arith.constant 0 : i32
    %c0_i32_1 = arith.constant 0 : i32
    return %arg0, %c0_i32, %c0_i32_0 : i32, i32, i32
  }
}

</mosaic_0001>

<llo_original>
// kernel: geneformer_forward.1
$region0: #{geneformer_forward.1}
  #allocation0 [shape = 'u32[]', space=smem, size = 0x4, offset = 0x4, fixed_abs, tag = 'smem constant byte address 0x4 - core index']
  #allocation1 [shape = 'u32[144,128]{1,0:T(1,128)}', space=vmem, size = 0x12000, scoped, tag = 'internal scratch']
  %s0 = inlined_call_operand.vmem [shape: f32[2,8,32], index: 0, kind: input, shape index: {}]
  %s1 = inlined_call_operand.vmem [shape: f32[2,32], index: 1, kind: input, shape index: {}]
  %s2 = inlined_call_operand.vmem [shape: bf16[6,32,96], index: 2, kind: input, shape index: {}]
  %s3 = inlined_call_operand.vmem [shape: f32[6,1,96], index: 3, kind: input, shape index: {}]
  %s4 = inlined_call_operand.vmem [shape: bf16[6,32,32], index: 4, kind: input, shape index: {}]
  %s5 = inlined_call_operand.vmem [shape: f32[6,6,32], index: 5, kind: input, shape index: {}]
  %s6 = inlined_call_operand.vmem [shape: bf16[6,32,64], index: 6, kind: input, shape index: {}]
  %s7 = inlined_call_operand.vmem [shape: f32[6,1,64], index: 7, kind: input, shape index: {}]
  %s8 = inlined_call_operand.vmem [shape: bf16[6,64,32], index: 8, kind: input, shape index: {}]
  %s9 = inlined_call_operand.hbm [shape: f32[2,1,32], index: 9, kind: output, shape index: {}]
  %s10 = sld [smem:[#allocation0]]
  $region69: #{geneformer_forward.1} parent=0
    _
  %s12 = ssub.s32 1, %s10
  %s13 = scalar_select 0, %s12, %s10
  $region1: #{geneformer_forward.1} parent=0
    #allocation2 [shape = 'u8[1024]{0}', space=vmem, size = 0x400, scoped, tag = 'output window, operand 0']
    #allocation3 [shape = 's32[2]{0}', space=sflag, size = 0x8, scoped, tag = 'scoped memory for geneformer_forward.1']
    %14 = vsyncpa [#allocation3], 0
    %s15 = scalar_lea.sflag [#allocation3], 1
    %16 = vsyncpa %s15, 0
    loop: start=0, step=1, limit=4
    $region2: #{geneformer_forward.1} parent=1 // loop_pre_header
      _
    $region3: #{geneformer_forward.1} parent=1 // loop_header
      %s18 = sphi 0, %s22
      %p19 = scmp.ge.s32.totalorder %s18, 4
      %s28 = sphi 0, %s30
      %s31 = sphi 0, %s28
      %s32 = sphi 0, %s31
      %s48 = sphi 0, %s32
      %s52 = sphi 0, %s52
      %s54 = sphi 0, %s52
      %s55 = sphi 0, %s54
      %s69 = sphi 0, %s55
      %s73 = sphi 0, %s73
      %s75 = sphi 0, %s73
      %s76 = sphi 0, %s75
      %s90 = sphi 0, %s76
      %s94 = sphi 0, %s94
      %s96 = sphi 0, %s94
      %s97 = sphi 0, %s96
      %s111 = sphi 0, %s97
      %s115 = sphi 0, %s115
      %s117 = sphi 0, %s115
      %s118 = sphi 0, %s117
      %s132 = sphi 0, %s118
      %s136 = sphi 0, %s136
      %s138 = sphi 0, %s136
      %s139 = sphi 0, %s138
      %s153 = sphi 0, %s139
      %s157 = sphi 0, %s157
      %s159 = sphi 0, %s157
      %s160 = sphi 0, %s159
      %s174 = sphi 0, %s160
      %s178 = sphi 0, %s178
      %s180 = sphi 0, %s178
      %s181 = sphi 0, %s180
      %s195 = sphi 0, %s181
      %s199 = sphi 0, %s199
      %s201 = sphi 0, %s199
      %s202 = sphi 0, %s201
      %s216 = sphi 0, %s202
      %s222 = sphi 0, %s224
      %s225 = sphi 0, %s222
      %s226 = sphi 0, %s225
      %s242 = sphi 0, %s226
    $region4: #{geneformer_forward.1} parent=1 // loop_header_branch
      %21 = sbr.rel (%p19) target = $region8
    $region5: #{geneformer_forward.1} parent=1 // loop_body
      %s23 = ssub.s32 %s18, 1
      %s24 = ssub.s32 %s18, 2
      %s25 = sadd.s32 %s18, 1
      %s26 = ssub.s32 %s18, %s25
      %p27 = scmp.eq.s32.totalorder %s26, 0
      %s29 = sadd.s32 %s28, 1
      %s30 = scalar_select %p27, %s28, %s29
      %p33 = pneg %p27
      %p34 = scmp.eq.s32.totalorder %s18, 1
      %p35 = por %p33, %p34
      %p36 = scmp.ne.s32.totalorder %s28, %s31
      %p37 = scmp.eq.s32.totalorder %s18, 0
      %p38 = por %p36, %p37
      %p39 = scmp.ne.s32.totalorder %s28, %s31
      %p40 = scmp.eq.s32.totalorder %s23, 1
      %p41 = por %p39, %p40
      %p42 = scmp.ne.s32.totalorder %s31, %s32
      %p43 = scmp.eq.s32.totalorder %s23, 0
      %p44 = por %p42, %p43
      %p45 = scmp.ne.s32.totalorder %s31, %s32
      %p46 = scmp.eq.s32.totalorder %s24, 1
      %p47 = por %p45, %p46
      %p49 = scmp.ne.s32.totalorder %s32, %s48
      %p50 = scmp.eq.s32.totalorder %s24, 0
      %p51 = por %p49, %p50
      %s53 = sadd.s32 %s52, 1
      %p56 = scmp.eq.s32.totalorder %s18, 1
      %p57 = scmp.ne.s32.totalorder %s52, %s54
      %p58 = scmp.eq.s32.totalorder %s18, 0
      %p59 = por %p57, %p58
      %p60 = scmp.ne.s32.totalorder %s52, %s54
      %p61 = scmp.eq.s32.totalorder %s23, 1
      %p62 = por %p60, %p61
      %p63 = scmp.ne.s32.totalorder %s54, %s55
      %p64 = scmp.eq.s32.totalorder %s23, 0
      %p65 = por %p63, %p64
      %p66 = scmp.ne.s32.totalorder %s54, %s55
      %p67 = scmp.eq.s32.totalorder %s24, 1
      %p68 = por %p66, %p67
      %p70 = scmp.ne.s32.totalorder %s55, %s69
      %p71 = scmp.eq.s32.totalorder %s24, 0
      %p72 = por %p70, %p71
      %s74 = sadd.s32 %s73, 1
      %p77 = scmp.eq.s32.totalorder %s18, 1
      %p78 = scmp.ne.s32.totalorder %s73, %s75
      %p79 = scmp.eq.s32.totalorder %s18, 0
      %p80 = por %p78, %p79
      %p81 = scmp.ne.s32.totalorder %s73, %s75
      %p82 = scmp.eq.s32.totalorder %s23, 1
      %p83 = por %p81, %p82
      %p84 = scmp.ne.s32.totalorder %s75, %s76
      %p85 = scmp.eq.s32.totalorder %s23, 0
      %p86 = por %p84, %p85
      %p87 = scmp.ne.s32.totalorder %s75, %s76
      %p88 = scmp.eq.s32.totalorder %s24, 1
      %p89 = por %p87, %p88
      %p91 = scmp.ne.s32.totalorder %s76, %s90
      %p92 = scmp.eq.s32.totalorder %s24, 0
      %p93 = por %p91, %p92
      %s95 = sadd.s32 %s94, 1
      %p98 = scmp.eq.s32.totalorder %s18, 1
      %p99 = scmp.ne.s32.totalorder %s94, %s96
      %p100 = scmp.eq.s32.totalorder %s18, 0
      %p101 = por %p99, %p100
      %p102 = scmp.ne.s32.totalorder %s94, %s96
      %p103 = scmp.eq.s32.totalorder %s23, 1
      %p104 = por %p102, %p103
      %p105 = scmp.ne.s32.totalorder %s96, %s97
      %p106 = scmp.eq.s32.totalorder %s23, 0
      %p107 = por %p105, %p106
      %p108 = scmp.ne.s32.totalorder %s96, %s97
      %p109 = scmp.eq.s32.totalorder %s24, 1
      %p110 = por %p108, %p109
      %p112 = scmp.ne.s32.totalorder %s97, %s111
      %p113 = scmp.eq.s32.totalorder %s24, 0
      %p114 = por %p112, %p113
      %s116 = sadd.s32 %s115, 1
      %p119 = scmp.eq.s32.totalorder %s18, 1
      %p120 = scmp.ne.s32.totalorder %s115, %s117
      %p121 = scmp.eq.s32.totalorder %s18, 0
      %p122 = por %p120, %p121
      %p123 = scmp.ne.s32.totalorder %s115, %s117
      %p124 = scmp.eq.s32.totalorder %s23, 1
      %p125 = por %p123, %p124
      %p126 = scmp.ne.s32.totalorder %s117, %s118
      %p127 = scmp.eq.s32.totalorder %s23, 0
      %p128 = por %p126, %p127
      %p129 = scmp.ne.s32.totalorder %s117, %s118
      %p130 = scmp.eq.s32.totalorder %s24, 1
      %p131 = por %p129, %p130
      %p133 = scmp.ne.s32.totalorder %s118, %s132
      %p134 = scmp.eq.s32.totalorder %s24, 0
      %p135 = por %p133, %p134
      %s137 = sadd.s32 %s136, 1
      %p140 = scmp.eq.s32.totalorder %s18, 1
      %p141 = scmp.ne.s32.totalorder %s136, %s138
      %p142 = scmp.eq.s32.totalorder %s18, 0
      %p143 = por %p141, %p142
      %p144 = scmp.ne.s32.totalorder %s136, %s138
      %p145 = scmp.eq.s32.totalorder %s23, 1
      %p146 = por %p144, %p145
      %p147 = scmp.ne.s32.totalorder %s138, %s139
      %p148 = scmp.eq.s32.totalorder %s23, 0
      %p149 = por %p147, %p148
      %p150 = scmp.ne.s32.totalorder %s138, %s139
      %p151 = scmp.eq.s32.totalorder %s24, 1
      %p152 = por %p150, %p151
      %p154 = scmp.ne.s32.totalorder %s139, %s153
      %p155 = scmp.eq.s32.totalorder %s24, 0
      %p156 = por %p154, %p155
      %s158 = sadd.s32 %s157, 1
      %p161 = scmp.eq.s32.totalorder %s18, 1
      %p162 = scmp.ne.s32.totalorder %s157, %s159
      %p163 = scmp.eq.s32.totalorder %s18, 0
      %p164 = por %p162, %p163
      %p165 = scmp.ne.s32.totalorder %s157, %s159
      %p166 = scmp.eq.s32.totalorder %s23, 1
      %p167 = por %p165, %p166
      %p168 = scmp.ne.s32.totalorder %s159, %s160
      %p169 = scmp.eq.s32.totalorder %s23, 0
      %p170 = por %p168, %p169
      %p171 = scmp.ne.s32.totalorder %s159, %s160
      %p172 = scmp.eq.s32.totalorder %s24, 1
      %p173 = por %p171, %p172
      %p175 = scmp.ne.s32.totalorder %s160, %s174
      %p176 = scmp.eq.s32.totalorder %s24, 0
      %p177 = por %p175, %p176
      %s179 = sadd.s32 %s178, 1
      %p182 = scmp.eq.s32.totalorder %s18, 1
      %p183 = scmp.ne.s32.totalorder %s178, %s180
      %p184 = scmp.eq.s32.totalorder %s18, 0
      %p185 = por %p183, %p184
      %p186 = scmp.ne.s32.totalorder %s178, %s180
      %p187 = scmp.eq.s32.totalorder %s23, 1
      %p188 = por %p186, %p187
      %p189 = scmp.ne.s32.totalorder %s180, %s181
      %p190 = scmp.eq.s32.totalorder %s23, 0
      %p191 = por %p189, %p190
      %p192 = scmp.ne.s32.totalorder %s180, %s181
      %p193 = scmp.eq.s32.totalorder %s24, 1
      %p194 = por %p192, %p193
      %p196 = scmp.ne.s32.totalorder %s181, %s195
      %p197 = scmp.eq.s32.totalorder %s24, 0
      %p198 = por %p196, %p197
      %s200 = sadd.s32 %s199, 1
      %p203 = scmp.eq.s32.totalorder %s18, 1
      %p204 = scmp.ne.s32.totalorder %s199, %s201
      %p205 = scmp.eq.s32.totalorder %s18, 0
      %p206 = por %p204, %p205
      %p207 = scmp.ne.s32.totalorder %s199, %s201
      %p208 = scmp.eq.s32.totalorder %s23, 1
      %p209 = por %p207, %p208
      %p210 = scmp.ne.s32.totalorder %s201, %s202
      %p211 = scmp.eq.s32.totalorder %s23, 0
      %p212 = por %p210, %p211
      %p213 = scmp.ne.s32.totalorder %s201, %s202
      %p214 = scmp.eq.s32.totalorder %s24, 1
      %p215 = por %p213, %p214
      %p217 = scmp.ne.s32.totalorder %s202, %s216
      %p218 = scmp.eq.s32.totalorder %s24, 0
      %p219 = por %p217, %p218
      %s220 = ssub.s32 %s18, %s25
      %p221 = scmp.eq.s32.totalorder %s220, 0
      %s223 = sadd.s32 %s222, 1
      %s224 = scalar_select %p221, %s222, %s223
      %p227 = pneg %p221
      %p228 = scmp.eq.s32.totalorder %s18, 1
      %p229 = por %p227, %p228
      %p230 = scmp.ne.s32.totalorder %s222, %s225
      %p231 = scmp.eq.s32.totalorder %s18, 0
      %p232 = por %p230, %p231
      %p233 = scmp.ne.s32.totalorder %s222, %s225
      %p234 = scmp.eq.s32.totalorder %s23, 1
      %p235 = por %p233, %p234
      %p236 = scmp.ne.s32.totalorder %s225, %s226
      %p237 = scmp.eq.s32.totalorder %s23, 0
      %p238 = por %p236, %p237
      %p239 = scmp.ne.s32.totalorder %s225, %s226
      %p240 = scmp.eq.s32.totalorder %s24, 1
      %p241 = por %p239, %p240
      %p243 = scmp.ne.s32.totalorder %s226, %s242
      %p244 = scmp.eq.s32.totalorder %s24, 0
      %p245 = por %p243, %p244
      %p246 = scmp.le.s32.totalorder 1, %s18
      %p247 = scmp.lt.s32.totalorder %s18, 3
      %p248 = pnand %p246, %p247
      %p249 = pneg %p248
      // Predicated region
      $region9: #{geneformer_forward.1} parent=5 // pred_check
        _
      $region10: #{geneformer_forward.1} parent=5 // pred_check_branch
        %251 = sbr.rel (%p248) target = $region12
      $region11: #{geneformer_forward.1} parent=5 // pred_region
        %s252 = ssub.s32 %s18, 1
        // Predicated region
        $region13: #{geneformer_forward.1} parent=11 // pred_check
          %p253 = pneg %p65
        $region14: #{geneformer_forward.1} parent=11 // pred_check_branch
          %255 = sbr.rel (%p253) target = $region16
        $region15: #{geneformer_forward.1} parent=11 // pred_region
          _
        $region16: #{geneformer_forward.1} parent=11 // pred_fallthru
          _
        // Predicated region
        $region17: #{geneformer_forward.1} parent=11 // pred_check
          %p256 = pneg %p86
        $region18: #{geneformer_forward.1} parent=11 // pred_check_branch
          %258 = sbr.rel (%p256) target = $region20
        $region19: #{geneformer_forward.1} parent=11 // pred_region
          _
        $region20: #{geneformer_forward.1} parent=11 // pred_fallthru
          _
        // Predicated region
        $region21: #{geneformer_forward.1} parent=11 // pred_check
          %p259 = pneg %p107
        $region22: #{geneformer_forward.1} parent=11 // pred_check_branch
          %261 = sbr.rel (%p259) target = $region24
        $region23: #{geneformer_forward.1} parent=11 // pred_region
          _
        $region24: #{geneformer_forward.1} parent=11 // pred_fallthru
          _
        // Predicated region
        $region25: #{geneformer_forward.1} parent=11 // pred_check
          %p262 = pneg %p128
        $region26: #{geneformer_forward.1} parent=11 // pred_check_branch
          %264 = sbr.rel (%p262) target = $region28
        $region27: #{geneformer_forward.1} parent=11 // pred_region
          _
        $region28: #{geneformer_forward.1} parent=11 // pred_fallthru
          _
        // Predicated region
        $region29: #{geneformer_forward.1} parent=11 // pred_check
          %p265 = pneg %p149
        $region30: #{geneformer_forward.1} parent=11 // pred_check_branch
          %267 = sbr.rel (%p265) target = $region32
        $region31: #{geneformer_forward.1} parent=11 // pred_region
          _
        $region32: #{geneformer_forward.1} parent=11 // pred_fallthru
          _
        // Predicated region
        $region33: #{geneformer_forward.1} parent=11 // pred_check
          %p268 = pneg %p170
        $region34: #{geneformer_forward.1} parent=11 // pred_check_branch
          %270 = sbr.rel (%p268) target = $region36
        $region35: #{geneformer_forward.1} parent=11 // pred_region
          _
        $region36: #{geneformer_forward.1} parent=11 // pred_fallthru
          _
        // Predicated region
        $region37: #{geneformer_forward.1} parent=11 // pred_check
          %p271 = pneg %p191
        $region38: #{geneformer_forward.1} parent=11 // pred_check_branch
          %273 = sbr.rel (%p271) target = $region40
        $region39: #{geneformer_forward.1} parent=11 // pred_region
          _
        $region40: #{geneformer_forward.1} parent=11 // pred_fallthru
          _
        // Predicated region
        $region41: #{geneformer_forward.1} parent=11 // pred_check
          %p274 = pneg %p212
        $region42: #{geneformer_forward.1} parent=11 // pred_check_branch
          %276 = sbr.rel (%p274) target = $region44
        $region43: #{geneformer_forward.1} parent=11 // pred_region
          _
        $region44: #{geneformer_forward.1} parent=11 // pred_fallthru
          _
      $region12: #{geneformer_forward.1} parent=5 // pred_fallthru
        _
      %p277 = scmp.lt.s32.totalorder %s18, 2
      // Predicated region
      $region45: #{geneformer_forward.1} parent=5 // pred_check
        %p278 = pneg %p277
      $region46: #{geneformer_forward.1} parent=5 // pred_check_branch
        %280 = sbr.rel (%p278) target = $region48
      $region47: #{geneformer_forward.1} parent=5 // pred_region
        // Predicated region
        $region49: #{geneformer_forward.1} parent=47 // pred_check
          %p281 = pneg %p38
        $region50: #{geneformer_forward.1} parent=47 // pred_check_branch
          %283 = sbr.rel (%p281) target = $region52
        $region51: #{geneformer_forward.1} parent=47 // pred_region
          %p284 = scmp.lt.s32.totalorder %s18, 1
          %s285 = scalar_select %p284, %s18, 1
          %s286 = smul.addr %s285, 8
          %s287 = scalar_lea.vmem %s0, %s286
        $region52: #{geneformer_forward.1} parent=47 // pred_fallthru
          _
      $region48: #{geneformer_forward.1} parent=5 // pred_fallthru
        _
      %p288 = scmp.le.s32.totalorder 1, %s18
      %p289 = scmp.lt.s32.totalorder %s18, 3
      %p290 = pnand %p288, %p289
      %p291 = pneg %p290
      // Predicated region
      $region53: #{geneformer_forward.1} parent=5 // pred_check
        _
      $region54: #{geneformer_forward.1} parent=5 // pred_check_branch
        %293 = sbr.rel (%p290) target = $region56
      $region55: #{geneformer_forward.1} parent=5 // pred_region
        %s294 = ssub.s32 %s18, 1
        %p295 = scmp.lt.s32.totalorder %s23, 1
        %s296 = scalar_select %p295, %s23, 1
        %s297 = smul.addr %s296, 8
        %s298 = scalar_lea.vmem %s0, %s297
        %p299 = pneg %p44
        %p300 = pneg %p41
        %p301 = pneg %p65
        %p302 = pneg %p62
        %p303 = pneg %p86
        %p304 = pneg %p83
        %p305 = pneg %p107
        %p306 = pneg %p104
        %p307 = pneg %p128
        %p308 = pneg %p125
        %p309 = pneg %p149
        %p310 = pneg %p146
        %p311 = pneg %p170
        %p312 = pneg %p167
        %p313 = pneg %p191
        %p314 = pneg %p188
        %p315 = pneg %p212
        %p316 = pneg %p209
        %p317 = pneg %p238
        %p318 = pneg %p235
        %s319 = sand.u32 %s225, 1
        %s320 = scalar_lea.sflag [#allocation3], %s319
        %s321 = sand.u32 %s225, 1
        %s322 = scalar_lea.vmem [#allocation2], %s321
        %p323 = scmp.lt.s32.totalorder %s23, 1
        %s324 = scalar_select %p323, %s23, 1
        %s325 = smul.addr %s324, 8
        %s326 = scalar_lea.vmem %s0, %s325
        %v328 = vld [vmem:[%s1] sm:$0x3]
        %v329 = vld [vmem:[%s326] sm:$0xff]
        %vm330 = vcmask 261120
        %v331 = vsel %vm330, %v329, 0.0
        %332 = vadd.xlane.f32.xlu0 %v331
        %v333 = vpop.xlane.xlu0 %332
        %v334 = vrcp.pop 32.0
        %v335 = vmul.f32 %v333, %v334
        %v336 = vsub.f32 %v329, %v335
        %v337 = vmul.f32 %v336, %v336
        %v338 = vsel %vm330, %v337, 0.0
        %339 = vadd.xlane.f32.xlu0 %v338
        %v340 = vpop.xlane.xlu0 %339
        %v341 = vmul.f32 %v340, %v334
        %v342 = vadd.f32 %v341, 1e-12
        %v343 = vrsqrt.pop %v342
        %v344 = vmul.f32 %v336, %v343
        %v345 = vlaneseq
        %v346 = vshrl.u32 %v345, 7
        %v347 = vsub.s32 0, %v346
        %v348 = vrot.slane %v328, %v347
        %v349 = vmul.f32 %v344, %v348
        %v350 = vlaneseq
        %v351 = vshrl.u32 %v350, 7
        %v352 = vsub.s32 1, %v351
        %v353 = vrot.slane %v328, %v352
        %v354 = vadd.f32 %v349, %v353
        %v355 = vld [vmem:[%s2] sm:$0xf]
        %v356 = vld [vmem:[%s2 + $0x4] sm:$0xf]
        %v357 = vld [vmem:[%s2 + $0x8] sm:$0xf]
        %v358 = vld [vmem:[%s2 + $0xc] sm:$0xf]
        %v359 = vld [vmem:[%s3] sm:$0x1]
        %v360 = vld [vmem:[%s4] sm:$0xf]
        %v361 = vld [vmem:[%s4 + $0x4] sm:$0xf]
        %v362 = vld [vmem:[%s4 + $0x8] sm:$0xf]
        %v363 = vld [vmem:[%s4 + $0xc] sm:$0xf]
        %v364 = vld [vmem:[%s5] sm:$0x3f]
        %v365 = vld [vmem:[%s6] sm:$0xf]
        %v366 = vld [vmem:[%s6 + $0x4] sm:$0xf]
        %v367 = vld [vmem:[%s6 + $0x8] sm:$0xf]
        %v368 = vld [vmem:[%s6 + $0xc] sm:$0xf]
        %v369 = vld [vmem:[%s7] sm:$0x1]
        %v370 = vld [vmem:[%s8] sm:$0xf]
        %v371 = vld [vmem:[%s8 + $0x4] sm:$0xf]
        %v372 = vld [vmem:[%s8 + $0x8] sm:$0xf]
        %v373 = vld [vmem:[%s8 + $0xc] sm:$0xf]
        %v374 = vld [vmem:[%s8 + $0x10] sm:$0xf]
        %v375 = vld [vmem:[%s8 + $0x14] sm:$0xf]
        %v376 = vld [vmem:[%s8 + $0x18] sm:$0xf]
        %v377 = vld [vmem:[%s8 + $0x1c] sm:$0xf]
        %v378 = vpack.c.bf16 %v354, %v354
        %v380 = vlaneseq
        %v381 = vshrl.u32 %v380, 7
        %v382 = vsub.s32 0, %v381
        %v383 = vrot.slane %v359, %v382
        %v389 = vunpack.c.l.b16 %v355
        %v390 = vunpack.c.l.b16 %v356
        %v391 = vunpack.c.l.b16 %v357
        %v392 = vunpack.c.l.b16 %v358
        %v393 = vpack.c.b16 %v390, %v389
        %v394 = vpack.c.b16 %v392, %v391
        %v398 = vsel %vm330, %v378, 0
        %400 = vmatprep.subr.bf16.mxu0 0
        %401 = vmatpush1.bf16.msra.mxu0 %v393
        %402 = vmatprep.subr.bf16.mxu0 0
        %403 = vmatpush1.bf16.msra.mxu0 %v394
        %404 = vmatprep.subr.bf16.mxu0 0
        %405 = vmatpush1.bf16.msra.mxu0 0
        %406 = vmatprep.subr.bf16.mxu0 0
        %407 = vmatpush1.bf16.msra.mxu0 0
        %408 = vmatprep.subr.bf16.mxu0 0
        %409 = vmatpush1.bf16.msra.mxu0 0
        %410 = vmatprep.subr.bf16.mxu0 0
        %411 = vmatpush1.bf16.msra.mxu0 0
        %412 = vmatprep.subr.bf16.mxu0 0
        %413 = vmatpush1.bf16.msra.mxu0 0
        %414 = vmatprep.subr.bf16.mxu0 0
        %415 = vmatpush1.bf16.msra.mxu0 0
        %416 = vmatprep.subr.bf16.mxu0 0
        %417 = vmatpush1.bf16.msra.mxu0 0
        %418 = vmatprep.subr.bf16.mxu0 0
        %419 = vmatpush1.bf16.msra.mxu0 0
        %420 = vmatprep.subr.bf16.mxu0 0
        %421 = vmatpush1.bf16.msra.mxu0 0
        %422 = vmatprep.subr.bf16.mxu0 0
        %423 = vmatpush1.bf16.msra.mxu0 0
        %424 = vmatprep.subr.bf16.mxu0 0
        %425 = vmatpush1.bf16.msra.mxu0 0
        %426 = vmatprep.subr.bf16.mxu0 0
        %427 = vmatpush1.bf16.msra.mxu0 0
        %428 = vmatprep.subr.bf16.mxu0 0
        %429 = vmatpush1.bf16.msra.mxu0 0
        %430 = vmatprep.subr.bf16.mxu0 0
        %431 = vmatpush1.bf16.msra.mxu0 0
        %432 = vmatprep.mubr.bf16.mxu0 0
        %433 = vmatmul.mubr.bf16.gmra.mrb[0].mxu0 %v398
        %v434 = vpop.f32.mrb[0].mxu0
        %v435 = vadd.f32 %v383, %v434
        %v436 = vpop.f32.mrb[0].mxu0
        %v437 = vpop.f32.mrb[0].mxu0
        %v438 = vpop.f32.mrb[0].mxu0
        %439 = vdwg.mxu0
        %441 = vrot.lane.b32.xlu0 %v435, 96
        %v442 = vpop.permute.xlu0 %441
        %444 = vxpose.xlu0.b32.start [1/16] %v442, 128
        %445 = vxpose.xlu0.b32.cont [2/16] 0.0, 128
        %446 = vxpose.xlu0.b32.cont [3/16] 0.0, 128
        %447 = vxpose.xlu0.b32.cont [4/16] 0.0, 128
        %448 = vxpose.xlu0.b32.cont [5/16] 0.0, 128
        %449 = vxpose.xlu0.b32.cont [6/16] 0.0, 128
        %450 = vxpose.xlu0.b32.cont [7/16] 0.0, 128
        %451 = vxpose.xlu0.b32.cont [8/16] 0.0, 128
        %452 = vxpose.xlu0.b32.cont [9/16] 0.0, 128
        %453 = vxpose.xlu0.b32.cont [10/16] 0.0, 128
        %454 = vxpose.xlu0.b32.cont [11/16] 0.0, 128
        %455 = vxpose.xlu0.b32.cont [12/16] 0.0, 128
        %456 = vxpose.xlu0.b32.cont [13/16] 0.0, 128
        %457 = vxpose.xlu0.b32.cont [14/16] 0.0, 128
        %458 = vxpose.xlu0.b32.cont [15/16] 0.0, 128
        %459 = vxpose.xlu0.b32.end [16/16] 0.0, 128
        %v460 = vpop.trf.xlu0
        %v461 = vpop.trf.xlu0
        %v462 = vpop.trf.xlu0
        %v463 = vpop.trf.xlu0
        %v464 = vpop.trf.xlu0
        %v465 = vpop.trf.xlu0
        %v466 = vpop.trf.xlu0
        %v467 = vpop.trf.xlu0
        %v468 = vpop.trf.xlu0
        %v469 = vpop.trf.xlu0
        %v470 = vpop.trf.xlu0
        %v471 = vpop.trf.xlu0
        %v472 = vpop.trf.xlu0
        %v473 = vpop.trf.xlu0
        %v474 = vpop.trf.xlu0
        %v475 = vpop.trf.xlu0
        %v476 = vpack.c.bf16 %v435, %v435
        %v477 = vpack.c.bf16 %v460, %v460
        %vm478 = vcmask 64512
        %v480 = vsel %vm478, %v476, 0
        %vm482 = vcmask 1043456
        %v484 = vsel %vm482, %v477, 0
        %486 = vmatprep.subr.bf16.mxu0 0
        %487 = vmatpush1.bf16.msra.mxu0 %v484
        %488 = vmatprep.subr.bf16.mxu0 0
        %489 = vmatpush1.bf16.msra.mxu0 0
        %490 = vmatprep.subr.bf16.mxu0 0
        %491 = vmatpush1.bf16.msra.mxu0 0
        %492 = vmatprep.subr.bf16.mxu0 0
        %493 = vmatpush1.bf16.msra.mxu0 0
        %494 = vmatprep.subr.bf16.mxu0 0
        %495 = vmatpush1.bf16.msra.mxu0 0
        %496 = vmatprep.subr.bf16.mxu0 0
        %497 = vmatpush1.bf16.msra.mxu0 0
        %498 = vmatprep.subr.bf16.mxu0 0
        %499 = vmatpush1.bf16.msra.mxu0 0
        %500 = vmatprep.subr.bf16.mxu0 0
        %501 = vmatpush1.bf16.msra.mxu0 0
        %502 = vmatprep.subr.bf16.mxu0 0
        %503 = vmatpush1.bf16.msra.mxu0 0
        %504 = vmatprep.subr.bf16.mxu0 0
        %505 = vmatpush1.bf16.msra.mxu0 0
        %506 = vmatprep.subr.bf16.mxu0 0
        %507 = vmatpush1.bf16.msra.mxu0 0
        %508 = vmatprep.subr.bf16.mxu0 0
        %509 = vmatpush1.bf16.msra.mxu0 0
        %510 = vmatprep.subr.bf16.mxu0 0
        %511 = vmatpush1.bf16.msra.mxu0 0
        %512 = vmatprep.subr.bf16.mxu0 0
        %513 = vmatpush1.bf16.msra.mxu0 0
        %514 = vmatprep.subr.bf16.mxu0 0
        %515 = vmatpush1.bf16.msra.mxu0 0
        %516 = vmatprep.subr.bf16.mxu0 0
        %517 = vmatpush1.bf16.msra.mxu0 0
        %518 = vmatprep.mubr.bf16.mxu0 0
        %519 = vmatmul.mubr.bf16.gmra.mrb[0].mxu0 %v480
        %v520 = vpop.f32.mrb[0].mxu0
        %v521 = vadd.f32 0.0, %v520
        %v522 = vpop.f32.mrb[0].mxu0
        %v523 = vpop.f32.mrb[0].mxu0
        %v524 = vpop.f32.mrb[0].mxu0
        %525 = vdwg.mxu0
        %v526 = vmul.f32 %v521, 0.35355338
        %v527 = vsel %vm478, %v526, -inf
        %528 = vmax.xlane.f32.xlu0 %v527
        %v529 = vpop.xlane.xlu0 %528
        %v530 = vsub.f32 %v526, %v529
        %v531 = vmul.f32 %v530, 1.442695
        %v532 = vpow.pop %v531
        %v533 = vsel %vm478, %v532, 0.0
        %534 = vadd.xlane.f32.xlu0 %v533
        %v535 = vpop.xlane.xlu0 %534
        %v536 = vrcp.pop %v535
        %v537 = vmul.f32 %v532, %v536
        %v538 = vpack.c.bf16 %v537, %v537
        %540 = vrot.lane.b32.xlu0 %v476, 64
        %v541 = vpop.permute.xlu0 %540
        %v543 = vsel %vm478, %v538, 0
        %v546 = vsel %vm482, %v541, 0
        %548 = vmatprep.subr.bf16.mxu0 0
        %549 = vmatpush1.bf16.msra.mxu0 %v546
        %550 = vmatprep.subr.bf16.mxu0 0
        %551 = vmatpush1.bf16.msra.mxu0 0
        %552 = vmatprep.subr.bf16.mxu0 0
        %553 = vmatpush1.bf16.msra.mxu0 0
        %554 = vmatprep.subr.bf16.mxu0 0
        %555 = vmatpush1.bf16.msra.mxu0 0
        %556 = vmatprep.subr.bf16.mxu0 0
        %557 = vmatpush1.bf16.msra.mxu0 0
        %558 = vmatprep.subr.bf16.mxu0 0
        %559 = vmatpush1.bf16.msra.mxu0 0
        %560 = vmatprep.subr.bf16.mxu0 0
        %561 = vmatpush1.bf16.msra.mxu0 0
        %562 = vmatprep.subr.bf16.mxu0 0
        %563 = vmatpush1.bf16.msra.mxu0 0
        %564 = vmatprep.subr.bf16.mxu0 0
        %565 = vmatpush1.bf16.msra.mxu0 0
        %566 = vmatprep.subr.bf16.mxu0 0
        %567 = vmatpush1.bf16.msra.mxu0 0
        %568 = vmatprep.subr.bf16.mxu0 0
        %569 = vmatpush1.bf16.msra.mxu0 0
        %570 = vmatprep.subr.bf16.mxu0 0
        %571 = vmatpush1.bf16.msra.mxu0 0
        %572 = vmatprep.subr.bf16.mxu0 0
        %573 = vmatpush1.bf16.msra.mxu0 0
        %574 = vmatprep.subr.bf16.mxu0 0
        %575 = vmatpush1.bf16.msra.mxu0 0
        %576 = vmatprep.subr.bf16.mxu0 0
        %577 = vmatpush1.bf16.msra.mxu0 0
        %578 = vmatprep.subr.bf16.mxu0 0
        %579 = vmatpush1.bf16.msra.mxu0 0
        %580 = vmatprep.mubr.bf16.mxu0 0
        %581 = vmatmul.mubr.bf16.gmra.mrb[0].mxu0 %v543
        %v582 = vpop.f32.mrb[0].mxu0
        %v583 = vadd.f32 0.0, %v582
        %v584 = vpop.f32.mrb[0].mxu0
        %v585 = vpop.f32.mrb[0].mxu0
        %v586 = vpop.f32.mrb[0].mxu0
        %587 = vdwg.mxu0
        %v588 = vpack.c.bf16 %v461, %v461
        %589 = vrot.lane.b32.xlu0 %v476, 120
        %v590 = vpop.permute.xlu0 %589
        %v592 = vsel %vm478, %v590, 0
        %v595 = vsel %vm482, %v588, 0
        %597 = vmatprep.subr.bf16.mxu0 0
        %598 = vmatpush1.bf16.msra.mxu0 %v595
        %599 = vmatprep.subr.bf16.mxu0 0
        %600 = vmatpush1.bf16.msra.mxu0 0
        %601 = vmatprep.subr.bf16.mxu0 0
        %602 = vmatpush1.bf16.msra.mxu0 0
        %603 = vmatprep.subr.bf16.mxu0 0
        %604 = vmatpush1.bf16.msra.mxu0 0
        %605 = vmatprep.subr.bf16.mxu0 0
        %606 = vmatpush1.bf16.msra.mxu0 0
        %607 = vmatprep.subr.bf16.mxu0 0
        %608 = vmatpush1.bf16.msra.mxu0 0
        %609 = vmatprep.subr.bf16.mxu0 0
        %610 = vmatpush1.bf16.msra.mxu0 0
        %611 = vmatprep.subr.bf16.mxu0 0
        %612 = vmatpush1.bf16.msra.mxu0 0
        %613 = vmatprep.subr.bf16.mxu0 0
        %614 = vmatpush1.bf16.msra.mxu0 0
        %615 = vmatprep.subr.bf16.mxu0 0
        %616 = vmatpush1.bf16.msra.mxu0 0
        %617 = vmatprep.subr.bf16.mxu0 0
        %618 = vmatpush1.bf16.msra.mxu0 0
        %619 = vmatprep.subr.bf16.mxu0 0
        %620 = vmatpush1.bf16.msra.mxu0 0
        %621 = vmatprep.subr.bf16.mxu0 0
        %622 = vmatpush1.bf16.msra.mxu0 0
        %623 = vmatprep.subr.bf16.mxu0 0
        %624 = vmatpush1.bf16.msra.mxu0 0
        %625 = vmatprep.subr.bf16.mxu0 0
        %626 = vmatpush1.bf16.msra.mxu0 0
        %627 = vmatprep.subr.bf16.mxu0 0
        %628 = vmatpush1.bf16.msra.mxu0 0
        %629 = vmatprep.mubr.bf16.mxu0 0
        %630 = vmatmul.mubr.bf16.gmra.mrb[0].mxu0 %v592
        %v631 = vpop.f32.mrb[0].mxu0
        %v632 = vadd.f32 0.0, %v631
        %v633 = vpop.f32.mrb[0].mxu0
        %v634 = vpop.f32.mrb[0].mxu0
        %v635 = vpop.f32.mrb[0].mxu0
        %636 = vdwg.mxu0
        %v637 = vmul.f32 %v632, 0.35355338
        %v638 = vsel %vm478, %v637, -inf
        %639 = vmax.xlane.f32.xlu0 %v638
        %v640 = vpop.xlane.xlu0 %639
        %v641 = vsub.f32 %v637, %v640
        %v642 = vmul.f32 %v641, 1.442695
        %v643 = vpow.pop %v642
        %v644 = vsel %vm478, %v643, 0.0
        %645 = vadd.xlane.f32.xlu0 %v644
        %v646 = vpop.xlane.xlu0 %645
        %v647 = vrcp.pop %v646
        %v648 = vmul.f32 %v643, %v647
        %v649 = vpack.c.bf16 %v648, %v648
        %650 = vrot.lane.b32.xlu0 %v476, 56
        %v651 = vpop.permute.xlu0 %650
        %v653 = vsel %vm478, %v649, 0
        %v656 = vsel %vm482, %v651, 0
        %658 = vmatprep.subr.bf16.mxu0 0
        %659 = vmatpush1.bf16.msra.mxu0 %v656
        %660 = vmatprep.subr.bf16.mxu0 0
        %661 = vmatpush1.bf16.msra.mxu0 0
        %662 = vmatprep.subr.bf16.mxu0 0
        %663 = vmatpush1.bf16.msra.mxu0 0
        %664 = vmatprep.subr.bf16.mxu0 0
        %665 = vmatpush1.bf16.msra.mxu0 0
        %666 = vmatprep.subr.bf16.mxu0 0
        %667 = vmatpush1.bf16.msra.mxu0 0
        %668 = vmatprep.subr.bf16.mxu0 0
        %669 = vmatpush1.bf16.msra.mxu0 0
        %670 = vmatprep.subr.bf16.mxu0 0
        %671 = vmatpush1.bf16.msra.mxu0 0
        %672 = vmatprep.subr.bf16.mxu0 0
        %673 = vmatpush1.bf16.msra.mxu0 0
        %674 = vmatprep.subr.bf16.mxu0 0
        %675 = vmatpush1.bf16.msra.mxu0 0
        %676 = vmatprep.subr.bf16.mxu0 0
        %677 = vmatpush1.bf16.msra.mxu0 0
        %678 = vmatprep.subr.bf16.mxu0 0
        %679 = vmatpush1.bf16.msra.mxu0 0
        %680 = vmatprep.subr.bf16.mxu0 0
        %681 = vmatpush1.bf16.msra.mxu0 0
        %682 = vmatprep.subr.bf16.mxu0 0
        %683 = vmatpush1.bf16.msra.mxu0 0
        %684 = vmatprep.subr.bf16.mxu0 0
        %685 = vmatpush1.bf16.msra.mxu0 0
        %686 = vmatprep.subr.bf16.mxu0 0
        %687 = vmatpush1.bf16.msra.mxu0 0
        %688 = vmatprep.subr.bf16.mxu0 0
        %689 = vmatpush1.bf16.msra.mxu0 0
        %690 = vmatprep.mubr.bf16.mxu0 0
        %691 = vmatmul.mubr.bf16.gmra.mrb[0].mxu0 %v653
        %v692 = vpop.f32.mrb[0].mxu0
        %v693 = vadd.f32 0.0, %v692
        %v694 = vpop.f32.mrb[0].mxu0
        %v695 = vpop.f32.mrb[0].mxu0
        %v696 = vpop.f32.mrb[0].mxu0
        %697 = vdwg.mxu0
        %v698 = vpack.c.bf16 %v462, %v462
        %699 = vrot.lane.b32.xlu0 %v476, 112
        %v700 = vpop.permute.xlu0 %699
        %v702 = vsel %vm478, %v700, 0
        %v705 = vsel %vm482, %v698, 0
        %707 = vmatprep.subr.bf16.mxu0 0
        %708 = vmatpush1.bf16.msra.mxu0 %v705
        %709 = vmatprep.subr.bf16.mxu0 0
        %710 = vmatpush1.bf16.msra.mxu0 0
        %711 = vmatprep.subr.bf16.mxu0 0
        %712 = vmatpush1.bf16.msra.mxu0 0
        %713 = vmatprep.subr.bf16.mxu0 0
        %714 = vmatpush1.bf16.msra.mxu0 0
        %715 = vmatprep.subr.bf16.mxu0 0
        %716 = vmatpush1.bf16.msra.mxu0 0
        %717 = vmatprep.subr.bf16.mxu0 0
        %718 = vmatpush1.bf16.msra.mxu0 0
        %719 = vmatprep.subr.bf16.mxu0 0
        %720 = vmatpush1.bf16.msra.mxu0 0
        %721 = vmatprep.subr.bf16.mxu0 0
        %722 = vmatpush1.bf16.msra.mxu0 0
        %723 = vmatprep.subr.bf16.mxu0 0
        %724 = vmatpush1.bf16.msra.mxu0 0
        %725 = vmatprep.subr.bf16.mxu0 0
        %726 = vmatpush1.bf16.msra.mxu0 0
        %727 = vmatprep.subr.bf16.mxu0 0
        %728 = vmatpush1.bf16.msra.mxu0 0
        %729 = vmatprep.subr.bf16.mxu0 0
        %730 = vmatpush1.bf16.msra.mxu0 0
        %731 = vmatprep.subr.bf16.mxu0 0
        %732 = vmatpush1.bf16.msra.mxu0 0
        %733 = vmatprep.subr.bf16.mxu0 0
        %734 = vmatpush1.bf16.msra.mxu0 0
        %735 = vmatprep.subr.bf16.mxu0 0
        %736 = vmatpush1.bf16.msra.mxu0 0
        %737 = vmatprep.subr.bf16.mxu0 0
        %738 = vmatpush1.bf16.msra.mxu0 0
        %739 = vmatprep.mubr.bf16.mxu0 0
        %740 = vmatmul.mubr.bf16.gmra.mrb[0].mxu0 %v702
        %v741 = vpop.f32.mrb[0].mxu0
        %v742 = vadd.f32 0.0, %v741
        %v743 = vpop.f32.mrb[0].mxu0
        %v744 = vpop.f32.mrb[0].mxu0
        %v745 = vpop.f32.mrb[0].mxu0
        %746 = vdwg.mxu0
        %v747 = vmul.f32 %v742, 0.35355338
        %v748 = vsel %vm478, %v747, -inf
        %749 = vmax.xlane.f32.xlu0 %v748
        %v750 = vpop.xlane.xlu0 %749
        %v751 = vsub.f32 %v747, %v750
        %v752 = vmul.f32 %v751, 1.442695
        %v753 = vpow.pop %v752
        %v754 = vsel %vm478, %v753, 0.0
        %755 = vadd.xlane.f32.xlu0 %v754
        %v756 = vpop.xlane.xlu0 %755
        %v757 = vrcp.pop %v756
        %v758 = vmul.f32 %v753, %v757
        %v759 = vpack.c.bf16 %v758, %v758
        %760 = vrot.lane.b32.xlu0 %v476, 48
        %v761 = vpop.permute.xlu0 %760
        %v763 = vsel %vm478, %v759, 0
        %v766 = vsel %vm482, %v761, 0
        %768 = vmatprep.subr.bf16.mxu0 0
        %769 = vmatpush1.bf16.msra.mxu0 %v766
        %770 = vmatprep.subr.bf16.mxu0 0
        %771 = vmatpush1.bf16.msra.mxu0 0
        %772 = vmatprep.subr.bf16.mxu0 0
        %773 = vmatpush1.bf16.msra.mxu0 0
        %774 = vmatprep.subr.bf16.mxu0 0
        %775 = vmatpush1.bf16.msra.mxu0 0
        %776 = vmatprep.subr.bf16.mxu0 0
        %777 = vmatpush1.bf16.msra.mxu0 0
        %778 = vmatprep.subr.bf16.mxu0 0
        %779 = vmatpush1.bf16.msra.mxu0 0
        %780 = vmatprep.subr.bf16.mxu0 0
        %781 = vmatpush1.bf16.msra.mxu0 0
        %782 = vmatprep.subr.bf16.mxu0 0
        %783 = vmatpush1.bf16.msra.mxu0 0
        %784 = vmatprep.subr.bf16.mxu0 0
        %785 = vmatpush1.bf16.msra.mxu0 0
        %786 = vmatprep.subr.bf16.mxu0 0
        %787 = vmatpush1.bf16.msra.mxu0 0
        %788 = vmatprep.subr.bf16.mxu0 0
        %789 = vmatpush1.bf16.msra.mxu0 0
        %790 = vmatprep.subr.bf16.mxu0 0
        %791 = vmatpush1.bf16.msra.mxu0 0
        %792 = vmatprep.subr.bf16.mxu0 0
        %793 = vmatpush1.bf16.msra.mxu0 0
        %794 = vmatprep.subr.bf16.mxu0 0
        %795 = vmatpush1.bf16.msra.mxu0 0
        %796 = vmatprep.subr.bf16.mxu0 0
        %797 = vmatpush1.bf16.msra.mxu0 0
        %798 = vmatprep.subr.bf16.mxu0 0
        %799 = vmatpush1.bf16.msra.mxu0 0
        %800 = vmatprep.mubr.bf16.mxu0 0
        %801 = vmatmul.mubr.bf16.gmra.mrb[0].mxu0 %v763
        %v802 = vpop.f32.mrb[0].mxu0
        %v803 = vadd.f32 0.0, %v802
        %v804 = vpop.f32.mrb[0].mxu0
        %v805 = vpop.f32.mrb[0].mxu0
        %v806 = vpop.f32.mrb[0].mxu0
        %807 = vdwg.mxu0
        %v808 = vpack.c.bf16 %v463, %v463
        %809 = vrot.lane.b32.xlu0 %v476, 104
        %v810 = vpop.permute.xlu0 %809
        %v812 = vsel %vm478, %v810, 0
        %v815 = vsel %vm482, %v808, 0
        %817 = vmatprep.subr.bf16.mxu0 0
        %818 = vmatpush1.bf16.msra.mxu0 %v815
        %819 = vmatprep.subr.bf16.mxu0 0
        %820 = vmatpush1.bf16.msra.mxu0 0
        %821 = vmatprep.subr.bf16.mxu0 0
        %822 = vmatpush1.bf16.msra.mxu0 0
        %823 = vmatprep.subr.bf16.mxu0 0
        %824 = vmatpush1.bf16.msra.mxu0 0
        %825 = vmatprep.subr.bf16.mxu0 0
        %826 = vmatpush1.bf16.msra.mxu0 0
        %827 = vmatprep.subr.bf16.mxu0 0
        %828 = vmatpush1.bf16.msra.mxu0 0
        %829 = vmatprep.subr.bf16.mxu0 0
        %830 = vmatpush1.bf16.msra.mxu0 0
        %831 = vmatprep.subr.bf16.mxu0 0
        %832 = vmatpush1.bf16.msra.mxu0 0
        %833 = vmatprep.subr.bf16.mxu0 0
        %834 = vmatpush1.bf16.msra.mxu0 0
        %835 = vmatprep.subr.bf16.mxu0 0
        %836 = vmatpush1.bf16.msra.mxu0 0
        %837 = vmatprep.subr.bf16.mxu0 0
        %838 = vmatpush1.bf16.msra.mxu0 0
        %839 = vmatprep.subr.bf16.mxu0 0
        %840 = vmatpush1.bf16.msra.mxu0 0
        %841 = vmatprep.subr.bf16.mxu0 0
        %842 = vmatpush1.bf16.msra.mxu0 0
        %843 = vmatprep.subr.bf16.mxu0 0
        %844 = vmatpush1.bf16.msra.mxu0 0
        %845 = vmatprep.subr.bf16.mxu0 0
        %846 = vmatpush1.bf16.msra.mxu0 0
        %847 = vmatprep.subr.bf16.mxu0 0
        %848 = vmatpush1.bf16.msra.mxu0 0
        %849 = vmatprep.mubr.bf16.mxu0 0
        %850 = vmatmul.mubr.bf16.gmra.mrb[0].mxu0 %v812
        %v851 = vpop.f32.mrb[0].mxu0
        %v852 = vadd.f32 0.0, %v851
        %v853 = vpop.f32.mrb[0].mxu0
        %v854 = vpop.f32.mrb[0].mxu0
        %v855 = vpop.f32.mrb[0].mxu0
        %856 = vdwg.mxu0
        %v857 = vmul.f32 %v852, 0.35355338
        %v858 = vsel %vm478, %v857, -inf
        %859 = vmax.xlane.f32.xlu0 %v858
        %v860 = vpop.xlane.xlu0 %859
        %v861 = vsub.f32 %v857, %v860
        %v862 = vmul.f32 %v861, 1.442695
        %v863 = vpow.pop %v862
        %v864 = vsel %vm478, %v863, 0.0
        %865 = vadd.xlane.f32.xlu0 %v864
        %v866 = vpop.xlane.xlu0 %865
        %v867 = vrcp.pop %v866
        %v868 = vmul.f32 %v863, %v867
        %v869 = vpack.c.bf16 %v868, %v868
        %870 = vrot.lane.b32.xlu0 %v476, 40
        %v871 = vpop.permute.xlu0 %870
        %v873 = vsel %vm478, %v869, 0
        %v876 = vsel %vm482, %v871, 0
        %878 = vmatprep.subr.bf16.mxu0 0
        %879 = vmatpush1.bf16.msra.mxu0 %v876
        %880 = vmatprep.subr.bf16.mxu0 0
        %881 = vmatpush1.bf16.msra.mxu0 0
        %882 = vmatprep.subr.bf16.mxu0 0
        %883 = vmatpush1.bf16.msra.mxu0 0
        %884 = vmatprep.subr.bf16.mxu0 0
        %885 = vmatpush1.bf16.msra.mxu0 0
        %886 = vmatprep.subr.bf16.mxu0 0
        %887 = vmatpush1.bf16.msra.mxu0 0
        %888 = vmatprep.subr.bf16.mxu0 0
        %889 = vmatpush1.bf16.msra.mxu0 0
        %890 = vmatprep.subr.bf16.mxu0 0
        %891 = vmatpush1.bf16.msra.mxu0 0
        %892 = vmatprep.subr.bf16.mxu0 0
        %893 = vmatpush1.bf16.msra.mxu0 0
        %894 = vmatprep.subr.bf16.mxu0 0
        %895 = vmatpush1.bf16.msra.mxu0 0
        %896 = vmatprep.subr.bf16.mxu0 0
        %897 = vmatpush1.bf16.msra.mxu0 0
        %898 = vmatprep.subr.bf16.mxu0 0
        %899 = vmatpush1.bf16.msra.mxu0 0
        %900 = vmatprep.subr.bf16.mxu0 0
        %901 = vmatpush1.bf16.msra.mxu0 0
        %902 = vmatprep.subr.bf16.mxu0 0
        %903 = vmatpush1.bf16.msra.mxu0 0
        %904 = vmatprep.subr.bf16.mxu0 0
        %905 = vmatpush1.bf16.msra.mxu0 0
        %906 = vmatprep.subr.bf16.mxu0 0
        %907 = vmatpush1.bf16.msra.mxu0 0
        %908 = vmatprep.subr.bf16.mxu0 0
        %909 = vmatpush1.bf16.msra.mxu0 0
        %910 = vmatprep.mubr.bf16.mxu0 0
        %911 = vmatmul.mubr.bf16.gmra.mrb[0].mxu0 %v873
        %v912 = vpop.f32.mrb[0].mxu0
        %v913 = vadd.f32 0.0, %v912
        %v914 = vpop.f32.mrb[0].mxu0
        %v915 = vpop.f32.mrb[0].mxu0
        %v916 = vpop.f32.mrb[0].mxu0
        %917 = vdwg.mxu0
        %919 = vrot.lane.b32.xlu0 %v693, 8
        %v920 = vpop.permute.xlu0 %919
        %923 = vrot.lane.b32.xlu0 %v803, 16
        %v924 = vpop.permute.xlu0 %923
        %927 = vrot.lane.b32.xlu0 %v913, 24
        %v928 = vpop.permute.xlu0 %927
        %v930 = vsel %vm478, %v583, %v920
        %vm931 = vcmask 130048
        %v932 = vsel %vm931, %v930, %v924
        %vm933 = vcmask 195584
        %v934 = vsel %vm933, %v932, %v928
        %v935 = vpack.c.bf16 %v934, %v934
        %v936 = vlaneseq
        %v937 = vshrl.u32 %v936, 7
        %v938 = vsub.s32 0, %v937
        %v939 = vrot.slane %v364, %v938
        %v944 = vunpack.c.l.b16 %v360
        %v945 = vunpack.c.l.b16 %v361
        %v946 = vunpack.c.l.b16 %v362
        %v947 = vunpack.c.l.b16 %v363
        %v948 = vpack.c.b16 %v945, %v944
        %v949 = vpack.c.b16 %v947, %v946
        %v953 = vsel %vm330, %v935, 0
        %955 = vmatprep.subr.bf16.mxu0 0
        %956 = vmatpush1.bf16.msra.mxu0 %v948
        %957 = vmatprep.subr.bf16.mxu0 0
        %958 = vmatpush1.bf16.msra.mxu0 %v949
        %959 = vmatprep.subr.bf16.mxu0 0
        %960 = vmatpush1.bf16.msra.mxu0 0
        %961 = vmatprep.subr.bf16.mxu0 0
        %962 = vmatpush1.bf16.msra.mxu0 0
        %963 = vmatprep.subr.bf16.mxu0 0
        %964 = vmatpush1.bf16.msra.mxu0 0
        %965 = vmatprep.subr.bf16.mxu0 0
        %966 = vmatpush1.bf16.msra.mxu0 0
        %967 = vmatprep.subr.bf16.mxu0 0
        %968 = vmatpush1.bf16.msra.mxu0 0
        %969 = vmatprep.subr.bf16.mxu0 0
        %970 = vmatpush1.bf16.msra.mxu0 0
        %971 = vmatprep.subr.bf16.mxu0 0
        %972 = vmatpush1.bf16.msra.mxu0 0
        %973 = vmatprep.subr.bf16.mxu0 0
        %974 = vmatpush1.bf16.msra.mxu0 0
        %975 = vmatprep.subr.bf16.mxu0 0
        %976 = vmatpush1.bf16.msra.mxu0 0
        %977 = vmatprep.subr.bf16.mxu0 0
        %978 = vmatpush1.bf16.msra.mxu0 0
        %979 = vmatprep.subr.bf16.mxu0 0
        %980 = vmatpush1.bf16.msra.mxu0 0
        %981 = vmatprep.subr.bf16.mxu0 0
        %982 = vmatpush1.bf16.msra.mxu0 0
        %983 = vmatprep.subr.bf16.mxu0 0
        %984 = vmatpush1.bf16.msra.mxu0 0
        %985 = vmatprep.subr.bf16.mxu0 0
        %986 = vmatpush1.bf16.msra.mxu0 0
        %987 = vmatprep.mubr.bf16.mxu0 0
        %988 = vmatmul.mubr.bf16.gmra.mrb[0].mxu0 %v953
        %v989 = vpop.f32.mrb[0].mxu0
        %v990 = vadd.f32 %v939, %v989
        %v991 = vpop.f32.mrb[0].mxu0
        %v992 = vpop.f32.mrb[0].mxu0
        %v993 = vpop.f32.mrb[0].mxu0
        %994 = vdwg.mxu0
        %v995 = vadd.f32 %v354, %v990
        %v996 = vsel %vm330, %v995, 0.0
        %997 = vadd.xlane.f32.xlu0 %v996
        %v998 = vpop.xlane.xlu0 %997
        %v999 = vmul.f32 %v998, %v334
        %v1000 = vsub.f32 %v995, %v999
        %v1001 = vmul.f32 %v1000, %v1000
        %v1002 = vsel %vm330, %v1001, 0.0
        %1003 = vadd.xlane.f32.xlu0 %v1002
        %v1004 = vpop.xlane.xlu0 %1003
        %v1005 = vmul.f32 %v1004, %v334
        %v1006 = vadd.f32 %v1005, 1e-12
        %v1007 = vrsqrt.pop %v1006
        %v1008 = vmul.f32 %v1000, %v1007
        %v1009 = vlaneseq
        %v1010 = vshrl.u32 %v1009, 7
        %v1011 = vsub.s32 1, %v1010
        %v1012 = vrot.slane %v364, %v1011
        %v1013 = vmul.f32 %v1008, %v1012
        %v1014 = vlaneseq
        %v1015 = vshrl.u32 %v1014, 7
        %v1016 = vsub.s32 2, %v1015
        %v1017 = vrot.slane %v364, %v1016
        %v1018 = vadd.f32 %v1013, %v1017
        %v1019 = vpack.c.bf16 %v1018, %v1018
        %v1021 = vlaneseq
        %v1022 = vshrl.u32 %v1021, 7
        %v1023 = vsub.s32 0, %v1022
        %v1024 = vrot.slane %v369, %v1023
        %v1030 = vunpack.c.l.b16 %v365
        %v1031 = vunpack.c.l.b16 %v366
        %v1032 = vunpack.c.l.b16 %v367
        %v1033 = vunpack.c.l.b16 %v368
        %v1034 = vpack.c.b16 %v1031, %v1030
        %v1035 = vpack.c.b16 %v1033, %v1032
        %v1039 = vsel %vm330, %v1019, 0
        %1041 = vmatprep.subr.bf16.mxu0 0
        %1042 = vmatpush1.bf16.msra.mxu0 %v1034
        %1043 = vmatprep.subr.bf16.mxu0 0
        %1044 = vmatpush1.bf16.msra.mxu0 %v1035
        %1045 = vmatprep.subr.bf16.mxu0 0
        %1046 = vmatpush1.bf16.msra.mxu0 0
        %1047 = vmatprep.subr.bf16.mxu0 0
        %1048 = vmatpush1.bf16.msra.mxu0 0
        %1049 = vmatprep.subr.bf16.mxu0 0
        %1050 = vmatpush1.bf16.msra.mxu0 0
        %1051 = vmatprep.subr.bf16.mxu0 0
        %1052 = vmatpush1.bf16.msra.mxu0 0
        %1053 = vmatprep.subr.bf16.mxu0 0
        %1054 = vmatpush1.bf16.msra.mxu0 0
        %1055 = vmatprep.subr.bf16.mxu0 0
        %1056 = vmatpush1.bf16.msra.mxu0 0
        %1057 = vmatprep.subr.bf16.mxu0 0
        %1058 = vmatpush1.bf16.msra.mxu0 0
        %1059 = vmatprep.subr.bf16.mxu0 0
        %1060 = vmatpush1.bf16.msra.mxu0 0
        %1061 = vmatprep.subr.bf16.mxu0 0
        %1062 = vmatpush1.bf16.msra.mxu0 0
        %1063 = vmatprep.subr.bf16.mxu0 0
        %1064 = vmatpush1.bf16.msra.mxu0 0
        %1065 = vmatprep.subr.bf16.mxu0 0
        %1066 = vmatpush1.bf16.msra.mxu0 0
        %1067 = vmatprep.subr.bf16.mxu0 0
        %1068 = vmatpush1.bf16.msra.mxu0 0
        %1069 = vmatprep.subr.bf16.mxu0 0
        %1070 = vmatpush1.bf16.msra.mxu0 0
        %1071 = vmatprep.subr.bf16.mxu0 0
        %1072 = vmatpush1.bf16.msra.mxu0 0
        %1073 = vmatprep.mubr.bf16.mxu0 0
        %1074 = vmatmul.mubr.bf16.gmra.mrb[0].mxu0 %v1039
        %v1075 = vpop.f32.mrb[0].mxu0
        %v1076 = vadd.f32 %v1024, %v1075
        %v1077 = vpop.f32.mrb[0].mxu0
        %v1078 = vpop.f32.mrb[0].mxu0
        %v1079 = vpop.f32.mrb[0].mxu0
        %1080 = vdwg.mxu0
        %v1081 = vmul.f32 %v1076, 0.5
        %v1082 = vmul.f32 %v1076, 0.044715
        %v1083 = vmul.f32 %v1082, %v1076
        %v1084 = vmul.f32 %v1083, %v1076
        %v1085 = vadd.f32 %v1076, %v1084
        %v1086 = vmul.f32 %v1085, 0.7978846
        %v1087 = vtanh.pop %v1086
        %v1088 = vadd.f32 %v1087, 1.0
        %v1089 = vmul.f32 %v1081, %v1088
        %v1090 = vpack.c.bf16 %v1089, %v1089
        %v1091 = vlaneseq
        %v1092 = vshrl.u32 %v1091, 7
        %v1093 = vsub.s32 3, %v1092
        %v1094 = vrot.slane %v364, %v1093
        %v1103 = vunpack.c.l.b16 %v370
        %v1104 = vunpack.c.l.b16 %v371
        %v1105 = vunpack.c.l.b16 %v372
        %v1106 = vunpack.c.l.b16 %v373
        %v1107 = vunpack.c.l.b16 %v374
        %v1108 = vunpack.c.l.b16 %v375
        %v1109 = vunpack.c.l.b16 %v376
        %v1110 = vunpack.c.l.b16 %v377
        %v1111 = vpack.c.b16 %v1104, %v1103
        %v1112 = vpack.c.b16 %v1106, %v1105
        %v1113 = vpack.c.b16 %v1108, %v1107
        %v1114 = vpack.c.b16 %v1110, %v1109
        %vm1119 = vcmask 523264
        %v1121 = vsel %vm1119, %v1090, 0
        %1123 = vmatprep.subr.bf16.mxu0 0
        %1124 = vmatpush1.bf16.msra.mxu0 %v1111
        %1125 = vmatprep.subr.bf16.mxu0 0
        %1126 = vmatpush1.bf16.msra.mxu0 %v1112
        %1127 = vmatprep.subr.bf16.mxu0 0
        %1128 = vmatpush1.bf16.msra.mxu0 %v1113
        %1129 = vmatprep.subr.bf16.mxu0 0
        %1130 = vmatpush1.bf16.msra.mxu0 %v1114
        %1131 = vmatprep.subr.bf16.mxu0 0
        %1132 = vmatpush1.bf16.msra.mxu0 0
        %1133 = vmatprep.subr.bf16.mxu0 0
        %1134 = vmatpush1.bf16.msra.mxu0 0
        %1135 = vmatprep.subr.bf16.mxu0 0
        %1136 = vmatpush1.bf16.msra.mxu0 0
        %1137 = vmatprep.subr.bf16.mxu0 0
        %1138 = vmatpush1.bf16.msra.mxu0 0
        %1139 = vmatprep.subr.bf16.mxu0 0
        %1140 = vmatpush1.bf16.msra.mxu0 0
        %1141 = vmatprep.subr.bf16.mxu0 0
        %1142 = vmatpush1.bf16.msra.mxu0 0
        %1143 = vmatprep.subr.bf16.mxu0 0
        %1144 = vmatpush1.bf16.msra.mxu0 0
        %1145 = vmatprep.subr.bf16.mxu0 0
        %1146 = vmatpush1.bf16.msra.mxu0 0
        %1147 = vmatprep.subr.bf16.mxu0 0
        %1148 = vmatpush1.bf16.msra.mxu0 0
        %1149 = vmatprep.subr.bf16.mxu0 0
        %1150 = vmatpush1.bf16.msra.mxu0 0
        %1151 = vmatprep.subr.bf16.mxu0 0
        %1152 = vmatpush1.bf16.msra.mxu0 0
        %1153 = vmatprep.subr.bf16.mxu0 0
        %1154 = vmatpush1.bf16.msra.mxu0 0
        %1155 = vmatprep.mubr.bf16.mxu0 0
        %1156 = vmatmul.mubr.bf16.gmra.mrb[0].mxu0 %v1121
        %v1157 = vpop.f32.mrb[0].mxu0
        %v1158 = vadd.f32 %v1094, %v1157
        %v1159 = vpop.f32.mrb[0].mxu0
        %v1160 = vpop.f32.mrb[0].mxu0
        %v1161 = vpop.f32.mrb[0].mxu0
        %1162 = vdwg.mxu0
        %v1163 = vadd.f32 %v1018, %v1158
        %v1164 = vsel %vm330, %v1163, 0.0
        %1165 = vadd.xlane.f32.xlu0 %v1164
        %v1166 = vpop.xlane.xlu0 %1165
        %v1167 = vmul.f32 %v1166, %v334
        %v1168 = vsub.f32 %v1163, %v1167
        %v1169 = vmul.f32 %v1168, %v1168
        %v1170 = vsel %vm330, %v1169, 0.0
        %1171 = vadd.xlane.f32.xlu0 %v1170
        %v1172 = vpop.xlane.xlu0 %1171
        %v1173 = vmul.f32 %v1172, %v334
        %v1174 = vadd.f32 %v1173, 1e-12
        %v1175 = vrsqrt.pop %v1174
        %v1176 = vmul.f32 %v1168, %v1175
        %v1177 = vlaneseq
        %v1178 = vshrl.u32 %v1177, 7
        %v1179 = vsub.s32 4, %v1178
        %v1180 = vrot.slane %v364, %v1179
        %v1181 = vmul.f32 %v1176, %v1180
        %v1182 = vlaneseq
        %v1183 = vshrl.u32 %v1182, 7
        %v1184 = vsub.s32 5, %v1183
        %v1185 = vrot.slane %v364, %v1184
        %v1186 = vadd.f32 %v1181, %v1185
        %s1187 = scalar_lea.vmem %s2, 16
        %v1188 = vld [vmem:[%s1187] sm:$0xf]
        %v1189 = vld [vmem:[%s1187 + $0x4] sm:$0xf]
        %v1190 = vld [vmem:[%s1187 + $0x8] sm:$0xf]
        %v1191 = vld [vmem:[%s1187 + $0xc] sm:$0xf]
        %s1192 = scalar_lea.vmem %s3, 1
        %v1193 = vld [vmem:[%s1192] sm:$0x1]
        %s1194 = scalar_lea.vmem %s4, 16
        %v1195 = vld [vmem:[%s1194] sm:$0xf]
        %v1196 = vld [vmem:[%s1194 + $0x4] sm:$0xf]
        %v1197 = vld [vmem:[%s1194 + $0x8] sm:$0xf]
        %v1198 = vld [vmem:[%s1194 + $0xc] sm:$0xf]
        %s1199 = scalar_lea.vmem %s5, 8
        %v1200 = vld [vmem:[%s1199] sm:$0x3f]
        %s1201 = scalar_lea.vmem %s6, 16
        %v1202 = vld [vmem:[%s1201] sm:$0xf]
        %v1203 = vld [vmem:[%s1201 + $0x4] sm:$0xf]
        %v1204 = vld [vmem:[%s1201 + $0x8] sm:$0xf]
        %v1205 = vld [vmem:[%s1201 + $0xc] sm:$0xf]
        %s1206 = scalar_lea.vmem %s7, 1
        %v1207 = vld [vmem:[%s1206] sm:$0x1]
        %s1208 = scalar_lea.vmem %s8, 32
        %v1209 = vld [vmem:[%s1208] sm:$0xf]
        %v1210 = vld [vmem:[%s1208 + $0x4] sm:$0xf]
        %v1211 = vld [vmem:[%s1208 + $0x8] sm:$0xf]
        %v1212 = vld [vmem:[%s1208 + $0xc] sm:$0xf]
        %v1213 = vld [vmem:[%s1208 + $0x10] sm:$0xf]
        %v1214 = vld [vmem:[%s1208 + $0x14] sm:$0xf]
        %v1215 = vld [vmem:[%s1208 + $0x18] sm:$0xf]
        %v1216 = vld [vmem:[%s1208 + $0x1c] sm:$0xf]
        %v1217 = vpack.c.bf16 %v1186, %v1186
        %v1219 = vlaneseq
        %v1220 = vshrl.u32 %v1219, 7
        %v1221 = vsub.s32 0, %v1220
        %v1222 = vrot.slane %v1193, %v1221
        %v1228 = vunpack.c.l.b16 %v1188
        %v1229 = vunpack.c.l.b16 %v1189
        %v1230 = vunpack.c.l.b16 %v1190
        %v1231 = vunpack.c.l.b16 %v1191
        %v1232 = vpack.c.b16 %v1229, %v1228
        %v1233 = vpack.c.b16 %v1231, %v1230
        %v1237 = vsel %vm330, %v1217, 0
        %1239 = vmatprep.subr.bf16.mxu0 0
        %1240 = vmatpush1.bf16.msra.mxu0 %v1232
        %1241 = vmatprep.subr.bf16.mxu0 0
        %1242 = vmatpush1.bf16.msra.mxu0 %v1233
        %1243 = vmatprep.subr.bf16.mxu0 0
        %1244 = vmatpush1.bf16.msra.mxu0 0
        %1245 = vmatprep.subr.bf16.mxu0 0
        %1246 = vmatpush1.bf16.msra.mxu0 0
        %1247 = vmatprep.subr.bf16.mxu0 0
        %1248 = vmatpush1.bf16.msra.mxu0 0
        %1249 = vmatprep.subr.bf16.mxu0 0
        %1250 = vmatpush1.bf16.msra.mxu0 0
        %1251 = vmatprep.subr.bf16.mxu0 0
        %1252 = vmatpush1.bf16.msra.mxu0 0
        %1253 = vmatprep.subr.bf16.mxu0 0
        %1254 = vmatpush1.bf16.msra.mxu0 0
        %1255 = vmatprep.subr.bf16.mxu0 0
        %1256 = vmatpush1.bf16.msra.mxu0 0
        %1257 = vmatprep.subr.bf16.mxu0 0
        %1258 = vmatpush1.bf16.msra.mxu0 0
        %1259 = vmatprep.subr.bf16.mxu0 0
        %1260 = vmatpush1.bf16.msra.mxu0 0
        %1261 = vmatprep.subr.bf16.mxu0 0
        %1262 = vmatpush1.bf16.msra.mxu0 0
        %1263 = vmatprep.subr.bf16.mxu0 0
        %1264 = vmatpush1.bf16.msra.mxu0 0
        %1265 = vmatprep.subr.bf16.mxu0 0
        %1266 = vmatpush1.bf16.msra.mxu0 0
        %1267 = vmatprep.subr.bf16.mxu0 0
        %1268 = vmatpush1.bf16.msra.mxu0 0
        %1269 = vmatprep.subr.bf16.mxu0 0
        %1270 = vmatpush1.bf16.msra.mxu0 0
        %1271 = vmatprep.mubr.bf16.mxu0 0
        %1272 = vmatmul.mubr.bf16.gmra.mrb[0].mxu0 %v1237
        %v1273 = vpop.f32.mrb[0].mxu0
        %v1274 = vadd.f32 %v1222, %v1273
        %v1275 = vpop.f32.mrb[0].mxu0
        %v1276 = vpop.f32.mrb[0].mxu0
        %v1277 = vpop.f32.mrb[0].mxu0
        %1278 = vdwg.mxu0
        %1280 = vrot.lane.b32.xlu0 %v1274, 96
        %v1281 = vpop.permute.xlu0 %1280
        %1283 = vxpose.xlu0.b32.start [1/16] %v1281, 128
        %1284 = vxpose.xlu0.b32.cont [2/16] 0.0, 128
        %1285 = vxpose.xlu0.b32.cont [3/16] 0.0, 128
        %1286 = vxpose.xlu0.b32.cont [4/16] 0.0, 128
        %1287 = vxpose.xlu0.b32.cont [5/16] 0.0, 128
        %1288 = vxpose.xlu0.b32.cont [6/16] 0.0, 128
        %1289 = vxpose.xlu0.b32.cont [7/16] 0.0, 128
        %1290 = vxpose.xlu0.b32.cont [8/16] 0.0, 128
        %1291 = vxpose.xlu0.b32.cont [9/16] 0.0, 128
        %1292 = vxpose.xlu0.b32.cont [10/16] 0.0, 128
        %1293 = vxpose.xlu0.b32.cont [11/16] 0.0, 128
        %1294 = vxpose.xlu0.b32.cont [12/16] 0.0, 128
        %1295 = vxpose.xlu0.b32.cont [13/16] 0.0, 128
        %1296 = vxpose.xlu0.b32.cont [14/16] 0.0, 128
        %1297 = vxpose.xlu0.b32.cont [15/16] 0.0, 128
        %1298 = vxpose.xlu0.b32.end [16/16] 0.0, 128
        %v1299 = vpop.trf.xlu0
        %v1300 = vpop.trf.xlu0
        %v1301 = vpop.trf.xlu0
        %v1302 = vpop.trf.xlu0
        %v1303 = vpop.trf.xlu0
        %v1304 = vpop.trf.xlu0
        %v1305 = vpop.trf.xlu0
        %v1306 = vpop.trf.xlu0
        %v1307 = vpop.trf.xlu0
        %v1308 = vpop.trf.xlu0
        %v1309 = vpop.trf.xlu0
        %v1310 = vpop.trf.xlu0
        %v1311 = vpop.trf.xlu0
        %v1312 = vpop.trf.xlu0
        %v1313 = vpop.trf.xlu0
        %v1314 = vpop.trf.xlu0
        %v1315 = vpack.c.bf16 %v1274, %v1274
        %v1316 = vpack.c.bf16 %v1299, %v1299
        %v1318 = vsel %vm478, %v1315, 0
        %v1321 = vsel %vm482, %v1316, 0
        %1323 = vmatprep.subr.bf16.mxu0 0
        %1324 = vmatpush1.bf16.msra.mxu0 %v1321
        %1325 = vmatprep.subr.bf16.mxu0 0
        %1326 = vmatpush1.bf16.msra.mxu0 0
        %1327 = vmatprep.subr.bf16.mxu0 0
        %1328 = vmatpush1.bf16.msra.mxu0 0
        %1329 = vmatprep.subr.bf16.mxu0 0
        %1330 = vmatpush1.bf16.msra.mxu0 0
        %1331 = vmatprep.subr.bf16.mxu0 0
        %1332 = vmatpush1.bf16.msra.mxu0 0
        %1333 = vmatprep.subr.bf16.mxu0 0
        %1334 = vmatpush1.bf16.msra.mxu0 0
        %1335 = vmatprep.subr.bf16.mxu0 0
        %1336 = vmatpush1.bf16.msra.mxu0 0
        %1337 = vmatprep.subr.bf16.mxu0 0
        %1338 = vmatpush1.bf16.msra.mxu0 0
        %1339 = vmatprep.subr.bf16.mxu0 0
        %1340 = vmatpush1.bf16.msra.mxu0 0
        %1341 = vmatprep.subr.bf16.mxu0 0
        %1342 = vmatpush1.bf16.msra.mxu0 0
        %1343 = vmatprep.subr.bf16.mxu0 0
        %1344 = vmatpush1.bf16.msra.mxu0 0
        %1345 = vmatprep.subr.bf16.mxu0 0
        %1346 = vmatpush1.bf16.msra.mxu0 0
        %1347 = vmatprep.subr.bf16.mxu0 0
        %1348 = vmatpush1.bf16.msra.mxu0 0
        %1349 = vmatprep.subr.bf16.mxu0 0
        %1350 = vmatpush1.bf16.msra.mxu0 0
        %1351 = vmatprep.subr.bf16.mxu0 0
        %1352 = vmatpush1.bf16.msra.mxu0 0
        %1353 = vmatprep.subr.bf16.mxu0 0
        %1354 = vmatpush1.bf16.msra.mxu0 0
        %1355 = vmatprep.mubr.bf16.mxu0 0
        %1356 = vmatmul.mubr.bf16.gmra.mrb[0].mxu0 %v1318
        %v1357 = vpop.f32.mrb[0].mxu0
        %v1358 = vadd.f32 0.0, %v1357
        %v1359 = vpop.f32.mrb[0].mxu0
        %v1360 = vpop.f32.mrb[0].mxu0
        %v1361 = vpop.f32.mrb[0].mxu0
        %1362 = vdwg.mxu0
        %v1363 = vmul.f32 %v1358, 0.35355338
        %v1364 = vsel %vm478, %v1363, -inf
        %1365 = vmax.xlane.f32.xlu0 %v1364
        %v1366 = vpop.xlane.xlu0 %1365
        %v1367 = vsub.f32 %v1363, %v1366
        %v1368 = vmul.f32 %v1367, 1.442695
        %v1369 = vpow.pop %v1368
        %v1370 = vsel %vm478, %v1369, 0.0
        %1371 = vadd.xlane.f32.xlu0 %v1370
        %v1372 = vpop.xlane.xlu0 %1371
        %v1373 = vrcp.pop %v1372
        %v1374 = vmul.f32 %v1369, %v1373
        %v1375 = vpack.c.bf16 %v1374, %v1374
        %1377 = vrot.lane.b32.xlu0 %v1315, 64
        %v1378 = vpop.permute.xlu0 %1377
        %v1380 = vsel %vm478, %v1375, 0
        %v1383 = vsel %vm482, %v1378, 0
        %1385 = vmatprep.subr.bf16.mxu0 0
        %1386 = vmatpush1.bf16.msra.mxu0 %v1383
        %1387 = vmatprep.subr.bf16.mxu0 0
        %1388 = vmatpush1.bf16.msra.mxu0 0
        %1389 = vmatprep.subr.bf16.mxu0 0
        %1390 = vmatpush1.bf16.msra.mxu0 0
        %1391 = vmatprep.subr.bf16.mxu0 0
        %1392 = vmatpush1.bf16.msra.mxu0 0
        %1393 = vmatprep.subr.bf16.mxu0 0
        %1394 = vmatpush1.bf16.msra.mxu0 0
        %1395 = vmatprep.subr.bf16.mxu0 0
        %1396 = vmatpush1.bf16.msra.mxu0 0
        %1397 = vmatprep.subr.bf16.mxu0 0
        %1398 = vmatpush1.bf16.msra.mxu0 0
        %1399 = vmatprep.subr.bf16.mxu0 0
        %1400 = vmatpush1.bf16.msra.mxu0 0
        %1401 = vmatprep.subr.bf16.mxu0 0
        %1402 = vmatpush1.bf16.msra.mxu0 0
        %1403 = vmatprep.subr.bf16.mxu0 0
        %1404 = vmatpush1.bf16.msra.mxu0 0
        %1405 = vmatprep.subr.bf16.mxu0 0
        %1406 = vmatpush1.bf16.msra.mxu0 0
        %1407 = vmatprep.subr.bf16.mxu0 0
        %1408 = vmatpush1.bf16.msra.mxu0 0
        %1409 = vmatprep.subr.bf16.mxu0 0
        %1410 = vmatpush1.bf16.msra.mxu0 0
        %1411 = vmatprep.subr.bf16.mxu0 0
        %1412 = vmatpush1.bf16.msra.mxu0 0
        %1413 = vmatprep.subr.bf16.mxu0 0
        %1414 = vmatpush1.bf16.msra.mxu0 0
        %1415 = vmatprep.subr.bf16.mxu0 0
        %1416 = vmatpush1.bf16.msra.mxu0 0
        %1417 = vmatprep.mubr.bf16.mxu0 0
        %1418 = vmatmul.mubr.bf16.gmra.mrb[0].mxu0 %v1380
        %v1419 = vpop.f32.mrb[0].mxu0
        %v1420 = vadd.f32 0.0, %v1419
        %v1421 = vpop.f32.mrb[0].mxu0
        %v1422 = vpop.f32.mrb[0].mxu0
        %v1423 = vpop.f32.mrb[0].mxu0
        %1424 = vdwg.mxu0
        %v1425 = vpack.c.bf16 %v1300, %v1300
        %1426 = vrot.lane.b32.xlu0 %v1315, 120
        %v1427 = vpop.permute.xlu0 %1426
        %v1429 = vsel %vm478, %v1427, 0
        %v1432 = vsel %vm482, %v1425, 0
        %1434 = vmatprep.subr.bf16.mxu0 0
        %1435 = vmatpush1.bf16.msra.mxu0 %v1432
        %1436 = vmatprep.subr.bf16.mxu0 0
        %1437 = vmatpush1.bf16.msra.mxu0 0
        %1438 = vmatprep.subr.bf16.mxu0 0
        %1439 = vmatpush1.bf16.msra.mxu0 0
        %1440 = vmatprep.subr.bf16.mxu0 0
        %1441 = vmatpush1.bf16.msra.mxu0 0
        %1442 = vmatprep.subr.bf16.mxu0 0
        %1443 = vmatpush1.bf16.msra.mxu0 0
        %1444 = vmatprep.subr.bf16.mxu0 0
        %1445 = vmatpush1.bf16.msra.mxu0 0
        %1446 = vmatprep.subr.bf16.mxu0 0
        %1447 = vmatpush1.bf16.msra.mxu0 0
        %1448 = vmatprep.subr.bf16.mxu0 0
        %1449 = vmatpush1.bf16.msra.mxu0 0
        %1450 = vmatprep.subr.bf16.mxu0 0
        %1451 = vmatpush1.bf16.msra.mxu0 0
        %1452 = vmatprep.subr.bf16.mxu0 0
        %1453 = vmatpush1.bf16.msra.mxu0 0
        %1454 = vmatprep.subr.bf16.mxu0 0
        %1455 = vmatpush1.bf16.msra.mxu0 0
        %1456 = vmatprep.subr.bf16.mxu0 0
        %1457 = vmatpush1.bf16.msra.mxu0 0
        %1458 = vmatprep.subr.bf16.mxu0 0
        %1459 = vmatpush1.bf16.msra.mxu0 0
        %1460 = vmatprep.subr.bf16.mxu0 0
        %1461 = vmatpush1.bf16.msra.mxu0 0
        %1462 = vmatprep.subr.bf16.mxu0 0
        %1463 = vmatpush1.bf16.msra.mxu0 0
        %1464 = vmatprep.subr.bf16.mxu0 0
        %1465 = vmatpush1.bf16.msra.mxu0 0
        %1466 = vmatprep.mubr.bf16.mxu0 0
        %1467 = vmatmul.mubr.bf16.gmra.mrb[0].mxu0 %v1429
        %v1468 = vpop.f32.mrb[0].mxu0
        %v1469 = vadd.f32 0.0, %v1468
        %v1470 = vpop.f32.mrb[0].mxu0
        %v1471 = vpop.f32.mrb[0].mxu0
        %v1472 = vpop.f32.mrb[0].mxu0
        %1473 = vdwg.mxu0
        %v1474 = vmul.f32 %v1469, 0.35355338
        %v1475 = vsel %vm478, %v1474, -inf
        %1476 = vmax.xlane.f32.xlu0 %v1475
        %v1477 = vpop.xlane.xlu0 %1476
        %v1478 = vsub.f32 %v1474, %v1477
        %v1479 = vmul.f32 %v1478, 1.442695
        %v1480 = vpow.pop %v1479
        %v1481 = vsel %vm478, %v1480, 0.0
        %1482 = vadd.xlane.f32.xlu0 %v1481
        %v1483 = vpop.xlane.xlu0 %1482
        %v1484 = vrcp.pop %v1483
        %v1485 = vmul.f32 %v1480, %v1484
        %v1486 = vpack.c.bf16 %v1485, %v1485
        %1487 = vrot.lane.b32.xlu0 %v1315, 56
        %v1488 = vpop.permute.xlu0 %1487
        %v1490 = vsel %vm478, %v1486, 0
        %v1493 = vsel %vm482, %v1488, 0
        %1495 = vmatprep.subr.bf16.mxu0 0
        %1496 = vmatpush1.bf16.msra.mxu0 %v1493
        %1497 = vmatprep.subr.bf16.mxu0 0
        %1498 = vmatpush1.bf16.msra.mxu0 0
        %1499 = vmatprep.subr.bf16.mxu0 0
        %1500 = vmatpush1.bf16.msra.mxu0 0
        %1501 = vmatprep.subr.bf16.mxu0 0
        %1502 = vmatpush1.bf16.msra.mxu0 0
        %1503 = vmatprep.subr.bf16.mxu0 0
        %1504 = vmatpush1.bf16.msra.mxu0 0
        %1505 = vmatprep.subr.bf16.mxu0 0
        %1506 = vmatpush1.bf16.msra.mxu0 0
        %1507 = vmatprep.subr.bf16.mxu0 0
        %1508 = vmatpush1.bf16.msra.mxu0 0
        %1509 = vmatprep.subr.bf16.mxu0 0
        %1510 = vmatpush1.bf16.msra.mxu0 0
        %1511 = vmatprep.subr.bf16.mxu0 0
        %1512 = vmatpush1.bf16.msra.mxu0 0
        %1513 = vmatprep.subr.bf16.mxu0 0
        %1514 = vmatpush1.bf16.msra.mxu0 0
        %1515 = vmatprep.subr.bf16.mxu0 0
        %1516 = vmatpush1.bf16.msra.mxu0 0
        %1517 = vmatprep.subr.bf16.mxu0 0
        %1518 = vmatpush1.bf16.msra.mxu0 0
        %1519 = vmatprep.subr.bf16.mxu0 0
        %1520 = vmatpush1.bf16.msra.mxu0 0
        %1521 = vmatprep.subr.bf16.mxu0 0
        %1522 = vmatpush1.bf16.msra.mxu0 0
        %1523 = vmatprep.subr.bf16.mxu0 0
        %1524 = vmatpush1.bf16.msra.mxu0 0
        %1525 = vmatprep.subr.bf16.mxu0 0
        %1526 = vmatpush1.bf16.msra.mxu0 0
        %1527 = vmatprep.mubr.bf16.mxu0 0
        %1528 = vmatmul.mubr.bf16.gmra.mrb[0].mxu0 %v1490
        %v1529 = vpop.f32.mrb[0].mxu0
        %v1530 = vadd.f32 0.0, %v1529
        %v1531 = vpop.f32.mrb[0].mxu0
        %v1532 = vpop.f32.mrb[0].mxu0
        %v1533 = vpop.f32.mrb[0].mxu0
        %1534 = vdwg.mxu0
        %v1535 = vpack.c.bf16 %v1301, %v1301
        %1536 = vrot.lane.b32.xlu0 %v1315, 112
        %v1537 = vpop.permute.xlu0 %1536
        %v1539 = vsel %vm478, %v1537, 0
        %v1542 = vsel %vm482, %v1535, 0
        %1544 = vmatprep.subr.bf16.mxu0 0
        %1545 = vmatpush1.bf16.msra.mxu0 %v1542
        %1546 = vmatprep.subr.bf16.mxu0 0
        %1547 = vmatpush1.bf16.msra.mxu0 0
        %1548 = vmatprep.subr.bf16.mxu0 0
        %1549 = vmatpush1.bf16.msra.mxu0 0
        %1550 = vmatprep.subr.bf16.mxu0 0
        %1551 = vmatpush1.bf16.msra.mxu0 0
        %1552 = vmatprep.subr.bf16.mxu0 0
        %1553 = vmatpush1.bf16.msra.mxu0 0
        %1554 = vmatprep.subr.bf16.mxu0 0
        %1555 = vmatpush1.bf16.msra.mxu0 0
        %1556 = vmatprep.subr.bf16.mxu0 0
        %1557 = vmatpush1.bf16.msra.mxu0 0
        %1558 = vmatprep.subr.bf16.mxu0 0
        %1559 = vmatpush1.bf16.msra.mxu0 0
        %1560 = vmatprep.subr.bf16.mxu0 0
        %1561 = vmatpush1.bf16.msra.mxu0 0
        %1562 = vmatprep.subr.bf16.mxu0 0
        %1563 = vmatpush1.bf16.msra.mxu0 0
        %1564 = vmatprep.subr.bf16.mxu0 0
        %1565 = vmatpush1.bf16.msra.mxu0 0
        %1566 = vmatprep.subr.bf16.mxu0 0
        %1567 = vmatpush1.bf16.msra.mxu0 0
        %1568 = vmatprep.subr.bf16.mxu0 0
        %1569 = vmatpush1.bf16.msra.mxu0 0
        %1570 = vmatprep.subr.bf16.mxu0 0
        %1571 = vmatpush1.bf16.msra.mxu0 0
        %1572 = vmatprep.subr.bf16.mxu0 0
        %1573 = vmatpush1.bf16.msra.mxu0 0
        %1574 = vmatprep.subr.bf16.mxu0 0
        %1575 = vmatpush1.bf16.msra.mxu0 0
        %1576 = vmatprep.mubr.bf16.mxu0 0
        %1577 = vmatmul.mubr.bf16.gmra.mrb[0].mxu0 %v1539
        %v1578 = vpop.f32.mrb[0].mxu0
        %v1579 = vadd.f32 0.0, %v1578
        %v1580 = vpop.f32.mrb[0].mxu0
        %v1581 = vpop.f32.mrb[0].mxu0
        %v1582 = vpop.f32.mrb[0].mxu0
        %1583 = vdwg.mxu0
        %v1584 = vmul.f32 %v1579, 0.35355338
        %v1585 = vsel %vm478, %v1584, -inf
        %1586 = vmax.xlane.f32.xlu0 %v1585
        %v1587 = vpop.xlane.xlu0 %1586
        %v1588 = vsub.f32 %v1584, %v1587
        %v1589 = vmul.f32 %v1588, 1.442695
        %v1590 = vpow.pop %v1589
        %v1591 = vsel %vm478, %v1590, 0.0
        %1592 = vadd.xlane.f32.xlu0 %v1591
        %v1593 = vpop.xlane.xlu0 %1592
        %v1594 = vrcp.pop %v1593
        %v1595 = vmul.f32 %v1590, %v1594
        %v1596 = vpack.c.bf16 %v1595, %v1595
        %1597 = vrot.lane.b32.xlu0 %v1315, 48
        %v1598 = vpop.permute.xlu0 %1597
        %v1600 = vsel %vm478, %v1596, 0
        %v1603 = vsel %vm482, %v1598, 0
        %1605 = vmatprep.subr.bf16.mxu0 0
        %1606 = vmatpush1.bf16.msra.mxu0 %v1603
        %1607 = vmatprep.subr.bf16.mxu0 0
        %1608 = vmatpush1.bf16.msra.mxu0 0
        %1609 = vmatprep.subr.bf16.mxu0 0
        %1610 = vmatpush1.bf16.msra.mxu0 0
        %1611 = vmatprep.subr.bf16.mxu0 0
        %1612 = vmatpush1.bf16.msra.mxu0 0
        %1613 = vmatprep.subr.bf16.mxu0 0
        %1614 = vmatpush1.bf16.msra.mxu0 0
        %1615 = vmatprep.subr.bf16.mxu0 0
        %1616 = vmatpush1.bf16.msra.mxu0 0
        %1617 = vmatprep.subr.bf16.mxu0 0
        %1618 = vmatpush1.bf16.msra.mxu0 0
        %1619 = vmatprep.subr.bf16.mxu0 0
        %1620 = vmatpush1.bf16.msra.mxu0 0
        %1621 = vmatprep.subr.bf16.mxu0 0
        %1622 = vmatpush1.bf16.msra.mxu0 0
        %1623 = vmatprep.subr.bf16.mxu0 0
        %1624 = vmatpush1.bf16.msra.mxu0 0
        %1625 = vmatprep.subr.bf16.mxu0 0
        %1626 = vmatpush1.bf16.msra.mxu0 0
        %1627 = vmatprep.subr.bf16.mxu0 0
        %1628 = vmatpush1.bf16.msra.mxu0 0
        %1629 = vmatprep.subr.bf16.mxu0 0
        %1630 = vmatpush1.bf16.msra.mxu0 0
        %1631 = vmatprep.subr.bf16.mxu0 0
        %1632 = vmatpush1.bf16.msra.mxu0 0
        %1633 = vmatprep.subr.bf16.mxu0 0
        %1634 = vmatpush1.bf16.msra.mxu0 0
        %1635 = vmatprep.subr.bf16.mxu0 0
        %1636 = vmatpush1.bf16.msra.mxu0 0
        %1637 = vmatprep.mubr.bf16.mxu0 0
        %1638 = vmatmul.mubr.bf16.gmra.mrb[0].mxu0 %v1600
        %v1639 = vpop.f32.mrb[0].mxu0
        %v1640 = vadd.f32 0.0, %v1639
        %v1641 = vpop.f32.mrb[0].mxu0
        %v1642 = vpop.f32.mrb[0].mxu0
        %v1643 = vpop.f32.mrb[0].mxu0
        %1644 = vdwg.mxu0
        %v1645 = vpack.c.bf16 %v1302, %v1302
        %1646 = vrot.lane.b32.xlu0 %v1315, 104
        %v1647 = vpop.permute.xlu0 %1646
        %v1649 = vsel %vm478, %v1647, 0
        %v1652 = vsel %vm482, %v1645, 0
        %1654 = vmatprep.subr.bf16.mxu0 0
        %1655 = vmatpush1.bf16.msra.mxu0 %v1652
        %1656 = vmatprep.subr.bf16.mxu0 0
        %1657 = vmatpush1.bf16.msra.mxu0 0
        %1658 = vmatprep.subr.bf16.mxu0 0
        %1659 = vmatpush1.bf16.msra.mxu0 0
        %1660 = vmatprep.subr.bf16.mxu0 0
        %1661 = vmatpush1.bf16.msra.mxu0 0
        %1662 = vmatprep.subr.bf16.mxu0 0
        %1663 = vmatpush1.bf16.msra.mxu0 0
        %1664 = vmatprep.subr.bf16.mxu0 0
        %1665 = vmatpush1.bf16.msra.mxu0 0
        %1666 = vmatprep.subr.bf16.mxu0 0
        %1667 = vmatpush1.bf16.msra.mxu0 0
        %1668 = vmatprep.subr.bf16.mxu0 0
        %1669 = vmatpush1.bf16.msra.mxu0 0
        %1670 = vmatprep.subr.bf16.mxu0 0
        %1671 = vmatpush1.bf16.msra.mxu0 0
        %1672 = vmatprep.subr.bf16.mxu0 0
        %1673 = vmatpush1.bf16.msra.mxu0 0
        %1674 = vmatprep.subr.bf16.mxu0 0
        %1675 = vmatpush1.bf16.msra.mxu0 0
        %1676 = vmatprep.subr.bf16.mxu0 0
        %1677 = vmatpush1.bf16.msra.mxu0 0
        %1678 = vmatprep.subr.bf16.mxu0 0
        %1679 = vmatpush1.bf16.msra.mxu0 0
        %1680 = vmatprep.subr.bf16.mxu0 0
        %1681 = vmatpush1.bf16.msra.mxu0 0
        %1682 = vmatprep.subr.bf16.mxu0 0
        %1683 = vmatpush1.bf16.msra.mxu0 0
        %1684 = vmatprep.subr.bf16.mxu0 0
        %1685 = vmatpush1.bf16.msra.mxu0 0
        %1686 = vmatprep.mubr.bf16.mxu0 0
        %1687 = vmatmul.mubr.bf16.gmra.mrb[0].mxu0 %v1649
        %v1688 = vpop.f32.mrb[0].mxu0
        %v1689 = vadd.f32 0.0, %v1688
        %v1690 = vpop.f32.mrb[0].mxu0
        %v1691 = vpop.f32.mrb[0].mxu0
        %v1692 = vpop.f32.mrb[0].mxu0
        %1693 = vdwg.mxu0
        %v1694 = vmul.f32 %v1689, 0.35355338
        %v1695 = vsel %vm478, %v1694, -inf
        %1696 = vmax.xlane.f32.xlu0 %v1695
        %v1697 = vpop.xlane.xlu0 %1696
        %v1698 = vsub.f32 %v1694, %v1697
        %v1699 = vmul.f32 %v1698, 1.442695
        %v1700 = vpow.pop %v1699
        %v1701 = vsel %vm478, %v1700, 0.0
        %1702 = vadd.xlane.f32.xlu0 %v1701
        %v1703 = vpop.xlane.xlu0 %1702
        %v1704 = vrcp.pop %v1703
        %v1705 = vmul.f32 %v1700, %v1704
        %v1706 = vpack.c.bf16 %v1705, %v1705
        %1707 = vrot.lane.b32.xlu0 %v1315, 40
        %v1708 = vpop.permute.xlu0 %1707
        %v1710 = vsel %vm478, %v1706, 0
        %v1713 = vsel %vm482, %v1708, 0
        %1715 = vmatprep.subr.bf16.mxu0 0
        %1716 = vmatpush1.bf16.msra.mxu0 %v1713
        %1717 = vmatprep.subr.bf16.mxu0 0
        %1718 = vmatpush1.bf16.msra.mxu0 0
        %1719 = vmatprep.subr.bf16.mxu0 0
        %1720 = vmatpush1.bf16.msra.mxu0 0
        %1721 = vmatprep.subr.bf16.mxu0 0
        %1722 = vmatpush1.bf16.msra.mxu0 0
        %1723 = vmatprep.subr.bf16.mxu0 0
        %1724 = vmatpush1.bf16.msra.mxu0 0
        %1725 = vmatprep.subr.bf16.mxu0 0
        %1726 = vmatpush1.bf16.msra.mxu0 0
        %1727 = vmatprep.subr.bf16.mxu0 0
        %1728 = vmatpush1.bf16.msra.mxu0 0
        %1729 = vmatprep.subr.bf16.mxu0 0
        %1730 = vmatpush1.bf16.msra.mxu0 0
        %1731 = vmatprep.subr.bf16.mxu0 0
        %1732 = vmatpush1.bf16.msra.mxu0 0
        %1733 = vmatprep.subr.bf16.mxu0 0
        %1734 = vmatpush1.bf16.msra.mxu0 0
        %1735 = vmatprep.subr.bf16.mxu0 0
        %1736 = vmatpush1.bf16.msra.mxu0 0
        %1737 = vmatprep.subr.bf16.mxu0 0
        %1738 = vmatpush1.bf16.msra.mxu0 0
        %1739 = vmatprep.subr.bf16.mxu0 0
        %1740 = vmatpush1.bf16.msra.mxu0 0
        %1741 = vmatprep.subr.bf16.mxu0 0
        %1742 = vmatpush1.bf16.msra.mxu0 0
        %1743 = vmatprep.subr.bf16.mxu0 0
        %1744 = vmatpush1.bf16.msra.mxu0 0
        %1745 = vmatprep.subr.bf16.mxu0 0
        %1746 = vmatpush1.bf16.msra.mxu0 0
        %1747 = vmatprep.mubr.bf16.mxu0 0
        %1748 = vmatmul.mubr.bf16.gmra.mrb[0].mxu0 %v1710
        %v1749 = vpop.f32.mrb[0].mxu0
        %v1750 = vadd.f32 0.0, %v1749
        %v1751 = vpop.f32.mrb[0].mxu0
        %v1752 = vpop.f32.mrb[0].mxu0
        %v1753 = vpop.f32.mrb[0].mxu0
        %1754 = vdwg.mxu0
        %1756 = vrot.lane.b32.xlu0 %v1530, 8
        %v1757 = vpop.permute.xlu0 %1756
        %1760 = vrot.lane.b32.xlu0 %v1640, 16
        %v1761 = vpop.permute.xlu0 %1760
        %1764 = vrot.lane.b32.xlu0 %v1750, 24
        %v1765 = vpop.permute.xlu0 %1764
        %v1767 = vsel %vm478, %v1420, %v1757
        %v1768 = vsel %vm931, %v1767, %v1761
        %v1769 = vsel %vm933, %v1768, %v1765
        %v1770 = vpack.c.bf16 %v1769, %v1769
        %v1771 = vlaneseq
        %v1772 = vshrl.u32 %v1771, 7
        %v1773 = vsub.s32 0, %v1772
        %v1774 = vrot.slane %v1200, %v1773
        %v1779 = vunpack.c.l.b16 %v1195
        %v1780 = vunpack.c.l.b16 %v1196
        %v1781 = vunpack.c.l.b16 %v1197
        %v1782 = vunpack.c.l.b16 %v1198
        %v1783 = vpack.c.b16 %v1780, %v1779
        %v1784 = vpack.c.b16 %v1782, %v1781
        %v1788 = vsel %vm330, %v1770, 0
        %1790 = vmatprep.subr.bf16.mxu0 0
        %1791 = vmatpush1.bf16.msra.mxu0 %v1783
        %1792 = vmatprep.subr.bf16.mxu0 0
        %1793 = vmatpush1.bf16.msra.mxu0 %v1784
        %1794 = vmatprep.subr.bf16.mxu0 0
        %1795 = vmatpush1.bf16.msra.mxu0 0
        %1796 = vmatprep.subr.bf16.mxu0 0
        %1797 = vmatpush1.bf16.msra.mxu0 0
        %1798 = vmatprep.subr.bf16.mxu0 0
        %1799 = vmatpush1.bf16.msra.mxu0 0
        %1800 = vmatprep.subr.bf16.mxu0 0
        %1801 = vmatpush1.bf16.msra.mxu0 0
        %1802 = vmatprep.subr.bf16.mxu0 0
        %1803 = vmatpush1.bf16.msra.mxu0 0
        %1804 = vmatprep.subr.bf16.mxu0 0
        %1805 = vmatpush1.bf16.msra.mxu0 0
        %1806 = vmatprep.subr.bf16.mxu0 0
        %1807 = vmatpush1.bf16.msra.mxu0 0
        %1808 = vmatprep.subr.bf16.mxu0 0
        %1809 = vmatpush1.bf16.msra.mxu0 0
        %1810 = vmatprep.subr.bf16.mxu0 0
        %1811 = vmatpush1.bf16.msra.mxu0 0
        %1812 = vmatprep.subr.bf16.mxu0 0
        %1813 = vmatpush1.bf16.msra.mxu0 0
        %1814 = vmatprep.subr.bf16.mxu0 0
        %1815 = vmatpush1.bf16.msra.mxu0 0
        %1816 = vmatprep.subr.bf16.mxu0 0
        %1817 = vmatpush1.bf16.msra.mxu0 0
        %1818 = vmatprep.subr.bf16.mxu0 0
        %1819 = vmatpush1.bf16.msra.mxu0 0
        %1820 = vmatprep.subr.bf16.mxu0 0
        %1821 = vmatpush1.bf16.msra.mxu0 0
        %1822 = vmatprep.mubr.bf16.mxu0 0
        %1823 = vmatmul.mubr.bf16.gmra.mrb[0].mxu0 %v1788
        %v1824 = vpop.f32.mrb[0].mxu0
        %v1825 = vadd.f32 %v1774, %v1824
        %v1826 = vpop.f32.mrb[0].mxu0
        %v1827 = vpop.f32.mrb[0].mxu0
        %v1828 = vpop.f32.mrb[0].mxu0
        %1829 = vdwg.mxu0
        %v1830 = vadd.f32 %v1186, %v1825
        %v1831 = vsel %vm330, %v1830, 0.0
        %1832 = vadd.xlane.f32.xlu0 %v1831
        %v1833 = vpop.xlane.xlu0 %1832
        %v1834 = vmul.f32 %v1833, %v334
        %v1835 = vsub.f32 %v1830, %v1834
        %v1836 = vmul.f32 %v1835, %v1835
        %v1837 = vsel %vm330, %v1836, 0.0
        %1838 = vadd.xlane.f32.xlu0 %v1837
        %v1839 = vpop.xlane.xlu0 %1838
        %v1840 = vmul.f32 %v1839, %v334
        %v1841 = vadd.f32 %v1840, 1e-12
        %v1842 = vrsqrt.pop %v1841
        %v1843 = vmul.f32 %v1835, %v1842
        %v1844 = vlaneseq
        %v1845 = vshrl.u32 %v1844, 7
        %v1846 = vsub.s32 1, %v1845
        %v1847 = vrot.slane %v1200, %v1846
        %v1848 = vmul.f32 %v1843, %v1847
        %v1849 = vlaneseq
        %v1850 = vshrl.u32 %v1849, 7
        %v1851 = vsub.s32 2, %v1850
        %v1852 = vrot.slane %v1200, %v1851
        %v1853 = vadd.f32 %v1848, %v1852
        %v1854 = vpack.c.bf16 %v1853, %v1853
        %v1856 = vlaneseq
        %v1857 = vshrl.u32 %v1856, 7
        %v1858 = vsub.s32 0, %v1857
        %v1859 = vrot.slane %v1207, %v1858
        %v1865 = vunpack.c.l.b16 %v1202
        %v1866 = vunpack.c.l.b16 %v1203
        %v1867 = vunpack.c.l.b16 %v1204
        %v1868 = vunpack.c.l.b16 %v1205
        %v1869 = vpack.c.b16 %v1866, %v1865
        %v1870 = vpack.c.b16 %v1868, %v1867
        %v1874 = vsel %vm330, %v1854, 0
        %1876 = vmatprep.subr.bf16.mxu0 0
        %1877 = vmatpush1.bf16.msra.mxu0 %v1869
        %1878 = vmatprep.subr.bf16.mxu0 0
        %1879 = vmatpush1.bf16.msra.mxu0 %v1870
        %1880 = vmatprep.subr.bf16.mxu0 0
        %1881 = vmatpush1.bf16.msra.mxu0 0
        %1882 = vmatprep.subr.bf16.mxu0 0
        %1883 = vmatpush1.bf16.msra.mxu0 0
        %1884 = vmatprep.subr.bf16.mxu0 0
        %1885 = vmatpush1.bf16.msra.mxu0 0
        %1886 = vmatprep.subr.bf16.mxu0 0
        %1887 = vmatpush1.bf16.msra.mxu0 0
        %1888 = vmatprep.subr.bf16.mxu0 0
        %1889 = vmatpush1.bf16.msra.mxu0 0
        %1890 = vmatprep.subr.bf16.mxu0 0
        %1891 = vmatpush1.bf16.msra.mxu0 0
        %1892 = vmatprep.subr.bf16.mxu0 0
        %1893 = vmatpush1.bf16.msra.mxu0 0
        %1894 = vmatprep.subr.bf16.mxu0 0
        %1895 = vmatpush1.bf16.msra.mxu0 0
        %1896 = vmatprep.subr.bf16.mxu0 0
        %1897 = vmatpush1.bf16.msra.mxu0 0
        %1898 = vmatprep.subr.bf16.mxu0 0
        %1899 = vmatpush1.bf16.msra.mxu0 0
        %1900 = vmatprep.subr.bf16.mxu0 0
        %1901 = vmatpush1.bf16.msra.mxu0 0
        %1902 = vmatprep.subr.bf16.mxu0 0
        %1903 = vmatpush1.bf16.msra.mxu0 0
        %1904 = vmatprep.subr.bf16.mxu0 0
        %1905 = vmatpush1.bf16.msra.mxu0 0
        %1906 = vmatprep.subr.bf16.mxu0 0
        %1907 = vmatpush1.bf16.msra.mxu0 0
        %1908 = vmatprep.mubr.bf16.mxu0 0
        %1909 = vmatmul.mubr.bf16.gmra.mrb[0].mxu0 %v1874
        %v1910 = vpop.f32.mrb[0].mxu0
        %v1911 = vadd.f32 %v1859, %v1910
        %v1912 = vpop.f32.mrb[0].mxu0
        %v1913 = vpop.f32.mrb[0].mxu0
        %v1914 = vpop.f32.mrb[0].mxu0
        %1915 = vdwg.mxu0
        %v1916 = vmul.f32 %v1911, 0.5
        %v1917 = vmul.f32 %v1911, 0.044715
        %v1918 = vmul.f32 %v1917, %v1911
        %v1919 = vmul.f32 %v1918, %v1911
        %v1920 = vadd.f32 %v1911, %v1919
        %v1921 = vmul.f32 %v1920, 0.7978846
        %v1922 = vtanh.pop %v1921
        %v1923 = vadd.f32 %v1922, 1.0
        %v1924 = vmul.f32 %v1916, %v1923
        %v1925 = vpack.c.bf16 %v1924, %v1924
        %v1926 = vlaneseq
        %v1927 = vshrl.u32 %v1926, 7
        %v1928 = vsub.s32 3, %v1927
        %v1929 = vrot.slane %v1200, %v1928
        %v1938 = vunpack.c.l.b16 %v1209
        %v1939 = vunpack.c.l.b16 %v1210
        %v1940 = vunpack.c.l.b16 %v1211
        %v1941 = vunpack.c.l.b16 %v1212
        %v1942 = vunpack.c.l.b16 %v1213
        %v1943 = vunpack.c.l.b16 %v1214
        %v1944 = vunpack.c.l.b16 %v1215
        %v1945 = vunpack.c.l.b16 %v1216
        %v1946 = vpack.c.b16 %v1939, %v1938
        %v1947 = vpack.c.b16 %v1941, %v1940
        %v1948 = vpack.c.b16 %v1943, %v1942
        %v1949 = vpack.c.b16 %v1945, %v1944
        %v1955 = vsel %vm1119, %v1925, 0
        %1957 = vmatprep.subr.bf16.mxu0 0
        %1958 = vmatpush1.bf16.msra.mxu0 %v1946
        %1959 = vmatprep.subr.bf16.mxu0 0
        %1960 = vmatpush1.bf16.msra.mxu0 %v1947
        %1961 = vmatprep.subr.bf16.mxu0 0
        %1962 = vmatpush1.bf16.msra.mxu0 %v1948
        %1963 = vmatprep.subr.bf16.mxu0 0
        %1964 = vmatpush1.bf16.msra.mxu0 %v1949
        %1965 = vmatprep.subr.bf16.mxu0 0
        %1966 = vmatpush1.bf16.msra.mxu0 0
        %1967 = vmatprep.subr.bf16.mxu0 0
        %1968 = vmatpush1.bf16.msra.mxu0 0
        %1969 = vmatprep.subr.bf16.mxu0 0
        %1970 = vmatpush1.bf16.msra.mxu0 0
        %1971 = vmatprep.subr.bf16.mxu0 0
        %1972 = vmatpush1.bf16.msra.mxu0 0
        %1973 = vmatprep.subr.bf16.mxu0 0
        %1974 = vmatpush1.bf16.msra.mxu0 0
        %1975 = vmatprep.subr.bf16.mxu0 0
        %1976 = vmatpush1.bf16.msra.mxu0 0
        %1977 = vmatprep.subr.bf16.mxu0 0
        %1978 = vmatpush1.bf16.msra.mxu0 0
        %1979 = vmatprep.subr.bf16.mxu0 0
        %1980 = vmatpush1.bf16.msra.mxu0 0
        %1981 = vmatprep.subr.bf16.mxu0 0
        %1982 = vmatpush1.bf16.msra.mxu0 0
        %1983 = vmatprep.subr.bf16.mxu0 0
        %1984 = vmatpush1.bf16.msra.mxu0 0
        %1985 = vmatprep.subr.bf16.mxu0 0
        %1986 = vmatpush1.bf16.msra.mxu0 0
        %1987 = vmatprep.subr.bf16.mxu0 0
        %1988 = vmatpush1.bf16.msra.mxu0 0
        %1989 = vmatprep.mubr.bf16.mxu0 0
        %1990 = vmatmul.mubr.bf16.gmra.mrb[0].mxu0 %v1955
        %v1991 = vpop.f32.mrb[0].mxu0
        %v1992 = vadd.f32 %v1929, %v1991
        %v1993 = vpop.f32.mrb[0].mxu0
        %v1994 = vpop.f32.mrb[0].mxu0
        %v1995 = vpop.f32.mrb[0].mxu0
        %1996 = vdwg.mxu0
        %v1997 = vadd.f32 %v1853, %v1992
        %v1998 = vsel %vm330, %v1997, 0.0
        %1999 = vadd.xlane.f32.xlu0 %v1998
        %v2000 = vpop.xlane.xlu0 %1999
        %v2001 = vmul.f32 %v2000, %v334
        %v2002 = vsub.f32 %v1997, %v2001
        %v2003 = vmul.f32 %v2002, %v2002
        %v2004 = vsel %vm330, %v2003, 0.0
        %2005 = vadd.xlane.f32.xlu0 %v2004
        %v2006 = vpop.xlane.xlu0 %2005
        %v2007 = vmul.f32 %v2006, %v334
        %v2008 = vadd.f32 %v2007, 1e-12
        %v2009 = vrsqrt.pop %v2008
        %v2010 = vmul.f32 %v2002, %v2009
        %v2011 = vlaneseq
        %v2012 = vshrl.u32 %v2011, 7
        %v2013 = vsub.s32 4, %v2012
        %v2014 = vrot.slane %v1200, %v2013
        %v2015 = vmul.f32 %v2010, %v2014
        %v2016 = vlaneseq
        %v2017 = vshrl.u32 %v2016, 7
        %v2018 = vsub.s32 5, %v2017
        %v2019 = vrot.slane %v1200, %v2018
        %v2020 = vadd.f32 %v2015, %v2019
        %s2021 = scalar_lea.vmem %s2, 32
        %v2022 = vld [vmem:[%s2021] sm:$0xf]
        %v2023 = vld [vmem:[%s2021 + $0x4] sm:$0xf]
        %v2024 = vld [vmem:[%s2021 + $0x8] sm:$0xf]
        %v2025 = vld [vmem:[%s2021 + $0xc] sm:$0xf]
        %s2026 = scalar_lea.vmem %s3, 2
        %v2027 = vld [vmem:[%s2026] sm:$0x1]
        %s2028 = scalar_lea.vmem %s4, 32
        %v2029 = vld [vmem:[%s2028] sm:$0xf]
        %v2030 = vld [vmem:[%s2028 + $0x4] sm:$0xf]
        %v2031 = vld [vmem:[%s2028 + $0x8] sm:$0xf]
        %v2032 = vld [vmem:[%s2028 + $0xc] sm:$0xf]
        %s2033 = scalar_lea.vmem %s5, 16
        %v2034 = vld [vmem:[%s2033] sm:$0x3f]
        %s2035 = scalar_lea.vmem %s6, 32
        %v2036 = vld [vmem:[%s2035] sm:$0xf]
        %v2037 = vld [vmem:[%s2035 + $0x4] sm:$0xf]
        %v2038 = vld [vmem:[%s2035 + $0x8] sm:$0xf]
        %v2039 = vld [vmem:[%s2035 + $0xc] sm:$0xf]
        %s2040 = scalar_lea.vmem %s7, 2
        %v2041 = vld [vmem:[%s2040] sm:$0x1]
        %s2042 = scalar_lea.vmem %s8, 64
        %v2043 = vld [vmem:[%s2042] sm:$0xf]
        %v2044 = vld [vmem:[%s2042 + $0x4] sm:$0xf]
        %v2045 = vld [vmem:[%s2042 + $0x8] sm:$0xf]
        %v2046 = vld [vmem:[%s2042 + $0xc] sm:$0xf]
        %v2047 = vld [vmem:[%s2042 + $0x10] sm:$0xf]
        %v2048 = vld [vmem:[%s2042 + $0x14] sm:$0xf]
        %v2049 = vld [vmem:[%s2042 + $0x18] sm:$0xf]
        %v2050 = vld [vmem:[%s2042 + $0x1c] sm:$0xf]
        %v2051 = vpack.c.bf16 %v2020, %v2020
        %v2053 = vlaneseq
        %v2054 = vshrl.u32 %v2053, 7
        %v2055 = vsub.s32 0, %v2054
        %v2056 = vrot.slane %v2027, %v2055
        %v2062 = vunpack.c.l.b16 %v2022
        %v2063 = vunpack.c.l.b16 %v2023
        %v2064 = vunpack.c.l.b16 %v2024
        %v2065 = vunpack.c.l.b16 %v2025
        %v2066 = vpack.c.b16 %v2063, %v2062
        %v2067 = vpack.c.b16 %v2065, %v2064
        %v2071 = vsel %vm330, %v2051, 0
        %2073 = vmatprep.subr.bf16.mxu0 0
        %2074 = vmatpush1.bf16.msra.mxu0 %v2066
        %2075 = vmatprep.subr.bf16.mxu0 0
        %2076 = vmatpush1.bf16.msra.mxu0 %v2067
        %2077 = vmatprep.subr.bf16.mxu0 0
        %2078 = vmatpush1.bf16.msra.mxu0 0
        %2079 = vmatprep.subr.bf16.mxu0 0
        %2080 = vmatpush1.bf16.msra.mxu0 0
        %2081 = vmatprep.subr.bf16.mxu0 0
        %2082 = vmatpush1.bf16.msra.mxu0 0
        %2083 = vmatprep.subr.bf16.mxu0 0
        %2084 = vmatpush1.bf16.msra.mxu0 0
        %2085 = vmatprep.subr.bf16.mxu0 0
        %2086 = vmatpush1.bf16.msra.mxu0 0
        %2087 = vmatprep.subr.bf16.mxu0 0
        %2088 = vmatpush1.bf16.msra.mxu0 0
        %2089 = vmatprep.subr.bf16.mxu0 0
        %2090 = vmatpush1.bf16.msra.mxu0 0
        %2091 = vmatprep.subr.bf16.mxu0 0
        %2092 = vmatpush1.bf16.msra.mxu0 0
        %2093 = vmatprep.subr.bf16.mxu0 0
        %2094 = vmatpush1.bf16.msra.mxu0 0
        %2095 = vmatprep.subr.bf16.mxu0 0
        %2096 = vmatpush1.bf16.msra.mxu0 0
        %2097 = vmatprep.subr.bf16.mxu0 0
        %2098 = vmatpush1.bf16.msra.mxu0 0
        %2099 = vmatprep.subr.bf16.mxu0 0
        %2100 = vmatpush1.bf16.msra.mxu0 0
        %2101 = vmatprep.subr.bf16.mxu0 0
        %2102 = vmatpush1.bf16.msra.mxu0 0
        %2103 = vmatprep.subr.bf16.mxu0 0
        %2104 = vmatpush1.bf16.msra.mxu0 0
        %2105 = vmatprep.mubr.bf16.mxu0 0
        %2106 = vmatmul.mubr.bf16.gmra.mrb[0].mxu0 %v2071
        %v2107 = vpop.f32.mrb[0].mxu0
        %v2108 = vadd.f32 %v2056, %v2107
        %v2109 = vpop.f32.mrb[0].mxu0
        %v2110 = vpop.f32.mrb[0].mxu0
        %v2111 = vpop.f32.mrb[0].mxu0
        %2112 = vdwg.mxu0
        %2114 = vrot.lane.b32.xlu0 %v2108, 96
        %v2115 = vpop.permute.xlu0 %2114
        %2117 = vxpose.xlu0.b32.start [1/16] %v2115, 128
        %2118 = vxpose.xlu0.b32.cont [2/16] 0.0, 128
        %2119 = vxpose.xlu0.b32.cont [3/16] 0.0, 128
        %2120 = vxpose.xlu0.b32.cont [4/16] 0.0, 128
        %2121 = vxpose.xlu0.b32.cont [5/16] 0.0, 128
        %2122 = vxpose.xlu0.b32.cont [6/16] 0.0, 128
        %2123 = vxpose.xlu0.b32.cont [7/16] 0.0, 128
        %2124 = vxpose.xlu0.b32.cont [8/16] 0.0, 128
        %2125 = vxpose.xlu0.b32.cont [9/16] 0.0, 128
        %2126 = vxpose.xlu0.b32.cont [10/16] 0.0, 128
        %2127 = vxpose.xlu0.b32.cont [11/16] 0.0, 128
        %2128 = vxpose.xlu0.b32.cont [12/16] 0.0, 128
        %2129 = vxpose.xlu0.b32.cont [13/16] 0.0, 128
        %2130 = vxpose.xlu0.b32.cont [14/16] 0.0, 128
        %2131 = vxpose.xlu0.b32.cont [15/16] 0.0, 128
        %2132 = vxpose.xlu0.b32.end [16/16] 0.0, 128
        %v2133 = vpop.trf.xlu0
        %v2134 = vpop.trf.xlu0
        %v2135 = vpop.trf.xlu0
        %v2136 = vpop.trf.xlu0
        %v2137 = vpop.trf.xlu0
        %v2138 = vpop.trf.xlu0
        %v2139 = vpop.trf.xlu0
        %v2140 = vpop.trf.xlu0
        %v2141 = vpop.trf.xlu0
        %v2142 = vpop.trf.xlu0
        %v2143 = vpop.trf.xlu0
        %v2144 = vpop.trf.xlu0
        %v2145 = vpop.trf.xlu0
        %v2146 = vpop.trf.xlu0
        %v2147 = vpop.trf.xlu0
        %v2148 = vpop.trf.xlu0
        %v2149 = vpack.c.bf16 %v2108, %v2108
        %v2150 = vpack.c.bf16 %v2133, %v2133
        %v2152 = vsel %vm478, %v2149, 0
        %v2155 = vsel %vm482, %v2150, 0
        %2157 = vmatprep.subr.bf16.mxu0 0
        %2158 = vmatpush1.bf16.msra.mxu0 %v2155
        %2159 = vmatprep.subr.bf16.mxu0 0
        %2160 = vmatpush1.bf16.msra.mxu0 0
        %2161 = vmatprep.subr.bf16.mxu0 0
        %2162 = vmatpush1.bf16.msra.mxu0 0
        %2163 = vmatprep.subr.bf16.mxu0 0
        %2164 = vmatpush1.bf16.msra.mxu0 0
        %2165 = vmatprep.subr.bf16.mxu0 0
        %2166 = vmatpush1.bf16.msra.mxu0 0
        %2167 = vmatprep.subr.bf16.mxu0 0
        %2168 = vmatpush1.bf16.msra.mxu0 0
        %2169 = vmatprep.subr.bf16.mxu0 0
        %2170 = vmatpush1.bf16.msra.mxu0 0
        %2171 = vmatprep.subr.bf16.mxu0 0
        %2172 = vmatpush1.bf16.msra.mxu0 0
        %2173 = vmatprep.subr.bf16.mxu0 0
        %2174 = vmatpush1.bf16.msra.mxu0 0
        %2175 = vmatprep.subr.bf16.mxu0 0
        %2176 = vmatpush1.bf16.msra.mxu0 0
        %2177 = vmatprep.subr.bf16.mxu0 0
        %2178 = vmatpush1.bf16.msra.mxu0 0
        %2179 = vmatprep.subr.bf16.mxu0 0
        %2180 = vmatpush1.bf16.msra.mxu0 0
        %2181 = vmatprep.subr.bf16.mxu0 0
        %2182 = vmatpush1.bf16.msra.mxu0 0
        %2183 = vmatprep.subr.bf16.mxu0 0
        %2184 = vmatpush1.bf16.msra.mxu0 0
        %2185 = vmatprep.subr.bf16.mxu0 0
        %2186 = vmatpush1.bf16.msra.mxu0 0
        %2187 = vmatprep.subr.bf16.mxu0 0
        %2188 = vmatpush1.bf16.msra.mxu0 0
        %2189 = vmatprep.mubr.bf16.mxu0 0
        %2190 = vmatmul.mubr.bf16.gmra.mrb[0].mxu0 %v2152
        %v2191 = vpop.f32.mrb[0].mxu0
        %v2192 = vadd.f32 0.0, %v2191
        %v2193 = vpop.f32.mrb[0].mxu0
        %v2194 = vpop.f32.mrb[0].mxu0
        %v2195 = vpop.f32.mrb[0].mxu0
        %2196 = vdwg.mxu0
        %v2197 = vmul.f32 %v2192, 0.35355338
        %v2198 = vsel %vm478, %v2197, -inf
        %2199 = vmax.xlane.f32.xlu0 %v2198
        %v2200 = vpop.xlane.xlu0 %2199
        %v2201 = vsub.f32 %v2197, %v2200
        %v2202 = vmul.f32 %v2201, 1.442695
        %v2203 = vpow.pop %v2202
        %v2204 = vsel %vm478, %v2203, 0.0
        %2205 = vadd.xlane.f32.xlu0 %v2204
        %v2206 = vpop.xlane.xlu0 %2205
        %v2207 = vrcp.pop %v2206
        %v2208 = vmul.f32 %v2203, %v2207
        %v2209 = vpack.c.bf16 %v2208, %v2208
        %2211 = vrot.lane.b32.xlu0 %v2149, 64
        %v2212 = vpop.permute.xlu0 %2211
        %v2214 = vsel %vm478, %v2209, 0
        %v2217 = vsel %vm482, %v2212, 0
        %2219 = vmatprep.subr.bf16.mxu0 0
        %2220 = vmatpush1.bf16.msra.mxu0 %v2217
        %2221 = vmatprep.subr.bf16.mxu0 0
        %2222 = vmatpush1.bf16.msra.mxu0 0
        %2223 = vmatprep.subr.bf16.mxu0 0
        %2224 = vmatpush1.bf16.msra.mxu0 0
        %2225 = vmatprep.subr.bf16.mxu0 0
        %2226 = vmatpush1.bf16.msra.mxu0 0
        %2227 = vmatprep.subr.bf16.mxu0 0
        %2228 = vmatpush1.bf16.msra.mxu0 0
        %2229 = vmatprep.subr.bf16.mxu0 0
        %2230 = vmatpush1.bf16.msra.mxu0 0
        %2231 = vmatprep.subr.bf16.mxu0 0
        %2232 = vmatpush1.bf16.msra.mxu0 0
        %2233 = vmatprep.subr.bf16.mxu0 0
        %2234 = vmatpush1.bf16.msra.mxu0 0
        %2235 = vmatprep.subr.bf16.mxu0 0
        %2236 = vmatpush1.bf16.msra.mxu0 0
        %2237 = vmatprep.subr.bf16.mxu0 0
        %2238 = vmatpush1.bf16.msra.mxu0 0
        %2239 = vmatprep.subr.bf16.mxu0 0
        %2240 = vmatpush1.bf16.msra.mxu0 0
        %2241 = vmatprep.subr.bf16.mxu0 0
        %2242 = vmatpush1.bf16.msra.mxu0 0
        %2243 = vmatprep.subr.bf16.mxu0 0
        %2244 = vmatpush1.bf16.msra.mxu0 0
        %2245 = vmatprep.subr.bf16.mxu0 0
        %2246 = vmatpush1.bf16.msra.mxu0 0
        %2247 = vmatprep.subr.bf16.mxu0 0
        %2248 = vmatpush1.bf16.msra.mxu0 0
        %2249 = vmatprep.subr.bf16.mxu0 0
        %2250 = vmatpush1.bf16.msra.mxu0 0
        %2251 = vmatprep.mubr.bf16.mxu0 0
        %2252 = vmatmul.mubr.bf16.gmra.mrb[0].mxu0 %v2214
        %v2253 = vpop.f32.mrb[0].mxu0
        %v2254 = vadd.f32 0.0, %v2253
        %v2255 = vpop.f32.mrb[0].mxu0
        %v2256 = vpop.f32.mrb[0].mxu0
        %v2257 = vpop.f32.mrb[0].mxu0
        %2258 = vdwg.mxu0
        %v2259 = vpack.c.bf16 %v2134, %v2134
        %2260 = vrot.lane.b32.xlu0 %v2149, 120
        %v2261 = vpop.permute.xlu0 %2260
        %v2263 = vsel %vm478, %v2261, 0
        %v2266 = vsel %vm482, %v2259, 0
        %2268 = vmatprep.subr.bf16.mxu0 0
        %2269 = vmatpush1.bf16.msra.mxu0 %v2266
        %2270 = vmatprep.subr.bf16.mxu0 0
        %2271 = vmatpush1.bf16.msra.mxu0 0
        %2272 = vmatprep.subr.bf16.mxu0 0
        %2273 = vmatpush1.bf16.msra.mxu0 0
        %2274 = vmatprep.subr.bf16.mxu0 0
        %2275 = vmatpush1.bf16.msra.mxu0 0
        %2276 = vmatprep.subr.bf16.mxu0 0
        %2277 = vmatpush1.bf16.msra.mxu0 0
        %2278 = vmatprep.subr.bf16.mxu0 0
        %2279 = vmatpush1.bf16.msra.mxu0 0
        %2280 = vmatprep.subr.bf16.mxu0 0
        %2281 = vmatpush1.bf16.msra.mxu0 0
        %2282 = vmatprep.subr.bf16.mxu0 0
        %2283 = vmatpush1.bf16.msra.mxu0 0
        %2284 = vmatprep.subr.bf16.mxu0 0
        %2285 = vmatpush1.bf16.msra.mxu0 0
        %2286 = vmatprep.subr.bf16.mxu0 0
        %2287 = vmatpush1.bf16.msra.mxu0 0
        %2288 = vmatprep.subr.bf16.mxu0 0
        %2289 = vmatpush1.bf16.msra.mxu0 0
        %2290 = vmatprep.subr.bf16.mxu0 0
        %2291 = vmatpush1.bf16.msra.mxu0 0
        %2292 = vmatprep.subr.bf16.mxu0 0
        %2293 = vmatpush1.bf16.msra.mxu0 0
        %2294 = vmatprep.subr.bf16.mxu0 0
        %2295 = vmatpush1.bf16.msra.mxu0 0
        %2296 = vmatprep.subr.bf16.mxu0 0
        %2297 = vmatpush1.bf16.msra.mxu0 0
        %2298 = vmatprep.subr.bf16.mxu0 0
        %2299 = vmatpush1.bf16.msra.mxu0 0
        %2300 = vmatprep.mubr.bf16.mxu0 0
        %2301 = vmatmul.mubr.bf16.gmra.mrb[0].mxu0 %v2263
        %v2302 = vpop.f32.mrb[0].mxu0
        %v2303 = vadd.f32 0.0, %v2302
        %v2304 = vpop.f32.mrb[0].mxu0
        %v2305 = vpop.f32.mrb[0].mxu0
        %v2306 = vpop.f32.mrb[0].mxu0
        %2307 = vdwg.mxu0
        %v2308 = vmul.f32 %v2303, 0.35355338
        %v2309 = vsel %vm478, %v2308, -inf
        %2310 = vmax.xlane.f32.xlu0 %v2309
        %v2311 = vpop.xlane.xlu0 %2310
        %v2312 = vsub.f32 %v2308, %v2311
        %v2313 = vmul.f32 %v2312, 1.442695
        %v2314 = vpow.pop %v2313
        %v2315 = vsel %vm478, %v2314, 0.0
        %2316 = vadd.xlane.f32.xlu0 %v2315
        %v2317 = vpop.xlane.xlu0 %2316
        %v2318 = vrcp.pop %v2317
        %v2319 = vmul.f32 %v2314, %v2318
        %v2320 = vpack.c.bf16 %v2319, %v2319
        %2321 = vrot.lane.b32.xlu0 %v2149, 56
        %v2322 = vpop.permute.xlu0 %2321
        %v2324 = vsel %vm478, %v2320, 0
        %v2327 = vsel %vm482, %v2322, 0
        %2329 = vmatprep.subr.bf16.mxu0 0
        %2330 = vmatpush1.bf16.msra.mxu0 %v2327
        %2331 = vmatprep.subr.bf16.mxu0 0
        %2332 = vmatpush1.bf16.msra.mxu0 0
        %2333 = vmatprep.subr.bf16.mxu0 0
        %2334 = vmatpush1.bf16.msra.mxu0 0
        %2335 = vmatprep.subr.bf16.mxu0 0
        %2336 = vmatpush1.bf16.msra.mxu0 0
        %2337 = vmatprep.subr.bf16.mxu0 0
        %2338 = vmatpush1.bf16.msra.mxu0 0
        %2339 = vmatprep.subr.bf16.mxu0 0
        %2340 = vmatpush1.bf16.msra.mxu0 0
        %2341 = vmatprep.subr.bf16.mxu0 0
        %2342 = vmatpush1.bf16.msra.mxu0 0
        %2343 = vmatprep.subr.bf16.mxu0 0
        %2344 = vmatpush1.bf16.msra.mxu0 0
        %2345 = vmatprep.subr.bf16.mxu0 0
        %2346 = vmatpush1.bf16.msra.mxu0 0
        %2347 = vmatprep.subr.bf16.mxu0 0
        %2348 = vmatpush1.bf16.msra.mxu0 0
        %2349 = vmatprep.subr.bf16.mxu0 0
        %2350 = vmatpush1.bf16.msra.mxu0 0
        %2351 = vmatprep.subr.bf16.mxu0 0
        %2352 = vmatpush1.bf16.msra.mxu0 0
        %2353 = vmatprep.subr.bf16.mxu0 0
        %2354 = vmatpush1.bf16.msra.mxu0 0
        %2355 = vmatprep.subr.bf16.mxu0 0
        %2356 = vmatpush1.bf16.msra.mxu0 0
        %2357 = vmatprep.subr.bf16.mxu0 0
        %2358 = vmatpush1.bf16.msra.mxu0 0
        %2359 = vmatprep.subr.bf16.mxu0 0
        %2360 = vmatpush1.bf16.msra.mxu0 0
        %2361 = vmatprep.mubr.bf16.mxu0 0
        %2362 = vmatmul.mubr.bf16.gmra.mrb[0].mxu0 %v2324
        %v2363 = vpop.f32.mrb[0].mxu0
        %v2364 = vadd.f32 0.0, %v2363
        %v2365 = vpop.f32.mrb[0].mxu0
        %v2366 = vpop.f32.mrb[0].mxu0
        %v2367 = vpop.f32.mrb[0].mxu0
        %2368 = vdwg.mxu0
        %v2369 = vpack.c.bf16 %v2135, %v2135
        %2370 = vrot.lane.b32.xlu0 %v2149, 112
        %v2371 = vpop.permute.xlu0 %2370
        %v2373 = vsel %vm478, %v2371, 0
        %v2376 = vsel %vm482, %v2369, 0
        %2378 = vmatprep.subr.bf16.mxu0 0
        %2379 = vmatpush1.bf16.msra.mxu0 %v2376
        %2380 = vmatprep.subr.bf16.mxu0 0
        %2381 = vmatpush1.bf16.msra.mxu0 0
        %2382 = vmatprep.subr.bf16.mxu0 0
        %2383 = vmatpush1.bf16.msra.mxu0 0
        %2384 = vmatprep.subr.bf16.mxu0 0
        %2385 = vmatpush1.bf16.msra.mxu0 0
        %2386 = vmatprep.subr.bf16.mxu0 0
        %2387 = vmatpush1.bf16.msra.mxu0 0
        %2388 = vmatprep.subr.bf16.mxu0 0
        %2389 = vmatpush1.bf16.msra.mxu0 0
        %2390 = vmatprep.subr.bf16.mxu0 0
        %2391 = vmatpush1.bf16.msra.mxu0 0
        %2392 = vmatprep.subr.bf16.mxu0 0
        %2393 = vmatpush1.bf16.msra.mxu0 0
        %2394 = vmatprep.subr.bf16.mxu0 0
        %2395 = vmatpush1.bf16.msra.mxu0 0
        %2396 = vmatprep.subr.bf16.mxu0 0
        %2397 = vmatpush1.bf16.msra.mxu0 0
        %2398 = vmatprep.subr.bf16.mxu0 0
        %2399 = vmatpush1.bf16.msra.mxu0 0
        %2400 = vmatprep.subr.bf16.mxu0 0
        %2401 = vmatpush1.bf16.msra.mxu0 0
        %2402 = vmatprep.subr.bf16.mxu0 0
        %2403 = vmatpush1.bf16.msra.mxu0 0
        %2404 = vmatprep.subr.bf16.mxu0 0
        %2405 = vmatpush1.bf16.msra.mxu0 0
        %2406 = vmatprep.subr.bf16.mxu0 0
        %2407 = vmatpush1.bf16.msra.mxu0 0
        %2408 = vmatprep.subr.bf16.mxu0 0
        %2409 = vmatpush1.bf16.msra.mxu0 0
        %2410 = vmatprep.mubr.bf16.mxu0 0
        %2411 = vmatmul.mubr.bf16.gmra.mrb[0].mxu0 %v2373
        %v2412 = vpop.f32.mrb[0].mxu0
        %v2413 = vadd.f32 0.0, %v2412
        %v2414 = vpop.f32.mrb[0].mxu0
        %v2415 = vpop.f32.mrb[0].mxu0
        %v2416 = vpop.f32.mrb[0].mxu0
        %2417 = vdwg.mxu0
        %v2418 = vmul.f32 %v2413, 0.35355338
        %v2419 = vsel %vm478, %v2418, -inf
        %2420 = vmax.xlane.f32.xlu0 %v2419
        %v2421 = vpop.xlane.xlu0 %2420
        %v2422 = vsub.f32 %v2418, %v2421
        %v2423 = vmul.f32 %v2422, 1.442695
        %v2424 = vpow.pop %v2423
        %v2425 = vsel %vm478, %v2424, 0.0
        %2426 = vadd.xlane.f32.xlu0 %v2425
        %v2427 = vpop.xlane.xlu0 %2426
        %v2428 = vrcp.pop %v2427
        %v2429 = vmul.f32 %v2424, %v2428
        %v2430 = vpack.c.bf16 %v2429, %v2429
        %2431 = vrot.lane.b32.xlu0 %v2149, 48
        %v2432 = vpop.permute.xlu0 %2431
        %v2434 = vsel %vm478, %v2430, 0
        %v2437 = vsel %vm482, %v2432, 0
        %2439 = vmatprep.subr.bf16.mxu0 0
        %2440 = vmatpush1.bf16.msra.mxu0 %v2437
        %2441 = vmatprep.subr.bf16.mxu0 0
        %2442 = vmatpush1.bf16.msra.mxu0 0
        %2443 = vmatprep.subr.bf16.mxu0 0
        %2444 = vmatpush1.bf16.msra.mxu0 0
        %2445 = vmatprep.subr.bf16.mxu0 0
        %2446 = vmatpush1.bf16.msra.mxu0 0
        %2447 = vmatprep.subr.bf16.mxu0 0
        %2448 = vmatpush1.bf16.msra.mxu0 0
        %2449 = vmatprep.subr.bf16.mxu0 0
        %2450 = vmatpush1.bf16.msra.mxu0 0
        %2451 = vmatprep.subr.bf16.mxu0 0
        %2452 = vmatpush1.bf16.msra.mxu0 0
        %2453 = vmatprep.subr.bf16.mxu0 0
        %2454 = vmatpush1.bf16.msra.mxu0 0
        %2455 = vmatprep.subr.bf16.mxu0 0
        %2456 = vmatpush1.bf16.msra.mxu0 0
        %2457 = vmatprep.subr.bf16.mxu0 0
        %2458 = vmatpush1.bf16.msra.mxu0 0
        %2459 = vmatprep.subr.bf16.mxu0 0
        %2460 = vmatpush1.bf16.msra.mxu0 0
        %2461 = vmatprep.subr.bf16.mxu0 0
        %2462 = vmatpush1.bf16.msra.mxu0 0
        %2463 = vmatprep.subr.bf16.mxu0 0
        %2464 = vmatpush1.bf16.msra.mxu0 0
        %2465 = vmatprep.subr.bf16.mxu0 0
        %2466 = vmatpush1.bf16.msra.mxu0 0
        %2467 = vmatprep.subr.bf16.mxu0 0
        %2468 = vmatpush1.bf16.msra.mxu0 0
        %2469 = vmatprep.subr.bf16.mxu0 0
        %2470 = vmatpush1.bf16.msra.mxu0 0
        %2471 = vmatprep.mubr.bf16.mxu0 0
        %2472 = vmatmul.mubr.bf16.gmra.mrb[0].mxu0 %v2434
        %v2473 = vpop.f32.mrb[0].mxu0
        %v2474 = vadd.f32 0.0, %v2473
        %v2475 = vpop.f32.mrb[0].mxu0
        %v2476 = vpop.f32.mrb[0].mxu0
        %v2477 = vpop.f32.mrb[0].mxu0
        %2478 = vdwg.mxu0
        %v2479 = vpack.c.bf16 %v2136, %v2136
        %2480 = vrot.lane.b32.xlu0 %v2149, 104
        %v2481 = vpop.permute.xlu0 %2480
        %v2483 = vsel %vm478, %v2481, 0
        %v2486 = vsel %vm482, %v2479, 0
        %2488 = vmatprep.subr.bf16.mxu0 0
        %2489 = vmatpush1.bf16.msra.mxu0 %v2486
        %2490 = vmatprep.subr.bf16.mxu0 0
        %2491 = vmatpush1.bf16.msra.mxu0 0
        %2492 = vmatprep.subr.bf16.mxu0 0
        %2493 = vmatpush1.bf16.msra.mxu0 0
        %2494 = vmatprep.subr.bf16.mxu0 0
        %2495 = vmatpush1.bf16.msra.mxu0 0
        %2496 = vmatprep.subr.bf16.mxu0 0
        %2497 = vmatpush1.bf16.msra.mxu0 0
        %2498 = vmatprep.subr.bf16.mxu0 0
        %2499 = vmatpush1.bf16.msra.mxu0 0
        %2500 = vmatprep.subr.bf16.mxu0 0
        %2501 = vmatpush1.bf16.msra.mxu0 0
        %2502 = vmatprep.subr.bf16.mxu0 0
        %2503 = vmatpush1.bf16.msra.mxu0 0
        %2504 = vmatprep.subr.bf16.mxu0 0
        %2505 = vmatpush1.bf16.msra.mxu0 0
        %2506 = vmatprep.subr.bf16.mxu0 0
        %2507 = vmatpush1.bf16.msra.mxu0 0
        %2508 = vmatprep.subr.bf16.mxu0 0
        %2509 = vmatpush1.bf16.msra.mxu0 0
        %2510 = vmatprep.subr.bf16.mxu0 0
        %2511 = vmatpush1.bf16.msra.mxu0 0
        %2512 = vmatprep.subr.bf16.mxu0 0
        %2513 = vmatpush1.bf16.msra.mxu0 0
        %2514 = vmatprep.subr.bf16.mxu0 0
        %2515 = vmatpush1.bf16.msra.mxu0 0
        %2516 = vmatprep.subr.bf16.mxu0 0
        %2517 = vmatpush1.bf16.msra.mxu0 0
        %2518 = vmatprep.subr.bf16.mxu0 0
        %2519 = vmatpush1.bf16.msra.mxu0 0
        %2520 = vmatprep.mubr.bf16.mxu0 0
        %2521 = vmatmul.mubr.bf16.gmra.mrb[0].mxu0 %v2483
        %v2522 = vpop.f32.mrb[0].mxu0
        %v2523 = vadd.f32 0.0, %v2522
        %v2524 = vpop.f32.mrb[0].mxu0
        %v2525 = vpop.f32.mrb[0].mxu0
        %v2526 = vpop.f32.mrb[0].mxu0
        %2527 = vdwg.mxu0
        %v2528 = vmul.f32 %v2523, 0.35355338
        %v2529 = vsel %vm478, %v2528, -inf
        %2530 = vmax.xlane.f32.xlu0 %v2529
        %v2531 = vpop.xlane.xlu0 %2530
        %v2532 = vsub.f32 %v2528, %v2531
        %v2533 = vmul.f32 %v2532, 1.442695
        %v2534 = vpow.pop %v2533
        %v2535 = vsel %vm478, %v2534, 0.0
        %2536 = vadd.xlane.f32.xlu0 %v2535
        %v2537 = vpop.xlane.xlu0 %2536
        %v2538 = vrcp.pop %v2537
        %v2539 = vmul.f32 %v2534, %v2538
        %v2540 = vpack.c.bf16 %v2539, %v2539
        %2541 = vrot.lane.b32.xlu0 %v2149, 40
        %v2542 = vpop.permute.xlu0 %2541
        %v2544 = vsel %vm478, %v2540, 0
        %v2547 = vsel %vm482, %v2542, 0
        %2549 = vmatprep.subr.bf16.mxu0 0
        %2550 = vmatpush1.bf16.msra.mxu0 %v2547
        %2551 = vmatprep.subr.bf16.mxu0 0
        %2552 = vmatpush1.bf16.msra.mxu0 0
        %2553 = vmatprep.subr.bf16.mxu0 0
        %2554 = vmatpush1.bf16.msra.mxu0 0
        %2555 = vmatprep.subr.bf16.mxu0 0
        %2556 = vmatpush1.bf16.msra.mxu0 0
        %2557 = vmatprep.subr.bf16.mxu0 0
        %2558 = vmatpush1.bf16.msra.mxu0 0
        %2559 = vmatprep.subr.bf16.mxu0 0
        %2560 = vmatpush1.bf16.msra.mxu0 0
        %2561 = vmatprep.subr.bf16.mxu0 0
        %2562 = vmatpush1.bf16.msra.mxu0 0
        %2563 = vmatprep.subr.bf16.mxu0 0
        %2564 = vmatpush1.bf16.msra.mxu0 0
        %2565 = vmatprep.subr.bf16.mxu0 0
        %2566 = vmatpush1.bf16.msra.mxu0 0
        %2567 = vmatprep.subr.bf16.mxu0 0
        %2568 = vmatpush1.bf16.msra.mxu0 0
        %2569 = vmatprep.subr.bf16.mxu0 0
        %2570 = vmatpush1.bf16.msra.mxu0 0
        %2571 = vmatprep.subr.bf16.mxu0 0
        %2572 = vmatpush1.bf16.msra.mxu0 0
        %2573 = vmatprep.subr.bf16.mxu0 0
        %2574 = vmatpush1.bf16.msra.mxu0 0
        %2575 = vmatprep.subr.bf16.mxu0 0
        %2576 = vmatpush1.bf16.msra.mxu0 0
        %2577 = vmatprep.subr.bf16.mxu0 0
        %2578 = vmatpush1.bf16.msra.mxu0 0
        %2579 = vmatprep.subr.bf16.mxu0 0
        %2580 = vmatpush1.bf16.msra.mxu0 0
        %2581 = vmatprep.mubr.bf16.mxu0 0
        %2582 = vmatmul.mubr.bf16.gmra.mrb[0].mxu0 %v2544
        %v2583 = vpop.f32.mrb[0].mxu0
        %v2584 = vadd.f32 0.0, %v2583
        %v2585 = vpop.f32.mrb[0].mxu0
        %v2586 = vpop.f32.mrb[0].mxu0
        %v2587 = vpop.f32.mrb[0].mxu0
        %2588 = vdwg.mxu0
        %2590 = vrot.lane.b32.xlu0 %v2364, 8
        %v2591 = vpop.permute.xlu0 %2590
        %2594 = vrot.lane.b32.xlu0 %v2474, 16
        %v2595 = vpop.permute.xlu0 %2594
        %2598 = vrot.lane.b32.xlu0 %v2584, 24
        %v2599 = vpop.permute.xlu0 %2598
        %v2601 = vsel %vm478, %v2254, %v2591
        %v2602 = vsel %vm931, %v2601, %v2595
        %v2603 = vsel %vm933, %v2602, %v2599
        %v2604 = vpack.c.bf16 %v2603, %v2603
        %v2605 = vlaneseq
        %v2606 = vshrl.u32 %v2605, 7
        %v2607 = vsub.s32 0, %v2606
        %v2608 = vrot.slane %v2034, %v2607
        %v2613 = vunpack.c.l.b16 %v2029
        %v2614 = vunpack.c.l.b16 %v2030
        %v2615 = vunpack.c.l.b16 %v2031
        %v2616 = vunpack.c.l.b16 %v2032
        %v2617 = vpack.c.b16 %v2614, %v2613
        %v2618 = vpack.c.b16 %v2616, %v2615
        %v2622 = vsel %vm330, %v2604, 0
        %2624 = vmatprep.subr.bf16.mxu0 0
        %2625 = vmatpush1.bf16.msra.mxu0 %v2617
        %2626 = vmatprep.subr.bf16.mxu0 0
        %2627 = vmatpush1.bf16.msra.mxu0 %v2618
        %2628 = vmatprep.subr.bf16.mxu0 0
        %2629 = vmatpush1.bf16.msra.mxu0 0
        %2630 = vmatprep.subr.bf16.mxu0 0
        %2631 = vmatpush1.bf16.msra.mxu0 0
        %2632 = vmatprep.subr.bf16.mxu0 0
        %2633 = vmatpush1.bf16.msra.mxu0 0
        %2634 = vmatprep.subr.bf16.mxu0 0
        %2635 = vmatpush1.bf16.msra.mxu0 0
        %2636 = vmatprep.subr.bf16.mxu0 0
        %2637 = vmatpush1.bf16.msra.mxu0 0
        %2638 = vmatprep.subr.bf16.mxu0 0
        %2639 = vmatpush1.bf16.msra.mxu0 0
        %2640 = vmatprep.subr.bf16.mxu0 0
        %2641 = vmatpush1.bf16.msra.mxu0 0
        %2642 = vmatprep.subr.bf16.mxu0 0
        %2643 = vmatpush1.bf16.msra.mxu0 0
        %2644 = vmatprep.subr.bf16.mxu0 0
        %2645 = vmatpush1.bf16.msra.mxu0 0
        %2646 = vmatprep.subr.bf16.mxu0 0
        %2647 = vmatpush1.bf16.msra.mxu0 0
        %2648 = vmatprep.subr.bf16.mxu0 0
        %2649 = vmatpush1.bf16.msra.mxu0 0
        %2650 = vmatprep.subr.bf16.mxu0 0
        %2651 = vmatpush1.bf16.msra.mxu0 0
        %2652 = vmatprep.subr.bf16.mxu0 0
        %2653 = vmatpush1.bf16.msra.mxu0 0
        %2654 = vmatprep.subr.bf16.mxu0 0
        %2655 = vmatpush1.bf16.msra.mxu0 0
        %2656 = vmatprep.mubr.bf16.mxu0 0
        %2657 = vmatmul.mubr.bf16.gmra.mrb[0].mxu0 %v2622
        %v2658 = vpop.f32.mrb[0].mxu0
        %v2659 = vadd.f32 %v2608, %v2658
        %v2660 = vpop.f32.mrb[0].mxu0
        %v2661 = vpop.f32.mrb[0].mxu0
        %v2662 = vpop.f32.mrb[0].mxu0
        %2663 = vdwg.mxu0
        %v2664 = vadd.f32 %v2020, %v2659
        %v2665 = vsel %vm330, %v2664, 0.0
        %2666 = vadd.xlane.f32.xlu0 %v2665
        %v2667 = vpop.xlane.xlu0 %2666
        %v2668 = vmul.f32 %v2667, %v334
        %v2669 = vsub.f32 %v2664, %v2668
        %v2670 = vmul.f32 %v2669, %v2669
        %v2671 = vsel %vm330, %v2670, 0.0
        %2672 = vadd.xlane.f32.xlu0 %v2671
        %v2673 = vpop.xlane.xlu0 %2672
        %v2674 = vmul.f32 %v2673, %v334
        %v2675 = vadd.f32 %v2674, 1e-12
        %v2676 = vrsqrt.pop %v2675
        %v2677 = vmul.f32 %v2669, %v2676
        %v2678 = vlaneseq
        %v2679 = vshrl.u32 %v2678, 7
        %v2680 = vsub.s32 1, %v2679
        %v2681 = vrot.slane %v2034, %v2680
        %v2682 = vmul.f32 %v2677, %v2681
        %v2683 = vlaneseq
        %v2684 = vshrl.u32 %v2683, 7
        %v2685 = vsub.s32 2, %v2684
        %v2686 = vrot.slane %v2034, %v2685
        %v2687 = vadd.f32 %v2682, %v2686
        %v2688 = vpack.c.bf16 %v2687, %v2687
        %v2690 = vlaneseq
        %v2691 = vshrl.u32 %v2690, 7
        %v2692 = vsub.s32 0, %v2691
        %v2693 = vrot.slane %v2041, %v2692
        %v2699 = vunpack.c.l.b16 %v2036
        %v2700 = vunpack.c.l.b16 %v2037
        %v2701 = vunpack.c.l.b16 %v2038
        %v2702 = vunpack.c.l.b16 %v2039
        %v2703 = vpack.c.b16 %v2700, %v2699
        %v2704 = vpack.c.b16 %v2702, %v2701
        %v2708 = vsel %vm330, %v2688, 0
        %2710 = vmatprep.subr.bf16.mxu0 0
        %2711 = vmatpush1.bf16.msra.mxu0 %v2703
        %2712 = vmatprep.subr.bf16.mxu0 0
        %2713 = vmatpush1.bf16.msra.mxu0 %v2704
        %2714 = vmatprep.subr.bf16.mxu0 0
        %2715 = vmatpush1.bf16.msra.mxu0 0
        %2716 = vmatprep.subr.bf16.mxu0 0
        %2717 = vmatpush1.bf16.msra.mxu0 0
        %2718 = vmatprep.subr.bf16.mxu0 0
        %2719 = vmatpush1.bf16.msra.mxu0 0
        %2720 = vmatprep.subr.bf16.mxu0 0
        %2721 = vmatpush1.bf16.msra.mxu0 0
        %2722 = vmatprep.subr.bf16.mxu0 0
        %2723 = vmatpush1.bf16.msra.mxu0 0
        %2724 = vmatprep.subr.bf16.mxu0 0
        %2725 = vmatpush1.bf16.msra.mxu0 0
        %2726 = vmatprep.subr.bf16.mxu0 0
        %2727 = vmatpush1.bf16.msra.mxu0 0
        %2728 = vmatprep.subr.bf16.mxu0 0
        %2729 = vmatpush1.bf16.msra.mxu0 0
        %2730 = vmatprep.subr.bf16.mxu0 0
        %2731 = vmatpush1.bf16.msra.mxu0 0
        %2732 = vmatprep.subr.bf16.mxu0 0
        %2733 = vmatpush1.bf16.msra.mxu0 0
        %2734 = vmatprep.subr.bf16.mxu0 0
        %2735 = vmatpush1.bf16.msra.mxu0 0
        %2736 = vmatprep.subr.bf16.mxu0 0
        %2737 = vmatpush1.bf16.msra.mxu0 0
        %2738 = vmatprep.subr.bf16.mxu0 0
        %2739 = vmatpush1.bf16.msra.mxu0 0
        %2740 = vmatprep.subr.bf16.mxu0 0
        %2741 = vmatpush1.bf16.msra.mxu0 0
        %2742 = vmatprep.mubr.bf16.mxu0 0
        %2743 = vmatmul.mubr.bf16.gmra.mrb[0].mxu0 %v2708
        %v2744 = vpop.f32.mrb[0].mxu0
        %v2745 = vadd.f32 %v2693, %v2744
        %v2746 = vpop.f32.mrb[0].mxu0
        %v2747 = vpop.f32.mrb[0].mxu0
        %v2748 = vpop.f32.mrb[0].mxu0
        %2749 = vdwg.mxu0
        %v2750 = vmul.f32 %v2745, 0.5
        %v2751 = vmul.f32 %v2745, 0.044715
        %v2752 = vmul.f32 %v2751, %v2745
        %v2753 = vmul.f32 %v2752, %v2745
        %v2754 = vadd.f32 %v2745, %v2753
        %v2755 = vmul.f32 %v2754, 0.7978846
        %v2756 = vtanh.pop %v2755
        %v2757 = vadd.f32 %v2756, 1.0
        %v2758 = vmul.f32 %v2750, %v2757
        %v2759 = vpack.c.bf16 %v2758, %v2758
        %v2760 = vlaneseq
        %v2761 = vshrl.u32 %v2760, 7
        %v2762 = vsub.s32 3, %v2761
        %v2763 = vrot.slane %v2034, %v2762
        %v2772 = vunpack.c.l.b16 %v2043
        %v2773 = vunpack.c.l.b16 %v2044
        %v2774 = vunpack.c.l.b16 %v2045
        %v2775 = vunpack.c.l.b16 %v2046
        %v2776 = vunpack.c.l.b16 %v2047
        %v2777 = vunpack.c.l.b16 %v2048
        %v2778 = vunpack.c.l.b16 %v2049
        %v2779 = vunpack.c.l.b16 %v2050
        %v2780 = vpack.c.b16 %v2773, %v2772
        %v2781 = vpack.c.b16 %v2775, %v2774
        %v2782 = vpack.c.b16 %v2777, %v2776
        %v2783 = vpack.c.b16 %v2779, %v2778
        %v2789 = vsel %vm1119, %v2759, 0
        %2791 = vmatprep.subr.bf16.mxu0 0
        %2792 = vmatpush1.bf16.msra.mxu0 %v2780
        %2793 = vmatprep.subr.bf16.mxu0 0
        %2794 = vmatpush1.bf16.msra.mxu0 %v2781
        %2795 = vmatprep.subr.bf16.mxu0 0
        %2796 = vmatpush1.bf16.msra.mxu0 %v2782
        %2797 = vmatprep.subr.bf16.mxu0 0
        %2798 = vmatpush1.bf16.msra.mxu0 %v2783
        %2799 = vmatprep.subr.bf16.mxu0 0
        %2800 = vmatpush1.bf16.msra.mxu0 0
        %2801 = vmatprep.subr.bf16.mxu0 0
        %2802 = vmatpush1.bf16.msra.mxu0 0
        %2803 = vmatprep.subr.bf16.mxu0 0
        %2804 = vmatpush1.bf16.msra.mxu0 0
        %2805 = vmatprep.subr.bf16.mxu0 0
        %2806 = vmatpush1.bf16.msra.mxu0 0
        %2807 = vmatprep.subr.bf16.mxu0 0
        %2808 = vmatpush1.bf16.msra.mxu0 0
        %2809 = vmatprep.subr.bf16.mxu0 0
        %2810 = vmatpush1.bf16.msra.mxu0 0
        %2811 = vmatprep.subr.bf16.mxu0 0
        %2812 = vmatpush1.bf16.msra.mxu0 0
        %2813 = vmatprep.subr.bf16.mxu0 0
        %2814 = vmatpush1.bf16.msra.mxu0 0
        %2815 = vmatprep.subr.bf16.mxu0 0
        %2816 = vmatpush1.bf16.msra.mxu0 0
        %2817 = vmatprep.subr.bf16.mxu0 0
        %2818 = vmatpush1.bf16.msra.mxu0 0
        %2819 = vmatprep.subr.bf16.mxu0 0
        %2820 = vmatpush1.bf16.msra.mxu0 0
        %2821 = vmatprep.subr.bf16.mxu0 0
        %2822 = vmatpush1.bf16.msra.mxu0 0
        %2823 = vmatprep.mubr.bf16.mxu0 0
        %2824 = vmatmul.mubr.bf16.gmra.mrb[0].mxu0 %v2789
        %v2825 = vpop.f32.mrb[0].mxu0
        %v2826 = vadd.f32 %v2763, %v2825
        %v2827 = vpop.f32.mrb[0].mxu0
        %v2828 = vpop.f32.mrb[0].mxu0
        %v2829 = vpop.f32.mrb[0].mxu0
        %2830 = vdwg.mxu0
        %v2831 = vadd.f32 %v2687, %v2826
        %v2832 = vsel %vm330, %v2831, 0.0
        %2833 = vadd.xlane.f32.xlu0 %v2832
        %v2834 = vpop.xlane.xlu0 %2833
        %v2835 = vmul.f32 %v2834, %v334
        %v2836 = vsub.f32 %v2831, %v2835
        %v2837 = vmul.f32 %v2836, %v2836
        %v2838 = vsel %vm330, %v2837, 0.0
        %2839 = vadd.xlane.f32.xlu0 %v2838
        %v2840 = vpop.xlane.xlu0 %2839
        %v2841 = vmul.f32 %v2840, %v334
        %v2842 = vadd.f32 %v2841, 1e-12
        %v2843 = vrsqrt.pop %v2842
        %v2844 = vmul.f32 %v2836, %v2843
        %v2845 = vlaneseq
        %v2846 = vshrl.u32 %v2845, 7
        %v2847 = vsub.s32 4, %v2846
        %v2848 = vrot.slane %v2034, %v2847
        %v2849 = vmul.f32 %v2844, %v2848
        %v2850 = vlaneseq
        %v2851 = vshrl.u32 %v2850, 7
        %v2852 = vsub.s32 5, %v2851
        %v2853 = vrot.slane %v2034, %v2852
        %v2854 = vadd.f32 %v2849, %v2853
        %s2855 = scalar_lea.vmem %s2, 48
        %v2856 = vld [vmem:[%s2855] sm:$0xf]
        %v2857 = vld [vmem:[%s2855 + $0x4] sm:$0xf]
        %v2858 = vld [vmem:[%s2855 + $0x8] sm:$0xf]
        %v2859 = vld [vmem:[%s2855 + $0xc] sm:$0xf]
        %s2860 = scalar_lea.vmem %s3, 3
        %v2861 = vld [vmem:[%s2860] sm:$0x1]
        %s2862 = scalar_lea.vmem %s4, 48
        %v2863 = vld [vmem:[%s2862] sm:$0xf]
        %v2864 = vld [vmem:[%s2862 + $0x4] sm:$0xf]
        %v2865 = vld [vmem:[%s2862 + $0x8] sm:$0xf]
        %v2866 = vld [vmem:[%s2862 + $0xc] sm:$0xf]
        %s2867 = scalar_lea.vmem %s5, 24
        %v2868 = vld [vmem:[%s2867] sm:$0x3f]
        %s2869 = scalar_lea.vmem %s6, 48
        %v2870 = vld [vmem:[%s2869] sm:$0xf]
        %v2871 = vld [vmem:[%s2869 + $0x4] sm:$0xf]
        %v2872 = vld [vmem:[%s2869 + $0x8] sm:$0xf]
        %v2873 = vld [vmem:[%s2869 + $0xc] sm:$0xf]
        %s2874 = scalar_lea.vmem %s7, 3
        %v2875 = vld [vmem:[%s2874] sm:$0x1]
        %s2876 = scalar_lea.vmem %s8, 96
        %v2877 = vld [vmem:[%s2876] sm:$0xf]
        %v2878 = vld [vmem:[%s2876 + $0x4] sm:$0xf]
        %v2879 = vld [vmem:[%s2876 + $0x8] sm:$0xf]
        %v2880 = vld [vmem:[%s2876 + $0xc] sm:$0xf]
        %v2881 = vld [vmem:[%s2876 + $0x10] sm:$0xf]
        %v2882 = vld [vmem:[%s2876 + $0x14] sm:$0xf]
        %v2883 = vld [vmem:[%s2876 + $0x18] sm:$0xf]
        %v2884 = vld [vmem:[%s2876 + $0x1c] sm:$0xf]
        %v2885 = vpack.c.bf16 %v2854, %v2854
        %v2887 = vlaneseq
        %v2888 = vshrl.u32 %v2887, 7
        %v2889 = vsub.s32 0, %v2888
        %v2890 = vrot.slane %v2861, %v2889
        %v2896 = vunpack.c.l.b16 %v2856
        %v2897 = vunpack.c.l.b16 %v2857
        %v2898 = vunpack.c.l.b16 %v2858
        %v2899 = vunpack.c.l.b16 %v2859
        %v2900 = vpack.c.b16 %v2897, %v2896
        %v2901 = vpack.c.b16 %v2899, %v2898
        %v2905 = vsel %vm330, %v2885, 0
        %2907 = vmatprep.subr.bf16.mxu0 0
        %2908 = vmatpush1.bf16.msra.mxu0 %v2900
        %2909 = vmatprep.subr.bf16.mxu0 0
        %2910 = vmatpush1.bf16.msra.mxu0 %v2901
        %2911 = vmatprep.subr.bf16.mxu0 0
        %2912 = vmatpush1.bf16.msra.mxu0 0
        %2913 = vmatprep.subr.bf16.mxu0 0
        %2914 = vmatpush1.bf16.msra.mxu0 0
        %2915 = vmatprep.subr.bf16.mxu0 0
        %2916 = vmatpush1.bf16.msra.mxu0 0
        %2917 = vmatprep.subr.bf16.mxu0 0
        %2918 = vmatpush1.bf16.msra.mxu0 0
        %2919 = vmatprep.subr.bf16.mxu0 0
        %2920 = vmatpush1.bf16.msra.mxu0 0
        %2921 = vmatprep.subr.bf16.mxu0 0
        %2922 = vmatpush1.bf16.msra.mxu0 0
        %2923 = vmatprep.subr.bf16.mxu0 0
        %2924 = vmatpush1.bf16.msra.mxu0 0
        %2925 = vmatprep.subr.bf16.mxu0 0
        %2926 = vmatpush1.bf16.msra.mxu0 0
        %2927 = vmatprep.subr.bf16.mxu0 0
        %2928 = vmatpush1.bf16.msra.mxu0 0
        %2929 = vmatprep.subr.bf16.mxu0 0
        %2930 = vmatpush1.bf16.msra.mxu0 0
        %2931 = vmatprep.subr.bf16.mxu0 0
        %2932 = vmatpush1.bf16.msra.mxu0 0
        %2933 = vmatprep.subr.bf16.mxu0 0
        %2934 = vmatpush1.bf16.msra.mxu0 0
        %2935 = vmatprep.subr.bf16.mxu0 0
        %2936 = vmatpush1.bf16.msra.mxu0 0
        %2937 = vmatprep.subr.bf16.mxu0 0
        %2938 = vmatpush1.bf16.msra.mxu0 0
        %2939 = vmatprep.mubr.bf16.mxu0 0
        %2940 = vmatmul.mubr.bf16.gmra.mrb[0].mxu0 %v2905
        %v2941 = vpop.f32.mrb[0].mxu0
        %v2942 = vadd.f32 %v2890, %v2941
        %v2943 = vpop.f32.mrb[0].mxu0
        %v2944 = vpop.f32.mrb[0].mxu0
        %v2945 = vpop.f32.mrb[0].mxu0
        %2946 = vdwg.mxu0
        %2948 = vrot.lane.b32.xlu0 %v2942, 96
        %v2949 = vpop.permute.xlu0 %2948
        %2951 = vxpose.xlu0.b32.start [1/16] %v2949, 128
        %2952 = vxpose.xlu0.b32.cont [2/16] 0.0, 128
        %2953 = vxpose.xlu0.b32.cont [3/16] 0.0, 128
        %2954 = vxpose.xlu0.b32.cont [4/16] 0.0, 128
        %2955 = vxpose.xlu0.b32.cont [5/16] 0.0, 128
        %2956 = vxpose.xlu0.b32.cont [6/16] 0.0, 128
        %2957 = vxpose.xlu0.b32.cont [7/16] 0.0, 128
        %2958 = vxpose.xlu0.b32.cont [8/16] 0.0, 128
        %2959 = vxpose.xlu0.b32.cont [9/16] 0.0, 128
        %2960 = vxpose.xlu0.b32.cont [10/16] 0.0, 128
        %2961 = vxpose.xlu0.b32.cont [11/16] 0.0, 128
        %2962 = vxpose.xlu0.b32.cont [12/16] 0.0, 128
        %2963 = vxpose.xlu0.b32.cont [13/16] 0.0, 128
        %2964 = vxpose.xlu0.b32.cont [14/16] 0.0, 128
        %2965 = vxpose.xlu0.b32.cont [15/16] 0.0, 128
        %2966 = vxpose.xlu0.b32.end [16/16] 0.0, 128
        %v2967 = vpop.trf.xlu0
        %v2968 = vpop.trf.xlu0
        %v2969 = vpop.trf.xlu0
        %v2970 = vpop.trf.xlu0
        %v2971 = vpop.trf.xlu0
        %v2972 = vpop.trf.xlu0
        %v2973 = vpop.trf.xlu0
        %v2974 = vpop.trf.xlu0
        %v2975 = vpop.trf.xlu0
        %v2976 = vpop.trf.xlu0
        %v2977 = vpop.trf.xlu0
        %v2978 = vpop.trf.xlu0
        %v2979 = vpop.trf.xlu0
        %v2980 = vpop.trf.xlu0
        %v2981 = vpop.trf.xlu0
        %v2982 = vpop.trf.xlu0
        %v2983 = vpack.c.bf16 %v2942, %v2942
        %v2984 = vpack.c.bf16 %v2967, %v2967
        %v2986 = vsel %vm478, %v2983, 0
        %v2989 = vsel %vm482, %v2984, 0
        %2991 = vmatprep.subr.bf16.mxu0 0
        %2992 = vmatpush1.bf16.msra.mxu0 %v2989
        %2993 = vmatprep.subr.bf16.mxu0 0
        %2994 = vmatpush1.bf16.msra.mxu0 0
        %2995 = vmatprep.subr.bf16.mxu0 0
        %2996 = vmatpush1.bf16.msra.mxu0 0
        %2997 = vmatprep.subr.bf16.mxu0 0
        %2998 = vmatpush1.bf16.msra.mxu0 0
        %2999 = vmatprep.subr.bf16.mxu0 0
        %3000 = vmatpush1.bf16.msra.mxu0 0
        %3001 = vmatprep.subr.bf16.mxu0 0
        %3002 = vmatpush1.bf16.msra.mxu0 0
        %3003 = vmatprep.subr.bf16.mxu0 0
        %3004 = vmatpush1.bf16.msra.mxu0 0
        %3005 = vmatprep.subr.bf16.mxu0 0
        %3006 = vmatpush1.bf16.msra.mxu0 0
        %3007 = vmatprep.subr.bf16.mxu0 0
        %3008 = vmatpush1.bf16.msra.mxu0 0
        %3009 = vmatprep.subr.bf16.mxu0 0
        %3010 = vmatpush1.bf16.msra.mxu0 0
        %3011 = vmatprep.subr.bf16.mxu0 0
        %3012 = vmatpush1.bf16.msra.mxu0 0
        %3013 = vmatprep.subr.bf16.mxu0 0
        %3014 = vmatpush1.bf16.msra.mxu0 0
        %3015 = vmatprep.subr.bf16.mxu0 0
        %3016 = vmatpush1.bf16.msra.mxu0 0
        %3017 = vmatprep.subr.bf16.mxu0 0
        %3018 = vmatpush1.bf16.msra.mxu0 0
        %3019 = vmatprep.subr.bf16.mxu0 0
        %3020 = vmatpush1.bf16.msra.mxu0 0
        %3021 = vmatprep.subr.bf16.mxu0 0
        %3022 = vmatpush1.bf16.msra.mxu0 0
        %3023 = vmatprep.mubr.bf16.mxu0 0
        %3024 = vmatmul.mubr.bf16.gmra.mrb[0].mxu0 %v2986
        %v3025 = vpop.f32.mrb[0].mxu0
        %v3026 = vadd.f32 0.0, %v3025
        %v3027 = vpop.f32.mrb[0].mxu0
        %v3028 = vpop.f32.mrb[0].mxu0
        %v3029 = vpop.f32.mrb[0].mxu0
        %3030 = vdwg.mxu0
        %v3031 = vmul.f32 %v3026, 0.35355338
        %v3032 = vsel %vm478, %v3031, -inf
        %3033 = vmax.xlane.f32.xlu0 %v3032
        %v3034 = vpop.xlane.xlu0 %3033
        %v3035 = vsub.f32 %v3031, %v3034
        %v3036 = vmul.f32 %v3035, 1.442695
        %v3037 = vpow.pop %v3036
        %v3038 = vsel %vm478, %v3037, 0.0
        %3039 = vadd.xlane.f32.xlu0 %v3038
        %v3040 = vpop.xlane.xlu0 %3039
        %v3041 = vrcp.pop %v3040
        %v3042 = vmul.f32 %v3037, %v3041
        %v3043 = vpack.c.bf16 %v3042, %v3042
        %3045 = vrot.lane.b32.xlu0 %v2983, 64
        %v3046 = vpop.permute.xlu0 %3045
        %v3048 = vsel %vm478, %v3043, 0
        %v3051 = vsel %vm482, %v3046, 0
        %3053 = vmatprep.subr.bf16.mxu0 0
        %3054 = vmatpush1.bf16.msra.mxu0 %v3051
        %3055 = vmatprep.subr.bf16.mxu0 0
        %3056 = vmatpush1.bf16.msra.mxu0 0
        %3057 = vmatprep.subr.bf16.mxu0 0
        %3058 = vmatpush1.bf16.msra.mxu0 0
        %3059 = vmatprep.subr.bf16.mxu0 0
        %3060 = vmatpush1.bf16.msra.mxu0 0
        %3061 = vmatprep.subr.bf16.mxu0 0
        %3062 = vmatpush1.bf16.msra.mxu0 0
        %3063 = vmatprep.subr.bf16.mxu0 0
        %3064 = vmatpush1.bf16.msra.mxu0 0
        %3065 = vmatprep.subr.bf16.mxu0 0
        %3066 = vmatpush1.bf16.msra.mxu0 0
        %3067 = vmatprep.subr.bf16.mxu0 0
        %3068 = vmatpush1.bf16.msra.mxu0 0
        %3069 = vmatprep.subr.bf16.mxu0 0
        %3070 = vmatpush1.bf16.msra.mxu0 0
        %3071 = vmatprep.subr.bf16.mxu0 0
        %3072 = vmatpush1.bf16.msra.mxu0 0
        %3073 = vmatprep.subr.bf16.mxu0 0
        %3074 = vmatpush1.bf16.msra.mxu0 0
        %3075 = vmatprep.subr.bf16.mxu0 0
        %3076 = vmatpush1.bf16.msra.mxu0 0
        %3077 = vmatprep.subr.bf16.mxu0 0
        %3078 = vmatpush1.bf16.msra.mxu0 0
        %3079 = vmatprep.subr.bf16.mxu0 0
        %3080 = vmatpush1.bf16.msra.mxu0 0
        %3081 = vmatprep.subr.bf16.mxu0 0
        %3082 = vmatpush1.bf16.msra.mxu0 0
        %3083 = vmatprep.subr.bf16.mxu0 0
        %3084 = vmatpush1.bf16.msra.mxu0 0
        %3085 = vmatprep.mubr.bf16.mxu0 0
        %3086 = vmatmul.mubr.bf16.gmra.mrb[0].mxu0 %v3048
        %v3087 = vpop.f32.mrb[0].mxu0
        %v3088 = vadd.f32 0.0, %v3087
        %v3089 = vpop.f32.mrb[0].mxu0
        %v3090 = vpop.f32.mrb[0].mxu0
        %v3091 = vpop.f32.mrb[0].mxu0
        %3092 = vdwg.mxu0
        %v3093 = vpack.c.bf16 %v2968, %v2968
        %3094 = vrot.lane.b32.xlu0 %v2983, 120
        %v3095 = vpop.permute.xlu0 %3094
        %v3097 = vsel %vm478, %v3095, 0
        %v3100 = vsel %vm482, %v3093, 0
        %3102 = vmatprep.subr.bf16.mxu0 0
        %3103 = vmatpush1.bf16.msra.mxu0 %v3100
        %3104 = vmatprep.subr.bf16.mxu0 0
        %3105 = vmatpush1.bf16.msra.mxu0 0
        %3106 = vmatprep.subr.bf16.mxu0 0
        %3107 = vmatpush1.bf16.msra.mxu0 0
        %3108 = vmatprep.subr.bf16.mxu0 0
        %3109 = vmatpush1.bf16.msra.mxu0 0
        %3110 = vmatprep.subr.bf16.mxu0 0
        %3111 = vmatpush1.bf16.msra.mxu0 0
        %3112 = vmatprep.subr.bf16.mxu0 0
        %3113 = vmatpush1.bf16.msra.mxu0 0
        %3114 = vmatprep.subr.bf16.mxu0 0
        %3115 = vmatpush1.bf16.msra.mxu0 0
        %3116 = vmatprep.subr.bf16.mxu0 0
        %3117 = vmatpush1.bf16.msra.mxu0 0
        %3118 = vmatprep.subr.bf16.mxu0 0
        %3119 = vmatpush1.bf16.msra.mxu0 0
        %3120 = vmatprep.subr.bf16.mxu0 0
        %3121 = vmatpush1.bf16.msra.mxu0 0
        %3122 = vmatprep.subr.bf16.mxu0 0
        %3123 = vmatpush1.bf16.msra.mxu0 0
        %3124 = vmatprep.subr.bf16.mxu0 0
        %3125 = vmatpush1.bf16.msra.mxu0 0
        %3126 = vmatprep.subr.bf16.mxu0 0
        %3127 = vmatpush1.bf16.msra.mxu0 0
        %3128 = vmatprep.subr.bf16.mxu0 0
        %3129 = vmatpush1.bf16.msra.mxu0 0
        %3130 = vmatprep.subr.bf16.mxu0 0
        %3131 = vmatpush1.bf16.msra.mxu0 0
        %3132 = vmatprep.subr.bf16.mxu0 0
        %3133 = vmatpush1.bf16.msra.mxu0 0
        %3134 = vmatprep.mubr.bf16.mxu0 0
        %3135 = vmatmul.mubr.bf16.gmra.mrb[0].mxu0 %v3097
        %v3136 = vpop.f32.mrb[0].mxu0
        %v3137 = vadd.f32 0.0, %v3136
        %v3138 = vpop.f32.mrb[0].mxu0
        %v3139 = vpop.f32.mrb[0].mxu0
        %v3140 = vpop.f32.mrb[0].mxu0
        %3141 = vdwg.mxu0
        %v3142 = vmul.f32 %v3137, 0.35355338
        %v3143 = vsel %vm478, %v3142, -inf
        %3144 = vmax.xlane.f32.xlu0 %v3143
        %v3145 = vpop.xlane.xlu0 %3144
        %v3146 = vsub.f32 %v3142, %v3145
        %v3147 = vmul.f32 %v3146, 1.442695
        %v3148 = vpow.pop %v3147
        %v3149 = vsel %vm478, %v3148, 0.0
        %3150 = vadd.xlane.f32.xlu0 %v3149
        %v3151 = vpop.xlane.xlu0 %3150
        %v3152 = vrcp.pop %v3151
        %v3153 = vmul.f32 %v3148, %v3152
        %v3154 = vpack.c.bf16 %v3153, %v3153
        %3155 = vrot.lane.b32.xlu0 %v2983, 56
        %v3156 = vpop.permute.xlu0 %3155
        %v3158 = vsel %vm478, %v3154, 0
        %v3161 = vsel %vm482, %v3156, 0
        %3163 = vmatprep.subr.bf16.mxu0 0
        %3164 = vmatpush1.bf16.msra.mxu0 %v3161
        %3165 = vmatprep.subr.bf16.mxu0 0
        %3166 = vmatpush1.bf16.msra.mxu0 0
        %3167 = vmatprep.subr.bf16.mxu0 0
        %3168 = vmatpush1.bf16.msra.mxu0 0
        %3169 = vmatprep.subr.bf16.mxu0 0
        %3170 = vmatpush1.bf16.msra.mxu0 0
        %3171 = vmatprep.subr.bf16.mxu0 0
        %3172 = vmatpush1.bf16.msra.mxu0 0
        %3173 = vmatprep.subr.bf16.mxu0 0
        %3174 = vmatpush1.bf16.msra.mxu0 0
        %3175 = vmatprep.subr.bf16.mxu0 0
        %3176 = vmatpush1.bf16.msra.mxu0 0
        %3177 = vmatprep.subr.bf16.mxu0 0
        %3178 = vmatpush1.bf16.msra.mxu0 0
        %3179 = vmatprep.subr.bf16.mxu0 0
        %3180 = vmatpush1.bf16.msra.mxu0 0
        %3181 = vmatprep.subr.bf16.mxu0 0
        %3182 = vmatpush1.bf16.msra.mxu0 0
        %3183 = vmatprep.subr.bf16.mxu0 0
        %3184 = vmatpush1.bf16.msra.mxu0 0
        %3185 = vmatprep.subr.bf16.mxu0 0
        %3186 = vmatpush1.bf16.msra.mxu0 0
        %3187 = vmatprep.subr.bf16.mxu0 0
        %3188 = vmatpush1.bf16.msra.mxu0 0
        %3189 = vmatprep.subr.bf16.mxu0 0
        %3190 = vmatpush1.bf16.msra.mxu0 0
        %3191 = vmatprep.subr.bf16.mxu0 0
        %3192 = vmatpush1.bf16.msra.mxu0 0
        %3193 = vmatprep.subr.bf16.mxu0 0
        %3194 = vmatpush1.bf16.msra.mxu0 0
        %3195 = vmatprep.mubr.bf16.mxu0 0
        %3196 = vmatmul.mubr.bf16.gmra.mrb[0].mxu0 %v3158
        %v3197 = vpop.f32.mrb[0].mxu0
        %v3198 = vadd.f32 0.0, %v3197
        %v3199 = vpop.f32.mrb[0].mxu0
        %v3200 = vpop.f32.mrb[0].mxu0
        %v3201 = vpop.f32.mrb[0].mxu0
        %3202 = vdwg.mxu0
        %v3203 = vpack.c.bf16 %v2969, %v2969
        %3204 = vrot.lane.b32.xlu0 %v2983, 112
        %v3205 = vpop.permute.xlu0 %3204
        %v3207 = vsel %vm478, %v3205, 0
        %v3210 = vsel %vm482, %v3203, 0
        %3212 = vmatprep.subr.bf16.mxu0 0
        %3213 = vmatpush1.bf16.msra.mxu0 %v3210
        %3214 = vmatprep.subr.bf16.mxu0 0
        %3215 = vmatpush1.bf16.msra.mxu0 0
        %3216 = vmatprep.subr.bf16.mxu0 0
        %3217 = vmatpush1.bf16.msra.mxu0 0
        %3218 = vmatprep.subr.bf16.mxu0 0
        %3219 = vmatpush1.bf16.msra.mxu0 0
        %3220 = vmatprep.subr.bf16.mxu0 0
        %3221 = vmatpush1.bf16.msra.mxu0 0
        %3222 = vmatprep.subr.bf16.mxu0 0
        %3223 = vmatpush1.bf16.msra.mxu0 0
        %3224 = vmatprep.subr.bf16.mxu0 0
        %3225 = vmatpush1.bf16.msra.mxu0 0
        %3226 = vmatprep.subr.bf16.mxu0 0
        %3227 = vmatpush1.bf16.msra.mxu0 0
        %3228 = vmatprep.subr.bf16.mxu0 0
        %3229 = vmatpush1.bf16.msra.mxu0 0
        %3230 = vmatprep.subr.bf16.mxu0 0
        %3231 = vmatpush1.bf16.msra.mxu0 0
        %3232 = vmatprep.subr.bf16.mxu0 0
        %3233 = vmatpush1.bf16.msra.mxu0 0
        %3234 = vmatprep.subr.bf16.mxu0 0
        %3235 = vmatpush1.bf16.msra.mxu0 0
        %3236 = vmatprep.subr.bf16.mxu0 0
        %3237 = vmatpush1.bf16.msra.mxu0 0
        %3238 = vmatprep.subr.bf16.mxu0 0
        %3239 = vmatpush1.bf16.msra.mxu0 0
        %3240 = vmatprep.subr.bf16.mxu0 0
        %3241 = vmatpush1.bf16.msra.mxu0 0
        %3242 = vmatprep.subr.bf16.mxu0 0
        %3243 = vmatpush1.bf16.msra.mxu0 0
        %3244 = vmatprep.mubr.bf16.mxu0 0
        %3245 = vmatmul.mubr.bf16.gmra.mrb[0].mxu0 %v3207
        %v3246 = vpop.f32.mrb[0].mxu0
        %v3247 = vadd.f32 0.0, %v3246
        %v3248 = vpop.f32.mrb[0].mxu0
        %v3249 = vpop.f32.mrb[0].mxu0
        %v3250 = vpop.f32.mrb[0].mxu0
        %3251 = vdwg.mxu0
        %v3252 = vmul.f32 %v3247, 0.35355338
        %v3253 = vsel %vm478, %v3252, -inf
        %3254 = vmax.xlane.f32.xlu0 %v3253
        %v3255 = vpop.xlane.xlu0 %3254
        %v3256 = vsub.f32 %v3252, %v3255
        %v3257 = vmul.f32 %v3256, 1.442695
        %v3258 = vpow.pop %v3257
        %v3259 = vsel %vm478, %v3258, 0.0
        %3260 = vadd.xlane.f32.xlu0 %v3259
        %v3261 = vpop.xlane.xlu0 %3260
        %v3262 = vrcp.pop %v3261
        %v3263 = vmul.f32 %v3258, %v3262
        %v3264 = vpack.c.bf16 %v3263, %v3263
        %3265 = vrot.lane.b32.xlu0 %v2983, 48
        %v3266 = vpop.permute.xlu0 %3265
        %v3268 = vsel %vm478, %v3264, 0
        %v3271 = vsel %vm482, %v3266, 0
        %3273 = vmatprep.subr.bf16.mxu0 0
        %3274 = vmatpush1.bf16.msra.mxu0 %v3271
        %3275 = vmatprep.subr.bf16.mxu0 0
        %3276 = vmatpush1.bf16.msra.mxu0 0
        %3277 = vmatprep.subr.bf16.mxu0 0
        %3278 = vmatpush1.bf16.msra.mxu0 0
        %3279 = vmatprep.subr.bf16.mxu0 0
        %3280 = vmatpush1.bf16.msra.mxu0 0
        %3281 = vmatprep.subr.bf16.mxu0 0
        %3282 = vmatpush1.bf16.msra.mxu0 0
        %3283 = vmatprep.subr.bf16.mxu0 0
        %3284 = vmatpush1.bf16.msra.mxu0 0
        %3285 = vmatprep.subr.bf16.mxu0 0
        %3286 = vmatpush1.bf16.msra.mxu0 0
        %3287 = vmatprep.subr.bf16.mxu0 0
        %3288 = vmatpush1.bf16.msra.mxu0 0
        %3289 = vmatprep.subr.bf16.mxu0 0
        %3290 = vmatpush1.bf16.msra.mxu0 0
        %3291 = vmatprep.subr.bf16.mxu0 0
        %3292 = vmatpush1.bf16.msra.mxu0 0
        %3293 = vmatprep.subr.bf16.mxu0 0
        %3294 = vmatpush1.bf16.msra.mxu0 0
        %3295 = vmatprep.subr.bf16.mxu0 0
        %3296 = vmatpush1.bf16.msra.mxu0 0
        %3297 = vmatprep.subr.bf16.mxu0 0
        %3298 = vmatpush1.bf16.msra.mxu0 0
        %3299 = vmatprep.subr.bf16.mxu0 0
        %3300 = vmatpush1.bf16.msra.mxu0 0
        %3301 = vmatprep.subr.bf16.mxu0 0
        %3302 = vmatpush1.bf16.msra.mxu0 0
        %3303 = vmatprep.subr.bf16.mxu0 0
        %3304 = vmatpush1.bf16.msra.mxu0 0
        %3305 = vmatprep.mubr.bf16.mxu0 0
        %3306 = vmatmul.mubr.bf16.gmra.mrb[0].mxu0 %v3268
        %v3307 = vpop.f32.mrb[0].mxu0
        %v3308 = vadd.f32 0.0, %v3307
        %v3309 = vpop.f32.mrb[0].mxu0
        %v3310 = vpop.f32.mrb[0].mxu0
        %v3311 = vpop.f32.mrb[0].mxu0
        %3312 = vdwg.mxu0
        %v3313 = vpack.c.bf16 %v2970, %v2970
        %3314 = vrot.lane.b32.xlu0 %v2983, 104
        %v3315 = vpop.permute.xlu0 %3314
        %v3317 = vsel %vm478, %v3315, 0
        %v3320 = vsel %vm482, %v3313, 0
        %3322 = vmatprep.subr.bf16.mxu0 0
        %3323 = vmatpush1.bf16.msra.mxu0 %v3320
        %3324 = vmatprep.subr.bf16.mxu0 0
        %3325 = vmatpush1.bf16.msra.mxu0 0
        %3326 = vmatprep.subr.bf16.mxu0 0
        %3327 = vmatpush1.bf16.msra.mxu0 0
        %3328 = vmatprep.subr.bf16.mxu0 0
        %3329 = vmatpush1.bf16.msra.mxu0 0
        %3330 = vmatprep.subr.bf16.mxu0 0
        %3331 = vmatpush1.bf16.msra.mxu0 0
        %3332 = vmatprep.subr.bf16.mxu0 0
        %3333 = vmatpush1.bf16.msra.mxu0 0
        %3334 = vmatprep.subr.bf16.mxu0 0
        %3335 = vmatpush1.bf16.msra.mxu0 0
        %3336 = vmatprep.subr.bf16.mxu0 0
        %3337 = vmatpush1.bf16.msra.mxu0 0
        %3338 = vmatprep.subr.bf16.mxu0 0
        %3339 = vmatpush1.bf16.msra.mxu0 0
        %3340 = vmatprep.subr.bf16.mxu0 0
        %3341 = vmatpush1.bf16.msra.mxu0 0
        %3342 = vmatprep.subr.bf16.mxu0 0
        %3343 = vmatpush1.bf16.msra.mxu0 0
        %3344 = vmatprep.subr.bf16.mxu0 0
        %3345 = vmatpush1.bf16.msra.mxu0 0
        %3346 = vmatprep.subr.bf16.mxu0 0
        %3347 = vmatpush1.bf16.msra.mxu0 0
        %3348 = vmatprep.subr.bf16.mxu0 0
        %3349 = vmatpush1.bf16.msra.mxu0 0
        %3350 = vmatprep.subr.bf16.mxu0 0
        %3351 = vmatpush1.bf16.msra.mxu0 0
        %3352 = vmatprep.subr.bf16.mxu0 0
        %3353 = vmatpush1.bf16.msra.mxu0 0
        %3354 = vmatprep.mubr.bf16.mxu0 0
        %3355 = vmatmul.mubr.bf16.gmra.mrb[0].mxu0 %v3317
        %v3356 = vpop.f32.mrb[0].mxu0
        %v3357 = vadd.f32 0.0, %v3356
        %v3358 = vpop.f32.mrb[0].mxu0
        %v3359 = vpop.f32.mrb[0].mxu0
        %v3360 = vpop.f32.mrb[0].mxu0
        %3361 = vdwg.mxu0
        %v3362 = vmul.f32 %v3357, 0.35355338
        %v3363 = vsel %vm478, %v3362, -inf
        %3364 = vmax.xlane.f32.xlu0 %v3363
        %v3365 = vpop.xlane.xlu0 %3364
        %v3366 = vsub.f32 %v3362, %v3365
        %v3367 = vmul.f32 %v3366, 1.442695
        %v3368 = vpow.pop %v3367
        %v3369 = vsel %vm478, %v3368, 0.0
        %3370 = vadd.xlane.f32.xlu0 %v3369
        %v3371 = vpop.xlane.xlu0 %3370
        %v3372 = vrcp.pop %v3371
        %v3373 = vmul.f32 %v3368, %v3372
        %v3374 = vpack.c.bf16 %v3373, %v3373
        %3375 = vrot.lane.b32.xlu0 %v2983, 40
        %v3376 = vpop.permute.xlu0 %3375
        %v3378 = vsel %vm478, %v3374, 0
        %v3381 = vsel %vm482, %v3376, 0
        %3383 = vmatprep.subr.bf16.mxu0 0
        %3384 = vmatpush1.bf16.msra.mxu0 %v3381
        %3385 = vmatprep.subr.bf16.mxu0 0
        %3386 = vmatpush1.bf16.msra.mxu0 0
        %3387 = vmatprep.subr.bf16.mxu0 0
        %3388 = vmatpush1.bf16.msra.mxu0 0
        %3389 = vmatprep.subr.bf16.mxu0 0
        %3390 = vmatpush1.bf16.msra.mxu0 0
        %3391 = vmatprep.subr.bf16.mxu0 0
        %3392 = vmatpush1.bf16.msra.mxu0 0
        %3393 = vmatprep.subr.bf16.mxu0 0
        %3394 = vmatpush1.bf16.msra.mxu0 0
        %3395 = vmatprep.subr.bf16.mxu0 0
        %3396 = vmatpush1.bf16.msra.mxu0 0
        %3397 = vmatprep.subr.bf16.mxu0 0
        %3398 = vmatpush1.bf16.msra.mxu0 0
        %3399 = vmatprep.subr.bf16.mxu0 0
        %3400 = vmatpush1.bf16.msra.mxu0 0
        %3401 = vmatprep.subr.bf16.mxu0 0
        %3402 = vmatpush1.bf16.msra.mxu0 0
        %3403 = vmatprep.subr.bf16.mxu0 0
        %3404 = vmatpush1.bf16.msra.mxu0 0
        %3405 = vmatprep.subr.bf16.mxu0 0
        %3406 = vmatpush1.bf16.msra.mxu0 0
        %3407 = vmatprep.subr.bf16.mxu0 0
        %3408 = vmatpush1.bf16.msra.mxu0 0
        %3409 = vmatprep.subr.bf16.mxu0 0
        %3410 = vmatpush1.bf16.msra.mxu0 0
        %3411 = vmatprep.subr.bf16.mxu0 0
        %3412 = vmatpush1.bf16.msra.mxu0 0
        %3413 = vmatprep.subr.bf16.mxu0 0
        %3414 = vmatpush1.bf16.msra.mxu0 0
        %3415 = vmatprep.mubr.bf16.mxu0 0
        %3416 = vmatmul.mubr.bf16.gmra.mrb[0].mxu0 %v3378
        %v3417 = vpop.f32.mrb[0].mxu0
        %v3418 = vadd.f32 0.0, %v3417
        %v3419 = vpop.f32.mrb[0].mxu0
        %v3420 = vpop.f32.mrb[0].mxu0
        %v3421 = vpop.f32.mrb[0].mxu0
        %3422 = vdwg.mxu0
        %3424 = vrot.lane.b32.xlu0 %v3198, 8
        %v3425 = vpop.permute.xlu0 %3424
        %3428 = vrot.lane.b32.xlu0 %v3308, 16
        %v3429 = vpop.permute.xlu0 %3428
        %3432 = vrot.lane.b32.xlu0 %v3418, 24
        %v3433 = vpop.permute.xlu0 %3432
        %v3435 = vsel %vm478, %v3088, %v3425
        %v3436 = vsel %vm931, %v3435, %v3429
        %v3437 = vsel %vm933, %v3436, %v3433
        %v3438 = vpack.c.bf16 %v3437, %v3437
        %v3439 = vlaneseq
        %v3440 = vshrl.u32 %v3439, 7
        %v3441 = vsub.s32 0, %v3440
        %v3442 = vrot.slane %v2868, %v3441
        %v3447 = vunpack.c.l.b16 %v2863
        %v3448 = vunpack.c.l.b16 %v2864
        %v3449 = vunpack.c.l.b16 %v2865
        %v3450 = vunpack.c.l.b16 %v2866
        %v3451 = vpack.c.b16 %v3448, %v3447
        %v3452 = vpack.c.b16 %v3450, %v3449
        %v3456 = vsel %vm330, %v3438, 0
        %3458 = vmatprep.subr.bf16.mxu0 0
        %3459 = vmatpush1.bf16.msra.mxu0 %v3451
        %3460 = vmatprep.subr.bf16.mxu0 0
        %3461 = vmatpush1.bf16.msra.mxu0 %v3452
        %3462 = vmatprep.subr.bf16.mxu0 0
        %3463 = vmatpush1.bf16.msra.mxu0 0
        %3464 = vmatprep.subr.bf16.mxu0 0
        %3465 = vmatpush1.bf16.msra.mxu0 0
        %3466 = vmatprep.subr.bf16.mxu0 0
        %3467 = vmatpush1.bf16.msra.mxu0 0
        %3468 = vmatprep.subr.bf16.mxu0 0
        %3469 = vmatpush1.bf16.msra.mxu0 0
        %3470 = vmatprep.subr.bf16.mxu0 0
        %3471 = vmatpush1.bf16.msra.mxu0 0
        %3472 = vmatprep.subr.bf16.mxu0 0
        %3473 = vmatpush1.bf16.msra.mxu0 0
        %3474 = vmatprep.subr.bf16.mxu0 0
        %3475 = vmatpush1.bf16.msra.mxu0 0
        %3476 = vmatprep.subr.bf16.mxu0 0
        %3477 = vmatpush1.bf16.msra.mxu0 0
        %3478 = vmatprep.subr.bf16.mxu0 0
        %3479 = vmatpush1.bf16.msra.mxu0 0
        %3480 = vmatprep.subr.bf16.mxu0 0
        %3481 = vmatpush1.bf16.msra.mxu0 0
        %3482 = vmatprep.subr.bf16.mxu0 0
        %3483 = vmatpush1.bf16.msra.mxu0 0
        %3484 = vmatprep.subr.bf16.mxu0 0
        %3485 = vmatpush1.bf16.msra.mxu0 0
        %3486 = vmatprep.subr.bf16.mxu0 0
        %3487 = vmatpush1.bf16.msra.mxu0 0
        %3488 = vmatprep.subr.bf16.mxu0 0
        %3489 = vmatpush1.bf16.msra.mxu0 0
        %3490 = vmatprep.mubr.bf16.mxu0 0
        %3491 = vmatmul.mubr.bf16.gmra.mrb[0].mxu0 %v3456
        %v3492 = vpop.f32.mrb[0].mxu0
        %v3493 = vadd.f32 %v3442, %v3492
        %v3494 = vpop.f32.mrb[0].mxu0
        %v3495 = vpop.f32.mrb[0].mxu0
        %v3496 = vpop.f32.mrb[0].mxu0
        %3497 = vdwg.mxu0
        %v3498 = vadd.f32 %v2854, %v3493
        %v3499 = vsel %vm330, %v3498, 0.0
        %3500 = vadd.xlane.f32.xlu0 %v3499
        %v3501 = vpop.xlane.xlu0 %3500
        %v3502 = vmul.f32 %v3501, %v334
        %v3503 = vsub.f32 %v3498, %v3502
        %v3504 = vmul.f32 %v3503, %v3503
        %v3505 = vsel %vm330, %v3504, 0.0
        %3506 = vadd.xlane.f32.xlu0 %v3505
        %v3507 = vpop.xlane.xlu0 %3506
        %v3508 = vmul.f32 %v3507, %v334
        %v3509 = vadd.f32 %v3508, 1e-12
        %v3510 = vrsqrt.pop %v3509
        %v3511 = vmul.f32 %v3503, %v3510
        %v3512 = vlaneseq
        %v3513 = vshrl.u32 %v3512, 7
        %v3514 = vsub.s32 1, %v3513
        %v3515 = vrot.slane %v2868, %v3514
        %v3516 = vmul.f32 %v3511, %v3515
        %v3517 = vlaneseq
        %v3518 = vshrl.u32 %v3517, 7
        %v3519 = vsub.s32 2, %v3518
        %v3520 = vrot.slane %v2868, %v3519
        %v3521 = vadd.f32 %v3516, %v3520
        %v3522 = vpack.c.bf16 %v3521, %v3521
        %v3524 = vlaneseq
        %v3525 = vshrl.u32 %v3524, 7
        %v3526 = vsub.s32 0, %v3525
        %v3527 = vrot.slane %v2875, %v3526
        %v3533 = vunpack.c.l.b16 %v2870
        %v3534 = vunpack.c.l.b16 %v2871
        %v3535 = vunpack.c.l.b16 %v2872
        %v3536 = vunpack.c.l.b16 %v2873
        %v3537 = vpack.c.b16 %v3534, %v3533
        %v3538 = vpack.c.b16 %v3536, %v3535
        %v3542 = vsel %vm330, %v3522, 0
        %3544 = vmatprep.subr.bf16.mxu0 0
        %3545 = vmatpush1.bf16.msra.mxu0 %v3537
        %3546 = vmatprep.subr.bf16.mxu0 0
        %3547 = vmatpush1.bf16.msra.mxu0 %v3538
        %3548 = vmatprep.subr.bf16.mxu0 0
        %3549 = vmatpush1.bf16.msra.mxu0 0
        %3550 = vmatprep.subr.bf16.mxu0 0
        %3551 = vmatpush1.bf16.msra.mxu0 0
        %3552 = vmatprep.subr.bf16.mxu0 0
        %3553 = vmatpush1.bf16.msra.mxu0 0
        %3554 = vmatprep.subr.bf16.mxu0 0
        %3555 = vmatpush1.bf16.msra.mxu0 0
        %3556 = vmatprep.subr.bf16.mxu0 0
        %3557 = vmatpush1.bf16.msra.mxu0 0
        %3558 = vmatprep.subr.bf16.mxu0 0
        %3559 = vmatpush1.bf16.msra.mxu0 0
        %3560 = vmatprep.subr.bf16.mxu0 0
        %3561 = vmatpush1.bf16.msra.mxu0 0
        %3562 = vmatprep.subr.bf16.mxu0 0
        %3563 = vmatpush1.bf16.msra.mxu0 0
        %3564 = vmatprep.subr.bf16.mxu0 0
        %3565 = vmatpush1.bf16.msra.mxu0 0
        %3566 = vmatprep.subr.bf16.mxu0 0
        %3567 = vmatpush1.bf16.msra.mxu0 0
        %3568 = vmatprep.subr.bf16.mxu0 0
        %3569 = vmatpush1.bf16.msra.mxu0 0
        %3570 = vmatprep.subr.bf16.mxu0 0
        %3571 = vmatpush1.bf16.msra.mxu0 0
        %3572 = vmatprep.subr.bf16.mxu0 0
        %3573 = vmatpush1.bf16.msra.mxu0 0
        %3574 = vmatprep.subr.bf16.mxu0 0
        %3575 = vmatpush1.bf16.msra.mxu0 0
        %3576 = vmatprep.mubr.bf16.mxu0 0
        %3577 = vmatmul.mubr.bf16.gmra.mrb[0].mxu0 %v3542
        %v3578 = vpop.f32.mrb[0].mxu0
        %v3579 = vadd.f32 %v3527, %v3578
        %v3580 = vpop.f32.mrb[0].mxu0
        %v3581 = vpop.f32.mrb[0].mxu0
        %v3582 = vpop.f32.mrb[0].mxu0
        %3583 = vdwg.mxu0
        %v3584 = vmul.f32 %v3579, 0.5
        %v3585 = vmul.f32 %v3579, 0.044715
        %v3586 = vmul.f32 %v3585, %v3579
        %v3587 = vmul.f32 %v3586, %v3579
        %v3588 = vadd.f32 %v3579, %v3587
        %v3589 = vmul.f32 %v3588, 0.7978846
        %v3590 = vtanh.pop %v3589
        %v3591 = vadd.f32 %v3590, 1.0
        %v3592 = vmul.f32 %v3584, %v3591
        %v3593 = vpack.c.bf16 %v3592, %v3592
        %v3594 = vlaneseq
        %v3595 = vshrl.u32 %v3594, 7
        %v3596 = vsub.s32 3, %v3595
        %v3597 = vrot.slane %v2868, %v3596
        %v3606 = vunpack.c.l.b16 %v2877
        %v3607 = vunpack.c.l.b16 %v2878
        %v3608 = vunpack.c.l.b16 %v2879
        %v3609 = vunpack.c.l.b16 %v2880
        %v3610 = vunpack.c.l.b16 %v2881
        %v3611 = vunpack.c.l.b16 %v2882
        %v3612 = vunpack.c.l.b16 %v2883
        %v3613 = vunpack.c.l.b16 %v2884
        %v3614 = vpack.c.b16 %v3607, %v3606
        %v3615 = vpack.c.b16 %v3609, %v3608
        %v3616 = vpack.c.b16 %v3611, %v3610
        %v3617 = vpack.c.b16 %v3613, %v3612
        %v3623 = vsel %vm1119, %v3593, 0
        %3625 = vmatprep.subr.bf16.mxu0 0
        %3626 = vmatpush1.bf16.msra.mxu0 %v3614
        %3627 = vmatprep.subr.bf16.mxu0 0
        %3628 = vmatpush1.bf16.msra.mxu0 %v3615
        %3629 = vmatprep.subr.bf16.mxu0 0
        %3630 = vmatpush1.bf16.msra.mxu0 %v3616
        %3631 = vmatprep.subr.bf16.mxu0 0
        %3632 = vmatpush1.bf16.msra.mxu0 %v3617
        %3633 = vmatprep.subr.bf16.mxu0 0
        %3634 = vmatpush1.bf16.msra.mxu0 0
        %3635 = vmatprep.subr.bf16.mxu0 0
        %3636 = vmatpush1.bf16.msra.mxu0 0
        %3637 = vmatprep.subr.bf16.mxu0 0
        %3638 = vmatpush1.bf16.msra.mxu0 0
        %3639 = vmatprep.subr.bf16.mxu0 0
        %3640 = vmatpush1.bf16.msra.mxu0 0
        %3641 = vmatprep.subr.bf16.mxu0 0
        %3642 = vmatpush1.bf16.msra.mxu0 0
        %3643 = vmatprep.subr.bf16.mxu0 0
        %3644 = vmatpush1.bf16.msra.mxu0 0
        %3645 = vmatprep.subr.bf16.mxu0 0
        %3646 = vmatpush1.bf16.msra.mxu0 0
        %3647 = vmatprep.subr.bf16.mxu0 0
        %3648 = vmatpush1.bf16.msra.mxu0 0
        %3649 = vmatprep.subr.bf16.mxu0 0
        %3650 = vmatpush1.bf16.msra.mxu0 0
        %3651 = vmatprep.subr.bf16.mxu0 0
        %3652 = vmatpush1.bf16.msra.mxu0 0
        %3653 = vmatprep.subr.bf16.mxu0 0
        %3654 = vmatpush1.bf16.msra.mxu0 0
        %3655 = vmatprep.subr.bf16.mxu0 0
        %3656 = vmatpush1.bf16.msra.mxu0 0
        %3657 = vmatprep.mubr.bf16.mxu0 0
        %3658 = vmatmul.mubr.bf16.gmra.mrb[0].mxu0 %v3623
        %v3659 = vpop.f32.mrb[0].mxu0
        %v3660 = vadd.f32 %v3597, %v3659
        %v3661 = vpop.f32.mrb[0].mxu0
        %v3662 = vpop.f32.mrb[0].mxu0
        %v3663 = vpop.f32.mrb[0].mxu0
        %3664 = vdwg.mxu0
        %v3665 = vadd.f32 %v3521, %v3660
        %v3666 = vsel %vm330, %v3665, 0.0
        %3667 = vadd.xlane.f32.xlu0 %v3666
        %v3668 = vpop.xlane.xlu0 %3667
        %v3669 = vmul.f32 %v3668, %v334
        %v3670 = vsub.f32 %v3665, %v3669
        %v3671 = vmul.f32 %v3670, %v3670
        %v3672 = vsel %vm330, %v3671, 0.0
        %3673 = vadd.xlane.f32.xlu0 %v3672
        %v3674 = vpop.xlane.xlu0 %3673
        %v3675 = vmul.f32 %v3674, %v334
        %v3676 = vadd.f32 %v3675, 1e-12
        %v3677 = vrsqrt.pop %v3676
        %v3678 = vmul.f32 %v3670, %v3677
        %v3679 = vlaneseq
        %v3680 = vshrl.u32 %v3679, 7
        %v3681 = vsub.s32 4, %v3680
        %v3682 = vrot.slane %v2868, %v3681
        %v3683 = vmul.f32 %v3678, %v3682
        %v3684 = vlaneseq
        %v3685 = vshrl.u32 %v3684, 7
        %v3686 = vsub.s32 5, %v3685
        %v3687 = vrot.slane %v2868, %v3686
        %v3688 = vadd.f32 %v3683, %v3687
        %s3689 = scalar_lea.vmem %s2, 64
        %v3690 = vld [vmem:[%s3689] sm:$0xf]
        %v3691 = vld [vmem:[%s3689 + $0x4] sm:$0xf]
        %v3692 = vld [vmem:[%s3689 + $0x8] sm:$0xf]
        %v3693 = vld [vmem:[%s3689 + $0xc] sm:$0xf]
        %s3694 = scalar_lea.vmem %s3, 4
        %v3695 = vld [vmem:[%s3694] sm:$0x1]
        %s3696 = scalar_lea.vmem %s4, 64
        %v3697 = vld [vmem:[%s3696] sm:$0xf]
        %v3698 = vld [vmem:[%s3696 + $0x4] sm:$0xf]
        %v3699 = vld [vmem:[%s3696 + $0x8] sm:$0xf]
        %v3700 = vld [vmem:[%s3696 + $0xc] sm:$0xf]
        %s3701 = scalar_lea.vmem %s5, 32
        %v3702 = vld [vmem:[%s3701] sm:$0x3f]
        %s3703 = scalar_lea.vmem %s6, 64
        %v3704 = vld [vmem:[%s3703] sm:$0xf]
        %v3705 = vld [vmem:[%s3703 + $0x4] sm:$0xf]
        %v3706 = vld [vmem:[%s3703 + $0x8] sm:$0xf]
        %v3707 = vld [vmem:[%s3703 + $0xc] sm:$0xf]
        %s3708 = scalar_lea.vmem %s7, 4
        %v3709 = vld [vmem:[%s3708] sm:$0x1]
        %s3710 = scalar_lea.vmem %s8, 128
        %v3711 = vld [vmem:[%s3710] sm:$0xf]
        %v3712 = vld [vmem:[%s3710 + $0x4] sm:$0xf]
        %v3713 = vld [vmem:[%s3710 + $0x8] sm:$0xf]
        %v3714 = vld [vmem:[%s3710 + $0xc] sm:$0xf]
        %v3715 = vld [vmem:[%s3710 + $0x10] sm:$0xf]
        %v3716 = vld [vmem:[%s3710 + $0x14] sm:$0xf]
        %v3717 = vld [vmem:[%s3710 + $0x18] sm:$0xf]
        %v3718 = vld [vmem:[%s3710 + $0x1c] sm:$0xf]
        %v3719 = vpack.c.bf16 %v3688, %v3688
        %v3721 = vlaneseq
        %v3722 = vshrl.u32 %v3721, 7
        %v3723 = vsub.s32 0, %v3722
        %v3724 = vrot.slane %v3695, %v3723
        %v3730 = vunpack.c.l.b16 %v3690
        %v3731 = vunpack.c.l.b16 %v3691
        %v3732 = vunpack.c.l.b16 %v3692
        %v3733 = vunpack.c.l.b16 %v3693
        %v3734 = vpack.c.b16 %v3731, %v3730
        %v3735 = vpack.c.b16 %v3733, %v3732
        %v3739 = vsel %vm330, %v3719, 0
        %3741 = vmatprep.subr.bf16.mxu0 0
        %3742 = vmatpush1.bf16.msra.mxu0 %v3734
        %3743 = vmatprep.subr.bf16.mxu0 0
        %3744 = vmatpush1.bf16.msra.mxu0 %v3735
        %3745 = vmatprep.subr.bf16.mxu0 0
        %3746 = vmatpush1.bf16.msra.mxu0 0
        %3747 = vmatprep.subr.bf16.mxu0 0
        %3748 = vmatpush1.bf16.msra.mxu0 0
        %3749 = vmatprep.subr.bf16.mxu0 0
        %3750 = vmatpush1.bf16.msra.mxu0 0
        %3751 = vmatprep.subr.bf16.mxu0 0
        %3752 = vmatpush1.bf16.msra.mxu0 0
        %3753 = vmatprep.subr.bf16.mxu0 0
        %3754 = vmatpush1.bf16.msra.mxu0 0
        %3755 = vmatprep.subr.bf16.mxu0 0
        %3756 = vmatpush1.bf16.msra.mxu0 0
        %3757 = vmatprep.subr.bf16.mxu0 0
        %3758 = vmatpush1.bf16.msra.mxu0 0
        %3759 = vmatprep.subr.bf16.mxu0 0
        %3760 = vmatpush1.bf16.msra.mxu0 0
        %3761 = vmatprep.subr.bf16.mxu0 0
        %3762 = vmatpush1.bf16.msra.mxu0 0
        %3763 = vmatprep.subr.bf16.mxu0 0
        %3764 = vmatpush1.bf16.msra.mxu0 0
        %3765 = vmatprep.subr.bf16.mxu0 0
        %3766 = vmatpush1.bf16.msra.mxu0 0
        %3767 = vmatprep.subr.bf16.mxu0 0
        %3768 = vmatpush1.bf16.msra.mxu0 0
        %3769 = vmatprep.subr.bf16.mxu0 0
        %3770 = vmatpush1.bf16.msra.mxu0 0
        %3771 = vmatprep.subr.bf16.mxu0 0
        %3772 = vmatpush1.bf16.msra.mxu0 0
        %3773 = vmatprep.mubr.bf16.mxu0 0
        %3774 = vmatmul.mubr.bf16.gmra.mrb[0].mxu0 %v3739
        %v3775 = vpop.f32.mrb[0].mxu0
        %v3776 = vadd.f32 %v3724, %v3775
        %v3777 = vpop.f32.mrb[0].mxu0
        %v3778 = vpop.f32.mrb[0].mxu0
        %v3779 = vpop.f32.mrb[0].mxu0
        %3780 = vdwg.mxu0
        %3782 = vrot.lane.b32.xlu0 %v3776, 96
        %v3783 = vpop.permute.xlu0 %3782
        %3785 = vxpose.xlu0.b32.start [1/16] %v3783, 128
        %3786 = vxpose.xlu0.b32.cont [2/16] 0.0, 128
        %3787 = vxpose.xlu0.b32.cont [3/16] 0.0, 128
        %3788 = vxpose.xlu0.b32.cont [4/16] 0.0, 128
        %3789 = vxpose.xlu0.b32.cont [5/16] 0.0, 128
        %3790 = vxpose.xlu0.b32.cont [6/16] 0.0, 128
        %3791 = vxpose.xlu0.b32.cont [7/16] 0.0, 128
        %3792 = vxpose.xlu0.b32.cont [8/16] 0.0, 128
        %3793 = vxpose.xlu0.b32.cont [9/16] 0.0, 128
        %3794 = vxpose.xlu0.b32.cont [10/16] 0.0, 128
        %3795 = vxpose.xlu0.b32.cont [11/16] 0.0, 128
        %3796 = vxpose.xlu0.b32.cont [12/16] 0.0, 128
        %3797 = vxpose.xlu0.b32.cont [13/16] 0.0, 128
        %3798 = vxpose.xlu0.b32.cont [14/16] 0.0, 128
        %3799 = vxpose.xlu0.b32.cont [15/16] 0.0, 128
        %3800 = vxpose.xlu0.b32.end [16/16] 0.0, 128
        %v3801 = vpop.trf.xlu0
        %v3802 = vpop.trf.xlu0
        %v3803 = vpop.trf.xlu0
        %v3804 = vpop.trf.xlu0
        %v3805 = vpop.trf.xlu0
        %v3806 = vpop.trf.xlu0
        %v3807 = vpop.trf.xlu0
        %v3808 = vpop.trf.xlu0
        %v3809 = vpop.trf.xlu0
        %v3810 = vpop.trf.xlu0
        %v3811 = vpop.trf.xlu0
        %v3812 = vpop.trf.xlu0
        %v3813 = vpop.trf.xlu0
        %v3814 = vpop.trf.xlu0
        %v3815 = vpop.trf.xlu0
        %v3816 = vpop.trf.xlu0
        %v3817 = vpack.c.bf16 %v3776, %v3776
        %v3818 = vpack.c.bf16 %v3801, %v3801
        %v3820 = vsel %vm478, %v3817, 0
        %v3823 = vsel %vm482, %v3818, 0
        %3825 = vmatprep.subr.bf16.mxu0 0
        %3826 = vmatpush1.bf16.msra.mxu0 %v3823
        %3827 = vmatprep.subr.bf16.mxu0 0
        %3828 = vmatpush1.bf16.msra.mxu0 0
        %3829 = vmatprep.subr.bf16.mxu0 0
        %3830 = vmatpush1.bf16.msra.mxu0 0
        %3831 = vmatprep.subr.bf16.mxu0 0
        %3832 = vmatpush1.bf16.msra.mxu0 0
        %3833 = vmatprep.subr.bf16.mxu0 0
        %3834 = vmatpush1.bf16.msra.mxu0 0
        %3835 = vmatprep.subr.bf16.mxu0 0
        %3836 = vmatpush1.bf16.msra.mxu0 0
        %3837 = vmatprep.subr.bf16.mxu0 0
        %3838 = vmatpush1.bf16.msra.mxu0 0
        %3839 = vmatprep.subr.bf16.mxu0 0
        %3840 = vmatpush1.bf16.msra.mxu0 0
        %3841 = vmatprep.subr.bf16.mxu0 0
        %3842 = vmatpush1.bf16.msra.mxu0 0
        %3843 = vmatprep.subr.bf16.mxu0 0
        %3844 = vmatpush1.bf16.msra.mxu0 0
        %3845 = vmatprep.subr.bf16.mxu0 0
        %3846 = vmatpush1.bf16.msra.mxu0 0
        %3847 = vmatprep.subr.bf16.mxu0 0
        %3848 = vmatpush1.bf16.msra.mxu0 0
        %3849 = vmatprep.subr.bf16.mxu0 0
        %3850 = vmatpush1.bf16.msra.mxu0 0
        %3851 = vmatprep.subr.bf16.mxu0 0
        %3852 = vmatpush1.bf16.msra.mxu0 0
        %3853 = vmatprep.subr.bf16.mxu0 0
        %3854 = vmatpush1.bf16.msra.mxu0 0
        %3855 = vmatprep.subr.bf16.mxu0 0
        %3856 = vmatpush1.bf16.msra.mxu0 0
        %3857 = vmatprep.mubr.bf16.mxu0 0
        %3858 = vmatmul.mubr.bf16.gmra.mrb[0].mxu0 %v3820
        %v3859 = vpop.f32.mrb[0].mxu0
        %v3860 = vadd.f32 0.0, %v3859
        %v3861 = vpop.f32.mrb[0].mxu0
        %v3862 = vpop.f32.mrb[0].mxu0
        %v3863 = vpop.f32.mrb[0].mxu0
        %3864 = vdwg.mxu0
        %v3865 = vmul.f32 %v3860, 0.35355338
        %v3866 = vsel %vm478, %v3865, -inf
        %3867 = vmax.xlane.f32.xlu0 %v3866
        %v3868 = vpop.xlane.xlu0 %3867
        %v3869 = vsub.f32 %v3865, %v3868
        %v3870 = vmul.f32 %v3869, 1.442695
        %v3871 = vpow.pop %v3870
        %v3872 = vsel %vm478, %v3871, 0.0
        %3873 = vadd.xlane.f32.xlu0 %v3872
        %v3874 = vpop.xlane.xlu0 %3873
        %v3875 = vrcp.pop %v3874
        %v3876 = vmul.f32 %v3871, %v3875
        %v3877 = vpack.c.bf16 %v3876, %v3876
        %3879 = vrot.lane.b32.xlu0 %v3817, 64
        %v3880 = vpop.permute.xlu0 %3879
        %v3882 = vsel %vm478, %v3877, 0
        %v3885 = vsel %vm482, %v3880, 0
        %3887 = vmatprep.subr.bf16.mxu0 0
        %3888 = vmatpush1.bf16.msra.mxu0 %v3885
        %3889 = vmatprep.subr.bf16.mxu0 0
        %3890 = vmatpush1.bf16.msra.mxu0 0
        %3891 = vmatprep.subr.bf16.mxu0 0
        %3892 = vmatpush1.bf16.msra.mxu0 0
        %3893 = vmatprep.subr.bf16.mxu0 0
        %3894 = vmatpush1.bf16.msra.mxu0 0
        %3895 = vmatprep.subr.bf16.mxu0 0
        %3896 = vmatpush1.bf16.msra.mxu0 0
        %3897 = vmatprep.subr.bf16.mxu0 0
        %3898 = vmatpush1.bf16.msra.mxu0 0
        %3899 = vmatprep.subr.bf16.mxu0 0
        %3900 = vmatpush1.bf16.msra.mxu0 0
        %3901 = vmatprep.subr.bf16.mxu0 0
        %3902 = vmatpush1.bf16.msra.mxu0 0
        %3903 = vmatprep.subr.bf16.mxu0 0
        %3904 = vmatpush1.bf16.msra.mxu0 0
        %3905 = vmatprep.subr.bf16.mxu0 0
        %3906 = vmatpush1.bf16.msra.mxu0 0
        %3907 = vmatprep.subr.bf16.mxu0 0
        %3908 = vmatpush1.bf16.msra.mxu0 0
        %3909 = vmatprep.subr.bf16.mxu0 0
        %3910 = vmatpush1.bf16.msra.mxu0 0
        %3911 = vmatprep.subr.bf16.mxu0 0
        %3912 = vmatpush1.bf16.msra.mxu0 0
        %3913 = vmatprep.subr.bf16.mxu0 0
        %3914 = vmatpush1.bf16.msra.mxu0 0
        %3915 = vmatprep.subr.bf16.mxu0 0
        %3916 = vmatpush1.bf16.msra.mxu0 0
        %3917 = vmatprep.subr.bf16.mxu0 0
        %3918 = vmatpush1.bf16.msra.mxu0 0
        %3919 = vmatprep.mubr.bf16.mxu0 0
        %3920 = vmatmul.mubr.bf16.gmra.mrb[0].mxu0 %v3882
        %v3921 = vpop.f32.mrb[0].mxu0
        %v3922 = vadd.f32 0.0, %v3921
        %v3923 = vpop.f32.mrb[0].mxu0
        %v3924 = vpop.f32.mrb[0].mxu0
        %v3925 = vpop.f32.mrb[0].mxu0
        %3926 = vdwg.mxu0
        %v3927 = vpack.c.bf16 %v3802, %v3802
        %3928 = vrot.lane.b32.xlu0 %v3817, 120
        %v3929 = vpop.permute.xlu0 %3928
        %v3931 = vsel %vm478, %v3929, 0
        %v3934 = vsel %vm482, %v3927, 0
        %3936 = vmatprep.subr.bf16.mxu0 0
        %3937 = vmatpush1.bf16.msra.mxu0 %v3934
        %3938 = vmatprep.subr.bf16.mxu0 0
        %3939 = vmatpush1.bf16.msra.mxu0 0
        %3940 = vmatprep.subr.bf16.mxu0 0
        %3941 = vmatpush1.bf16.msra.mxu0 0
        %3942 = vmatprep.subr.bf16.mxu0 0
        %3943 = vmatpush1.bf16.msra.mxu0 0
        %3944 = vmatprep.subr.bf16.mxu0 0
        %3945 = vmatpush1.bf16.msra.mxu0 0
        %3946 = vmatprep.subr.bf16.mxu0 0
        %3947 = vmatpush1.bf16.msra.mxu0 0
        %3948 = vmatprep.subr.bf16.mxu0 0
        %3949 = vmatpush1.bf16.msra.mxu0 0
        %3950 = vmatprep.subr.bf16.mxu0 0
        %3951 = vmatpush1.bf16.msra.mxu0 0
        %3952 = vmatprep.subr.bf16.mxu0 0
        %3953 = vmatpush1.bf16.msra.mxu0 0
        %3954 = vmatprep.subr.bf16.mxu0 0
        %3955 = vmatpush1.bf16.msra.mxu0 0
        %3956 = vmatprep.subr.bf16.mxu0 0
        %3957 = vmatpush1.bf16.msra.mxu0 0
        %3958 = vmatprep.subr.bf16.mxu0 0
        %3959 = vmatpush1.bf16.msra.mxu0 0
        %3960 = vmatprep.subr.bf16.mxu0 0
        %3961 = vmatpush1.bf16.msra.mxu0 0
        %3962 = vmatprep.subr.bf16.mxu0 0
        %3963 = vmatpush1.bf16.msra.mxu0 0
        %3964 = vmatprep.subr.bf16.mxu0 0
        %3965 = vmatpush1.bf16.msra.mxu0 0
        %3966 = vmatprep.subr.bf16.mxu0 0
        %3967 = vmatpush1.bf16.msra.mxu0 0
        %3968 = vmatprep.mubr.bf16.mxu0 0
        %3969 = vmatmul.mubr.bf16.gmra.mrb[0].mxu0 %v3931
        %v3970 = vpop.f32.mrb[0].mxu0
        %v3971 = vadd.f32 0.0, %v3970
        %v3972 = vpop.f32.mrb[0].mxu0
        %v3973 = vpop.f32.mrb[0].mxu0
        %v3974 = vpop.f32.mrb[0].mxu0
        %3975 = vdwg.mxu0
        %v3976 = vmul.f32 %v3971, 0.35355338
        %v3977 = vsel %vm478, %v3976, -inf
        %3978 = vmax.xlane.f32.xlu0 %v3977
        %v3979 = vpop.xlane.xlu0 %3978
        %v3980 = vsub.f32 %v3976, %v3979
        %v3981 = vmul.f32 %v3980, 1.442695
        %v3982 = vpow.pop %v3981
        %v3983 = vsel %vm478, %v3982, 0.0
        %3984 = vadd.xlane.f32.xlu0 %v3983
        %v3985 = vpop.xlane.xlu0 %3984
        %v3986 = vrcp.pop %v3985
        %v3987 = vmul.f32 %v3982, %v3986
        %v3988 = vpack.c.bf16 %v3987, %v3987
        %3989 = vrot.lane.b32.xlu0 %v3817, 56
        %v3990 = vpop.permute.xlu0 %3989
        %v3992 = vsel %vm478, %v3988, 0
        %v3995 = vsel %vm482, %v3990, 0
        %3997 = vmatprep.subr.bf16.mxu0 0
        %3998 = vmatpush1.bf16.msra.mxu0 %v3995
        %3999 = vmatprep.subr.bf16.mxu0 0
        %4000 = vmatpush1.bf16.msra.mxu0 0
        %4001 = vmatprep.subr.bf16.mxu0 0
        %4002 = vmatpush1.bf16.msra.mxu0 0
        %4003 = vmatprep.subr.bf16.mxu0 0
        %4004 = vmatpush1.bf16.msra.mxu0 0
        %4005 = vmatprep.subr.bf16.mxu0 0
        %4006 = vmatpush1.bf16.msra.mxu0 0
        %4007 = vmatprep.subr.bf16.mxu0 0
        %4008 = vmatpush1.bf16.msra.mxu0 0
        %4009 = vmatprep.subr.bf16.mxu0 0
        %4010 = vmatpush1.bf16.msra.mxu0 0
        %4011 = vmatprep.subr.bf16.mxu0 0
        %4012 = vmatpush1.bf16.msra.mxu0 0
        %4013 = vmatprep.subr.bf16.mxu0 0
        %4014 = vmatpush1.bf16.msra.mxu0 0
        %4015 = vmatprep.subr.bf16.mxu0 0
        %4016 = vmatpush1.bf16.msra.mxu0 0
        %4017 = vmatprep.subr.bf16.mxu0 0
        %4018 = vmatpush1.bf16.msra.mxu0 0
        %4019 = vmatprep.subr.bf16.mxu0 0
        %4020 = vmatpush1.bf16.msra.mxu0 0
        %4021 = vmatprep.subr.bf16.mxu0 0
        %4022 = vmatpush1.bf16.msra.mxu0 0
        %4023 = vmatprep.subr.bf16.mxu0 0
        %4024 = vmatpush1.bf16.msra.mxu0 0
        %4025 = vmatprep.subr.bf16.mxu0 0
        %4026 = vmatpush1.bf16.msra.mxu0 0
        %4027 = vmatprep.subr.bf16.mxu0 0
        %4028 = vmatpush1.bf16.msra.mxu0 0
        %4029 = vmatprep.mubr.bf16.mxu0 0
        %4030 = vmatmul.mubr.bf16.gmra.mrb[0].mxu0 %v3992
        %v4031 = vpop.f32.mrb[0].mxu0
        %v4032 = vadd.f32 0.0, %v4031
        %v4033 = vpop.f32.mrb[0].mxu0
        %v4034 = vpop.f32.mrb[0].mxu0
        %v4035 = vpop.f32.mrb[0].mxu0
        %4036 = vdwg.mxu0
        %v4037 = vpack.c.bf16 %v3803, %v3803
        %4038 = vrot.lane.b32.xlu0 %v3817, 112
        %v4039 = vpop.permute.xlu0 %4038
        %v4041 = vsel %vm478, %v4039, 0
        %v4044 = vsel %vm482, %v4037, 0
        %4046 = vmatprep.subr.bf16.mxu0 0
        %4047 = vmatpush1.bf16.msra.mxu0 %v4044
        %4048 = vmatprep.subr.bf16.mxu0 0
        %4049 = vmatpush1.bf16.msra.mxu0 0
        %4050 = vmatprep.subr.bf16.mxu0 0
        %4051 = vmatpush1.bf16.msra.mxu0 0
        %4052 = vmatprep.subr.bf16.mxu0 0
        %4053 = vmatpush1.bf16.msra.mxu0 0
        %4054 = vmatprep.subr.bf16.mxu0 0
        %4055 = vmatpush1.bf16.msra.mxu0 0
        %4056 = vmatprep.subr.bf16.mxu0 0
        %4057 = vmatpush1.bf16.msra.mxu0 0
        %4058 = vmatprep.subr.bf16.mxu0 0
        %4059 = vmatpush1.bf16.msra.mxu0 0
        %4060 = vmatprep.subr.bf16.mxu0 0
        %4061 = vmatpush1.bf16.msra.mxu0 0
        %4062 = vmatprep.subr.bf16.mxu0 0
        %4063 = vmatpush1.bf16.msra.mxu0 0
        %4064 = vmatprep.subr.bf16.mxu0 0
        %4065 = vmatpush1.bf16.msra.mxu0 0
        %4066 = vmatprep.subr.bf16.mxu0 0
        %4067 = vmatpush1.bf16.msra.mxu0 0
        %4068 = vmatprep.subr.bf16.mxu0 0
        %4069 = vmatpush1.bf16.msra.mxu0 0
        %4070 = vmatprep.subr.bf16.mxu0 0
        %4071 = vmatpush1.bf16.msra.mxu0 0
        %4072 = vmatprep.subr.bf16.mxu0 0
        %4073 = vmatpush1.bf16.msra.mxu0 0
        %4074 = vmatprep.subr.bf16.mxu0 0
        %4075 = vmatpush1.bf16.msra.mxu0 0
        %4076 = vmatprep.subr.bf16.mxu0 0
        %4077 = vmatpush1.bf16.msra.mxu0 0
        %4078 = vmatprep.mubr.bf16.mxu0 0
        %4079 = vmatmul.mubr.bf16.gmra.mrb[0].mxu0 %v4041
        %v4080 = vpop.f32.mrb[0].mxu0
        %v4081 = vadd.f32 0.0, %v4080
        %v4082 = vpop.f32.mrb[0].mxu0
        %v4083 = vpop.f32.mrb[0].mxu0
        %v4084 = vpop.f32.mrb[0].mxu0
        %4085 = vdwg.mxu0
        %v4086 = vmul.f32 %v4081, 0.35355338
        %v4087 = vsel %vm478, %v4086, -inf
        %4088 = vmax.xlane.f32.xlu0 %v4087
        %v4089 = vpop.xlane.xlu0 %4088
        %v4090 = vsub.f32 %v4086, %v4089
        %v4091 = vmul.f32 %v4090, 1.442695
        %v4092 = vpow.pop %v4091
        %v4093 = vsel %vm478, %v4092, 0.0
        %4094 = vadd.xlane.f32.xlu0 %v4093
        %v4095 = vpop.xlane.xlu0 %4094
        %v4096 = vrcp.pop %v4095
        %v4097 = vmul.f32 %v4092, %v4096
        %v4098 = vpack.c.bf16 %v4097, %v4097
        %4099 = vrot.lane.b32.xlu0 %v3817, 48
        %v4100 = vpop.permute.xlu0 %4099
        %v4102 = vsel %vm478, %v4098, 0
        %v4105 = vsel %vm482, %v4100, 0
        %4107 = vmatprep.subr.bf16.mxu0 0
        %4108 = vmatpush1.bf16.msra.mxu0 %v4105
        %4109 = vmatprep.subr.bf16.mxu0 0
        %4110 = vmatpush1.bf16.msra.mxu0 0
        %4111 = vmatprep.subr.bf16.mxu0 0
        %4112 = vmatpush1.bf16.msra.mxu0 0
        %4113 = vmatprep.subr.bf16.mxu0 0
        %4114 = vmatpush1.bf16.msra.mxu0 0
        %4115 = vmatprep.subr.bf16.mxu0 0
        %4116 = vmatpush1.bf16.msra.mxu0 0
        %4117 = vmatprep.subr.bf16.mxu0 0
        %4118 = vmatpush1.bf16.msra.mxu0 0
        %4119 = vmatprep.subr.bf16.mxu0 0
        %4120 = vmatpush1.bf16.msra.mxu0 0
        %4121 = vmatprep.subr.bf16.mxu0 0
        %4122 = vmatpush1.bf16.msra.mxu0 0
        %4123 = vmatprep.subr.bf16.mxu0 0
        %4124 = vmatpush1.bf16.msra.mxu0 0
        %4125 = vmatprep.subr.bf16.mxu0 0
        %4126 = vmatpush1.bf16.msra.mxu0 0
        %4127 = vmatprep.subr.bf16.mxu0 0
        %4128 = vmatpush1.bf16.msra.mxu0 0
        %4129 = vmatprep.subr.bf16.mxu0 0
        %4130 = vmatpush1.bf16.msra.mxu0 0
        %4131 = vmatprep.subr.bf16.mxu0 0
        %4132 = vmatpush1.bf16.msra.mxu0 0
        %4133 = vmatprep.subr.bf16.mxu0 0
        %4134 = vmatpush1.bf16.msra.mxu0 0
        %4135 = vmatprep.subr.bf16.mxu0 0
        %4136 = vmatpush1.bf16.msra.mxu0 0
        %4137 = vmatprep.subr.bf16.mxu0 0
        %4138 = vmatpush1.bf16.msra.mxu0 0
        %4139 = vmatprep.mubr.bf16.mxu0 0
        %4140 = vmatmul.mubr.bf16.gmra.mrb[0].mxu0 %v4102
        %v4141 = vpop.f32.mrb[0].mxu0
        %v4142 = vadd.f32 0.0, %v4141
        %v4143 = vpop.f32.mrb[0].mxu0
        %v4144 = vpop.f32.mrb[0].mxu0
        %v4145 = vpop.f32.mrb[0].mxu0
        %4146 = vdwg.mxu0
        %v4147 = vpack.c.bf16 %v3804, %v3804
        %4148 = vrot.lane.b32.xlu0 %v3817, 104
        %v4149 = vpop.permute.xlu0 %4148
        %v4151 = vsel %vm478, %v4149, 0
        %v4154 = vsel %vm482, %v4147, 0
        %4156 = vmatprep.subr.bf16.mxu0 0
        %4157 = vmatpush1.bf16.msra.mxu0 %v4154
        %4158 = vmatprep.subr.bf16.mxu0 0
        %4159 = vmatpush1.bf16.msra.mxu0 0
        %4160 = vmatprep.subr.bf16.mxu0 0
        %4161 = vmatpush1.bf16.msra.mxu0 0
        %4162 = vmatprep.subr.bf16.mxu0 0
        %4163 = vmatpush1.bf16.msra.mxu0 0
        %4164 = vmatprep.subr.bf16.mxu0 0
        %4165 = vmatpush1.bf16.msra.mxu0 0
        %4166 = vmatprep.subr.bf16.mxu0 0
        %4167 = vmatpush1.bf16.msra.mxu0 0
        %4168 = vmatprep.subr.bf16.mxu0 0
        %4169 = vmatpush1.bf16.msra.mxu0 0
        %4170 = vmatprep.subr.bf16.mxu0 0
        %4171 = vmatpush1.bf16.msra.mxu0 0
        %4172 = vmatprep.subr.bf16.mxu0 0
        %4173 = vmatpush1.bf16.msra.mxu0 0
        %4174 = vmatprep.subr.bf16.mxu0 0
        %4175 = vmatpush1.bf16.msra.mxu0 0
        %4176 = vmatprep.subr.bf16.mxu0 0
        %4177 = vmatpush1.bf16.msra.mxu0 0
        %4178 = vmatprep.subr.bf16.mxu0 0
        %4179 = vmatpush1.bf16.msra.mxu0 0
        %4180 = vmatprep.subr.bf16.mxu0 0
        %4181 = vmatpush1.bf16.msra.mxu0 0
        %4182 = vmatprep.subr.bf16.mxu0 0
        %4183 = vmatpush1.bf16.msra.mxu0 0
        %4184 = vmatprep.subr.bf16.mxu0 0
        %4185 = vmatpush1.bf16.msra.mxu0 0
        %4186 = vmatprep.subr.bf16.mxu0 0
        %4187 = vmatpush1.bf16.msra.mxu0 0
        %4188 = vmatprep.mubr.bf16.mxu0 0
        %4189 = vmatmul.mubr.bf16.gmra.mrb[0].mxu0 %v4151
        %v4190 = vpop.f32.mrb[0].mxu0
        %v4191 = vadd.f32 0.0, %v4190
        %v4192 = vpop.f32.mrb[0].mxu0
        %v4193 = vpop.f32.mrb[0].mxu0
        %v4194 = vpop.f32.mrb[0].mxu0
        %4195 = vdwg.mxu0
        %v4196 = vmul.f32 %v4191, 0.35355338
        %v4197 = vsel %vm478, %v4196, -inf
        %4198 = vmax.xlane.f32.xlu0 %v4197
        %v4199 = vpop.xlane.xlu0 %4198
        %v4200 = vsub.f32 %v4196, %v4199
        %v4201 = vmul.f32 %v4200, 1.442695
        %v4202 = vpow.pop %v4201
        %v4203 = vsel %vm478, %v4202, 0.0
        %4204 = vadd.xlane.f32.xlu0 %v4203
        %v4205 = vpop.xlane.xlu0 %4204
        %v4206 = vrcp.pop %v4205
        %v4207 = vmul.f32 %v4202, %v4206
        %v4208 = vpack.c.bf16 %v4207, %v4207
        %4209 = vrot.lane.b32.xlu0 %v3817, 40
        %v4210 = vpop.permute.xlu0 %4209
        %v4212 = vsel %vm478, %v4208, 0
        %v4215 = vsel %vm482, %v4210, 0
        %4217 = vmatprep.subr.bf16.mxu0 0
        %4218 = vmatpush1.bf16.msra.mxu0 %v4215
        %4219 = vmatprep.subr.bf16.mxu0 0
        %4220 = vmatpush1.bf16.msra.mxu0 0
        %4221 = vmatprep.subr.bf16.mxu0 0
        %4222 = vmatpush1.bf16.msra.mxu0 0
        %4223 = vmatprep.subr.bf16.mxu0 0
        %4224 = vmatpush1.bf16.msra.mxu0 0
        %4225 = vmatprep.subr.bf16.mxu0 0
        %4226 = vmatpush1.bf16.msra.mxu0 0
        %4227 = vmatprep.subr.bf16.mxu0 0
        %4228 = vmatpush1.bf16.msra.mxu0 0
        %4229 = vmatprep.subr.bf16.mxu0 0
        %4230 = vmatpush1.bf16.msra.mxu0 0
        %4231 = vmatprep.subr.bf16.mxu0 0
        %4232 = vmatpush1.bf16.msra.mxu0 0
        %4233 = vmatprep.subr.bf16.mxu0 0
        %4234 = vmatpush1.bf16.msra.mxu0 0
        %4235 = vmatprep.subr.bf16.mxu0 0
        %4236 = vmatpush1.bf16.msra.mxu0 0
        %4237 = vmatprep.subr.bf16.mxu0 0
        %4238 = vmatpush1.bf16.msra.mxu0 0
        %4239 = vmatprep.subr.bf16.mxu0 0
        %4240 = vmatpush1.bf16.msra.mxu0 0
        %4241 = vmatprep.subr.bf16.mxu0 0
        %4242 = vmatpush1.bf16.msra.mxu0 0
        %4243 = vmatprep.subr.bf16.mxu0 0
        %4244 = vmatpush1.bf16.msra.mxu0 0
        %4245 = vmatprep.subr.bf16.mxu0 0
        %4246 = vmatpush1.bf16.msra.mxu0 0
        %4247 = vmatprep.subr.bf16.mxu0 0
        %4248 = vmatpush1.bf16.msra.mxu0 0
        %4249 = vmatprep.mubr.bf16.mxu0 0
        %4250 = vmatmul.mubr.bf16.gmra.mrb[0].mxu0 %v4212
        %v4251 = vpop.f32.mrb[0].mxu0
        %v4252 = vadd.f32 0.0, %v4251
        %v4253 = vpop.f32.mrb[0].mxu0
        %v4254 = vpop.f32.mrb[0].mxu0
        %v4255 = vpop.f32.mrb[0].mxu0
        %4256 = vdwg.mxu0
        %4258 = vrot.lane.b32.xlu0 %v4032, 8
        %v4259 = vpop.permute.xlu0 %4258
        %4262 = vrot.lane.b32.xlu0 %v4142, 16
        %v4263 = vpop.permute.xlu0 %4262
        %4266 = vrot.lane.b32.xlu0 %v4252, 24
        %v4267 = vpop.permute.xlu0 %4266
        %v4269 = vsel %vm478, %v3922, %v4259
        %v4270 = vsel %vm931, %v4269, %v4263
        %v4271 = vsel %vm933, %v4270, %v4267
        %v4272 = vpack.c.bf16 %v4271, %v4271
        %v4273 = vlaneseq
        %v4274 = vshrl.u32 %v4273, 7
        %v4275 = vsub.s32 0, %v4274
        %v4276 = vrot.slane %v3702, %v4275
        %v4281 = vunpack.c.l.b16 %v3697
        %v4282 = vunpack.c.l.b16 %v3698
        %v4283 = vunpack.c.l.b16 %v3699
        %v4284 = vunpack.c.l.b16 %v3700
        %v4285 = vpack.c.b16 %v4282, %v4281
        %v4286 = vpack.c.b16 %v4284, %v4283
        %v4290 = vsel %vm330, %v4272, 0
        %4292 = vmatprep.subr.bf16.mxu0 0
        %4293 = vmatpush1.bf16.msra.mxu0 %v4285
        %4294 = vmatprep.subr.bf16.mxu0 0
        %4295 = vmatpush1.bf16.msra.mxu0 %v4286
        %4296 = vmatprep.subr.bf16.mxu0 0
        %4297 = vmatpush1.bf16.msra.mxu0 0
        %4298 = vmatprep.subr.bf16.mxu0 0
        %4299 = vmatpush1.bf16.msra.mxu0 0
        %4300 = vmatprep.subr.bf16.mxu0 0
        %4301 = vmatpush1.bf16.msra.mxu0 0
        %4302 = vmatprep.subr.bf16.mxu0 0
        %4303 = vmatpush1.bf16.msra.mxu0 0
        %4304 = vmatprep.subr.bf16.mxu0 0
        %4305 = vmatpush1.bf16.msra.mxu0 0
        %4306 = vmatprep.subr.bf16.mxu0 0
        %4307 = vmatpush1.bf16.msra.mxu0 0
        %4308 = vmatprep.subr.bf16.mxu0 0
        %4309 = vmatpush1.bf16.msra.mxu0 0
        %4310 = vmatprep.subr.bf16.mxu0 0
        %4311 = vmatpush1.bf16.msra.mxu0 0
        %4312 = vmatprep.subr.bf16.mxu0 0
        %4313 = vmatpush1.bf16.msra.mxu0 0
        %4314 = vmatprep.subr.bf16.mxu0 0
        %4315 = vmatpush1.bf16.msra.mxu0 0
        %4316 = vmatprep.subr.bf16.mxu0 0
        %4317 = vmatpush1.bf16.msra.mxu0 0
        %4318 = vmatprep.subr.bf16.mxu0 0
        %4319 = vmatpush1.bf16.msra.mxu0 0
        %4320 = vmatprep.subr.bf16.mxu0 0
        %4321 = vmatpush1.bf16.msra.mxu0 0
        %4322 = vmatprep.subr.bf16.mxu0 0
        %4323 = vmatpush1.bf16.msra.mxu0 0
        %4324 = vmatprep.mubr.bf16.mxu0 0
        %4325 = vmatmul.mubr.bf16.gmra.mrb[0].mxu0 %v4290
        %v4326 = vpop.f32.mrb[0].mxu0
        %v4327 = vadd.f32 %v4276, %v4326
        %v4328 = vpop.f32.mrb[0].mxu0
        %v4329 = vpop.f32.mrb[0].mxu0
        %v4330 = vpop.f32.mrb[0].mxu0
        %4331 = vdwg.mxu0
        %v4332 = vadd.f32 %v3688, %v4327
        %v4333 = vsel %vm330, %v4332, 0.0
        %4334 = vadd.xlane.f32.xlu0 %v4333
        %v4335 = vpop.xlane.xlu0 %4334
        %v4336 = vmul.f32 %v4335, %v334
        %v4337 = vsub.f32 %v4332, %v4336
        %v4338 = vmul.f32 %v4337, %v4337
        %v4339 = vsel %vm330, %v4338, 0.0
        %4340 = vadd.xlane.f32.xlu0 %v4339
        %v4341 = vpop.xlane.xlu0 %4340
        %v4342 = vmul.f32 %v4341, %v334
        %v4343 = vadd.f32 %v4342, 1e-12
        %v4344 = vrsqrt.pop %v4343
        %v4345 = vmul.f32 %v4337, %v4344
        %v4346 = vlaneseq
        %v4347 = vshrl.u32 %v4346, 7
        %v4348 = vsub.s32 1, %v4347
        %v4349 = vrot.slane %v3702, %v4348
        %v4350 = vmul.f32 %v4345, %v4349
        %v4351 = vlaneseq
        %v4352 = vshrl.u32 %v4351, 7
        %v4353 = vsub.s32 2, %v4352
        %v4354 = vrot.slane %v3702, %v4353
        %v4355 = vadd.f32 %v4350, %v4354
        %v4356 = vpack.c.bf16 %v4355, %v4355
        %v4358 = vlaneseq
        %v4359 = vshrl.u32 %v4358, 7
        %v4360 = vsub.s32 0, %v4359
        %v4361 = vrot.slane %v3709, %v4360
        %v4367 = vunpack.c.l.b16 %v3704
        %v4368 = vunpack.c.l.b16 %v3705
        %v4369 = vunpack.c.l.b16 %v3706
        %v4370 = vunpack.c.l.b16 %v3707
        %v4371 = vpack.c.b16 %v4368, %v4367
        %v4372 = vpack.c.b16 %v4370, %v4369
        %v4376 = vsel %vm330, %v4356, 0
        %4378 = vmatprep.subr.bf16.mxu0 0
        %4379 = vmatpush1.bf16.msra.mxu0 %v4371
        %4380 = vmatprep.subr.bf16.mxu0 0
        %4381 = vmatpush1.bf16.msra.mxu0 %v4372
        %4382 = vmatprep.subr.bf16.mxu0 0
        %4383 = vmatpush1.bf16.msra.mxu0 0
        %4384 = vmatprep.subr.bf16.mxu0 0
        %4385 = vmatpush1.bf16.msra.mxu0 0
        %4386 = vmatprep.subr.bf16.mxu0 0
        %4387 = vmatpush1.bf16.msra.mxu0 0
        %4388 = vmatprep.subr.bf16.mxu0 0
        %4389 = vmatpush1.bf16.msra.mxu0 0
        %4390 = vmatprep.subr.bf16.mxu0 0
        %4391 = vmatpush1.bf16.msra.mxu0 0
        %4392 = vmatprep.subr.bf16.mxu0 0
        %4393 = vmatpush1.bf16.msra.mxu0 0
        %4394 = vmatprep.subr.bf16.mxu0 0
        %4395 = vmatpush1.bf16.msra.mxu0 0
        %4396 = vmatprep.subr.bf16.mxu0 0
        %4397 = vmatpush1.bf16.msra.mxu0 0
        %4398 = vmatprep.subr.bf16.mxu0 0
        %4399 = vmatpush1.bf16.msra.mxu0 0
        %4400 = vmatprep.subr.bf16.mxu0 0
        %4401 = vmatpush1.bf16.msra.mxu0 0
        %4402 = vmatprep.subr.bf16.mxu0 0
        %4403 = vmatpush1.bf16.msra.mxu0 0
        %4404 = vmatprep.subr.bf16.mxu0 0
        %4405 = vmatpush1.bf16.msra.mxu0 0
        %4406 = vmatprep.subr.bf16.mxu0 0
        %4407 = vmatpush1.bf16.msra.mxu0 0
        %4408 = vmatprep.subr.bf16.mxu0 0
        %4409 = vmatpush1.bf16.msra.mxu0 0
        %4410 = vmatprep.mubr.bf16.mxu0 0
        %4411 = vmatmul.mubr.bf16.gmra.mrb[0].mxu0 %v4376
        %v4412 = vpop.f32.mrb[0].mxu0
        %v4413 = vadd.f32 %v4361, %v4412
        %v4414 = vpop.f32.mrb[0].mxu0
        %v4415 = vpop.f32.mrb[0].mxu0
        %v4416 = vpop.f32.mrb[0].mxu0
        %4417 = vdwg.mxu0
        %v4418 = vmul.f32 %v4413, 0.5
        %v4419 = vmul.f32 %v4413, 0.044715
        %v4420 = vmul.f32 %v4419, %v4413
        %v4421 = vmul.f32 %v4420, %v4413
        %v4422 = vadd.f32 %v4413, %v4421
        %v4423 = vmul.f32 %v4422, 0.7978846
        %v4424 = vtanh.pop %v4423
        %v4425 = vadd.f32 %v4424, 1.0
        %v4426 = vmul.f32 %v4418, %v4425
        %v4427 = vpack.c.bf16 %v4426, %v4426
        %v4428 = vlaneseq
        %v4429 = vshrl.u32 %v4428, 7
        %v4430 = vsub.s32 3, %v4429
        %v4431 = vrot.slane %v3702, %v4430
        %v4440 = vunpack.c.l.b16 %v3711
        %v4441 = vunpack.c.l.b16 %v3712
        %v4442 = vunpack.c.l.b16 %v3713
        %v4443 = vunpack.c.l.b16 %v3714
        %v4444 = vunpack.c.l.b16 %v3715
        %v4445 = vunpack.c.l.b16 %v3716
        %v4446 = vunpack.c.l.b16 %v3717
        %v4447 = vunpack.c.l.b16 %v3718
        %v4448 = vpack.c.b16 %v4441, %v4440
        %v4449 = vpack.c.b16 %v4443, %v4442
        %v4450 = vpack.c.b16 %v4445, %v4444
        %v4451 = vpack.c.b16 %v4447, %v4446
        %v4457 = vsel %vm1119, %v4427, 0
        %4459 = vmatprep.subr.bf16.mxu0 0
        %4460 = vmatpush1.bf16.msra.mxu0 %v4448
        %4461 = vmatprep.subr.bf16.mxu0 0
        %4462 = vmatpush1.bf16.msra.mxu0 %v4449
        %4463 = vmatprep.subr.bf16.mxu0 0
        %4464 = vmatpush1.bf16.msra.mxu0 %v4450
        %4465 = vmatprep.subr.bf16.mxu0 0
        %4466 = vmatpush1.bf16.msra.mxu0 %v4451
        %4467 = vmatprep.subr.bf16.mxu0 0
        %4468 = vmatpush1.bf16.msra.mxu0 0
        %4469 = vmatprep.subr.bf16.mxu0 0
        %4470 = vmatpush1.bf16.msra.mxu0 0
        %4471 = vmatprep.subr.bf16.mxu0 0
        %4472 = vmatpush1.bf16.msra.mxu0 0
        %4473 = vmatprep.subr.bf16.mxu0 0
        %4474 = vmatpush1.bf16.msra.mxu0 0
        %4475 = vmatprep.subr.bf16.mxu0 0
        %4476 = vmatpush1.bf16.msra.mxu0 0
        %4477 = vmatprep.subr.bf16.mxu0 0
        %4478 = vmatpush1.bf16.msra.mxu0 0
        %4479 = vmatprep.subr.bf16.mxu0 0
        %4480 = vmatpush1.bf16.msra.mxu0 0
        %4481 = vmatprep.subr.bf16.mxu0 0
        %4482 = vmatpush1.bf16.msra.mxu0 0
        %4483 = vmatprep.subr.bf16.mxu0 0
        %4484 = vmatpush1.bf16.msra.mxu0 0
        %4485 = vmatprep.subr.bf16.mxu0 0
        %4486 = vmatpush1.bf16.msra.mxu0 0
        %4487 = vmatprep.subr.bf16.mxu0 0
        %4488 = vmatpush1.bf16.msra.mxu0 0
        %4489 = vmatprep.subr.bf16.mxu0 0
        %4490 = vmatpush1.bf16.msra.mxu0 0
        %4491 = vmatprep.mubr.bf16.mxu0 0
        %4492 = vmatmul.mubr.bf16.gmra.mrb[0].mxu0 %v4457
        %v4493 = vpop.f32.mrb[0].mxu0
        %v4494 = vadd.f32 %v4431, %v4493
        %v4495 = vpop.f32.mrb[0].mxu0
        %v4496 = vpop.f32.mrb[0].mxu0
        %v4497 = vpop.f32.mrb[0].mxu0
        %4498 = vdwg.mxu0
        %v4499 = vadd.f32 %v4355, %v4494
        %v4500 = vsel %vm330, %v4499, 0.0
        %4501 = vadd.xlane.f32.xlu0 %v4500
        %v4502 = vpop.xlane.xlu0 %4501
        %v4503 = vmul.f32 %v4502, %v334
        %v4504 = vsub.f32 %v4499, %v4503
        %v4505 = vmul.f32 %v4504, %v4504
        %v4506 = vsel %vm330, %v4505, 0.0
        %4507 = vadd.xlane.f32.xlu0 %v4506
        %v4508 = vpop.xlane.xlu0 %4507
        %v4509 = vmul.f32 %v4508, %v334
        %v4510 = vadd.f32 %v4509, 1e-12
        %v4511 = vrsqrt.pop %v4510
        %v4512 = vmul.f32 %v4504, %v4511
        %v4513 = vlaneseq
        %v4514 = vshrl.u32 %v4513, 7
        %v4515 = vsub.s32 4, %v4514
        %v4516 = vrot.slane %v3702, %v4515
        %v4517 = vmul.f32 %v4512, %v4516
        %v4518 = vlaneseq
        %v4519 = vshrl.u32 %v4518, 7
        %v4520 = vsub.s32 5, %v4519
        %v4521 = vrot.slane %v3702, %v4520
        %v4522 = vadd.f32 %v4517, %v4521
        %s4523 = scalar_lea.vmem %s2, 80
        %v4524 = vld [vmem:[%s4523] sm:$0xf]
        %v4525 = vld [vmem:[%s4523 + $0x4] sm:$0xf]
        %v4526 = vld [vmem:[%s4523 + $0x8] sm:$0xf]
        %v4527 = vld [vmem:[%s4523 + $0xc] sm:$0xf]
        %s4528 = scalar_lea.vmem %s3, 5
        %v4529 = vld [vmem:[%s4528] sm:$0x1]
        %s4530 = scalar_lea.vmem %s4, 80
        %v4531 = vld [vmem:[%s4530] sm:$0xf]
        %v4532 = vld [vmem:[%s4530 + $0x4] sm:$0xf]
        %v4533 = vld [vmem:[%s4530 + $0x8] sm:$0xf]
        %v4534 = vld [vmem:[%s4530 + $0xc] sm:$0xf]
        %s4535 = scalar_lea.vmem %s5, 40
        %v4536 = vld [vmem:[%s4535] sm:$0x3f]
        %s4537 = scalar_lea.vmem %s6, 80
        %v4538 = vld [vmem:[%s4537] sm:$0xf]
        %v4539 = vld [vmem:[%s4537 + $0x4] sm:$0xf]
        %v4540 = vld [vmem:[%s4537 + $0x8] sm:$0xf]
        %v4541 = vld [vmem:[%s4537 + $0xc] sm:$0xf]
        %s4542 = scalar_lea.vmem %s7, 5
        %v4543 = vld [vmem:[%s4542] sm:$0x1]
        %s4544 = scalar_lea.vmem %s8, 160
        %v4545 = vld [vmem:[%s4544] sm:$0xf]
        %v4546 = vld [vmem:[%s4544 + $0x4] sm:$0xf]
        %v4547 = vld [vmem:[%s4544 + $0x8] sm:$0xf]
        %v4548 = vld [vmem:[%s4544 + $0xc] sm:$0xf]
        %v4549 = vld [vmem:[%s4544 + $0x10] sm:$0xf]
        %v4550 = vld [vmem:[%s4544 + $0x14] sm:$0xf]
        %v4551 = vld [vmem:[%s4544 + $0x18] sm:$0xf]
        %v4552 = vld [vmem:[%s4544 + $0x1c] sm:$0xf]
        %v4553 = vpack.c.bf16 %v4522, %v4522
        %v4555 = vlaneseq
        %v4556 = vshrl.u32 %v4555, 7
        %v4557 = vsub.s32 0, %v4556
        %v4558 = vrot.slane %v4529, %v4557
        %v4564 = vunpack.c.l.b16 %v4524
        %v4565 = vunpack.c.l.b16 %v4525
        %v4566 = vunpack.c.l.b16 %v4526
        %v4567 = vunpack.c.l.b16 %v4527
        %v4568 = vpack.c.b16 %v4565, %v4564
        %v4569 = vpack.c.b16 %v4567, %v4566
        %v4573 = vsel %vm330, %v4553, 0
        %4575 = vmatprep.subr.bf16.mxu0 0
        %4576 = vmatpush1.bf16.msra.mxu0 %v4568
        %4577 = vmatprep.subr.bf16.mxu0 0
        %4578 = vmatpush1.bf16.msra.mxu0 %v4569
        %4579 = vmatprep.subr.bf16.mxu0 0
        %4580 = vmatpush1.bf16.msra.mxu0 0
        %4581 = vmatprep.subr.bf16.mxu0 0
        %4582 = vmatpush1.bf16.msra.mxu0 0
        %4583 = vmatprep.subr.bf16.mxu0 0
        %4584 = vmatpush1.bf16.msra.mxu0 0
        %4585 = vmatprep.subr.bf16.mxu0 0
        %4586 = vmatpush1.bf16.msra.mxu0 0
        %4587 = vmatprep.subr.bf16.mxu0 0
        %4588 = vmatpush1.bf16.msra.mxu0 0
        %4589 = vmatprep.subr.bf16.mxu0 0
        %4590 = vmatpush1.bf16.msra.mxu0 0
        %4591 = vmatprep.subr.bf16.mxu0 0
        %4592 = vmatpush1.bf16.msra.mxu0 0
        %4593 = vmatprep.subr.bf16.mxu0 0
        %4594 = vmatpush1.bf16.msra.mxu0 0
        %4595 = vmatprep.subr.bf16.mxu0 0
        %4596 = vmatpush1.bf16.msra.mxu0 0
        %4597 = vmatprep.subr.bf16.mxu0 0
        %4598 = vmatpush1.bf16.msra.mxu0 0
        %4599 = vmatprep.subr.bf16.mxu0 0
        %4600 = vmatpush1.bf16.msra.mxu0 0
        %4601 = vmatprep.subr.bf16.mxu0 0
        %4602 = vmatpush1.bf16.msra.mxu0 0
        %4603 = vmatprep.subr.bf16.mxu0 0
        %4604 = vmatpush1.bf16.msra.mxu0 0
        %4605 = vmatprep.subr.bf16.mxu0 0
        %4606 = vmatpush1.bf16.msra.mxu0 0
        %4607 = vmatprep.mubr.bf16.mxu0 0
        %4608 = vmatmul.mubr.bf16.gmra.mrb[0].mxu0 %v4573
        %v4609 = vpop.f32.mrb[0].mxu0
        %v4610 = vadd.f32 %v4558, %v4609
        %v4611 = vpop.f32.mrb[0].mxu0
        %v4612 = vpop.f32.mrb[0].mxu0
        %v4613 = vpop.f32.mrb[0].mxu0
        %4614 = vdwg.mxu0
        %4616 = vrot.lane.b32.xlu0 %v4610, 96
        %v4617 = vpop.permute.xlu0 %4616
        %4619 = vxpose.xlu0.b32.start [1/16] %v4617, 128
        %4620 = vxpose.xlu0.b32.cont [2/16] 0.0, 128
        %4621 = vxpose.xlu0.b32.cont [3/16] 0.0, 128
        %4622 = vxpose.xlu0.b32.cont [4/16] 0.0, 128
        %4623 = vxpose.xlu0.b32.cont [5/16] 0.0, 128
        %4624 = vxpose.xlu0.b32.cont [6/16] 0.0, 128
        %4625 = vxpose.xlu0.b32.cont [7/16] 0.0, 128
        %4626 = vxpose.xlu0.b32.cont [8/16] 0.0, 128
        %4627 = vxpose.xlu0.b32.cont [9/16] 0.0, 128
        %4628 = vxpose.xlu0.b32.cont [10/16] 0.0, 128
        %4629 = vxpose.xlu0.b32.cont [11/16] 0.0, 128
        %4630 = vxpose.xlu0.b32.cont [12/16] 0.0, 128
        %4631 = vxpose.xlu0.b32.cont [13/16] 0.0, 128
        %4632 = vxpose.xlu0.b32.cont [14/16] 0.0, 128
        %4633 = vxpose.xlu0.b32.cont [15/16] 0.0, 128
        %4634 = vxpose.xlu0.b32.end [16/16] 0.0, 128
        %v4635 = vpop.trf.xlu0
        %v4636 = vpop.trf.xlu0
        %v4637 = vpop.trf.xlu0
        %v4638 = vpop.trf.xlu0
        %v4639 = vpop.trf.xlu0
        %v4640 = vpop.trf.xlu0
        %v4641 = vpop.trf.xlu0
        %v4642 = vpop.trf.xlu0
        %v4643 = vpop.trf.xlu0
        %v4644 = vpop.trf.xlu0
        %v4645 = vpop.trf.xlu0
        %v4646 = vpop.trf.xlu0
        %v4647 = vpop.trf.xlu0
        %v4648 = vpop.trf.xlu0
        %v4649 = vpop.trf.xlu0
        %v4650 = vpop.trf.xlu0
        %v4651 = vpack.c.bf16 %v4610, %v4610
        %v4652 = vpack.c.bf16 %v4635, %v4635
        %v4654 = vsel %vm478, %v4651, 0
        %v4657 = vsel %vm482, %v4652, 0
        %4659 = vmatprep.subr.bf16.mxu0 0
        %4660 = vmatpush1.bf16.msra.mxu0 %v4657
        %4661 = vmatprep.subr.bf16.mxu0 0
        %4662 = vmatpush1.bf16.msra.mxu0 0
        %4663 = vmatprep.subr.bf16.mxu0 0
        %4664 = vmatpush1.bf16.msra.mxu0 0
        %4665 = vmatprep.subr.bf16.mxu0 0
        %4666 = vmatpush1.bf16.msra.mxu0 0
        %4667 = vmatprep.subr.bf16.mxu0 0
        %4668 = vmatpush1.bf16.msra.mxu0 0
        %4669 = vmatprep.subr.bf16.mxu0 0
        %4670 = vmatpush1.bf16.msra.mxu0 0
        %4671 = vmatprep.subr.bf16.mxu0 0
        %4672 = vmatpush1.bf16.msra.mxu0 0
        %4673 = vmatprep.subr.bf16.mxu0 0
        %4674 = vmatpush1.bf16.msra.mxu0 0
        %4675 = vmatprep.subr.bf16.mxu0 0
        %4676 = vmatpush1.bf16.msra.mxu0 0
        %4677 = vmatprep.subr.bf16.mxu0 0
        %4678 = vmatpush1.bf16.msra.mxu0 0
        %4679 = vmatprep.subr.bf16.mxu0 0
        %4680 = vmatpush1.bf16.msra.mxu0 0
        %4681 = vmatprep.subr.bf16.mxu0 0
        %4682 = vmatpush1.bf16.msra.mxu0 0
        %4683 = vmatprep.subr.bf16.mxu0 0
        %4684 = vmatpush1.bf16.msra.mxu0 0
        %4685 = vmatprep.subr.bf16.mxu0 0
        %4686 = vmatpush1.bf16.msra.mxu0 0
        %4687 = vmatprep.subr.bf16.mxu0 0
        %4688 = vmatpush1.bf16.msra.mxu0 0
        %4689 = vmatprep.subr.bf16.mxu0 0
        %4690 = vmatpush1.bf16.msra.mxu0 0
        %4691 = vmatprep.mubr.bf16.mxu0 0
        %4692 = vmatmul.mubr.bf16.gmra.mrb[0].mxu0 %v4654
        %v4693 = vpop.f32.mrb[0].mxu0
        %v4694 = vadd.f32 0.0, %v4693
        %v4695 = vpop.f32.mrb[0].mxu0
        %v4696 = vpop.f32.mrb[0].mxu0
        %v4697 = vpop.f32.mrb[0].mxu0
        %4698 = vdwg.mxu0
        %v4699 = vmul.f32 %v4694, 0.35355338
        %v4700 = vsel %vm478, %v4699, -inf
        %4701 = vmax.xlane.f32.xlu0 %v4700
        %v4702 = vpop.xlane.xlu0 %4701
        %v4703 = vsub.f32 %v4699, %v4702
        %v4704 = vmul.f32 %v4703, 1.442695
        %v4705 = vpow.pop %v4704
        %v4706 = vsel %vm478, %v4705, 0.0
        %4707 = vadd.xlane.f32.xlu0 %v4706
        %v4708 = vpop.xlane.xlu0 %4707
        %v4709 = vrcp.pop %v4708
        %v4710 = vmul.f32 %v4705, %v4709
        %v4711 = vpack.c.bf16 %v4710, %v4710
        %4713 = vrot.lane.b32.xlu0 %v4651, 64
        %v4714 = vpop.permute.xlu0 %4713
        %v4716 = vsel %vm478, %v4711, 0
        %v4719 = vsel %vm482, %v4714, 0
        %4721 = vmatprep.subr.bf16.mxu0 0
        %4722 = vmatpush1.bf16.msra.mxu0 %v4719
        %4723 = vmatprep.subr.bf16.mxu0 0
        %4724 = vmatpush1.bf16.msra.mxu0 0
        %4725 = vmatprep.subr.bf16.mxu0 0
        %4726 = vmatpush1.bf16.msra.mxu0 0
        %4727 = vmatprep.subr.bf16.mxu0 0
        %4728 = vmatpush1.bf16.msra.mxu0 0
        %4729 = vmatprep.subr.bf16.mxu0 0
        %4730 = vmatpush1.bf16.msra.mxu0 0
        %4731 = vmatprep.subr.bf16.mxu0 0
        %4732 = vmatpush1.bf16.msra.mxu0 0
        %4733 = vmatprep.subr.bf16.mxu0 0
        %4734 = vmatpush1.bf16.msra.mxu0 0
        %4735 = vmatprep.subr.bf16.mxu0 0
        %4736 = vmatpush1.bf16.msra.mxu0 0
        %4737 = vmatprep.subr.bf16.mxu0 0
        %4738 = vmatpush1.bf16.msra.mxu0 0
        %4739 = vmatprep.subr.bf16.mxu0 0
        %4740 = vmatpush1.bf16.msra.mxu0 0
        %4741 = vmatprep.subr.bf16.mxu0 0
        %4742 = vmatpush1.bf16.msra.mxu0 0
        %4743 = vmatprep.subr.bf16.mxu0 0
        %4744 = vmatpush1.bf16.msra.mxu0 0
        %4745 = vmatprep.subr.bf16.mxu0 0
        %4746 = vmatpush1.bf16.msra.mxu0 0
        %4747 = vmatprep.subr.bf16.mxu0 0
        %4748 = vmatpush1.bf16.msra.mxu0 0
        %4749 = vmatprep.subr.bf16.mxu0 0
        %4750 = vmatpush1.bf16.msra.mxu0 0
        %4751 = vmatprep.subr.bf16.mxu0 0
        %4752 = vmatpush1.bf16.msra.mxu0 0
        %4753 = vmatprep.mubr.bf16.mxu0 0
        %4754 = vmatmul.mubr.bf16.gmra.mrb[0].mxu0 %v4716
        %v4755 = vpop.f32.mrb[0].mxu0
        %v4756 = vadd.f32 0.0, %v4755
        %v4757 = vpop.f32.mrb[0].mxu0
        %v4758 = vpop.f32.mrb[0].mxu0
        %v4759 = vpop.f32.mrb[0].mxu0
        %4760 = vdwg.mxu0
        %v4761 = vpack.c.bf16 %v4636, %v4636
        %4762 = vrot.lane.b32.xlu0 %v4651, 120
        %v4763 = vpop.permute.xlu0 %4762
        %v4765 = vsel %vm478, %v4763, 0
        %v4768 = vsel %vm482, %v4761, 0
        %4770 = vmatprep.subr.bf16.mxu0 0
        %4771 = vmatpush1.bf16.msra.mxu0 %v4768
        %4772 = vmatprep.subr.bf16.mxu0 0
        %4773 = vmatpush1.bf16.msra.mxu0 0
        %4774 = vmatprep.subr.bf16.mxu0 0
        %4775 = vmatpush1.bf16.msra.mxu0 0
        %4776 = vmatprep.subr.bf16.mxu0 0
        %4777 = vmatpush1.bf16.msra.mxu0 0
        %4778 = vmatprep.subr.bf16.mxu0 0
        %4779 = vmatpush1.bf16.msra.mxu0 0
        %4780 = vmatprep.subr.bf16.mxu0 0
        %4781 = vmatpush1.bf16.msra.mxu0 0
        %4782 = vmatprep.subr.bf16.mxu0 0
        %4783 = vmatpush1.bf16.msra.mxu0 0
        %4784 = vmatprep.subr.bf16.mxu0 0
        %4785 = vmatpush1.bf16.msra.mxu0 0
        %4786 = vmatprep.subr.bf16.mxu0 0
        %4787 = vmatpush1.bf16.msra.mxu0 0
        %4788 = vmatprep.subr.bf16.mxu0 0
        %4789 = vmatpush1.bf16.msra.mxu0 0
        %4790 = vmatprep.subr.bf16.mxu0 0
        %4791 = vmatpush1.bf16.msra.mxu0 0
        %4792 = vmatprep.subr.bf16.mxu0 0
        %4793 = vmatpush1.bf16.msra.mxu0 0
        %4794 = vmatprep.subr.bf16.mxu0 0
        %4795 = vmatpush1.bf16.msra.mxu0 0
        %4796 = vmatprep.subr.bf16.mxu0 0
        %4797 = vmatpush1.bf16.msra.mxu0 0
        %4798 = vmatprep.subr.bf16.mxu0 0
        %4799 = vmatpush1.bf16.msra.mxu0 0
        %4800 = vmatprep.subr.bf16.mxu0 0
        %4801 = vmatpush1.bf16.msra.mxu0 0
        %4802 = vmatprep.mubr.bf16.mxu0 0
        %4803 = vmatmul.mubr.bf16.gmra.mrb[0].mxu0 %v4765
        %v4804 = vpop.f32.mrb[0].mxu0
        %v4805 = vadd.f32 0.0, %v4804
        %v4806 = vpop.f32.mrb[0].mxu0
        %v4807 = vpop.f32.mrb[0].mxu0
        %v4808 = vpop.f32.mrb[0].mxu0
        %4809 = vdwg.mxu0
        %v4810 = vmul.f32 %v4805, 0.35355338
        %v4811 = vsel %vm478, %v4810, -inf
        %4812 = vmax.xlane.f32.xlu0 %v4811
        %v4813 = vpop.xlane.xlu0 %4812
        %v4814 = vsub.f32 %v4810, %v4813
        %v4815 = vmul.f32 %v4814, 1.442695
        %v4816 = vpow.pop %v4815
        %v4817 = vsel %vm478, %v4816, 0.0
        %4818 = vadd.xlane.f32.xlu0 %v4817
        %v4819 = vpop.xlane.xlu0 %4818
        %v4820 = vrcp.pop %v4819
        %v4821 = vmul.f32 %v4816, %v4820
        %v4822 = vpack.c.bf16 %v4821, %v4821
        %4823 = vrot.lane.b32.xlu0 %v4651, 56
        %v4824 = vpop.permute.xlu0 %4823
        %v4826 = vsel %vm478, %v4822, 0
        %v4829 = vsel %vm482, %v4824, 0
        %4831 = vmatprep.subr.bf16.mxu0 0
        %4832 = vmatpush1.bf16.msra.mxu0 %v4829
        %4833 = vmatprep.subr.bf16.mxu0 0
        %4834 = vmatpush1.bf16.msra.mxu0 0
        %4835 = vmatprep.subr.bf16.mxu0 0
        %4836 = vmatpush1.bf16.msra.mxu0 0
        %4837 = vmatprep.subr.bf16.mxu0 0
        %4838 = vmatpush1.bf16.msra.mxu0 0
        %4839 = vmatprep.subr.bf16.mxu0 0
        %4840 = vmatpush1.bf16.msra.mxu0 0
        %4841 = vmatprep.subr.bf16.mxu0 0
        %4842 = vmatpush1.bf16.msra.mxu0 0
        %4843 = vmatprep.subr.bf16.mxu0 0
        %4844 = vmatpush1.bf16.msra.mxu0 0
        %4845 = vmatprep.subr.bf16.mxu0 0
        %4846 = vmatpush1.bf16.msra.mxu0 0
        %4847 = vmatprep.subr.bf16.mxu0 0
        %4848 = vmatpush1.bf16.msra.mxu0 0
        %4849 = vmatprep.subr.bf16.mxu0 0
        %4850 = vmatpush1.bf16.msra.mxu0 0
        %4851 = vmatprep.subr.bf16.mxu0 0
        %4852 = vmatpush1.bf16.msra.mxu0 0
        %4853 = vmatprep.subr.bf16.mxu0 0
        %4854 = vmatpush1.bf16.msra.mxu0 0
        %4855 = vmatprep.subr.bf16.mxu0 0
        %4856 = vmatpush1.bf16.msra.mxu0 0
        %4857 = vmatprep.subr.bf16.mxu0 0
        %4858 = vmatpush1.bf16.msra.mxu0 0
        %4859 = vmatprep.subr.bf16.mxu0 0
        %4860 = vmatpush1.bf16.msra.mxu0 0
        %4861 = vmatprep.subr.bf16.mxu0 0
        %4862 = vmatpush1.bf16.msra.mxu0 0
        %4863 = vmatprep.mubr.bf16.mxu0 0
        %4864 = vmatmul.mubr.bf16.gmra.mrb[0].mxu0 %v4826
        %v4865 = vpop.f32.mrb[0].mxu0
        %v4866 = vadd.f32 0.0, %v4865
        %v4867 = vpop.f32.mrb[0].mxu0
        %v4868 = vpop.f32.mrb[0].mxu0
        %v4869 = vpop.f32.mrb[0].mxu0
        %4870 = vdwg.mxu0
        %v4871 = vpack.c.bf16 %v4637, %v4637
        %4872 = vrot.lane.b32.xlu0 %v4651, 112
        %v4873 = vpop.permute.xlu0 %4872
        %v4875 = vsel %vm478, %v4873, 0
        %v4878 = vsel %vm482, %v4871, 0
        %4880 = vmatprep.subr.bf16.mxu0 0
        %4881 = vmatpush1.bf16.msra.mxu0 %v4878
        %4882 = vmatprep.subr.bf16.mxu0 0
        %4883 = vmatpush1.bf16.msra.mxu0 0
        %4884 = vmatprep.subr.bf16.mxu0 0
        %4885 = vmatpush1.bf16.msra.mxu0 0
        %4886 = vmatprep.subr.bf16.mxu0 0
        %4887 = vmatpush1.bf16.msra.mxu0 0
        %4888 = vmatprep.subr.bf16.mxu0 0
        %4889 = vmatpush1.bf16.msra.mxu0 0
        %4890 = vmatprep.subr.bf16.mxu0 0
        %4891 = vmatpush1.bf16.msra.mxu0 0
        %4892 = vmatprep.subr.bf16.mxu0 0
        %4893 = vmatpush1.bf16.msra.mxu0 0
        %4894 = vmatprep.subr.bf16.mxu0 0
        %4895 = vmatpush1.bf16.msra.mxu0 0
        %4896 = vmatprep.subr.bf16.mxu0 0
        %4897 = vmatpush1.bf16.msra.mxu0 0
        %4898 = vmatprep.subr.bf16.mxu0 0
        %4899 = vmatpush1.bf16.msra.mxu0 0
        %4900 = vmatprep.subr.bf16.mxu0 0
        %4901 = vmatpush1.bf16.msra.mxu0 0
        %4902 = vmatprep.subr.bf16.mxu0 0
        %4903 = vmatpush1.bf16.msra.mxu0 0
        %4904 = vmatprep.subr.bf16.mxu0 0
        %4905 = vmatpush1.bf16.msra.mxu0 0
        %4906 = vmatprep.subr.bf16.mxu0 0
        %4907 = vmatpush1.bf16.msra.mxu0 0
        %4908 = vmatprep.subr.bf16.mxu0 0
        %4909 = vmatpush1.bf16.msra.mxu0 0
        %4910 = vmatprep.subr.bf16.mxu0 0
        %4911 = vmatpush1.bf16.msra.mxu0 0
        %4912 = vmatprep.mubr.bf16.mxu0 0
        %4913 = vmatmul.mubr.bf16.gmra.mrb[0].mxu0 %v4875
        %v4914 = vpop.f32.mrb[0].mxu0
        %v4915 = vadd.f32 0.0, %v4914
        %v4916 = vpop.f32.mrb[0].mxu0
        %v4917 = vpop.f32.mrb[0].mxu0
        %v4918 = vpop.f32.mrb[0].mxu0
        %4919 = vdwg.mxu0
        %v4920 = vmul.f32 %v4915, 0.35355338
        %v4921 = vsel %vm478, %v4920, -inf
        %4922 = vmax.xlane.f32.xlu0 %v4921
        %v4923 = vpop.xlane.xlu0 %4922
        %v4924 = vsub.f32 %v4920, %v4923
        %v4925 = vmul.f32 %v4924, 1.442695
        %v4926 = vpow.pop %v4925
        %v4927 = vsel %vm478, %v4926, 0.0
        %4928 = vadd.xlane.f32.xlu0 %v4927
        %v4929 = vpop.xlane.xlu0 %4928
        %v4930 = vrcp.pop %v4929
        %v4931 = vmul.f32 %v4926, %v4930
        %v4932 = vpack.c.bf16 %v4931, %v4931
        %4933 = vrot.lane.b32.xlu0 %v4651, 48
        %v4934 = vpop.permute.xlu0 %4933
        %v4936 = vsel %vm478, %v4932, 0
        %v4939 = vsel %vm482, %v4934, 0
        %4941 = vmatprep.subr.bf16.mxu0 0
        %4942 = vmatpush1.bf16.msra.mxu0 %v4939
        %4943 = vmatprep.subr.bf16.mxu0 0
        %4944 = vmatpush1.bf16.msra.mxu0 0
        %4945 = vmatprep.subr.bf16.mxu0 0
        %4946 = vmatpush1.bf16.msra.mxu0 0
        %4947 = vmatprep.subr.bf16.mxu0 0
        %4948 = vmatpush1.bf16.msra.mxu0 0
        %4949 = vmatprep.subr.bf16.mxu0 0
        %4950 = vmatpush1.bf16.msra.mxu0 0
        %4951 = vmatprep.subr.bf16.mxu0 0
        %4952 = vmatpush1.bf16.msra.mxu0 0
        %4953 = vmatprep.subr.bf16.mxu0 0
        %4954 = vmatpush1.bf16.msra.mxu0 0
        %4955 = vmatprep.subr.bf16.mxu0 0
        %4956 = vmatpush1.bf16.msra.mxu0 0
        %4957 = vmatprep.subr.bf16.mxu0 0
        %4958 = vmatpush1.bf16.msra.mxu0 0
        %4959 = vmatprep.subr.bf16.mxu0 0
        %4960 = vmatpush1.bf16.msra.mxu0 0
        %4961 = vmatprep.subr.bf16.mxu0 0
        %4962 = vmatpush1.bf16.msra.mxu0 0
        %4963 = vmatprep.subr.bf16.mxu0 0
        %4964 = vmatpush1.bf16.msra.mxu0 0
        %4965 = vmatprep.subr.bf16.mxu0 0
        %4966 = vmatpush1.bf16.msra.mxu0 0
        %4967 = vmatprep.subr.bf16.mxu0 0
        %4968 = vmatpush1.bf16.msra.mxu0 0
        %4969 = vmatprep.subr.bf16.mxu0 0
        %4970 = vmatpush1.bf16.msra.mxu0 0
        %4971 = vmatprep.subr.bf16.mxu0 0
        %4972 = vmatpush1.bf16.msra.mxu0 0
        %4973 = vmatprep.mubr.bf16.mxu0 0
        %4974 = vmatmul.mubr.bf16.gmra.mrb[0].mxu0 %v4936
        %v4975 = vpop.f32.mrb[0].mxu0
        %v4976 = vadd.f32 0.0, %v4975
        %v4977 = vpop.f32.mrb[0].mxu0
        %v4978 = vpop.f32.mrb[0].mxu0
        %v4979 = vpop.f32.mrb[0].mxu0
        %4980 = vdwg.mxu0
        %v4981 = vpack.c.bf16 %v4638, %v4638
        %4982 = vrot.lane.b32.xlu0 %v4651, 104
        %v4983 = vpop.permute.xlu0 %4982
        %v4985 = vsel %vm478, %v4983, 0
        %v4988 = vsel %vm482, %v4981, 0
        %4990 = vmatprep.subr.bf16.mxu0 0
        %4991 = vmatpush1.bf16.msra.mxu0 %v4988
        %4992 = vmatprep.subr.bf16.mxu0 0
        %4993 = vmatpush1.bf16.msra.mxu0 0
        %4994 = vmatprep.subr.bf16.mxu0 0
        %4995 = vmatpush1.bf16.msra.mxu0 0
        %4996 = vmatprep.subr.bf16.mxu0 0
        %4997 = vmatpush1.bf16.msra.mxu0 0
        %4998 = vmatprep.subr.bf16.mxu0 0
        %4999 = vmatpush1.bf16.msra.mxu0 0
        %5000 = vmatprep.subr.bf16.mxu0 0
        %5001 = vmatpush1.bf16.msra.mxu0 0
        %5002 = vmatprep.subr.bf16.mxu0 0
        %5003 = vmatpush1.bf16.msra.mxu0 0
        %5004 = vmatprep.subr.bf16.mxu0 0
        %5005 = vmatpush1.bf16.msra.mxu0 0
        %5006 = vmatprep.subr.bf16.mxu0 0
        %5007 = vmatpush1.bf16.msra.mxu0 0
        %5008 = vmatprep.subr.bf16.mxu0 0
        %5009 = vmatpush1.bf16.msra.mxu0 0
        %5010 = vmatprep.subr.bf16.mxu0 0
        %5011 = vmatpush1.bf16.msra.mxu0 0
        %5012 = vmatprep.subr.bf16.mxu0 0
        %5013 = vmatpush1.bf16.msra.mxu0 0
        %5014 = vmatprep.subr.bf16.mxu0 0
        %5015 = vmatpush1.bf16.msra.mxu0 0
        %5016 = vmatprep.subr.bf16.mxu0 0
        %5017 = vmatpush1.bf16.msra.mxu0 0
        %5018 = vmatprep.subr.bf16.mxu0 0
        %5019 = vmatpush1.bf16.msra.mxu0 0
        %5020 = vmatprep.subr.bf16.mxu0 0
        %5021 = vmatpush1.bf16.msra.mxu0 0
        %5022 = vmatprep.mubr.bf16.mxu0 0
        %5023 = vmatmul.mubr.bf16.gmra.mrb[0].mxu0 %v4985
        %v5024 = vpop.f32.mrb[0].mxu0
        %v5025 = vadd.f32 0.0, %v5024
        %v5026 = vpop.f32.mrb[0].mxu0
        %v5027 = vpop.f32.mrb[0].mxu0
        %v5028 = vpop.f32.mrb[0].mxu0
        %5029 = vdwg.mxu0
        %v5030 = vmul.f32 %v5025, 0.35355338
        %v5031 = vsel %vm478, %v5030, -inf
        %5032 = vmax.xlane.f32.xlu0 %v5031
        %v5033 = vpop.xlane.xlu0 %5032
        %v5034 = vsub.f32 %v5030, %v5033
        %v5035 = vmul.f32 %v5034, 1.442695
        %v5036 = vpow.pop %v5035
        %v5037 = vsel %vm478, %v5036, 0.0
        %5038 = vadd.xlane.f32.xlu0 %v5037
        %v5039 = vpop.xlane.xlu0 %5038
        %v5040 = vrcp.pop %v5039
        %v5041 = vmul.f32 %v5036, %v5040
        %v5042 = vpack.c.bf16 %v5041, %v5041
        %5043 = vrot.lane.b32.xlu0 %v4651, 40
        %v5044 = vpop.permute.xlu0 %5043
        %v5046 = vsel %vm478, %v5042, 0
        %v5049 = vsel %vm482, %v5044, 0
        %5051 = vmatprep.subr.bf16.mxu0 0
        %5052 = vmatpush1.bf16.msra.mxu0 %v5049
        %5053 = vmatprep.subr.bf16.mxu0 0
        %5054 = vmatpush1.bf16.msra.mxu0 0
        %5055 = vmatprep.subr.bf16.mxu0 0
        %5056 = vmatpush1.bf16.msra.mxu0 0
        %5057 = vmatprep.subr.bf16.mxu0 0
        %5058 = vmatpush1.bf16.msra.mxu0 0
        %5059 = vmatprep.subr.bf16.mxu0 0
        %5060 = vmatpush1.bf16.msra.mxu0 0
        %5061 = vmatprep.subr.bf16.mxu0 0
        %5062 = vmatpush1.bf16.msra.mxu0 0
        %5063 = vmatprep.subr.bf16.mxu0 0
        %5064 = vmatpush1.bf16.msra.mxu0 0
        %5065 = vmatprep.subr.bf16.mxu0 0
        %5066 = vmatpush1.bf16.msra.mxu0 0
        %5067 = vmatprep.subr.bf16.mxu0 0
        %5068 = vmatpush1.bf16.msra.mxu0 0
        %5069 = vmatprep.subr.bf16.mxu0 0
        %5070 = vmatpush1.bf16.msra.mxu0 0
        %5071 = vmatprep.subr.bf16.mxu0 0
        %5072 = vmatpush1.bf16.msra.mxu0 0
        %5073 = vmatprep.subr.bf16.mxu0 0
        %5074 = vmatpush1.bf16.msra.mxu0 0
        %5075 = vmatprep.subr.bf16.mxu0 0
        %5076 = vmatpush1.bf16.msra.mxu0 0
        %5077 = vmatprep.subr.bf16.mxu0 0
        %5078 = vmatpush1.bf16.msra.mxu0 0
        %5079 = vmatprep.subr.bf16.mxu0 0
        %5080 = vmatpush1.bf16.msra.mxu0 0
        %5081 = vmatprep.subr.bf16.mxu0 0
        %5082 = vmatpush1.bf16.msra.mxu0 0
        %5083 = vmatprep.mubr.bf16.mxu0 0
        %5084 = vmatmul.mubr.bf16.gmra.mrb[0].mxu0 %v5046
        %v5085 = vpop.f32.mrb[0].mxu0
        %v5086 = vadd.f32 0.0, %v5085
        %v5087 = vpop.f32.mrb[0].mxu0
        %v5088 = vpop.f32.mrb[0].mxu0
        %v5089 = vpop.f32.mrb[0].mxu0
        %5090 = vdwg.mxu0
        %5092 = vrot.lane.b32.xlu0 %v4866, 8
        %v5093 = vpop.permute.xlu0 %5092
        %5096 = vrot.lane.b32.xlu0 %v4976, 16
        %v5097 = vpop.permute.xlu0 %5096
        %5100 = vrot.lane.b32.xlu0 %v5086, 24
        %v5101 = vpop.permute.xlu0 %5100
        %v5103 = vsel %vm478, %v4756, %v5093
        %v5104 = vsel %vm931, %v5103, %v5097
        %v5105 = vsel %vm933, %v5104, %v5101
        %v5106 = vpack.c.bf16 %v5105, %v5105
        %v5107 = vlaneseq
        %v5108 = vshrl.u32 %v5107, 7
        %v5109 = vsub.s32 0, %v5108
        %v5110 = vrot.slane %v4536, %v5109
        %v5115 = vunpack.c.l.b16 %v4531
        %v5116 = vunpack.c.l.b16 %v4532
        %v5117 = vunpack.c.l.b16 %v4533
        %v5118 = vunpack.c.l.b16 %v4534
        %v5119 = vpack.c.b16 %v5116, %v5115
        %v5120 = vpack.c.b16 %v5118, %v5117
        %v5124 = vsel %vm330, %v5106, 0
        %5126 = vmatprep.subr.bf16.mxu0 0
        %5127 = vmatpush1.bf16.msra.mxu0 %v5119
        %5128 = vmatprep.subr.bf16.mxu0 0
        %5129 = vmatpush1.bf16.msra.mxu0 %v5120
        %5130 = vmatprep.subr.bf16.mxu0 0
        %5131 = vmatpush1.bf16.msra.mxu0 0
        %5132 = vmatprep.subr.bf16.mxu0 0
        %5133 = vmatpush1.bf16.msra.mxu0 0
        %5134 = vmatprep.subr.bf16.mxu0 0
        %5135 = vmatpush1.bf16.msra.mxu0 0
        %5136 = vmatprep.subr.bf16.mxu0 0
        %5137 = vmatpush1.bf16.msra.mxu0 0
        %5138 = vmatprep.subr.bf16.mxu0 0
        %5139 = vmatpush1.bf16.msra.mxu0 0
        %5140 = vmatprep.subr.bf16.mxu0 0
        %5141 = vmatpush1.bf16.msra.mxu0 0
        %5142 = vmatprep.subr.bf16.mxu0 0
        %5143 = vmatpush1.bf16.msra.mxu0 0
        %5144 = vmatprep.subr.bf16.mxu0 0
        %5145 = vmatpush1.bf16.msra.mxu0 0
        %5146 = vmatprep.subr.bf16.mxu0 0
        %5147 = vmatpush1.bf16.msra.mxu0 0
        %5148 = vmatprep.subr.bf16.mxu0 0
        %5149 = vmatpush1.bf16.msra.mxu0 0
        %5150 = vmatprep.subr.bf16.mxu0 0
        %5151 = vmatpush1.bf16.msra.mxu0 0
        %5152 = vmatprep.subr.bf16.mxu0 0
        %5153 = vmatpush1.bf16.msra.mxu0 0
        %5154 = vmatprep.subr.bf16.mxu0 0
        %5155 = vmatpush1.bf16.msra.mxu0 0
        %5156 = vmatprep.subr.bf16.mxu0 0
        %5157 = vmatpush1.bf16.msra.mxu0 0
        %5158 = vmatprep.mubr.bf16.mxu0 0
        %5159 = vmatmul.mubr.bf16.gmra.mrb[0].mxu0 %v5124
        %v5160 = vpop.f32.mrb[0].mxu0
        %v5161 = vadd.f32 %v5110, %v5160
        %v5162 = vpop.f32.mrb[0].mxu0
        %v5163 = vpop.f32.mrb[0].mxu0
        %v5164 = vpop.f32.mrb[0].mxu0
        %5165 = vdwg.mxu0
        %v5166 = vadd.f32 %v4522, %v5161
        %v5167 = vsel %vm330, %v5166, 0.0
        %5168 = vadd.xlane.f32.xlu0 %v5167
        %v5169 = vpop.xlane.xlu0 %5168
        %v5170 = vmul.f32 %v5169, %v334
        %v5171 = vsub.f32 %v5166, %v5170
        %v5172 = vmul.f32 %v5171, %v5171
        %v5173 = vsel %vm330, %v5172, 0.0
        %5174 = vadd.xlane.f32.xlu0 %v5173
        %v5175 = vpop.xlane.xlu0 %5174
        %v5176 = vmul.f32 %v5175, %v334
        %v5177 = vadd.f32 %v5176, 1e-12
        %v5178 = vrsqrt.pop %v5177
        %v5179 = vmul.f32 %v5171, %v5178
        %v5180 = vlaneseq
        %v5181 = vshrl.u32 %v5180, 7
        %v5182 = vsub.s32 1, %v5181
        %v5183 = vrot.slane %v4536, %v5182
        %v5184 = vmul.f32 %v5179, %v5183
        %v5185 = vlaneseq
        %v5186 = vshrl.u32 %v5185, 7
        %v5187 = vsub.s32 2, %v5186
        %v5188 = vrot.slane %v4536, %v5187
        %v5189 = vadd.f32 %v5184, %v5188
        %v5190 = vpack.c.bf16 %v5189, %v5189
        %v5192 = vlaneseq
        %v5193 = vshrl.u32 %v5192, 7
        %v5194 = vsub.s32 0, %v5193
        %v5195 = vrot.slane %v4543, %v5194
        %v5201 = vunpack.c.l.b16 %v4538
        %v5202 = vunpack.c.l.b16 %v4539
        %v5203 = vunpack.c.l.b16 %v4540
        %v5204 = vunpack.c.l.b16 %v4541
        %v5205 = vpack.c.b16 %v5202, %v5201
        %v5206 = vpack.c.b16 %v5204, %v5203
        %v5210 = vsel %vm330, %v5190, 0
        %5212 = vmatprep.subr.bf16.mxu0 0
        %5213 = vmatpush1.bf16.msra.mxu0 %v5205
        %5214 = vmatprep.subr.bf16.mxu0 0
        %5215 = vmatpush1.bf16.msra.mxu0 %v5206
        %5216 = vmatprep.subr.bf16.mxu0 0
        %5217 = vmatpush1.bf16.msra.mxu0 0
        %5218 = vmatprep.subr.bf16.mxu0 0
        %5219 = vmatpush1.bf16.msra.mxu0 0
        %5220 = vmatprep.subr.bf16.mxu0 0
        %5221 = vmatpush1.bf16.msra.mxu0 0
        %5222 = vmatprep.subr.bf16.mxu0 0
        %5223 = vmatpush1.bf16.msra.mxu0 0
        %5224 = vmatprep.subr.bf16.mxu0 0
        %5225 = vmatpush1.bf16.msra.mxu0 0
        %5226 = vmatprep.subr.bf16.mxu0 0
        %5227 = vmatpush1.bf16.msra.mxu0 0
        %5228 = vmatprep.subr.bf16.mxu0 0
        %5229 = vmatpush1.bf16.msra.mxu0 0
        %5230 = vmatprep.subr.bf16.mxu0 0
        %5231 = vmatpush1.bf16.msra.mxu0 0
        %5232 = vmatprep.subr.bf16.mxu0 0
        %5233 = vmatpush1.bf16.msra.mxu0 0
        %5234 = vmatprep.subr.bf16.mxu0 0
        %5235 = vmatpush1.bf16.msra.mxu0 0
        %5236 = vmatprep.subr.bf16.mxu0 0
        %5237 = vmatpush1.bf16.msra.mxu0 0
        %5238 = vmatprep.subr.bf16.mxu0 0
        %5239 = vmatpush1.bf16.msra.mxu0 0
        %5240 = vmatprep.subr.bf16.mxu0 0
        %5241 = vmatpush1.bf16.msra.mxu0 0
        %5242 = vmatprep.subr.bf16.mxu0 0
        %5243 = vmatpush1.bf16.msra.mxu0 0
        %5244 = vmatprep.mubr.bf16.mxu0 0
        %5245 = vmatmul.mubr.bf16.gmra.mrb[0].mxu0 %v5210
        %v5246 = vpop.f32.mrb[0].mxu0
        %v5247 = vadd.f32 %v5195, %v5246
        %v5248 = vpop.f32.mrb[0].mxu0
        %v5249 = vpop.f32.mrb[0].mxu0
        %v5250 = vpop.f32.mrb[0].mxu0
        %5251 = vdwg.mxu0
        %v5252 = vmul.f32 %v5247, 0.5
        %v5253 = vmul.f32 %v5247, 0.044715
        %v5254 = vmul.f32 %v5253, %v5247
        %v5255 = vmul.f32 %v5254, %v5247
        %v5256 = vadd.f32 %v5247, %v5255
        %v5257 = vmul.f32 %v5256, 0.7978846
        %v5258 = vtanh.pop %v5257
        %v5259 = vadd.f32 %v5258, 1.0
        %v5260 = vmul.f32 %v5252, %v5259
        %v5261 = vpack.c.bf16 %v5260, %v5260
        %v5262 = vlaneseq
        %v5263 = vshrl.u32 %v5262, 7
        %v5264 = vsub.s32 3, %v5263
        %v5265 = vrot.slane %v4536, %v5264
        %v5274 = vunpack.c.l.b16 %v4545
        %v5275 = vunpack.c.l.b16 %v4546
        %v5276 = vunpack.c.l.b16 %v4547
        %v5277 = vunpack.c.l.b16 %v4548
        %v5278 = vunpack.c.l.b16 %v4549
        %v5279 = vunpack.c.l.b16 %v4550
        %v5280 = vunpack.c.l.b16 %v4551
        %v5281 = vunpack.c.l.b16 %v4552
        %v5282 = vpack.c.b16 %v5275, %v5274
        %v5283 = vpack.c.b16 %v5277, %v5276
        %v5284 = vpack.c.b16 %v5279, %v5278
        %v5285 = vpack.c.b16 %v5281, %v5280
        %v5291 = vsel %vm1119, %v5261, 0
        %5293 = vmatprep.subr.bf16.mxu0 0
        %5294 = vmatpush1.bf16.msra.mxu0 %v5282
        %5295 = vmatprep.subr.bf16.mxu0 0
        %5296 = vmatpush1.bf16.msra.mxu0 %v5283
        %5297 = vmatprep.subr.bf16.mxu0 0
        %5298 = vmatpush1.bf16.msra.mxu0 %v5284
        %5299 = vmatprep.subr.bf16.mxu0 0
        %5300 = vmatpush1.bf16.msra.mxu0 %v5285
        %5301 = vmatprep.subr.bf16.mxu0 0
        %5302 = vmatpush1.bf16.msra.mxu0 0
        %5303 = vmatprep.subr.bf16.mxu0 0
        %5304 = vmatpush1.bf16.msra.mxu0 0
        %5305 = vmatprep.subr.bf16.mxu0 0
        %5306 = vmatpush1.bf16.msra.mxu0 0
        %5307 = vmatprep.subr.bf16.mxu0 0
        %5308 = vmatpush1.bf16.msra.mxu0 0
        %5309 = vmatprep.subr.bf16.mxu0 0
        %5310 = vmatpush1.bf16.msra.mxu0 0
        %5311 = vmatprep.subr.bf16.mxu0 0
        %5312 = vmatpush1.bf16.msra.mxu0 0
        %5313 = vmatprep.subr.bf16.mxu0 0
        %5314 = vmatpush1.bf16.msra.mxu0 0
        %5315 = vmatprep.subr.bf16.mxu0 0
        %5316 = vmatpush1.bf16.msra.mxu0 0
        %5317 = vmatprep.subr.bf16.mxu0 0
        %5318 = vmatpush1.bf16.msra.mxu0 0
        %5319 = vmatprep.subr.bf16.mxu0 0
        %5320 = vmatpush1.bf16.msra.mxu0 0
        %5321 = vmatprep.subr.bf16.mxu0 0
        %5322 = vmatpush1.bf16.msra.mxu0 0
        %5323 = vmatprep.subr.bf16.mxu0 0
        %5324 = vmatpush1.bf16.msra.mxu0 0
        %5325 = vmatprep.mubr.bf16.mxu0 0
        %5326 = vmatmul.mubr.bf16.gmra.mrb[0].mxu0 %v5291
        %v5327 = vpop.f32.mrb[0].mxu0
        %v5328 = vadd.f32 %v5265, %v5327
        %v5329 = vpop.f32.mrb[0].mxu0
        %v5330 = vpop.f32.mrb[0].mxu0
        %v5331 = vpop.f32.mrb[0].mxu0
        %5332 = vdwg.mxu0
        %v5333 = vadd.f32 %v5189, %v5328
        %v5334 = vsel %vm330, %v5333, 0.0
        %5335 = vadd.xlane.f32.xlu0 %v5334
        %v5336 = vpop.xlane.xlu0 %5335
        %v5337 = vmul.f32 %v5336, %v334
        %v5338 = vsub.f32 %v5333, %v5337
        %v5339 = vmul.f32 %v5338, %v5338
        %v5340 = vsel %vm330, %v5339, 0.0
        %5341 = vadd.xlane.f32.xlu0 %v5340
        %v5342 = vpop.xlane.xlu0 %5341
        %v5343 = vmul.f32 %v5342, %v334
        %v5344 = vadd.f32 %v5343, 1e-12
        %v5345 = vrsqrt.pop %v5344
        %v5346 = vmul.f32 %v5338, %v5345
        %v5347 = vlaneseq
        %v5348 = vshrl.u32 %v5347, 7
        %v5349 = vsub.s32 4, %v5348
        %v5350 = vrot.slane %v4536, %v5349
        %v5351 = vmul.f32 %v5346, %v5350
        %v5352 = vlaneseq
        %v5353 = vshrl.u32 %v5352, 7
        %v5354 = vsub.s32 5, %v5353
        %v5355 = vrot.slane %v4536, %v5354
        %v5356 = vadd.f32 %v5351, %v5355
        %v5357 = vsel %vm330, %v5356, 0.0
        %v5358 = vrot.slane %v5357, 4
        %v5359 = vadd.f32 %v5357, %v5358
        %v5360 = vrot.slane %v5359, 2
        %v5361 = vadd.f32 %v5359, %v5360
        %v5362 = vrot.slane %v5361, 1
        %v5363 = vadd.f32 %v5361, %v5362
        %v5364 = vrcp.pop 8.0
        %v5365 = vmul.f32 %v5363, %v5364
        %vm5366 = vcmask 253952
        %5367 = vst.msk [vmem:[%s322] sm:$0x1] %vm5366, %v5365
        %s5368 = sand.u32 %s225, 1
        %s5369 = scalar_lea.sflag [#allocation3], %s5368
        %s5370 = sand.u32 %s225, 1
        %s5371 = scalar_lea.vmem [#allocation2], %s5370
        // Predicated region
        $region57: #{geneformer_forward.1} parent=55 // pred_check
          %p5372 = pneg %p235
        $region58: #{geneformer_forward.1} parent=55 // pred_check_branch
          %5374 = sbr.rel (%p5372) target = $region60
        $region59: #{geneformer_forward.1} parent=55 // pred_region
          %s5376 = ssub.s32 16, 16
          %5377 = vsyncadd %s5369, %s5376
          %s5378 = smul.addr %s23, 16
          %s5379 = scalar_lea.hbm %s9, %s5378
          %s5381 = sshll.u32 %s5371, 4
          %s5382 = int_to_ptr.vmem [resolvable:$true] %s5381
          %5384 = dma.vmem_to_hbm [thread:$0]  %s5382, 16, %s5379, %s5369
        $region60: #{geneformer_forward.1} parent=55 // pred_fallthru
          _
      $region56: #{geneformer_forward.1} parent=5 // pred_fallthru
        _
      %p5385 = scmp.le.s32.totalorder 2, %s18
      // Predicated region
      $region61: #{geneformer_forward.1} parent=5 // pred_check
        %p5386 = pneg %p5385
      $region62: #{geneformer_forward.1} parent=5 // pred_check_branch
        %5388 = sbr.rel (%p5386) target = $region64
      $region63: #{geneformer_forward.1} parent=5 // pred_region
        %s5389 = ssub.s32 %s18, 2
        // Predicated region
        $region65: #{geneformer_forward.1} parent=63 // pred_check
          %p5390 = pneg %p241
        $region66: #{geneformer_forward.1} parent=63 // pred_check_branch
          %5392 = sbr.rel (%p5390) target = $region68
        $region67: #{geneformer_forward.1} parent=63 // pred_region
          %s5393 = sand.u32 %s226, 1
          %s5394 = scalar_lea.sflag [#allocation3], %s5393
          %s5395 = sand.u32 %s226, 1
          %s5396 = scalar_lea.vmem [#allocation2], %s5395
          %5397 = dma.done %s5394, 16
        $region68: #{geneformer_forward.1} parent=63 // pred_fallthru
          _
      $region64: #{geneformer_forward.1} parent=5 // pred_fallthru
        _
    $region6: #{geneformer_forward.1} parent=1 // loop_footer
      %s22 = sadd.s32 1, %s18
    $region7: #{geneformer_forward.1} parent=1 // loop_footer_branch
      %17 = sbr.rel target = $region3
    $region8: #{geneformer_forward.1} parent=1 // loop_exit
      _
    %5398 = vsyncpa [#allocation3], 1
    %s5399 = scalar_lea.sflag [#allocation3], 1
    %5400 = vsyncpa %s5399, 1

</llo_original>
